<compile_context>
chip_gen: v6e
topology: v6e:2x2x1
jax: 0.10.0
libtpu: 0.0.40
codegen_flags: <defaults>
</compile_context>

<pallas_src>
import jax
import jax.numpy as jnp
from jax.experimental import pallas as pl
from jax.experimental.pallas import tpu as pltpu


def _vmem_limit_bytes():
    # Generation-aware scoped-VMEM limit: ~75% of physical per-TC VMEM
    # (~48 MiB on v7x, ~96 MiB on v5e/v6e). Fall back to a v7x-safe 48 MiB.
    try:
        return int(pltpu.get_tpu_info().vmem_capacity_bytes) * 3 // 4
    except Exception:
        return 48 * 1024 * 1024


_VMEM_LIMIT = _vmem_limit_bytes()


def _round_up(x, m):
    return ((x + m - 1) // m) * m


# ----------------------------------------------------------------------------
# Tiled matmul + bias kernel.
# Used for (a) the hoisted input projection  X @ W_ih + b  and (b) the decoder.
# Grid is (col_tiles, row_tiles): the weight block index only changes on the
# OUTER axis, so Pallas keeps the (K, tn) weight tile resident in VMEM across
# the inner row sweep (no per-row-tile weight re-DMA).
# ----------------------------------------------------------------------------
def _matmul_bias_kernel(x_ref, w_ref, b_ref, o_ref):
    o_ref[...] = (jnp.dot(x_ref[...], w_ref[...],
                          preferred_element_type=jnp.float32)
                  + b_ref[...]).astype(o_ref.dtype)


def matmul_bias(x, w, b, *, tm=256, tn=1024, out_dtype=jnp.float32):
    """x: (M, K) bf16; w: (K, N) bf16; b: (1, N) f32 -> (M, N) out_dtype.

    Handles arbitrary M/N by padding to tile-aligned shapes and slicing the
    result back (reviewer correctness concern).  tn stays a multiple of 128
    (lane-dense, unmasked stores); K is kept whole per block.
    """
    M, K = x.shape
    N = w.shape[1]
    tm = min(tm, _round_up(M, 8))
    tn = min(tn, _round_up(N, 128))
    Mp, Np = _round_up(M, tm), _round_up(N, tn)
    if Mp != M:
        x = jnp.pad(x, ((0, Mp - M), (0, 0)))
    if Np != N:
        w = jnp.pad(w, ((0, 0), (0, Np - N)))
        b = jnp.pad(b, ((0, 0), (0, Np - N)))

    grid = (Np // tn, Mp // tm)  # weight tile outer, row tile inner (resident W)
    out = pl.pallas_call(
        _matmul_bias_kernel,
        out_shape=jax.ShapeDtypeStruct((Mp, Np), out_dtype),
        grid=grid,
        in_specs=[
            pl.BlockSpec((tm, K), lambda j, i: (i, 0)),   # activations stream
            pl.BlockSpec((K, tn), lambda j, i: (0, j)),   # weight: resident per j
            pl.BlockSpec((1, tn), lambda j, i: (0, j)),   # bias: resident per j
        ],
        out_specs=pl.BlockSpec((tm, tn), lambda j, i: (i, j)),
        compiler_params=pltpu.CompilerParams(
            dimension_semantics=("parallel", "parallel"),
            vmem_limit_bytes=_VMEM_LIMIT,
        ),
    )(x, w, b)
    if (Mp, Np) != (M, N):
        out = out[:M, :N]
    return out


# ----------------------------------------------------------------------------
# LSTM recurrence kernel.
# grid = (batch_shards, T // Tc); the leading axis is "parallel" so on v7x the
# two TensorCores each run an independent batch half of the recurrence.  Each
# grid step along the time axis consumes Tc timesteps of the precomputed input
# gates and runs an unrolled inner loop.  h/c live in VMEM scratch across the
# time sweep; W_hh is copied HBM->VMEM once at the start of each shard's sweep
# (per-core init, so scratch is never read uninitialized on either core).
# ----------------------------------------------------------------------------
def _lstm_kernel(gx_ref, h0_ref, c0_ref, whh_hbm,
                 out_ref, hN_ref, cN_ref,
                 h_sc, c_sc, whh_sc, dma_sem):
    t_blk = pl.program_id(1)              # time-chunk index (sequential axis)
    Tc = gx_ref.shape[0]
    H = h_sc.shape[-1]

    @pl.when(t_blk == 0)
    def _():
        # Runs at the start of every batch shard's time sweep -> each
        # TensorCore initializes its own scratch + resident W_hh copy.
        cp = pltpu.make_async_copy(whh_hbm, whh_sc, dma_sem)
        cp.start()
        h_sc[...] = h0_ref[...]
        c_sc[...] = c0_ref[...]
        cp.wait()

    def step(t, carry):
        h = h_sc[...]                     # (Bs, H) f32
        c = c_sc[...]
        # gates = gates_x[t] + h @ W_hh  (bf16 MXU operands, f32 accumulation).
        # W_hh is streamed from VMEM per vmatmul (not pinned in vregs).
        gates = gx_ref[t].astype(jnp.float32) + jnp.dot(
            h.astype(jnp.bfloat16), whh_sc[...],
            preferred_element_type=jnp.float32)
        # Element-wise gate math stays in f32 (v5e has no bf16 VPU/EUP path).
        # Gate order i, f, g, o (PyTorch); H is 128-aligned so slices are free.
        i_g = jax.nn.sigmoid(gates[:, 0 * H:1 * H])
        f_g = jax.nn.sigmoid(gates[:, 1 * H:2 * H])
        g_g = jnp.tanh(gates[:, 2 * H:3 * H])
        o_g = jax.nn.sigmoid(gates[:, 3 * H:4 * H])
        c_new = f_g * c + i_g * g_g
        h_new = o_g * jnp.tanh(c_new)
        c_sc[...] = c_new
        h_sc[...] = h_new
        out_ref[t] = h_new.astype(out_ref.dtype)   # bf16 hidden-state output
        return carry

    jax.lax.fori_loop(0, Tc, step, 0, unroll=True)

    # Final states written only on the last time step of this shard.
    @pl.when(t_blk == pl.num_programs(1) - 1)
    def _():
        hN_ref[...] = h_sc[...]
        cN_ref[...] = c_sc[...]


def lstm_layer(gates_x, h0, c0, w_hh, *, time_chunk=16, batch_shards=None):
    """gates_x: (T, B, 4H) bf16 (= X @ W_ih + b, precomputed);
    h0/c0: (B, H) f32; w_hh: (H, 4H) bf16.
    Returns (hidden_states (T,B,H) bf16, final_h f32, final_c f32)."""
    T, B, G = gates_x.shape
    H = h0.shape[-1]
    assert G == 4 * H

    Tc = min(time_chunk, T)
    while T % Tc:                          # largest divisor of T <= time_chunk
        Tc -= 1

    if batch_shards is None:
        # Shard batch across v7x's 2 TCs only if each half stays sublane-aligned.
        batch_shards = 2 if (B % 2 == 0 and B // 2 >= 8) else 1
    S = batch_shards
    assert B % S == 0
    Bs = B // S

    out_shapes = (
        jax.ShapeDtypeStruct((T, B, H), jnp.bfloat16),   # all hidden states
        jax.ShapeDtypeStruct((B, H), jnp.float32),       # final h
        jax.ShapeDtypeStruct((B, H), jnp.float32),       # final c
    )

    return pl.pallas_call(
        _lstm_kernel,
        out_shape=out_shapes,
        grid=(S, T // Tc),
        in_specs=[
            pl.BlockSpec((Tc, Bs, G), lambda s, n: (n, s, 0)),   # gates_x chunk
            pl.BlockSpec((Bs, H), lambda s, n: (s, 0)),          # h0 shard
            pl.BlockSpec((Bs, H), lambda s, n: (s, 0)),          # c0 shard
            pl.BlockSpec(memory_space=pl.ANY),                   # W_hh stays in HBM
        ],
        out_specs=[
            pl.BlockSpec((Tc, Bs, H), lambda s, n: (n, s, 0)),
            pl.BlockSpec((Bs, H), lambda s, n: (s, 0)),
            pl.BlockSpec((Bs, H), lambda s, n: (s, 0)),
        ],
        scratch_shapes=[
            pltpu.VMEM((Bs, H), jnp.float32),        # h carry
            pltpu.VMEM((Bs, H), jnp.float32),        # c carry
            pltpu.VMEM((H, G), jnp.bfloat16),        # resident W_hh (1 copy)
            pltpu.SemaphoreType.DMA(()),             # W_hh copy semaphore
        ],
        compiler_params=pltpu.CompilerParams(
            dimension_semantics=("parallel", "arbitrary"),  # batch ∥, time seq.
            vmem_limit_bytes=_VMEM_LIMIT,
        ),
    )(gates_x, h0, c0, w_hh)


# ----------------------------------------------------------------------------
# Full RNNModel forward (eval mode, nlayers=1 as in the module's __init__).
# ----------------------------------------------------------------------------
@jax.jit
def rnn_model_forward(tokens, h0, c0, params):
    # Embedding lookup (gather) kept in plain JAX glue; enc_w is bf16 so the
    # gather already yields bf16 (no wrapper-level cast round trip).
    emb = jnp.take(params["enc_w"], tokens, axis=0)          # (T, B, ninp) bf16
    T, B, ninp = emb.shape
    H = h0.shape[-1]
    # idrop / hdrop / odrop / edrop are identity in eval mode.

    # Hoisted input projection: ONE large MXU matmul over all T*B rows,
    # emitted directly in bf16 (halves HBM round trip + LSTM VMEM footprint).
    gates_x = matmul_bias(
        emb.reshape(T * B, ninp),
        params["w_ih"], params["b"],
        out_dtype=jnp.bfloat16,
    ).reshape(T, B, 4 * H)

    raw_output, h_new, c_new = lstm_layer(
        gates_x, h0, c0, params["w_hh"], time_chunk=16)

    # Tiled decoder: (T*B, H) bf16 @ (H, ntoken) bf16 + bias -> f32 logits.
    result = matmul_bias(
        raw_output.reshape(T * B, H),
        params["dec_w"], params["dec_b"],
        out_dtype=jnp.float32,
    )
    return result, (h_new, c_new)


def init_params(key, ntoken, ninp, nhid):
    k = jax.random.split(key, 6)
    initrange = 0.1
    stdv = 1.0 / (float(nhid) ** 0.5)
    enc_w = jax.random.uniform(k[0], (ntoken, ninp), jnp.float32,
                               -initrange, initrange)
    dec_w = jax.random.uniform(k[1], (nhid, ntoken), jnp.float32,
                               -initrange, initrange)   # decoder.weight.T
    dec_b = jnp.zeros((1, ntoken), jnp.float32)
    w_ih = jax.random.uniform(k[2], (ninp, 4 * nhid), jnp.float32, -stdv, stdv)
    w_hh = jax.random.uniform(k[3], (nhid, 4 * nhid), jnp.float32, -stdv, stdv)
    b_ih = jax.random.uniform(k[4], (4 * nhid,), jnp.float32, -stdv, stdv)
    b_hh = jax.random.uniform(k[5], (4 * nhid,), jnp.float32, -stdv, stdv)
    # Weights stored in bf16 (MXU operands); biases / accumulation stay f32.
    return dict(
        enc_w=enc_w.astype(jnp.bfloat16),
        dec_w=dec_w.astype(jnp.bfloat16),
        dec_b=dec_b,
        w_ih=w_ih.astype(jnp.bfloat16),
        w_hh=w_hh.astype(jnp.bfloat16),
        b=(b_ih + b_hh).reshape(1, 4 * nhid),
    )


def reference_forward(tokens, h0, c0, params):
    """Pure-JAX reference mirroring the kernel's bf16-operand / f32-accumulate
    recipe (bf16 gates_x, bf16 hidden states)."""
    emb = jnp.take(params["enc_w"], tokens, axis=0)          # bf16
    T, B, ninp = emb.shape
    H = h0.shape[-1]
    gx = (jnp.dot(emb.reshape(T * B, ninp), params["w_ih"],
                  preferred_element_type=jnp.float32)
          + params["b"]).astype(jnp.bfloat16).reshape(T, B, 4 * H)

    def step(carry, g_x):
        h, c = carry
        gates = g_x.astype(jnp.float32) + jnp.dot(
            h.astype(jnp.bfloat16), params["w_hh"],
            preferred_element_type=jnp.float32)
        i = jax.nn.sigmoid(gates[:, 0 * H:1 * H])
        f = jax.nn.sigmoid(gates[:, 1 * H:2 * H])
        g = jnp.tanh(gates[:, 2 * H:3 * H])
        o = jax.nn.sigmoid(gates[:, 3 * H:4 * H])
        c = f * c + i * g
        h = o * jnp.tanh(c)
        return (h, c), h.astype(jnp.bfloat16)

    (hN, cN), outs = jax.lax.scan(step, (h0, c0), gx)
    res = (jnp.dot(outs.reshape(T * B, H), params["dec_w"],
                   preferred_element_type=jnp.float32) + params["dec_b"])
    return res, (hN, cN)


if __name__ == "__main__":
    # Small but TPU-tile-aligned shapes: H multiple of 128, B multiple of 16
    # (so the v7x batch-shard path with B/2 >= 8 is exercised), vocab multiple
    # of 128 (lane-dense decoder tiles).
    ntoken, ninp, nhid = 512, 128, 128
    T, B = 16, 16

    key = jax.random.PRNGKey(0)
    kp, kt, kh, kc = jax.random.split(key, 4)
    params = init_params(kp, ntoken, ninp, nhid)

    tokens = jax.random.randint(kt, (T, B), 0, ntoken, dtype=jnp.int32)
    h0 = jax.random.normal(kh, (B, nhid), jnp.float32)   # init_hidden: randn
    c0 = jax.random.normal(kc, (B, nhid), jnp.float32)

    result, (hN, cN) = rnn_model_forward(tokens, h0, c0, params)
    jax.block_until_ready((result, hN, cN))

    ref_res, (ref_h, ref_c) = reference_forward(tokens, h0, c0, params)
    assert result.shape == (T * B, ntoken)
    assert hN.shape == (B, nhid) and cN.shape == (B, nhid)
    assert jnp.allclose(result, ref_res, atol=2e-2, rtol=2e-2), \
        float(jnp.max(jnp.abs(result - ref_res)))
    assert jnp.allclose(hN, ref_h, atol=2e-2, rtol=2e-2)
    assert jnp.allclose(cN, ref_c, atol=2e-2, rtol=2e-2)

    print("KERNEL_OK")
</pallas_src>

<mosaic_0001>
module attributes {stable_mosaic.version = 11 : i64} {
  func.func @_matmul_bias_kernel(%arg0: i32, %arg1: i32, %arg2: memref<256x128xbf16, #tpu.memory_space<vmem>>, %arg3: memref<128x512xbf16, #tpu.memory_space<vmem>>, %arg4: memref<1x512xf32, #tpu.memory_space<vmem>>, %arg5: memref<256x512xbf16, #tpu.memory_space<vmem>>) attributes {dimension_semantics = [#tpu.dimension_semantics<parallel>, #tpu.dimension_semantics<parallel>], iteration_bounds = array<i64: 1, 1>, scalar_prefetch = 0 : i64, scratch_operands = 0 : i64, tpu.core_type = #tpu.core_type<tc>, window_params = [{transform_indices = @transform_0, window_bounds = array<i64: 256, 128>}, {transform_indices = @transform_1, window_bounds = array<i64: 128, 512>}, {transform_indices = @transform_2, window_bounds = array<i64: 1, 512>}, {transform_indices = @transform_3, window_bounds = array<i64: 256, 512>}]} {
    %c0 = arith.constant 0 : index
    %c0_0 = arith.constant 0 : index
    %0 = vector.load %arg2[%c0, %c0_0] : memref<256x128xbf16, #tpu.memory_space<vmem>>, vector<256x128xbf16>
    %c0_1 = arith.constant 0 : index
    %c0_2 = arith.constant 0 : index
    %1 = vector.load %arg3[%c0_1, %c0_2] : memref<128x512xbf16, #tpu.memory_space<vmem>>, vector<128x512xbf16>
    %cst = arith.constant dense<0.000000e+00> : vector<256x512xf32>
    %2 = tpu.matmul %0, %1, %cst {dimension_numbers = #tpu.dot_dimension_numbers<[1], [0], [0], [1], [0, 0, 1, 1], [], []>} : vector<256x128xbf16>, vector<128x512xbf16>, vector<256x512xf32> -> vector<256x512xf32>
    %c0_3 = arith.constant 0 : index
    %c0_4 = arith.constant 0 : index
    %3 = vector.load %arg4[%c0_3, %c0_4] : memref<1x512xf32, #tpu.memory_space<vmem>>, vector<1x512xf32>
    %4 = vector.broadcast %3 : vector<1x512xf32> to vector<256x512xf32>
    %5 = arith.addf %2, %4 : vector<256x512xf32>
    %6 = arith.truncf %5 : vector<256x512xf32> to vector<256x512xbf16>
    %c0_5 = arith.constant 0 : index
    %c0_6 = arith.constant 0 : index
    %7 = vector.load %arg5[%c0_5, %c0_6] : memref<256x512xbf16, #tpu.memory_space<vmem>>, vector<256x512xbf16>
    tpu.vector_store %arg5[%c0_5, %c0_6], %6 {strides = array<i32>} : memref<256x512xbf16, #tpu.memory_space<vmem>>, vector<256x512xbf16>,
    return
  }
  func.func @transform_0(%arg0: i32, %arg1: i32) -> (i32, i32) {
    %c0_i32 = arith.constant 0 : i32
    %c0_i32_0 = arith.constant 0 : i32
    return %arg1, %c0_i32 : i32, i32
  }
  func.func @transform_1(%arg0: i32, %arg1: i32) -> (i32, i32) {
    %c0_i32 = arith.constant 0 : i32
    %c0_i32_0 = arith.constant 0 : i32
    return %c0_i32, %arg0 : i32, i32
  }
  func.func @transform_2(%arg0: i32, %arg1: i32) -> (i32, i32) {
    %c0_i32 = arith.constant 0 : i32
    %c0_i32_0 = arith.constant 0 : i32
    return %c0_i32, %arg0 : i32, i32
  }
  func.func @transform_3(%arg0: i32, %arg1: i32) -> (i32, i32) {
    %c0_i32 = arith.constant 0 : i32
    return %arg1, %arg0 : i32, i32
  }
}

module attributes {stable_mosaic.version = 11 : i64} {
  func.func @_matmul_bias_kernel(%arg0: i32, %arg1: i32, %arg2: memref<256x128xbf16, #tpu.memory_space<vmem>>, %arg3: memref<128x512xbf16, #tpu.memory_space<vmem>>, %arg4: memref<1x512xf32, #tpu.memory_space<vmem>>, %arg5: memref<256x512xf32, #tpu.memory_space<vmem>>) attributes {dimension_semantics = [#tpu.dimension_semantics<parallel>, #tpu.dimension_semantics<parallel>], iteration_bounds = array<i64: 1, 1>, scalar_prefetch = 0 : i64, scratch_operands = 0 : i64, tpu.core_type = #tpu.core_type<tc>, window_params = [{transform_indices = @transform_0, window_bounds = array<i64: 256, 128>}, {transform_indices = @transform_1, window_bounds = array<i64: 128, 512>}, {transform_indices = @transform_2, window_bounds = array<i64: 1, 512>}, {transform_indices = @transform_3, window_bounds = array<i64: 256, 512>}]} {
    %c0 = arith.constant 0 : index
    %c0_0 = arith.constant 0 : index
    %0 = vector.load %arg2[%c0, %c0_0] : memref<256x128xbf16, #tpu.memory_space<vmem>>, vector<256x128xbf16>
    %c0_1 = arith.constant 0 : index
    %c0_2 = arith.constant 0 : index
    %1 = vector.load %arg3[%c0_1, %c0_2] : memref<128x512xbf16, #tpu.memory_space<vmem>>, vector<128x512xbf16>
    %cst = arith.constant dense<0.000000e+00> : vector<256x512xf32>
    %2 = tpu.matmul %0, %1, %cst {dimension_numbers = #tpu.dot_dimension_numbers<[1], [0], [0], [1], [0, 0, 1, 1], [], []>} : vector<256x128xbf16>, vector<128x512xbf16>, vector<256x512xf32> -> vector<256x512xf32>
    %c0_3 = arith.constant 0 : index
    %c0_4 = arith.constant 0 : index
    %3 = vector.load %arg4[%c0_3, %c0_4] : memref<1x512xf32, #tpu.memory_space<vmem>>, vector<1x512xf32>
    %4 = vector.broadcast %3 : vector<1x512xf32> to vector<256x512xf32>
    %5 = arith.addf %2, %4 : vector<256x512xf32>
    %c0_5 = arith.constant 0 : index
    %c0_6 = arith.constant 0 : index
    %6 = vector.load %arg5[%c0_5, %c0_6] : memref<256x512xf32, #tpu.memory_space<vmem>>, vector<256x512xf32>
    tpu.vector_store %arg5[%c0_5, %c0_6], %5 {strides = array<i32>} : memref<256x512xf32, #tpu.memory_space<vmem>>, vector<256x512xf32>,
    return
  }
  func.func @transform_0(%arg0: i32, %arg1: i32) -> (i32, i32) {
    %c0_i32 = arith.constant 0 : i32
    %c0_i32_0 = arith.constant 0 : i32
    return %arg1, %c0_i32 : i32, i32
  }
  func.func @transform_1(%arg0: i32, %arg1: i32) -> (i32, i32) {
    %c0_i32 = arith.constant 0 : i32
    %c0_i32_0 = arith.constant 0 : i32
    return %c0_i32, %arg0 : i32, i32
  }
  func.func @transform_2(%arg0: i32, %arg1: i32) -> (i32, i32) {
    %c0_i32 = arith.constant 0 : i32
    %c0_i32_0 = arith.constant 0 : i32
    return %c0_i32, %arg0 : i32, i32
  }
  func.func @transform_3(%arg0: i32, %arg1: i32) -> (i32, i32) {
    %c0_i32 = arith.constant 0 : i32
    return %arg1, %arg0 : i32, i32
  }
}

module attributes {stable_mosaic.version = 11 : i64} {
  func.func @_lstm_kernel(%arg0: i32, %arg1: i32, %arg2: memref<16x8x512xbf16, #tpu.memory_space<vmem>>, %arg3: memref<8x128xf32, #tpu.memory_space<vmem>>, %arg4: memref<8x128xf32, #tpu.memory_space<vmem>>, %arg5: memref<128x512xbf16, #tpu.memory_space<any>>, %arg6: memref<16x8x128xbf16, #tpu.memory_space<vmem>>, %arg7: memref<8x128xf32, #tpu.memory_space<vmem>>, %arg8: memref<8x128xf32, #tpu.memory_space<vmem>>, %arg9: memref<8x128xf32, #tpu.memory_space<vmem>>, %arg10: memref<8x128xf32, #tpu.memory_space<vmem>>, %arg11: memref<128x512xbf16, #tpu.memory_space<vmem>>, %arg12: memref<!tpu.dma_semaphore, #tpu.memory_space<semaphore_mem>>) attributes {dimension_semantics = [#tpu.dimension_semantics<parallel>, #tpu.dimension_semantics<arbitrary>], iteration_bounds = array<i64: 2, 1>, scalar_prefetch = 0 : i64, scratch_operands = 4 : i64, tpu.core_type = #tpu.core_type<tc>, window_params = [{transform_indices = @transform_0, window_bounds = array<i64: 16, 8, 512>}, {transform_indices = @transform_1, window_bounds = array<i64: 8, 128>}, {transform_indices = @transform_2, window_bounds = array<i64: 8, 128>}, {}, {transform_indices = @transform_4, window_bounds = array<i64: 16, 8, 128>}, {transform_indices = @transform_5, window_bounds = array<i64: 8, 128>}, {transform_indices = @transform_6, window_bounds = array<i64: 8, 128>}]} {
    %c0_i32 = arith.constant 0 : i32
    %0 = arith.cmpi eq, %arg1, %c0_i32 : i32
    %1 = arith.extui %0 : i1 to i32
    %c0_i32_0 = arith.constant 0 : i32
    %2 = arith.cmpi ne, %1, %c0_i32_0 : i32
    scf.if %2 {
      tpu.enqueue_dma source(%arg5 : memref<128x512xbf16, #tpu.memory_space<any>>) target(%arg11 : memref<128x512xbf16, #tpu.memory_space<vmem>>) target_semaphore(%arg12 : memref<!tpu.dma_semaphore, #tpu.memory_space<semaphore_mem>>)
      %c0_290 = arith.constant 0 : index
      %c0_291 = arith.constant 0 : index
      %678 = vector.load %arg3[%c0_290, %c0_291] : memref<8x128xf32, #tpu.memory_space<vmem>>, vector<8x128xf32>
      %c0_292 = arith.constant 0 : index
      %c0_293 = arith.constant 0 : index
      %679 = vector.load %arg9[%c0_292, %c0_293] : memref<8x128xf32, #tpu.memory_space<vmem>>, vector<8x128xf32>
      tpu.vector_store %arg9[%c0_292, %c0_293], %678 {strides = array<i32>} : memref<8x128xf32, #tpu.memory_space<vmem>>, vector<8x128xf32>,
      %c0_294 = arith.constant 0 : index
      %c0_295 = arith.constant 0 : index
      %680 = vector.load %arg4[%c0_294, %c0_295] : memref<8x128xf32, #tpu.memory_space<vmem>>, vector<8x128xf32>
      %c0_296 = arith.constant 0 : index
      %c0_297 = arith.constant 0 : index
      %681 = vector.load %arg10[%c0_296, %c0_297] : memref<8x128xf32, #tpu.memory_space<vmem>>, vector<8x128xf32>
      tpu.vector_store %arg10[%c0_296, %c0_297], %680 {strides = array<i32>} : memref<8x128xf32, #tpu.memory_space<vmem>>, vector<8x128xf32>,
      tpu.wait_dma2 semaphore(%arg12 : memref<!tpu.dma_semaphore, #tpu.memory_space<semaphore_mem>>) src(%arg5 : memref<128x512xbf16, #tpu.memory_space<any>>) dst(%arg11 : memref<128x512xbf16, #tpu.memory_space<vmem>>)
    } else {
    }
    %c0_i32_1 = arith.constant 0 : i32
    %c0 = arith.constant 0 : index
    %c0_2 = arith.constant 0 : index
    %3 = vector.load %arg9[%c0, %c0_2] : memref<8x128xf32, #tpu.memory_space<vmem>>, vector<8x128xf32>
    %c0_3 = arith.constant 0 : index
    %c0_4 = arith.constant 0 : index
    %4 = vector.load %arg10[%c0_3, %c0_4] : memref<8x128xf32, #tpu.memory_space<vmem>>, vector<8x128xf32>
    %5 = arith.index_cast %c0_i32_1 : i32 to index
    %c0_5 = arith.constant 0 : index
    %c0_6 = arith.constant 0 : index
    %6 = vector.load %arg2[%5, %c0_5, %c0_6] : memref<16x8x512xbf16, #tpu.memory_space<vmem>>, vector<1x8x512xbf16>
    %7 = vector.shape_cast %6 : vector<1x8x512xbf16> to vector<8x512xbf16>
    %8 = arith.extf %7 : vector<8x512xbf16> to vector<8x512xf32>
    %9 = arith.truncf %3 : vector<8x128xf32> to vector<8x128xbf16>
    %c0_7 = arith.constant 0 : index
    %c0_8 = arith.constant 0 : index
    %10 = vector.load %arg11[%c0_7, %c0_8] : memref<128x512xbf16, #tpu.memory_space<vmem>>, vector<128x512xbf16>
    %cst = arith.constant dense<0.000000e+00> : vector<8x512xf32>
    %11 = tpu.matmul %9, %10, %cst {dimension_numbers = #tpu.dot_dimension_numbers<[1], [0], [0], [1], [0, 0, 1, 1], [], []>} : vector<8x128xbf16>, vector<128x512xbf16>, vector<8x512xf32> -> vector<8x512xf32>
    %12 = arith.addf %8, %11 : vector<8x512xf32>
    %13 = vector.extract_strided_slice %12 {offsets = [0, 0], sizes = [8, 128], strides = [1, 1]} : vector<8x512xf32> to vector<8x128xf32>
    %14 = arith.negf %13 : vector<8x128xf32>
    %15 = math.exp %14 : vector<8x128xf32>
    %cst_9 = arith.constant 1.000000e+00 : f32
    %16 = vector.broadcast %cst_9 : f32 to vector<8x128xf32>
    %17 = arith.addf %16, %15 : vector<8x128xf32>
    %18 = arith.divf %16, %17 : vector<8x128xf32>
    %19 = vector.extract_strided_slice %12 {offsets = [0, 128], sizes = [8, 128], strides = [1, 1]} : vector<8x512xf32> to vector<8x128xf32>
    %20 = arith.negf %19 : vector<8x128xf32>
    %21 = math.exp %20 : vector<8x128xf32>
    %cst_10 = arith.constant 1.000000e+00 : f32
    %22 = vector.broadcast %cst_10 : f32 to vector<8x128xf32>
    %23 = arith.addf %22, %21 : vector<8x128xf32>
    %24 = arith.divf %22, %23 : vector<8x128xf32>
    %25 = vector.extract_strided_slice %12 {offsets = [0, 256], sizes = [8, 128], strides = [1, 1]} : vector<8x512xf32> to vector<8x128xf32>
    %26 = math.tanh %25 : vector<8x128xf32>
    %27 = vector.extract_strided_slice %12 {offsets = [0, 384], sizes = [8, 128], strides = [1, 1]} : vector<8x512xf32> to vector<8x128xf32>
    %28 = arith.negf %27 : vector<8x128xf32>
    %29 = math.exp %28 : vector<8x128xf32>
    %cst_11 = arith.constant 1.000000e+00 : f32
    %30 = vector.broadcast %cst_11 : f32 to vector<8x128xf32>
    %31 = arith.addf %30, %29 : vector<8x128xf32>
    %32 = arith.divf %30, %31 : vector<8x128xf32>
    %33 = arith.mulf %24, %4 : vector<8x128xf32>
    %34 = arith.mulf %18, %26 : vector<8x128xf32>
    %35 = arith.addf %33, %34 : vector<8x128xf32>
    %36 = math.tanh %35 : vector<8x128xf32>
    %37 = arith.mulf %32, %36 : vector<8x128xf32>
    %c0_12 = arith.constant 0 : index
    %c0_13 = arith.constant 0 : index
    %38 = vector.load %arg10[%c0_12, %c0_13] : memref<8x128xf32, #tpu.memory_space<vmem>>, vector<8x128xf32>
    tpu.vector_store %arg10[%c0_12, %c0_13], %35 {strides = array<i32>} : memref<8x128xf32, #tpu.memory_space<vmem>>, vector<8x128xf32>,
    %c0_14 = arith.constant 0 : index
    %c0_15 = arith.constant 0 : index
    %39 = vector.load %arg9[%c0_14, %c0_15] : memref<8x128xf32, #tpu.memory_space<vmem>>, vector<8x128xf32>
    tpu.vector_store %arg9[%c0_14, %c0_15], %37 {strides = array<i32>} : memref<8x128xf32, #tpu.memory_space<vmem>>, vector<8x128xf32>,
    %40 = arith.truncf %37 : vector<8x128xf32> to vector<8x128xbf16>
    %41 = arith.index_cast %c0_i32_1 : i32 to index
    %c0_16 = arith.constant 0 : index
    %c0_17 = arith.constant 0 : index
    %42 = vector.load %arg6[%41, %c0_16, %c0_17] : memref<16x8x128xbf16, #tpu.memory_space<vmem>>, vector<1x8x128xbf16>
    %43 = vector.shape_cast %42 : vector<1x8x128xbf16> to vector<8x128xbf16>
    %44 = vector.shape_cast %40 : vector<8x128xbf16> to vector<1x8x128xbf16>
    tpu.vector_store %arg6[%41, %c0_16, %c0_17], %44 {strides = array<i32>} : memref<16x8x128xbf16, #tpu.memory_space<vmem>>, vector<1x8x128xbf16>,
    %c1_i32 = arith.constant 1 : i32
    %c0_18 = arith.constant 0 : index
    %c0_19 = arith.constant 0 : index
    %45 = vector.load %arg9[%c0_18, %c0_19] : memref<8x128xf32, #tpu.memory_space<vmem>>, vector<8x128xf32>
    %c0_20 = arith.constant 0 : index
    %c0_21 = arith.constant 0 : index
    %46 = vector.load %arg10[%c0_20, %c0_21] : memref<8x128xf32, #tpu.memory_space<vmem>>, vector<8x128xf32>
    %47 = arith.index_cast %c1_i32 : i32 to index
    %c0_22 = arith.constant 0 : index
    %c0_23 = arith.constant 0 : index
    %48 = vector.load %arg2[%47, %c0_22, %c0_23] : memref<16x8x512xbf16, #tpu.memory_space<vmem>>, vector<1x8x512xbf16>
    %49 = vector.shape_cast %48 : vector<1x8x512xbf16> to vector<8x512xbf16>
    %50 = arith.extf %49 : vector<8x512xbf16> to vector<8x512xf32>
    %51 = arith.truncf %45 : vector<8x128xf32> to vector<8x128xbf16>
    %c0_24 = arith.constant 0 : index
    %c0_25 = arith.constant 0 : index
    %52 = vector.load %arg11[%c0_24, %c0_25] : memref<128x512xbf16, #tpu.memory_space<vmem>>, vector<128x512xbf16>
    %cst_26 = arith.constant dense<0.000000e+00> : vector<8x512xf32>
    %53 = tpu.matmul %51, %52, %cst_26 {dimension_numbers = #tpu.dot_dimension_numbers<[1], [0], [0], [1], [0, 0, 1, 1], [], []>} : vector<8x128xbf16>, vector<128x512xbf16>, vector<8x512xf32> -> vector<8x512xf32>
    %54 = arith.addf %50, %53 : vector<8x512xf32>
    %55 = vector.extract_strided_slice %54 {offsets = [0, 0], sizes = [8, 128], strides = [1, 1]} : vector<8x512xf32> to vector<8x128xf32>
    %56 = arith.negf %55 : vector<8x128xf32>
    %57 = math.exp %56 : vector<8x128xf32>
    %cst_27 = arith.constant 1.000000e+00 : f32
    %58 = vector.broadcast %cst_27 : f32 to vector<8x128xf32>
    %59 = arith.addf %58, %57 : vector<8x128xf32>
    %60 = arith.divf %58, %59 : vector<8x128xf32>
    %61 = vector.extract_strided_slice %54 {offsets = [0, 128], sizes = [8, 128], strides = [1, 1]} : vector<8x512xf32> to vector<8x128xf32>
    %62 = arith.negf %61 : vector<8x128xf32>
    %63 = math.exp %62 : vector<8x128xf32>
    %cst_28 = arith.constant 1.000000e+00 : f32
    %64 = vector.broadcast %cst_28 : f32 to vector<8x128xf32>
    %65 = arith.addf %64, %63 : vector<8x128xf32>
    %66 = arith.divf %64, %65 : vector<8x128xf32>
    %67 = vector.extract_strided_slice %54 {offsets = [0, 256], sizes = [8, 128], strides = [1, 1]} : vector<8x512xf32> to vector<8x128xf32>
    %68 = math.tanh %67 : vector<8x128xf32>
    %69 = vector.extract_strided_slice %54 {offsets = [0, 384], sizes = [8, 128], strides = [1, 1]} : vector<8x512xf32> to vector<8x128xf32>
    %70 = arith.negf %69 : vector<8x128xf32>
    %71 = math.exp %70 : vector<8x128xf32>
    %cst_29 = arith.constant 1.000000e+00 : f32
    %72 = vector.broadcast %cst_29 : f32 to vector<8x128xf32>
    %73 = arith.addf %72, %71 : vector<8x128xf32>
    %74 = arith.divf %72, %73 : vector<8x128xf32>
    %75 = arith.mulf %66, %46 : vector<8x128xf32>
    %76 = arith.mulf %60, %68 : vector<8x128xf32>
    %77 = arith.addf %75, %76 : vector<8x128xf32>
    %78 = math.tanh %77 : vector<8x128xf32>
    %79 = arith.mulf %74, %78 : vector<8x128xf32>
    %c0_30 = arith.constant 0 : index
    %c0_31 = arith.constant 0 : index
    %80 = vector.load %arg10[%c0_30, %c0_31] : memref<8x128xf32, #tpu.memory_space<vmem>>, vector<8x128xf32>
    tpu.vector_store %arg10[%c0_30, %c0_31], %77 {strides = array<i32>} : memref<8x128xf32, #tpu.memory_space<vmem>>, vector<8x128xf32>,
    %c0_32 = arith.constant 0 : index
    %c0_33 = arith.constant 0 : index
    %81 = vector.load %arg9[%c0_32, %c0_33] : memref<8x128xf32, #tpu.memory_space<vmem>>, vector<8x128xf32>
    tpu.vector_store %arg9[%c0_32, %c0_33], %79 {strides = array<i32>} : memref<8x128xf32, #tpu.memory_space<vmem>>, vector<8x128xf32>,
    %82 = arith.truncf %79 : vector<8x128xf32> to vector<8x128xbf16>
    %83 = arith.index_cast %c1_i32 : i32 to index
    %c0_34 = arith.constant 0 : index
    %c0_35 = arith.constant 0 : index
    %84 = vector.load %arg6[%83, %c0_34, %c0_35] : memref<16x8x128xbf16, #tpu.memory_space<vmem>>, vector<1x8x128xbf16>
    %85 = vector.shape_cast %84 : vector<1x8x128xbf16> to vector<8x128xbf16>
    %86 = vector.shape_cast %82 : vector<8x128xbf16> to vector<1x8x128xbf16>
    tpu.vector_store %arg6[%83, %c0_34, %c0_35], %86 {strides = array<i32>} : memref<16x8x128xbf16, #tpu.memory_space<vmem>>, vector<1x8x128xbf16>,
    %c2_i32 = arith.constant 2 : i32
    %c0_36 = arith.constant 0 : index
    %c0_37 = arith.constant 0 : index
    %87 = vector.load %arg9[%c0_36, %c0_37] : memref<8x128xf32, #tpu.memory_space<vmem>>, vector<8x128xf32>
    %c0_38 = arith.constant 0 : index
    %c0_39 = arith.constant 0 : index
    %88 = vector.load %arg10[%c0_38, %c0_39] : memref<8x128xf32, #tpu.memory_space<vmem>>, vector<8x128xf32>
    %89 = arith.index_cast %c2_i32 : i32 to index
    %c0_40 = arith.constant 0 : index
    %c0_41 = arith.constant 0 : index
    %90 = vector.load %arg2[%89, %c0_40, %c0_41] : memref<16x8x512xbf16, #tpu.memory_space<vmem>>, vector<1x8x512xbf16>
    %91 = vector.shape_cast %90 : vector<1x8x512xbf16> to vector<8x512xbf16>
    %92 = arith.extf %91 : vector<8x512xbf16> to vector<8x512xf32>
    %93 = arith.truncf %87 : vector<8x128xf32> to vector<8x128xbf16>
    %c0_42 = arith.constant 0 : index
    %c0_43 = arith.constant 0 : index
    %94 = vector.load %arg11[%c0_42, %c0_43] : memref<128x512xbf16, #tpu.memory_space<vmem>>, vector<128x512xbf16>
    %cst_44 = arith.constant dense<0.000000e+00> : vector<8x512xf32>
    %95 = tpu.matmul %93, %94, %cst_44 {dimension_numbers = #tpu.dot_dimension_numbers<[1], [0], [0], [1], [0, 0, 1, 1], [], []>} : vector<8x128xbf16>, vector<128x512xbf16>, vector<8x512xf32> -> vector<8x512xf32>
    %96 = arith.addf %92, %95 : vector<8x512xf32>
    %97 = vector.extract_strided_slice %96 {offsets = [0, 0], sizes = [8, 128], strides = [1, 1]} : vector<8x512xf32> to vector<8x128xf32>
    %98 = arith.negf %97 : vector<8x128xf32>
    %99 = math.exp %98 : vector<8x128xf32>
    %cst_45 = arith.constant 1.000000e+00 : f32
    %100 = vector.broadcast %cst_45 : f32 to vector<8x128xf32>
    %101 = arith.addf %100, %99 : vector<8x128xf32>
    %102 = arith.divf %100, %101 : vector<8x128xf32>
    %103 = vector.extract_strided_slice %96 {offsets = [0, 128], sizes = [8, 128], strides = [1, 1]} : vector<8x512xf32> to vector<8x128xf32>
    %104 = arith.negf %103 : vector<8x128xf32>
    %105 = math.exp %104 : vector<8x128xf32>
    %cst_46 = arith.constant 1.000000e+00 : f32
    %106 = vector.broadcast %cst_46 : f32 to vector<8x128xf32>
    %107 = arith.addf %106, %105 : vector<8x128xf32>
    %108 = arith.divf %106, %107 : vector<8x128xf32>
    %109 = vector.extract_strided_slice %96 {offsets = [0, 256], sizes = [8, 128], strides = [1, 1]} : vector<8x512xf32> to vector<8x128xf32>
    %110 = math.tanh %109 : vector<8x128xf32>
    %111 = vector.extract_strided_slice %96 {offsets = [0, 384], sizes = [8, 128], strides = [1, 1]} : vector<8x512xf32> to vector<8x128xf32>
    %112 = arith.negf %111 : vector<8x128xf32>
    %113 = math.exp %112 : vector<8x128xf32>
    %cst_47 = arith.constant 1.000000e+00 : f32
    %114 = vector.broadcast %cst_47 : f32 to vector<8x128xf32>
    %115 = arith.addf %114, %113 : vector<8x128xf32>
    %116 = arith.divf %114, %115 : vector<8x128xf32>
    %117 = arith.mulf %108, %88 : vector<8x128xf32>
    %118 = arith.mulf %102, %110 : vector<8x128xf32>
    %119 = arith.addf %117, %118 : vector<8x128xf32>
    %120 = math.tanh %119 : vector<8x128xf32>
    %121 = arith.mulf %116, %120 : vector<8x128xf32>
    %c0_48 = arith.constant 0 : index
    %c0_49 = arith.constant 0 : index
    %122 = vector.load %arg10[%c0_48, %c0_49] : memref<8x128xf32, #tpu.memory_space<vmem>>, vector<8x128xf32>
    tpu.vector_store %arg10[%c0_48, %c0_49], %119 {strides = array<i32>} : memref<8x128xf32, #tpu.memory_space<vmem>>, vector<8x128xf32>,
    %c0_50 = arith.constant 0 : index
    %c0_51 = arith.constant 0 : index
    %123 = vector.load %arg9[%c0_50, %c0_51] : memref<8x128xf32, #tpu.memory_space<vmem>>, vector<8x128xf32>
    tpu.vector_store %arg9[%c0_50, %c0_51], %121 {strides = array<i32>} : memref<8x128xf32, #tpu.memory_space<vmem>>, vector<8x128xf32>,
    %124 = arith.truncf %121 : vector<8x128xf32> to vector<8x128xbf16>
    %125 = arith.index_cast %c2_i32 : i32 to index
    %c0_52 = arith.constant 0 : index
    %c0_53 = arith.constant 0 : index
    %126 = vector.load %arg6[%125, %c0_52, %c0_53] : memref<16x8x128xbf16, #tpu.memory_space<vmem>>, vector<1x8x128xbf16>
    %127 = vector.shape_cast %126 : vector<1x8x128xbf16> to vector<8x128xbf16>
    %128 = vector.shape_cast %124 : vector<8x128xbf16> to vector<1x8x128xbf16>
    tpu.vector_store %arg6[%125, %c0_52, %c0_53], %128 {strides = array<i32>} : memref<16x8x128xbf16, #tpu.memory_space<vmem>>, vector<1x8x128xbf16>,
    %c3_i32 = arith.constant 3 : i32
    %c0_54 = arith.constant 0 : index
    %c0_55 = arith.constant 0 : index
    %129 = vector.load %arg9[%c0_54, %c0_55] : memref<8x128xf32, #tpu.memory_space<vmem>>, vector<8x128xf32>
    %c0_56 = arith.constant 0 : index
    %c0_57 = arith.constant 0 : index
    %130 = vector.load %arg10[%c0_56, %c0_57] : memref<8x128xf32, #tpu.memory_space<vmem>>, vector<8x128xf32>
    %131 = arith.index_cast %c3_i32 : i32 to index
    %c0_58 = arith.constant 0 : index
    %c0_59 = arith.constant 0 : index
    %132 = vector.load %arg2[%131, %c0_58, %c0_59] : memref<16x8x512xbf16, #tpu.memory_space<vmem>>, vector<1x8x512xbf16>
    %133 = vector.shape_cast %132 : vector<1x8x512xbf16> to vector<8x512xbf16>
    %134 = arith.extf %133 : vector<8x512xbf16> to vector<8x512xf32>
    %135 = arith.truncf %129 : vector<8x128xf32> to vector<8x128xbf16>
    %c0_60 = arith.constant 0 : index
    %c0_61 = arith.constant 0 : index
    %136 = vector.load %arg11[%c0_60, %c0_61] : memref<128x512xbf16, #tpu.memory_space<vmem>>, vector<128x512xbf16>
    %cst_62 = arith.constant dense<0.000000e+00> : vector<8x512xf32>
    %137 = tpu.matmul %135, %136, %cst_62 {dimension_numbers = #tpu.dot_dimension_numbers<[1], [0], [0], [1], [0, 0, 1, 1], [], []>} : vector<8x128xbf16>, vector<128x512xbf16>, vector<8x512xf32> -> vector<8x512xf32>
    %138 = arith.addf %134, %137 : vector<8x512xf32>
    %139 = vector.extract_strided_slice %138 {offsets = [0, 0], sizes = [8, 128], strides = [1, 1]} : vector<8x512xf32> to vector<8x128xf32>
    %140 = arith.negf %139 : vector<8x128xf32>
    %141 = math.exp %140 : vector<8x128xf32>
    %cst_63 = arith.constant 1.000000e+00 : f32
    %142 = vector.broadcast %cst_63 : f32 to vector<8x128xf32>
    %143 = arith.addf %142, %141 : vector<8x128xf32>
    %144 = arith.divf %142, %143 : vector<8x128xf32>
    %145 = vector.extract_strided_slice %138 {offsets = [0, 128], sizes = [8, 128], strides = [1, 1]} : vector<8x512xf32> to vector<8x128xf32>
    %146 = arith.negf %145 : vector<8x128xf32>
    %147 = math.exp %146 : vector<8x128xf32>
    %cst_64 = arith.constant 1.000000e+00 : f32
    %148 = vector.broadcast %cst_64 : f32 to vector<8x128xf32>
    %149 = arith.addf %148, %147 : vector<8x128xf32>
    %150 = arith.divf %148, %149 : vector<8x128xf32>
    %151 = vector.extract_strided_slice %138 {offsets = [0, 256], sizes = [8, 128], strides = [1, 1]} : vector<8x512xf32> to vector<8x128xf32>
    %152 = math.tanh %151 : vector<8x128xf32>
    %153 = vector.extract_strided_slice %138 {offsets = [0, 384], sizes = [8, 128], strides = [1, 1]} : vector<8x512xf32> to vector<8x128xf32>
    %154 = arith.negf %153 : vector<8x128xf32>
    %155 = math.exp %154 : vector<8x128xf32>
    %cst_65 = arith.constant 1.000000e+00 : f32
    %156 = vector.broadcast %cst_65 : f32 to vector<8x128xf32>
    %157 = arith.addf %156, %155 : vector<8x128xf32>
    %158 = arith.divf %156, %157 : vector<8x128xf32>
    %159 = arith.mulf %150, %130 : vector<8x128xf32>
    %160 = arith.mulf %144, %152 : vector<8x128xf32>
    %161 = arith.addf %159, %160 : vector<8x128xf32>
    %162 = math.tanh %161 : vector<8x128xf32>
    %163 = arith.mulf %158, %162 : vector<8x128xf32>
    %c0_66 = arith.constant 0 : index
    %c0_67 = arith.constant 0 : index
    %164 = vector.load %arg10[%c0_66, %c0_67] : memref<8x128xf32, #tpu.memory_space<vmem>>, vector<8x128xf32>
    tpu.vector_store %arg10[%c0_66, %c0_67], %161 {strides = array<i32>} : memref<8x128xf32, #tpu.memory_space<vmem>>, vector<8x128xf32>,
    %c0_68 = arith.constant 0 : index
    %c0_69 = arith.constant 0 : index
    %165 = vector.load %arg9[%c0_68, %c0_69] : memref<8x128xf32, #tpu.memory_space<vmem>>, vector<8x128xf32>
    tpu.vector_store %arg9[%c0_68, %c0_69], %163 {strides = array<i32>} : memref<8x128xf32, #tpu.memory_space<vmem>>, vector<8x128xf32>,
    %166 = arith.truncf %163 : vector<8x128xf32> to vector<8x128xbf16>
    %167 = arith.index_cast %c3_i32 : i32 to index
    %c0_70 = arith.constant 0 : index
    %c0_71 = arith.constant 0 : index
    %168 = vector.load %arg6[%167, %c0_70, %c0_71] : memref<16x8x128xbf16, #tpu.memory_space<vmem>>, vector<1x8x128xbf16>
    %169 = vector.shape_cast %168 : vector<1x8x128xbf16> to vector<8x128xbf16>
    %170 = vector.shape_cast %166 : vector<8x128xbf16> to vector<1x8x128xbf16>
    tpu.vector_store %arg6[%167, %c0_70, %c0_71], %170 {strides = array<i32>} : memref<16x8x128xbf16, #tpu.memory_space<vmem>>, vector<1x8x128xbf16>,
    %c4_i32 = arith.constant 4 : i32
    %c0_72 = arith.constant 0 : index
    %c0_73 = arith.constant 0 : index
    %171 = vector.load %arg9[%c0_72, %c0_73] : memref<8x128xf32, #tpu.memory_space<vmem>>, vector<8x128xf32>
    %c0_74 = arith.constant 0 : index
    %c0_75 = arith.constant 0 : index
    %172 = vector.load %arg10[%c0_74, %c0_75] : memref<8x128xf32, #tpu.memory_space<vmem>>, vector<8x128xf32>
    %173 = arith.index_cast %c4_i32 : i32 to index
    %c0_76 = arith.constant 0 : index
    %c0_77 = arith.constant 0 : index
    %174 = vector.load %arg2[%173, %c0_76, %c0_77] : memref<16x8x512xbf16, #tpu.memory_space<vmem>>, vector<1x8x512xbf16>
    %175 = vector.shape_cast %174 : vector<1x8x512xbf16> to vector<8x512xbf16>
    %176 = arith.extf %175 : vector<8x512xbf16> to vector<8x512xf32>
    %177 = arith.truncf %171 : vector<8x128xf32> to vector<8x128xbf16>
    %c0_78 = arith.constant 0 : index
    %c0_79 = arith.constant 0 : index
    %178 = vector.load %arg11[%c0_78, %c0_79] : memref<128x512xbf16, #tpu.memory_space<vmem>>, vector<128x512xbf16>
    %cst_80 = arith.constant dense<0.000000e+00> : vector<8x512xf32>
    %179 = tpu.matmul %177, %178, %cst_80 {dimension_numbers = #tpu.dot_dimension_numbers<[1], [0], [0], [1], [0, 0, 1, 1], [], []>} : vector<8x128xbf16>, vector<128x512xbf16>, vector<8x512xf32> -> vector<8x512xf32>
    %180 = arith.addf %176, %179 : vector<8x512xf32>
    %181 = vector.extract_strided_slice %180 {offsets = [0, 0], sizes = [8, 128], strides = [1, 1]} : vector<8x512xf32> to vector<8x128xf32>
    %182 = arith.negf %181 : vector<8x128xf32>
    %183 = math.exp %182 : vector<8x128xf32>
    %cst_81 = arith.constant 1.000000e+00 : f32
    %184 = vector.broadcast %cst_81 : f32 to vector<8x128xf32>
    %185 = arith.addf %184, %183 : vector<8x128xf32>
    %186 = arith.divf %184, %185 : vector<8x128xf32>
    %187 = vector.extract_strided_slice %180 {offsets = [0, 128], sizes = [8, 128], strides = [1, 1]} : vector<8x512xf32> to vector<8x128xf32>
    %188 = arith.negf %187 : vector<8x128xf32>
    %189 = math.exp %188 : vector<8x128xf32>
    %cst_82 = arith.constant 1.000000e+00 : f32
    %190 = vector.broadcast %cst_82 : f32 to vector<8x128xf32>
    %191 = arith.addf %190, %189 : vector<8x128xf32>
    %192 = arith.divf %190, %191 : vector<8x128xf32>
    %193 = vector.extract_strided_slice %180 {offsets = [0, 256], sizes = [8, 128], strides = [1, 1]} : vector<8x512xf32> to vector<8x128xf32>
    %194 = math.tanh %193 : vector<8x128xf32>
    %195 = vector.extract_strided_slice %180 {offsets = [0, 384], sizes = [8, 128], strides = [1, 1]} : vector<8x512xf32> to vector<8x128xf32>
    %196 = arith.negf %195 : vector<8x128xf32>
    %197 = math.exp %196 : vector<8x128xf32>
    %cst_83 = arith.constant 1.000000e+00 : f32
    %198 = vector.broadcast %cst_83 : f32 to vector<8x128xf32>
    %199 = arith.addf %198, %197 : vector<8x128xf32>
    %200 = arith.divf %198, %199 : vector<8x128xf32>
    %201 = arith.mulf %192, %172 : vector<8x128xf32>
    %202 = arith.mulf %186, %194 : vector<8x128xf32>
    %203 = arith.addf %201, %202 : vector<8x128xf32>
    %204 = math.tanh %203 : vector<8x128xf32>
    %205 = arith.mulf %200, %204 : vector<8x128xf32>
    %c0_84 = arith.constant 0 : index
    %c0_85 = arith.constant 0 : index
    %206 = vector.load %arg10[%c0_84, %c0_85] : memref<8x128xf32, #tpu.memory_space<vmem>>, vector<8x128xf32>
    tpu.vector_store %arg10[%c0_84, %c0_85], %203 {strides = array<i32>} : memref<8x128xf32, #tpu.memory_space<vmem>>, vector<8x128xf32>,
    %c0_86 = arith.constant 0 : index
    %c0_87 = arith.constant 0 : index
    %207 = vector.load %arg9[%c0_86, %c0_87] : memref<8x128xf32, #tpu.memory_space<vmem>>, vector<8x128xf32>
    tpu.vector_store %arg9[%c0_86, %c0_87], %205 {strides = array<i32>} : memref<8x128xf32, #tpu.memory_space<vmem>>, vector<8x128xf32>,
    %208 = arith.truncf %205 : vector<8x128xf32> to vector<8x128xbf16>
    %209 = arith.index_cast %c4_i32 : i32 to index
    %c0_88 = arith.constant 0 : index
    %c0_89 = arith.constant 0 : index
    %210 = vector.load %arg6[%209, %c0_88, %c0_89] : memref<16x8x128xbf16, #tpu.memory_space<vmem>>, vector<1x8x128xbf16>
    %211 = vector.shape_cast %210 : vector<1x8x128xbf16> to vector<8x128xbf16>
    %212 = vector.shape_cast %208 : vector<8x128xbf16> to vector<1x8x128xbf16>
    tpu.vector_store %arg6[%209, %c0_88, %c0_89], %212 {strides = array<i32>} : memref<16x8x128xbf16, #tpu.memory_space<vmem>>, vector<1x8x128xbf16>,
    %c5_i32 = arith.constant 5 : i32
    %c0_90 = arith.constant 0 : index
    %c0_91 = arith.constant 0 : index
    %213 = vector.load %arg9[%c0_90, %c0_91] : memref<8x128xf32, #tpu.memory_space<vmem>>, vector<8x128xf32>
    %c0_92 = arith.constant 0 : index
    %c0_93 = arith.constant 0 : index
    %214 = vector.load %arg10[%c0_92, %c0_93] : memref<8x128xf32, #tpu.memory_space<vmem>>, vector<8x128xf32>
    %215 = arith.index_cast %c5_i32 : i32 to index
    %c0_94 = arith.constant 0 : index
    %c0_95 = arith.constant 0 : index
    %216 = vector.load %arg2[%215, %c0_94, %c0_95] : memref<16x8x512xbf16, #tpu.memory_space<vmem>>, vector<1x8x512xbf16>
    %217 = vector.shape_cast %216 : vector<1x8x512xbf16> to vector<8x512xbf16>
    %218 = arith.extf %217 : vector<8x512xbf16> to vector<8x512xf32>
    %219 = arith.truncf %213 : vector<8x128xf32> to vector<8x128xbf16>
    %c0_96 = arith.constant 0 : index
    %c0_97 = arith.constant 0 : index
    %220 = vector.load %arg11[%c0_96, %c0_97] : memref<128x512xbf16, #tpu.memory_space<vmem>>, vector<128x512xbf16>
    %cst_98 = arith.constant dense<0.000000e+00> : vector<8x512xf32>
    %221 = tpu.matmul %219, %220, %cst_98 {dimension_numbers = #tpu.dot_dimension_numbers<[1], [0], [0], [1], [0, 0, 1, 1], [], []>} : vector<8x128xbf16>, vector<128x512xbf16>, vector<8x512xf32> -> vector<8x512xf32>
    %222 = arith.addf %218, %221 : vector<8x512xf32>
    %223 = vector.extract_strided_slice %222 {offsets = [0, 0], sizes = [8, 128], strides = [1, 1]} : vector<8x512xf32> to vector<8x128xf32>
    %224 = arith.negf %223 : vector<8x128xf32>
    %225 = math.exp %224 : vector<8x128xf32>
    %cst_99 = arith.constant 1.000000e+00 : f32
    %226 = vector.broadcast %cst_99 : f32 to vector<8x128xf32>
    %227 = arith.addf %226, %225 : vector<8x128xf32>
    %228 = arith.divf %226, %227 : vector<8x128xf32>
    %229 = vector.extract_strided_slice %222 {offsets = [0, 128], sizes = [8, 128], strides = [1, 1]} : vector<8x512xf32> to vector<8x128xf32>
    %230 = arith.negf %229 : vector<8x128xf32>
    %231 = math.exp %230 : vector<8x128xf32>
    %cst_100 = arith.constant 1.000000e+00 : f32
    %232 = vector.broadcast %cst_100 : f32 to vector<8x128xf32>
    %233 = arith.addf %232, %231 : vector<8x128xf32>
    %234 = arith.divf %232, %233 : vector<8x128xf32>
    %235 = vector.extract_strided_slice %222 {offsets = [0, 256], sizes = [8, 128], strides = [1, 1]} : vector<8x512xf32> to vector<8x128xf32>
    %236 = math.tanh %235 : vector<8x128xf32>
    %237 = vector.extract_strided_slice %222 {offsets = [0, 384], sizes = [8, 128], strides = [1, 1]} : vector<8x512xf32> to vector<8x128xf32>
    %238 = arith.negf %237 : vector<8x128xf32>
    %239 = math.exp %238 : vector<8x128xf32>
    %cst_101 = arith.constant 1.000000e+00 : f32
    %240 = vector.broadcast %cst_101 : f32 to vector<8x128xf32>
    %241 = arith.addf %240, %239 : vector<8x128xf32>
    %242 = arith.divf %240, %241 : vector<8x128xf32>
    %243 = arith.mulf %234, %214 : vector<8x128xf32>
    %244 = arith.mulf %228, %236 : vector<8x128xf32>
    %245 = arith.addf %243, %244 : vector<8x128xf32>
    %246 = math.tanh %245 : vector<8x128xf32>
    %247 = arith.mulf %242, %246 : vector<8x128xf32>
    %c0_102 = arith.constant 0 : index
    %c0_103 = arith.constant 0 : index
    %248 = vector.load %arg10[%c0_102, %c0_103] : memref<8x128xf32, #tpu.memory_space<vmem>>, vector<8x128xf32>
    tpu.vector_store %arg10[%c0_102, %c0_103], %245 {strides = array<i32>} : memref<8x128xf32, #tpu.memory_space<vmem>>, vector<8x128xf32>,
    %c0_104 = arith.constant 0 : index
    %c0_105 = arith.constant 0 : index
    %249 = vector.load %arg9[%c0_104, %c0_105] : memref<8x128xf32, #tpu.memory_space<vmem>>, vector<8x128xf32>
    tpu.vector_store %arg9[%c0_104, %c0_105], %247 {strides = array<i32>} : memref<8x128xf32, #tpu.memory_space<vmem>>, vector<8x128xf32>,
    %250 = arith.truncf %247 : vector<8x128xf32> to vector<8x128xbf16>
    %251 = arith.index_cast %c5_i32 : i32 to index
    %c0_106 = arith.constant 0 : index
    %c0_107 = arith.constant 0 : index
    %252 = vector.load %arg6[%251, %c0_106, %c0_107] : memref<16x8x128xbf16, #tpu.memory_space<vmem>>, vector<1x8x128xbf16>
    %253 = vector.shape_cast %252 : vector<1x8x128xbf16> to vector<8x128xbf16>
    %254 = vector.shape_cast %250 : vector<8x128xbf16> to vector<1x8x128xbf16>
    tpu.vector_store %arg6[%251, %c0_106, %c0_107], %254 {strides = array<i32>} : memref<16x8x128xbf16, #tpu.memory_space<vmem>>, vector<1x8x128xbf16>,
    %c6_i32 = arith.constant 6 : i32
    %c0_108 = arith.constant 0 : index
    %c0_109 = arith.constant 0 : index
    %255 = vector.load %arg9[%c0_108, %c0_109] : memref<8x128xf32, #tpu.memory_space<vmem>>, vector<8x128xf32>
    %c0_110 = arith.constant 0 : index
    %c0_111 = arith.constant 0 : index
    %256 = vector.load %arg10[%c0_110, %c0_111] : memref<8x128xf32, #tpu.memory_space<vmem>>, vector<8x128xf32>
    %257 = arith.index_cast %c6_i32 : i32 to index
    %c0_112 = arith.constant 0 : index
    %c0_113 = arith.constant 0 : index
    %258 = vector.load %arg2[%257, %c0_112, %c0_113] : memref<16x8x512xbf16, #tpu.memory_space<vmem>>, vector<1x8x512xbf16>
    %259 = vector.shape_cast %258 : vector<1x8x512xbf16> to vector<8x512xbf16>
    %260 = arith.extf %259 : vector<8x512xbf16> to vector<8x512xf32>
    %261 = arith.truncf %255 : vector<8x128xf32> to vector<8x128xbf16>
    %c0_114 = arith.constant 0 : index
    %c0_115 = arith.constant 0 : index
    %262 = vector.load %arg11[%c0_114, %c0_115] : memref<128x512xbf16, #tpu.memory_space<vmem>>, vector<128x512xbf16>
    %cst_116 = arith.constant dense<0.000000e+00> : vector<8x512xf32>
    %263 = tpu.matmul %261, %262, %cst_116 {dimension_numbers = #tpu.dot_dimension_numbers<[1], [0], [0], [1], [0, 0, 1, 1], [], []>} : vector<8x128xbf16>, vector<128x512xbf16>, vector<8x512xf32> -> vector<8x512xf32>
    %264 = arith.addf %260, %263 : vector<8x512xf32>
    %265 = vector.extract_strided_slice %264 {offsets = [0, 0], sizes = [8, 128], strides = [1, 1]} : vector<8x512xf32> to vector<8x128xf32>
    %266 = arith.negf %265 : vector<8x128xf32>
    %267 = math.exp %266 : vector<8x128xf32>
    %cst_117 = arith.constant 1.000000e+00 : f32
    %268 = vector.broadcast %cst_117 : f32 to vector<8x128xf32>
    %269 = arith.addf %268, %267 : vector<8x128xf32>
    %270 = arith.divf %268, %269 : vector<8x128xf32>
    %271 = vector.extract_strided_slice %264 {offsets = [0, 128], sizes = [8, 128], strides = [1, 1]} : vector<8x512xf32> to vector<8x128xf32>
    %272 = arith.negf %271 : vector<8x128xf32>
    %273 = math.exp %272 : vector<8x128xf32>
    %cst_118 = arith.constant 1.000000e+00 : f32
    %274 = vector.broadcast %cst_118 : f32 to vector<8x128xf32>
    %275 = arith.addf %274, %273 : vector<8x128xf32>
    %276 = arith.divf %274, %275 : vector<8x128xf32>
    %277 = vector.extract_strided_slice %264 {offsets = [0, 256], sizes = [8, 128], strides = [1, 1]} : vector<8x512xf32> to vector<8x128xf32>
    %278 = math.tanh %277 : vector<8x128xf32>
    %279 = vector.extract_strided_slice %264 {offsets = [0, 384], sizes = [8, 128], strides = [1, 1]} : vector<8x512xf32> to vector<8x128xf32>
    %280 = arith.negf %279 : vector<8x128xf32>
    %281 = math.exp %280 : vector<8x128xf32>
    %cst_119 = arith.constant 1.000000e+00 : f32
    %282 = vector.broadcast %cst_119 : f32 to vector<8x128xf32>
    %283 = arith.addf %282, %281 : vector<8x128xf32>
    %284 = arith.divf %282, %283 : vector<8x128xf32>
    %285 = arith.mulf %276, %256 : vector<8x128xf32>
    %286 = arith.mulf %270, %278 : vector<8x128xf32>
    %287 = arith.addf %285, %286 : vector<8x128xf32>
    %288 = math.tanh %287 : vector<8x128xf32>
    %289 = arith.mulf %284, %288 : vector<8x128xf32>
    %c0_120 = arith.constant 0 : index
    %c0_121 = arith.constant 0 : index
    %290 = vector.load %arg10[%c0_120, %c0_121] : memref<8x128xf32, #tpu.memory_space<vmem>>, vector<8x128xf32>
    tpu.vector_store %arg10[%c0_120, %c0_121], %287 {strides = array<i32>} : memref<8x128xf32, #tpu.memory_space<vmem>>, vector<8x128xf32>,
    %c0_122 = arith.constant 0 : index
    %c0_123 = arith.constant 0 : index
    %291 = vector.load %arg9[%c0_122, %c0_123] : memref<8x128xf32, #tpu.memory_space<vmem>>, vector<8x128xf32>
    tpu.vector_store %arg9[%c0_122, %c0_123], %289 {strides = array<i32>} : memref<8x128xf32, #tpu.memory_space<vmem>>, vector<8x128xf32>,
    %292 = arith.truncf %289 : vector<8x128xf32> to vector<8x128xbf16>
    %293 = arith.index_cast %c6_i32 : i32 to index
    %c0_124 = arith.constant 0 : index
    %c0_125 = arith.constant 0 : index
    %294 = vector.load %arg6[%293, %c0_124, %c0_125] : memref<16x8x128xbf16, #tpu.memory_space<vmem>>, vector<1x8x128xbf16>
    %295 = vector.shape_cast %294 : vector<1x8x128xbf16> to vector<8x128xbf16>
    %296 = vector.shape_cast %292 : vector<8x128xbf16> to vector<1x8x128xbf16>
    tpu.vector_store %arg6[%293, %c0_124, %c0_125], %296 {strides = array<i32>} : memref<16x8x128xbf16, #tpu.memory_space<vmem>>, vector<1x8x128xbf16>,
    %c7_i32 = arith.constant 7 : i32
    %c0_126 = arith.constant 0 : index
    %c0_127 = arith.constant 0 : index
    %297 = vector.load %arg9[%c0_126, %c0_127] : memref<8x128xf32, #tpu.memory_space<vmem>>, vector<8x128xf32>
    %c0_128 = arith.constant 0 : index
    %c0_129 = arith.constant 0 : index
    %298 = vector.load %arg10[%c0_128, %c0_129] : memref<8x128xf32, #tpu.memory_space<vmem>>, vector<8x128xf32>
    %299 = arith.index_cast %c7_i32 : i32 to index
    %c0_130 = arith.constant 0 : index
    %c0_131 = arith.constant 0 : index
    %300 = vector.load %arg2[%299, %c0_130, %c0_131] : memref<16x8x512xbf16, #tpu.memory_space<vmem>>, vector<1x8x512xbf16>
    %301 = vector.shape_cast %300 : vector<1x8x512xbf16> to vector<8x512xbf16>
    %302 = arith.extf %301 : vector<8x512xbf16> to vector<8x512xf32>
    %303 = arith.truncf %297 : vector<8x128xf32> to vector<8x128xbf16>
    %c0_132 = arith.constant 0 : index
    %c0_133 = arith.constant 0 : index
    %304 = vector.load %arg11[%c0_132, %c0_133] : memref<128x512xbf16, #tpu.memory_space<vmem>>, vector<128x512xbf16>
    %cst_134 = arith.constant dense<0.000000e+00> : vector<8x512xf32>
    %305 = tpu.matmul %303, %304, %cst_134 {dimension_numbers = #tpu.dot_dimension_numbers<[1], [0], [0], [1], [0, 0, 1, 1], [], []>} : vector<8x128xbf16>, vector<128x512xbf16>, vector<8x512xf32> -> vector<8x512xf32>
    %306 = arith.addf %302, %305 : vector<8x512xf32>
    %307 = vector.extract_strided_slice %306 {offsets = [0, 0], sizes = [8, 128], strides = [1, 1]} : vector<8x512xf32> to vector<8x128xf32>
    %308 = arith.negf %307 : vector<8x128xf32>
    %309 = math.exp %308 : vector<8x128xf32>
    %cst_135 = arith.constant 1.000000e+00 : f32
    %310 = vector.broadcast %cst_135 : f32 to vector<8x128xf32>
    %311 = arith.addf %310, %309 : vector<8x128xf32>
    %312 = arith.divf %310, %311 : vector<8x128xf32>
    %313 = vector.extract_strided_slice %306 {offsets = [0, 128], sizes = [8, 128], strides = [1, 1]} : vector<8x512xf32> to vector<8x128xf32>
    %314 = arith.negf %313 : vector<8x128xf32>
    %315 = math.exp %314 : vector<8x128xf32>
    %cst_136 = arith.constant 1.000000e+00 : f32
    %316 = vector.broadcast %cst_136 : f32 to vector<8x128xf32>
    %317 = arith.addf %316, %315 : vector<8x128xf32>
    %318 = arith.divf %316, %317 : vector<8x128xf32>
    %319 = vector.extract_strided_slice %306 {offsets = [0, 256], sizes = [8, 128], strides = [1, 1]} : vector<8x512xf32> to vector<8x128xf32>
    %320 = math.tanh %319 : vector<8x128xf32>
    %321 = vector.extract_strided_slice %306 {offsets = [0, 384], sizes = [8, 128], strides = [1, 1]} : vector<8x512xf32> to vector<8x128xf32>
    %322 = arith.negf %321 : vector<8x128xf32>
    %323 = math.exp %322 : vector<8x128xf32>
    %cst_137 = arith.constant 1.000000e+00 : f32
    %324 = vector.broadcast %cst_137 : f32 to vector<8x128xf32>
    %325 = arith.addf %324, %323 : vector<8x128xf32>
    %326 = arith.divf %324, %325 : vector<8x128xf32>
    %327 = arith.mulf %318, %298 : vector<8x128xf32>
    %328 = arith.mulf %312, %320 : vector<8x128xf32>
    %329 = arith.addf %327, %328 : vector<8x128xf32>
    %330 = math.tanh %329 : vector<8x128xf32>
    %331 = arith.mulf %326, %330 : vector<8x128xf32>
    %c0_138 = arith.constant 0 : index
    %c0_139 = arith.constant 0 : index
    %332 = vector.load %arg10[%c0_138, %c0_139] : memref<8x128xf32, #tpu.memory_space<vmem>>, vector<8x128xf32>
    tpu.vector_store %arg10[%c0_138, %c0_139], %329 {strides = array<i32>} : memref<8x128xf32, #tpu.memory_space<vmem>>, vector<8x128xf32>,
    %c0_140 = arith.constant 0 : index
    %c0_141 = arith.constant 0 : index
    %333 = vector.load %arg9[%c0_140, %c0_141] : memref<8x128xf32, #tpu.memory_space<vmem>>, vector<8x128xf32>
    tpu.vector_store %arg9[%c0_140, %c0_141], %331 {strides = array<i32>} : memref<8x128xf32, #tpu.memory_space<vmem>>, vector<8x128xf32>,
    %334 = arith.truncf %331 : vector<8x128xf32> to vector<8x128xbf16>
    %335 = arith.index_cast %c7_i32 : i32 to index
    %c0_142 = arith.constant 0 : index
    %c0_143 = arith.constant 0 : index
    %336 = vector.load %arg6[%335, %c0_142, %c0_143] : memref<16x8x128xbf16, #tpu.memory_space<vmem>>, vector<1x8x128xbf16>
    %337 = vector.shape_cast %336 : vector<1x8x128xbf16> to vector<8x128xbf16>
    %338 = vector.shape_cast %334 : vector<8x128xbf16> to vector<1x8x128xbf16>
    tpu.vector_store %arg6[%335, %c0_142, %c0_143], %338 {strides = array<i32>} : memref<16x8x128xbf16, #tpu.memory_space<vmem>>, vector<1x8x128xbf16>,
    %c8_i32 = arith.constant 8 : i32
    %c0_144 = arith.constant 0 : index
    %c0_145 = arith.constant 0 : index
    %339 = vector.load %arg9[%c0_144, %c0_145] : memref<8x128xf32, #tpu.memory_space<vmem>>, vector<8x128xf32>
    %c0_146 = arith.constant 0 : index
    %c0_147 = arith.constant 0 : index
    %340 = vector.load %arg10[%c0_146, %c0_147] : memref<8x128xf32, #tpu.memory_space<vmem>>, vector<8x128xf32>
    %341 = arith.index_cast %c8_i32 : i32 to index
    %c0_148 = arith.constant 0 : index
    %c0_149 = arith.constant 0 : index
    %342 = vector.load %arg2[%341, %c0_148, %c0_149] : memref<16x8x512xbf16, #tpu.memory_space<vmem>>, vector<1x8x512xbf16>
    %343 = vector.shape_cast %342 : vector<1x8x512xbf16> to vector<8x512xbf16>
    %344 = arith.extf %343 : vector<8x512xbf16> to vector<8x512xf32>
    %345 = arith.truncf %339 : vector<8x128xf32> to vector<8x128xbf16>
    %c0_150 = arith.constant 0 : index
    %c0_151 = arith.constant 0 : index
    %346 = vector.load %arg11[%c0_150, %c0_151] : memref<128x512xbf16, #tpu.memory_space<vmem>>, vector<128x512xbf16>
    %cst_152 = arith.constant dense<0.000000e+00> : vector<8x512xf32>
    %347 = tpu.matmul %345, %346, %cst_152 {dimension_numbers = #tpu.dot_dimension_numbers<[1], [0], [0], [1], [0, 0, 1, 1], [], []>} : vector<8x128xbf16>, vector<128x512xbf16>, vector<8x512xf32> -> vector<8x512xf32>
    %348 = arith.addf %344, %347 : vector<8x512xf32>
    %349 = vector.extract_strided_slice %348 {offsets = [0, 0], sizes = [8, 128], strides = [1, 1]} : vector<8x512xf32> to vector<8x128xf32>
    %350 = arith.negf %349 : vector<8x128xf32>
    %351 = math.exp %350 : vector<8x128xf32>
    %cst_153 = arith.constant 1.000000e+00 : f32
    %352 = vector.broadcast %cst_153 : f32 to vector<8x128xf32>
    %353 = arith.addf %352, %351 : vector<8x128xf32>
    %354 = arith.divf %352, %353 : vector<8x128xf32>
    %355 = vector.extract_strided_slice %348 {offsets = [0, 128], sizes = [8, 128], strides = [1, 1]} : vector<8x512xf32> to vector<8x128xf32>
    %356 = arith.negf %355 : vector<8x128xf32>
    %357 = math.exp %356 : vector<8x128xf32>
    %cst_154 = arith.constant 1.000000e+00 : f32
    %358 = vector.broadcast %cst_154 : f32 to vector<8x128xf32>
    %359 = arith.addf %358, %357 : vector<8x128xf32>
    %360 = arith.divf %358, %359 : vector<8x128xf32>
    %361 = vector.extract_strided_slice %348 {offsets = [0, 256], sizes = [8, 128], strides = [1, 1]} : vector<8x512xf32> to vector<8x128xf32>
    %362 = math.tanh %361 : vector<8x128xf32>
    %363 = vector.extract_strided_slice %348 {offsets = [0, 384], sizes = [8, 128], strides = [1, 1]} : vector<8x512xf32> to vector<8x128xf32>
    %364 = arith.negf %363 : vector<8x128xf32>
    %365 = math.exp %364 : vector<8x128xf32>
    %cst_155 = arith.constant 1.000000e+00 : f32
    %366 = vector.broadcast %cst_155 : f32 to vector<8x128xf32>
    %367 = arith.addf %366, %365 : vector<8x128xf32>
    %368 = arith.divf %366, %367 : vector<8x128xf32>
    %369 = arith.mulf %360, %340 : vector<8x128xf32>
    %370 = arith.mulf %354, %362 : vector<8x128xf32>
    %371 = arith.addf %369, %370 : vector<8x128xf32>
    %372 = math.tanh %371 : vector<8x128xf32>
    %373 = arith.mulf %368, %372 : vector<8x128xf32>
    %c0_156 = arith.constant 0 : index
    %c0_157 = arith.constant 0 : index
    %374 = vector.load %arg10[%c0_156, %c0_157] : memref<8x128xf32, #tpu.memory_space<vmem>>, vector<8x128xf32>
    tpu.vector_store %arg10[%c0_156, %c0_157], %371 {strides = array<i32>} : memref<8x128xf32, #tpu.memory_space<vmem>>, vector<8x128xf32>,
    %c0_158 = arith.constant 0 : index
    %c0_159 = arith.constant 0 : index
    %375 = vector.load %arg9[%c0_158, %c0_159] : memref<8x128xf32, #tpu.memory_space<vmem>>, vector<8x128xf32>
    tpu.vector_store %arg9[%c0_158, %c0_159], %373 {strides = array<i32>} : memref<8x128xf32, #tpu.memory_space<vmem>>, vector<8x128xf32>,
    %376 = arith.truncf %373 : vector<8x128xf32> to vector<8x128xbf16>
    %377 = arith.index_cast %c8_i32 : i32 to index
    %c0_160 = arith.constant 0 : index
    %c0_161 = arith.constant 0 : index
    %378 = vector.load %arg6[%377, %c0_160, %c0_161] : memref<16x8x128xbf16, #tpu.memory_space<vmem>>, vector<1x8x128xbf16>
    %379 = vector.shape_cast %378 : vector<1x8x128xbf16> to vector<8x128xbf16>
    %380 = vector.shape_cast %376 : vector<8x128xbf16> to vector<1x8x128xbf16>
    tpu.vector_store %arg6[%377, %c0_160, %c0_161], %380 {strides = array<i32>} : memref<16x8x128xbf16, #tpu.memory_space<vmem>>, vector<1x8x128xbf16>,
    %c9_i32 = arith.constant 9 : i32
    %c0_162 = arith.constant 0 : index
    %c0_163 = arith.constant 0 : index
    %381 = vector.load %arg9[%c0_162, %c0_163] : memref<8x128xf32, #tpu.memory_space<vmem>>, vector<8x128xf32>
    %c0_164 = arith.constant 0 : index
    %c0_165 = arith.constant 0 : index
    %382 = vector.load %arg10[%c0_164, %c0_165] : memref<8x128xf32, #tpu.memory_space<vmem>>, vector<8x128xf32>
    %383 = arith.index_cast %c9_i32 : i32 to index
    %c0_166 = arith.constant 0 : index
    %c0_167 = arith.constant 0 : index
    %384 = vector.load %arg2[%383, %c0_166, %c0_167] : memref<16x8x512xbf16, #tpu.memory_space<vmem>>, vector<1x8x512xbf16>
    %385 = vector.shape_cast %384 : vector<1x8x512xbf16> to vector<8x512xbf16>
    %386 = arith.extf %385 : vector<8x512xbf16> to vector<8x512xf32>
    %387 = arith.truncf %381 : vector<8x128xf32> to vector<8x128xbf16>
    %c0_168 = arith.constant 0 : index
    %c0_169 = arith.constant 0 : index
    %388 = vector.load %arg11[%c0_168, %c0_169] : memref<128x512xbf16, #tpu.memory_space<vmem>>, vector<128x512xbf16>
    %cst_170 = arith.constant dense<0.000000e+00> : vector<8x512xf32>
    %389 = tpu.matmul %387, %388, %cst_170 {dimension_numbers = #tpu.dot_dimension_numbers<[1], [0], [0], [1], [0, 0, 1, 1], [], []>} : vector<8x128xbf16>, vector<128x512xbf16>, vector<8x512xf32> -> vector<8x512xf32>
    %390 = arith.addf %386, %389 : vector<8x512xf32>
    %391 = vector.extract_strided_slice %390 {offsets = [0, 0], sizes = [8, 128], strides = [1, 1]} : vector<8x512xf32> to vector<8x128xf32>
    %392 = arith.negf %391 : vector<8x128xf32>
    %393 = math.exp %392 : vector<8x128xf32>
    %cst_171 = arith.constant 1.000000e+00 : f32
    %394 = vector.broadcast %cst_171 : f32 to vector<8x128xf32>
    %395 = arith.addf %394, %393 : vector<8x128xf32>
    %396 = arith.divf %394, %395 : vector<8x128xf32>
    %397 = vector.extract_strided_slice %390 {offsets = [0, 128], sizes = [8, 128], strides = [1, 1]} : vector<8x512xf32> to vector<8x128xf32>
    %398 = arith.negf %397 : vector<8x128xf32>
    %399 = math.exp %398 : vector<8x128xf32>
    %cst_172 = arith.constant 1.000000e+00 : f32
    %400 = vector.broadcast %cst_172 : f32 to vector<8x128xf32>
    %401 = arith.addf %400, %399 : vector<8x128xf32>
    %402 = arith.divf %400, %401 : vector<8x128xf32>
    %403 = vector.extract_strided_slice %390 {offsets = [0, 256], sizes = [8, 128], strides = [1, 1]} : vector<8x512xf32> to vector<8x128xf32>
    %404 = math.tanh %403 : vector<8x128xf32>
    %405 = vector.extract_strided_slice %390 {offsets = [0, 384], sizes = [8, 128], strides = [1, 1]} : vector<8x512xf32> to vector<8x128xf32>
    %406 = arith.negf %405 : vector<8x128xf32>
    %407 = math.exp %406 : vector<8x128xf32>
    %cst_173 = arith.constant 1.000000e+00 : f32
    %408 = vector.broadcast %cst_173 : f32 to vector<8x128xf32>
    %409 = arith.addf %408, %407 : vector<8x128xf32>
    %410 = arith.divf %408, %409 : vector<8x128xf32>
    %411 = arith.mulf %402, %382 : vector<8x128xf32>
    %412 = arith.mulf %396, %404 : vector<8x128xf32>
    %413 = arith.addf %411, %412 : vector<8x128xf32>
    %414 = math.tanh %413 : vector<8x128xf32>
    %415 = arith.mulf %410, %414 : vector<8x128xf32>
    %c0_174 = arith.constant 0 : index
    %c0_175 = arith.constant 0 : index
    %416 = vector.load %arg10[%c0_174, %c0_175] : memref<8x128xf32, #tpu.memory_space<vmem>>, vector<8x128xf32>
    tpu.vector_store %arg10[%c0_174, %c0_175], %413 {strides = array<i32>} : memref<8x128xf32, #tpu.memory_space<vmem>>, vector<8x128xf32>,
    %c0_176 = arith.constant 0 : index
    %c0_177 = arith.constant 0 : index
    %417 = vector.load %arg9[%c0_176, %c0_177] : memref<8x128xf32, #tpu.memory_space<vmem>>, vector<8x128xf32>
    tpu.vector_store %arg9[%c0_176, %c0_177], %415 {strides = array<i32>} : memref<8x128xf32, #tpu.memory_space<vmem>>, vector<8x128xf32>,
    %418 = arith.truncf %415 : vector<8x128xf32> to vector<8x128xbf16>
    %419 = arith.index_cast %c9_i32 : i32 to index
    %c0_178 = arith.constant 0 : index
    %c0_179 = arith.constant 0 : index
    %420 = vector.load %arg6[%419, %c0_178, %c0_179] : memref<16x8x128xbf16, #tpu.memory_space<vmem>>, vector<1x8x128xbf16>
    %421 = vector.shape_cast %420 : vector<1x8x128xbf16> to vector<8x128xbf16>
    %422 = vector.shape_cast %418 : vector<8x128xbf16> to vector<1x8x128xbf16>
    tpu.vector_store %arg6[%419, %c0_178, %c0_179], %422 {strides = array<i32>} : memref<16x8x128xbf16, #tpu.memory_space<vmem>>, vector<1x8x128xbf16>,
    %c10_i32 = arith.constant 10 : i32
    %c0_180 = arith.constant 0 : index
    %c0_181 = arith.constant 0 : index
    %423 = vector.load %arg9[%c0_180, %c0_181] : memref<8x128xf32, #tpu.memory_space<vmem>>, vector<8x128xf32>
    %c0_182 = arith.constant 0 : index
    %c0_183 = arith.constant 0 : index
    %424 = vector.load %arg10[%c0_182, %c0_183] : memref<8x128xf32, #tpu.memory_space<vmem>>, vector<8x128xf32>
    %425 = arith.index_cast %c10_i32 : i32 to index
    %c0_184 = arith.constant 0 : index
    %c0_185 = arith.constant 0 : index
    %426 = vector.load %arg2[%425, %c0_184, %c0_185] : memref<16x8x512xbf16, #tpu.memory_space<vmem>>, vector<1x8x512xbf16>
    %427 = vector.shape_cast %426 : vector<1x8x512xbf16> to vector<8x512xbf16>
    %428 = arith.extf %427 : vector<8x512xbf16> to vector<8x512xf32>
    %429 = arith.truncf %423 : vector<8x128xf32> to vector<8x128xbf16>
    %c0_186 = arith.constant 0 : index
    %c0_187 = arith.constant 0 : index
    %430 = vector.load %arg11[%c0_186, %c0_187] : memref<128x512xbf16, #tpu.memory_space<vmem>>, vector<128x512xbf16>
    %cst_188 = arith.constant dense<0.000000e+00> : vector<8x512xf32>
    %431 = tpu.matmul %429, %430, %cst_188 {dimension_numbers = #tpu.dot_dimension_numbers<[1], [0], [0], [1], [0, 0, 1, 1], [], []>} : vector<8x128xbf16>, vector<128x512xbf16>, vector<8x512xf32> -> vector<8x512xf32>
    %432 = arith.addf %428, %431 : vector<8x512xf32>
    %433 = vector.extract_strided_slice %432 {offsets = [0, 0], sizes = [8, 128], strides = [1, 1]} : vector<8x512xf32> to vector<8x128xf32>
    %434 = arith.negf %433 : vector<8x128xf32>
    %435 = math.exp %434 : vector<8x128xf32>
    %cst_189 = arith.constant 1.000000e+00 : f32
    %436 = vector.broadcast %cst_189 : f32 to vector<8x128xf32>
    %437 = arith.addf %436, %435 : vector<8x128xf32>
    %438 = arith.divf %436, %437 : vector<8x128xf32>
    %439 = vector.extract_strided_slice %432 {offsets = [0, 128], sizes = [8, 128], strides = [1, 1]} : vector<8x512xf32> to vector<8x128xf32>
    %440 = arith.negf %439 : vector<8x128xf32>
    %441 = math.exp %440 : vector<8x128xf32>
    %cst_190 = arith.constant 1.000000e+00 : f32
    %442 = vector.broadcast %cst_190 : f32 to vector<8x128xf32>
    %443 = arith.addf %442, %441 : vector<8x128xf32>
    %444 = arith.divf %442, %443 : vector<8x128xf32>
    %445 = vector.extract_strided_slice %432 {offsets = [0, 256], sizes = [8, 128], strides = [1, 1]} : vector<8x512xf32> to vector<8x128xf32>
    %446 = math.tanh %445 : vector<8x128xf32>
    %447 = vector.extract_strided_slice %432 {offsets = [0, 384], sizes = [8, 128], strides = [1, 1]} : vector<8x512xf32> to vector<8x128xf32>
    %448 = arith.negf %447 : vector<8x128xf32>
    %449 = math.exp %448 : vector<8x128xf32>
    %cst_191 = arith.constant 1.000000e+00 : f32
    %450 = vector.broadcast %cst_191 : f32 to vector<8x128xf32>
    %451 = arith.addf %450, %449 : vector<8x128xf32>
    %452 = arith.divf %450, %451 : vector<8x128xf32>
    %453 = arith.mulf %444, %424 : vector<8x128xf32>
    %454 = arith.mulf %438, %446 : vector<8x128xf32>
    %455 = arith.addf %453, %454 : vector<8x128xf32>
    %456 = math.tanh %455 : vector<8x128xf32>
    %457 = arith.mulf %452, %456 : vector<8x128xf32>
    %c0_192 = arith.constant 0 : index
    %c0_193 = arith.constant 0 : index
    %458 = vector.load %arg10[%c0_192, %c0_193] : memref<8x128xf32, #tpu.memory_space<vmem>>, vector<8x128xf32>
    tpu.vector_store %arg10[%c0_192, %c0_193], %455 {strides = array<i32>} : memref<8x128xf32, #tpu.memory_space<vmem>>, vector<8x128xf32>,
    %c0_194 = arith.constant 0 : index
    %c0_195 = arith.constant 0 : index
    %459 = vector.load %arg9[%c0_194, %c0_195] : memref<8x128xf32, #tpu.memory_space<vmem>>, vector<8x128xf32>
    tpu.vector_store %arg9[%c0_194, %c0_195], %457 {strides = array<i32>} : memref<8x128xf32, #tpu.memory_space<vmem>>, vector<8x128xf32>,
    %460 = arith.truncf %457 : vector<8x128xf32> to vector<8x128xbf16>
    %461 = arith.index_cast %c10_i32 : i32 to index
    %c0_196 = arith.constant 0 : index
    %c0_197 = arith.constant 0 : index
    %462 = vector.load %arg6[%461, %c0_196, %c0_197] : memref<16x8x128xbf16, #tpu.memory_space<vmem>>, vector<1x8x128xbf16>
    %463 = vector.shape_cast %462 : vector<1x8x128xbf16> to vector<8x128xbf16>
    %464 = vector.shape_cast %460 : vector<8x128xbf16> to vector<1x8x128xbf16>
    tpu.vector_store %arg6[%461, %c0_196, %c0_197], %464 {strides = array<i32>} : memref<16x8x128xbf16, #tpu.memory_space<vmem>>, vector<1x8x128xbf16>,
    %c11_i32 = arith.constant 11 : i32
    %c0_198 = arith.constant 0 : index
    %c0_199 = arith.constant 0 : index
    %465 = vector.load %arg9[%c0_198, %c0_199] : memref<8x128xf32, #tpu.memory_space<vmem>>, vector<8x128xf32>
    %c0_200 = arith.constant 0 : index
    %c0_201 = arith.constant 0 : index
    %466 = vector.load %arg10[%c0_200, %c0_201] : memref<8x128xf32, #tpu.memory_space<vmem>>, vector<8x128xf32>
    %467 = arith.index_cast %c11_i32 : i32 to index
    %c0_202 = arith.constant 0 : index
    %c0_203 = arith.constant 0 : index
    %468 = vector.load %arg2[%467, %c0_202, %c0_203] : memref<16x8x512xbf16, #tpu.memory_space<vmem>>, vector<1x8x512xbf16>
    %469 = vector.shape_cast %468 : vector<1x8x512xbf16> to vector<8x512xbf16>
    %470 = arith.extf %469 : vector<8x512xbf16> to vector<8x512xf32>
    %471 = arith.truncf %465 : vector<8x128xf32> to vector<8x128xbf16>
    %c0_204 = arith.constant 0 : index
    %c0_205 = arith.constant 0 : index
    %472 = vector.load %arg11[%c0_204, %c0_205] : memref<128x512xbf16, #tpu.memory_space<vmem>>, vector<128x512xbf16>
    %cst_206 = arith.constant dense<0.000000e+00> : vector<8x512xf32>
    %473 = tpu.matmul %471, %472, %cst_206 {dimension_numbers = #tpu.dot_dimension_numbers<[1], [0], [0], [1], [0, 0, 1, 1], [], []>} : vector<8x128xbf16>, vector<128x512xbf16>, vector<8x512xf32> -> vector<8x512xf32>
    %474 = arith.addf %470, %473 : vector<8x512xf32>
    %475 = vector.extract_strided_slice %474 {offsets = [0, 0], sizes = [8, 128], strides = [1, 1]} : vector<8x512xf32> to vector<8x128xf32>
    %476 = arith.negf %475 : vector<8x128xf32>
    %477 = math.exp %476 : vector<8x128xf32>
    %cst_207 = arith.constant 1.000000e+00 : f32
    %478 = vector.broadcast %cst_207 : f32 to vector<8x128xf32>
    %479 = arith.addf %478, %477 : vector<8x128xf32>
    %480 = arith.divf %478, %479 : vector<8x128xf32>
    %481 = vector.extract_strided_slice %474 {offsets = [0, 128], sizes = [8, 128], strides = [1, 1]} : vector<8x512xf32> to vector<8x128xf32>
    %482 = arith.negf %481 : vector<8x128xf32>
    %483 = math.exp %482 : vector<8x128xf32>
    %cst_208 = arith.constant 1.000000e+00 : f32
    %484 = vector.broadcast %cst_208 : f32 to vector<8x128xf32>
    %485 = arith.addf %484, %483 : vector<8x128xf32>
    %486 = arith.divf %484, %485 : vector<8x128xf32>
    %487 = vector.extract_strided_slice %474 {offsets = [0, 256], sizes = [8, 128], strides = [1, 1]} : vector<8x512xf32> to vector<8x128xf32>
    %488 = math.tanh %487 : vector<8x128xf32>
    %489 = vector.extract_strided_slice %474 {offsets = [0, 384], sizes = [8, 128], strides = [1, 1]} : vector<8x512xf32> to vector<8x128xf32>
    %490 = arith.negf %489 : vector<8x128xf32>
    %491 = math.exp %490 : vector<8x128xf32>
    %cst_209 = arith.constant 1.000000e+00 : f32
    %492 = vector.broadcast %cst_209 : f32 to vector<8x128xf32>
    %493 = arith.addf %492, %491 : vector<8x128xf32>
    %494 = arith.divf %492, %493 : vector<8x128xf32>
    %495 = arith.mulf %486, %466 : vector<8x128xf32>
    %496 = arith.mulf %480, %488 : vector<8x128xf32>
    %497 = arith.addf %495, %496 : vector<8x128xf32>
    %498 = math.tanh %497 : vector<8x128xf32>
    %499 = arith.mulf %494, %498 : vector<8x128xf32>
    %c0_210 = arith.constant 0 : index
    %c0_211 = arith.constant 0 : index
    %500 = vector.load %arg10[%c0_210, %c0_211] : memref<8x128xf32, #tpu.memory_space<vmem>>, vector<8x128xf32>
    tpu.vector_store %arg10[%c0_210, %c0_211], %497 {strides = array<i32>} : memref<8x128xf32, #tpu.memory_space<vmem>>, vector<8x128xf32>,
    %c0_212 = arith.constant 0 : index
    %c0_213 = arith.constant 0 : index
    %501 = vector.load %arg9[%c0_212, %c0_213] : memref<8x128xf32, #tpu.memory_space<vmem>>, vector<8x128xf32>
    tpu.vector_store %arg9[%c0_212, %c0_213], %499 {strides = array<i32>} : memref<8x128xf32, #tpu.memory_space<vmem>>, vector<8x128xf32>,
    %502 = arith.truncf %499 : vector<8x128xf32> to vector<8x128xbf16>
    %503 = arith.index_cast %c11_i32 : i32 to index
    %c0_214 = arith.constant 0 : index
    %c0_215 = arith.constant 0 : index
    %504 = vector.load %arg6[%503, %c0_214, %c0_215] : memref<16x8x128xbf16, #tpu.memory_space<vmem>>, vector<1x8x128xbf16>
    %505 = vector.shape_cast %504 : vector<1x8x128xbf16> to vector<8x128xbf16>
    %506 = vector.shape_cast %502 : vector<8x128xbf16> to vector<1x8x128xbf16>
    tpu.vector_store %arg6[%503, %c0_214, %c0_215], %506 {strides = array<i32>} : memref<16x8x128xbf16, #tpu.memory_space<vmem>>, vector<1x8x128xbf16>,
    %c12_i32 = arith.constant 12 : i32
    %c0_216 = arith.constant 0 : index
    %c0_217 = arith.constant 0 : index
    %507 = vector.load %arg9[%c0_216, %c0_217] : memref<8x128xf32, #tpu.memory_space<vmem>>, vector<8x128xf32>
    %c0_218 = arith.constant 0 : index
    %c0_219 = arith.constant 0 : index
    %508 = vector.load %arg10[%c0_218, %c0_219] : memref<8x128xf32, #tpu.memory_space<vmem>>, vector<8x128xf32>
    %509 = arith.index_cast %c12_i32 : i32 to index
    %c0_220 = arith.constant 0 : index
    %c0_221 = arith.constant 0 : index
    %510 = vector.load %arg2[%509, %c0_220, %c0_221] : memref<16x8x512xbf16, #tpu.memory_space<vmem>>, vector<1x8x512xbf16>
    %511 = vector.shape_cast %510 : vector<1x8x512xbf16> to vector<8x512xbf16>
    %512 = arith.extf %511 : vector<8x512xbf16> to vector<8x512xf32>
    %513 = arith.truncf %507 : vector<8x128xf32> to vector<8x128xbf16>
    %c0_222 = arith.constant 0 : index
    %c0_223 = arith.constant 0 : index
    %514 = vector.load %arg11[%c0_222, %c0_223] : memref<128x512xbf16, #tpu.memory_space<vmem>>, vector<128x512xbf16>
    %cst_224 = arith.constant dense<0.000000e+00> : vector<8x512xf32>
    %515 = tpu.matmul %513, %514, %cst_224 {dimension_numbers = #tpu.dot_dimension_numbers<[1], [0], [0], [1], [0, 0, 1, 1], [], []>} : vector<8x128xbf16>, vector<128x512xbf16>, vector<8x512xf32> -> vector<8x512xf32>
    %516 = arith.addf %512, %515 : vector<8x512xf32>
    %517 = vector.extract_strided_slice %516 {offsets = [0, 0], sizes = [8, 128], strides = [1, 1]} : vector<8x512xf32> to vector<8x128xf32>
    %518 = arith.negf %517 : vector<8x128xf32>
    %519 = math.exp %518 : vector<8x128xf32>
    %cst_225 = arith.constant 1.000000e+00 : f32
    %520 = vector.broadcast %cst_225 : f32 to vector<8x128xf32>
    %521 = arith.addf %520, %519 : vector<8x128xf32>
    %522 = arith.divf %520, %521 : vector<8x128xf32>
    %523 = vector.extract_strided_slice %516 {offsets = [0, 128], sizes = [8, 128], strides = [1, 1]} : vector<8x512xf32> to vector<8x128xf32>
    %524 = arith.negf %523 : vector<8x128xf32>
    %525 = math.exp %524 : vector<8x128xf32>
    %cst_226 = arith.constant 1.000000e+00 : f32
    %526 = vector.broadcast %cst_226 : f32 to vector<8x128xf32>
    %527 = arith.addf %526, %525 : vector<8x128xf32>
    %528 = arith.divf %526, %527 : vector<8x128xf32>
    %529 = vector.extract_strided_slice %516 {offsets = [0, 256], sizes = [8, 128], strides = [1, 1]} : vector<8x512xf32> to vector<8x128xf32>
    %530 = math.tanh %529 : vector<8x128xf32>
    %531 = vector.extract_strided_slice %516 {offsets = [0, 384], sizes = [8, 128], strides = [1, 1]} : vector<8x512xf32> to vector<8x128xf32>
    %532 = arith.negf %531 : vector<8x128xf32>
    %533 = math.exp %532 : vector<8x128xf32>
    %cst_227 = arith.constant 1.000000e+00 : f32
    %534 = vector.broadcast %cst_227 : f32 to vector<8x128xf32>
    %535 = arith.addf %534, %533 : vector<8x128xf32>
    %536 = arith.divf %534, %535 : vector<8x128xf32>
    %537 = arith.mulf %528, %508 : vector<8x128xf32>
    %538 = arith.mulf %522, %530 : vector<8x128xf32>
    %539 = arith.addf %537, %538 : vector<8x128xf32>
    %540 = math.tanh %539 : vector<8x128xf32>
    %541 = arith.mulf %536, %540 : vector<8x128xf32>
    %c0_228 = arith.constant 0 : index
    %c0_229 = arith.constant 0 : index
    %542 = vector.load %arg10[%c0_228, %c0_229] : memref<8x128xf32, #tpu.memory_space<vmem>>, vector<8x128xf32>
    tpu.vector_store %arg10[%c0_228, %c0_229], %539 {strides = array<i32>} : memref<8x128xf32, #tpu.memory_space<vmem>>, vector<8x128xf32>,
    %c0_230 = arith.constant 0 : index
    %c0_231 = arith.constant 0 : index
    %543 = vector.load %arg9[%c0_230, %c0_231] : memref<8x128xf32, #tpu.memory_space<vmem>>, vector<8x128xf32>
    tpu.vector_store %arg9[%c0_230, %c0_231], %541 {strides = array<i32>} : memref<8x128xf32, #tpu.memory_space<vmem>>, vector<8x128xf32>,
    %544 = arith.truncf %541 : vector<8x128xf32> to vector<8x128xbf16>
    %545 = arith.index_cast %c12_i32 : i32 to index
    %c0_232 = arith.constant 0 : index
    %c0_233 = arith.constant 0 : index
    %546 = vector.load %arg6[%545, %c0_232, %c0_233] : memref<16x8x128xbf16, #tpu.memory_space<vmem>>, vector<1x8x128xbf16>
    %547 = vector.shape_cast %546 : vector<1x8x128xbf16> to vector<8x128xbf16>
    %548 = vector.shape_cast %544 : vector<8x128xbf16> to vector<1x8x128xbf16>
    tpu.vector_store %arg6[%545, %c0_232, %c0_233], %548 {strides = array<i32>} : memref<16x8x128xbf16, #tpu.memory_space<vmem>>, vector<1x8x128xbf16>,
    %c13_i32 = arith.constant 13 : i32
    %c0_234 = arith.constant 0 : index
    %c0_235 = arith.constant 0 : index
    %549 = vector.load %arg9[%c0_234, %c0_235] : memref<8x128xf32, #tpu.memory_space<vmem>>, vector<8x128xf32>
    %c0_236 = arith.constant 0 : index
    %c0_237 = arith.constant 0 : index
    %550 = vector.load %arg10[%c0_236, %c0_237] : memref<8x128xf32, #tpu.memory_space<vmem>>, vector<8x128xf32>
    %551 = arith.index_cast %c13_i32 : i32 to index
    %c0_238 = arith.constant 0 : index
    %c0_239 = arith.constant 0 : index
    %552 = vector.load %arg2[%551, %c0_238, %c0_239] : memref<16x8x512xbf16, #tpu.memory_space<vmem>>, vector<1x8x512xbf16>
    %553 = vector.shape_cast %552 : vector<1x8x512xbf16> to vector<8x512xbf16>
    %554 = arith.extf %553 : vector<8x512xbf16> to vector<8x512xf32>
    %555 = arith.truncf %549 : vector<8x128xf32> to vector<8x128xbf16>
    %c0_240 = arith.constant 0 : index
    %c0_241 = arith.constant 0 : index
    %556 = vector.load %arg11[%c0_240, %c0_241] : memref<128x512xbf16, #tpu.memory_space<vmem>>, vector<128x512xbf16>
    %cst_242 = arith.constant dense<0.000000e+00> : vector<8x512xf32>
    %557 = tpu.matmul %555, %556, %cst_242 {dimension_numbers = #tpu.dot_dimension_numbers<[1], [0], [0], [1], [0, 0, 1, 1], [], []>} : vector<8x128xbf16>, vector<128x512xbf16>, vector<8x512xf32> -> vector<8x512xf32>
    %558 = arith.addf %554, %557 : vector<8x512xf32>
    %559 = vector.extract_strided_slice %558 {offsets = [0, 0], sizes = [8, 128], strides = [1, 1]} : vector<8x512xf32> to vector<8x128xf32>
    %560 = arith.negf %559 : vector<8x128xf32>
    %561 = math.exp %560 : vector<8x128xf32>
    %cst_243 = arith.constant 1.000000e+00 : f32
    %562 = vector.broadcast %cst_243 : f32 to vector<8x128xf32>
    %563 = arith.addf %562, %561 : vector<8x128xf32>
    %564 = arith.divf %562, %563 : vector<8x128xf32>
    %565 = vector.extract_strided_slice %558 {offsets = [0, 128], sizes = [8, 128], strides = [1, 1]} : vector<8x512xf32> to vector<8x128xf32>
    %566 = arith.negf %565 : vector<8x128xf32>
    %567 = math.exp %566 : vector<8x128xf32>
    %cst_244 = arith.constant 1.000000e+00 : f32
    %568 = vector.broadcast %cst_244 : f32 to vector<8x128xf32>
    %569 = arith.addf %568, %567 : vector<8x128xf32>
    %570 = arith.divf %568, %569 : vector<8x128xf32>
    %571 = vector.extract_strided_slice %558 {offsets = [0, 256], sizes = [8, 128], strides = [1, 1]} : vector<8x512xf32> to vector<8x128xf32>
    %572 = math.tanh %571 : vector<8x128xf32>
    %573 = vector.extract_strided_slice %558 {offsets = [0, 384], sizes = [8, 128], strides = [1, 1]} : vector<8x512xf32> to vector<8x128xf32>
    %574 = arith.negf %573 : vector<8x128xf32>
    %575 = math.exp %574 : vector<8x128xf32>
    %cst_245 = arith.constant 1.000000e+00 : f32
    %576 = vector.broadcast %cst_245 : f32 to vector<8x128xf32>
    %577 = arith.addf %576, %575 : vector<8x128xf32>
    %578 = arith.divf %576, %577 : vector<8x128xf32>
    %579 = arith.mulf %570, %550 : vector<8x128xf32>
    %580 = arith.mulf %564, %572 : vector<8x128xf32>
    %581 = arith.addf %579, %580 : vector<8x128xf32>
    %582 = math.tanh %581 : vector<8x128xf32>
    %583 = arith.mulf %578, %582 : vector<8x128xf32>
    %c0_246 = arith.constant 0 : index
    %c0_247 = arith.constant 0 : index
    %584 = vector.load %arg10[%c0_246, %c0_247] : memref<8x128xf32, #tpu.memory_space<vmem>>, vector<8x128xf32>
    tpu.vector_store %arg10[%c0_246, %c0_247], %581 {strides = array<i32>} : memref<8x128xf32, #tpu.memory_space<vmem>>, vector<8x128xf32>,
    %c0_248 = arith.constant 0 : index
    %c0_249 = arith.constant 0 : index
    %585 = vector.load %arg9[%c0_248, %c0_249] : memref<8x128xf32, #tpu.memory_space<vmem>>, vector<8x128xf32>
    tpu.vector_store %arg9[%c0_248, %c0_249], %583 {strides = array<i32>} : memref<8x128xf32, #tpu.memory_space<vmem>>, vector<8x128xf32>,
    %586 = arith.truncf %583 : vector<8x128xf32> to vector<8x128xbf16>
    %587 = arith.index_cast %c13_i32 : i32 to index
    %c0_250 = arith.constant 0 : index
    %c0_251 = arith.constant 0 : index
    %588 = vector.load %arg6[%587, %c0_250, %c0_251] : memref<16x8x128xbf16, #tpu.memory_space<vmem>>, vector<1x8x128xbf16>
    %589 = vector.shape_cast %588 : vector<1x8x128xbf16> to vector<8x128xbf16>
    %590 = vector.shape_cast %586 : vector<8x128xbf16> to vector<1x8x128xbf16>
    tpu.vector_store %arg6[%587, %c0_250, %c0_251], %590 {strides = array<i32>} : memref<16x8x128xbf16, #tpu.memory_space<vmem>>, vector<1x8x128xbf16>,
    %c14_i32 = arith.constant 14 : i32
    %c0_252 = arith.constant 0 : index
    %c0_253 = arith.constant 0 : index
    %591 = vector.load %arg9[%c0_252, %c0_253] : memref<8x128xf32, #tpu.memory_space<vmem>>, vector<8x128xf32>
    %c0_254 = arith.constant 0 : index
    %c0_255 = arith.constant 0 : index
    %592 = vector.load %arg10[%c0_254, %c0_255] : memref<8x128xf32, #tpu.memory_space<vmem>>, vector<8x128xf32>
    %593 = arith.index_cast %c14_i32 : i32 to index
    %c0_256 = arith.constant 0 : index
    %c0_257 = arith.constant 0 : index
    %594 = vector.load %arg2[%593, %c0_256, %c0_257] : memref<16x8x512xbf16, #tpu.memory_space<vmem>>, vector<1x8x512xbf16>
    %595 = vector.shape_cast %594 : vector<1x8x512xbf16> to vector<8x512xbf16>
    %596 = arith.extf %595 : vector<8x512xbf16> to vector<8x512xf32>
    %597 = arith.truncf %591 : vector<8x128xf32> to vector<8x128xbf16>
    %c0_258 = arith.constant 0 : index
    %c0_259 = arith.constant 0 : index
    %598 = vector.load %arg11[%c0_258, %c0_259] : memref<128x512xbf16, #tpu.memory_space<vmem>>, vector<128x512xbf16>
    %cst_260 = arith.constant dense<0.000000e+00> : vector<8x512xf32>
    %599 = tpu.matmul %597, %598, %cst_260 {dimension_numbers = #tpu.dot_dimension_numbers<[1], [0], [0], [1], [0, 0, 1, 1], [], []>} : vector<8x128xbf16>, vector<128x512xbf16>, vector<8x512xf32> -> vector<8x512xf32>
    %600 = arith.addf %596, %599 : vector<8x512xf32>
    %601 = vector.extract_strided_slice %600 {offsets = [0, 0], sizes = [8, 128], strides = [1, 1]} : vector<8x512xf32> to vector<8x128xf32>
    %602 = arith.negf %601 : vector<8x128xf32>
    %603 = math.exp %602 : vector<8x128xf32>
    %cst_261 = arith.constant 1.000000e+00 : f32
    %604 = vector.broadcast %cst_261 : f32 to vector<8x128xf32>
    %605 = arith.addf %604, %603 : vector<8x128xf32>
    %606 = arith.divf %604, %605 : vector<8x128xf32>
    %607 = vector.extract_strided_slice %600 {offsets = [0, 128], sizes = [8, 128], strides = [1, 1]} : vector<8x512xf32> to vector<8x128xf32>
    %608 = arith.negf %607 : vector<8x128xf32>
    %609 = math.exp %608 : vector<8x128xf32>
    %cst_262 = arith.constant 1.000000e+00 : f32
    %610 = vector.broadcast %cst_262 : f32 to vector<8x128xf32>
    %611 = arith.addf %610, %609 : vector<8x128xf32>
    %612 = arith.divf %610, %611 : vector<8x128xf32>
    %613 = vector.extract_strided_slice %600 {offsets = [0, 256], sizes = [8, 128], strides = [1, 1]} : vector<8x512xf32> to vector<8x128xf32>
    %614 = math.tanh %613 : vector<8x128xf32>
    %615 = vector.extract_strided_slice %600 {offsets = [0, 384], sizes = [8, 128], strides = [1, 1]} : vector<8x512xf32> to vector<8x128xf32>
    %616 = arith.negf %615 : vector<8x128xf32>
    %617 = math.exp %616 : vector<8x128xf32>
    %cst_263 = arith.constant 1.000000e+00 : f32
    %618 = vector.broadcast %cst_263 : f32 to vector<8x128xf32>
    %619 = arith.addf %618, %617 : vector<8x128xf32>
    %620 = arith.divf %618, %619 : vector<8x128xf32>
    %621 = arith.mulf %612, %592 : vector<8x128xf32>
    %622 = arith.mulf %606, %614 : vector<8x128xf32>
    %623 = arith.addf %621, %622 : vector<8x128xf32>
    %624 = math.tanh %623 : vector<8x128xf32>
    %625 = arith.mulf %620, %624 : vector<8x128xf32>
    %c0_264 = arith.constant 0 : index
    %c0_265 = arith.constant 0 : index
    %626 = vector.load %arg10[%c0_264, %c0_265] : memref<8x128xf32, #tpu.memory_space<vmem>>, vector<8x128xf32>
    tpu.vector_store %arg10[%c0_264, %c0_265], %623 {strides = array<i32>} : memref<8x128xf32, #tpu.memory_space<vmem>>, vector<8x128xf32>,
    %c0_266 = arith.constant 0 : index
    %c0_267 = arith.constant 0 : index
    %627 = vector.load %arg9[%c0_266, %c0_267] : memref<8x128xf32, #tpu.memory_space<vmem>>, vector<8x128xf32>
    tpu.vector_store %arg9[%c0_266, %c0_267], %625 {strides = array<i32>} : memref<8x128xf32, #tpu.memory_space<vmem>>, vector<8x128xf32>,
    %628 = arith.truncf %625 : vector<8x128xf32> to vector<8x128xbf16>
    %629 = arith.index_cast %c14_i32 : i32 to index
    %c0_268 = arith.constant 0 : index
    %c0_269 = arith.constant 0 : index
    %630 = vector.load %arg6[%629, %c0_268, %c0_269] : memref<16x8x128xbf16, #tpu.memory_space<vmem>>, vector<1x8x128xbf16>
    %631 = vector.shape_cast %630 : vector<1x8x128xbf16> to vector<8x128xbf16>
    %632 = vector.shape_cast %628 : vector<8x128xbf16> to vector<1x8x128xbf16>
    tpu.vector_store %arg6[%629, %c0_268, %c0_269], %632 {strides = array<i32>} : memref<16x8x128xbf16, #tpu.memory_space<vmem>>, vector<1x8x128xbf16>,
    %c15_i32 = arith.constant 15 : i32
    %c0_270 = arith.constant 0 : index
    %c0_271 = arith.constant 0 : index
    %633 = vector.load %arg9[%c0_270, %c0_271] : memref<8x128xf32, #tpu.memory_space<vmem>>, vector<8x128xf32>
    %c0_272 = arith.constant 0 : index
    %c0_273 = arith.constant 0 : index
    %634 = vector.load %arg10[%c0_272, %c0_273] : memref<8x128xf32, #tpu.memory_space<vmem>>, vector<8x128xf32>
    %635 = arith.index_cast %c15_i32 : i32 to index
    %c0_274 = arith.constant 0 : index
    %c0_275 = arith.constant 0 : index
    %636 = vector.load %arg2[%635, %c0_274, %c0_275] : memref<16x8x512xbf16, #tpu.memory_space<vmem>>, vector<1x8x512xbf16>
    %637 = vector.shape_cast %636 : vector<1x8x512xbf16> to vector<8x512xbf16>
    %638 = arith.extf %637 : vector<8x512xbf16> to vector<8x512xf32>
    %639 = arith.truncf %633 : vector<8x128xf32> to vector<8x128xbf16>
    %c0_276 = arith.constant 0 : index
    %c0_277 = arith.constant 0 : index
    %640 = vector.load %arg11[%c0_276, %c0_277] : memref<128x512xbf16, #tpu.memory_space<vmem>>, vector<128x512xbf16>
    %cst_278 = arith.constant dense<0.000000e+00> : vector<8x512xf32>
    %641 = tpu.matmul %639, %640, %cst_278 {dimension_numbers = #tpu.dot_dimension_numbers<[1], [0], [0], [1], [0, 0, 1, 1], [], []>} : vector<8x128xbf16>, vector<128x512xbf16>, vector<8x512xf32> -> vector<8x512xf32>
    %642 = arith.addf %638, %641 : vector<8x512xf32>
    %643 = vector.extract_strided_slice %642 {offsets = [0, 0], sizes = [8, 128], strides = [1, 1]} : vector<8x512xf32> to vector<8x128xf32>
    %644 = arith.negf %643 : vector<8x128xf32>
    %645 = math.exp %644 : vector<8x128xf32>
    %cst_279 = arith.constant 1.000000e+00 : f32
    %646 = vector.broadcast %cst_279 : f32 to vector<8x128xf32>
    %647 = arith.addf %646, %645 : vector<8x128xf32>
    %648 = arith.divf %646, %647 : vector<8x128xf32>
    %649 = vector.extract_strided_slice %642 {offsets = [0, 128], sizes = [8, 128], strides = [1, 1]} : vector<8x512xf32> to vector<8x128xf32>
    %650 = arith.negf %649 : vector<8x128xf32>
    %651 = math.exp %650 : vector<8x128xf32>
    %cst_280 = arith.constant 1.000000e+00 : f32
    %652 = vector.broadcast %cst_280 : f32 to vector<8x128xf32>
    %653 = arith.addf %652, %651 : vector<8x128xf32>
    %654 = arith.divf %652, %653 : vector<8x128xf32>
    %655 = vector.extract_strided_slice %642 {offsets = [0, 256], sizes = [8, 128], strides = [1, 1]} : vector<8x512xf32> to vector<8x128xf32>
    %656 = math.tanh %655 : vector<8x128xf32>
    %657 = vector.extract_strided_slice %642 {offsets = [0, 384], sizes = [8, 128], strides = [1, 1]} : vector<8x512xf32> to vector<8x128xf32>
    %658 = arith.negf %657 : vector<8x128xf32>
    %659 = math.exp %658 : vector<8x128xf32>
    %cst_281 = arith.constant 1.000000e+00 : f32
    %660 = vector.broadcast %cst_281 : f32 to vector<8x128xf32>
    %661 = arith.addf %660, %659 : vector<8x128xf32>
    %662 = arith.divf %660, %661 : vector<8x128xf32>
    %663 = arith.mulf %654, %634 : vector<8x128xf32>
    %664 = arith.mulf %648, %656 : vector<8x128xf32>
    %665 = arith.addf %663, %664 : vector<8x128xf32>
    %666 = math.tanh %665 : vector<8x128xf32>
    %667 = arith.mulf %662, %666 : vector<8x128xf32>
    %c0_282 = arith.constant 0 : index
    %c0_283 = arith.constant 0 : index
    %668 = vector.load %arg10[%c0_282, %c0_283] : memref<8x128xf32, #tpu.memory_space<vmem>>, vector<8x128xf32>
    tpu.vector_store %arg10[%c0_282, %c0_283], %665 {strides = array<i32>} : memref<8x128xf32, #tpu.memory_space<vmem>>, vector<8x128xf32>,
    %c0_284 = arith.constant 0 : index
    %c0_285 = arith.constant 0 : index
    %669 = vector.load %arg9[%c0_284, %c0_285] : memref<8x128xf32, #tpu.memory_space<vmem>>, vector<8x128xf32>
    tpu.vector_store %arg9[%c0_284, %c0_285], %667 {strides = array<i32>} : memref<8x128xf32, #tpu.memory_space<vmem>>, vector<8x128xf32>,
    %670 = arith.truncf %667 : vector<8x128xf32> to vector<8x128xbf16>
    %671 = arith.index_cast %c15_i32 : i32 to index
    %c0_286 = arith.constant 0 : index
    %c0_287 = arith.constant 0 : index
    %672 = vector.load %arg6[%671, %c0_286, %c0_287] : memref<16x8x128xbf16, #tpu.memory_space<vmem>>, vector<1x8x128xbf16>
    %673 = vector.shape_cast %672 : vector<1x8x128xbf16> to vector<8x128xbf16>
    %674 = vector.shape_cast %670 : vector<8x128xbf16> to vector<1x8x128xbf16>
    tpu.vector_store %arg6[%671, %c0_286, %c0_287], %674 {strides = array<i32>} : memref<16x8x128xbf16, #tpu.memory_space<vmem>>, vector<1x8x128xbf16>,
    %c16_i32 = arith.constant 16 : i32
    %c0_i32_288 = arith.constant 0 : i32
    %675 = arith.cmpi eq, %arg1, %c0_i32_288 : i32
    %676 = arith.extui %675 : i1 to i32
    %c0_i32_289 = arith.constant 0 : i32
    %677 = arith.cmpi ne, %676, %c0_i32_289 : i32
    scf.if %677 {
      %c0_290 = arith.constant 0 : index
      %c0_291 = arith.constant 0 : index
      %678 = vector.load %arg9[%c0_290, %c0_291] : memref<8x128xf32, #tpu.memory_space<vmem>>, vector<8x128xf32>
      %c0_292 = arith.constant 0 : index
      %c0_293 = arith.constant 0 : index
      %679 = vector.load %arg7[%c0_292, %c0_293] : memref<8x128xf32, #tpu.memory_space<vmem>>, vector<8x128xf32>
      tpu.vector_store %arg7[%c0_292, %c0_293], %678 {strides = array<i32>} : memref<8x128xf32, #tpu.memory_space<vmem>>, vector<8x128xf32>,
      %c0_294 = arith.constant 0 : index
      %c0_295 = arith.constant 0 : index
      %680 = vector.load %arg10[%c0_294, %c0_295] : memref<8x128xf32, #tpu.memory_space<vmem>>, vector<8x128xf32>
      %c0_296 = arith.constant 0 : index
      %c0_297 = arith.constant 0 : index
      %681 = vector.load %arg8[%c0_296, %c0_297] : memref<8x128xf32, #tpu.memory_space<vmem>>, vector<8x128xf32>
      tpu.vector_store %arg8[%c0_296, %c0_297], %680 {strides = array<i32>} : memref<8x128xf32, #tpu.memory_space<vmem>>, vector<8x128xf32>,
    } else {
    }
    return
  }
  func.func @transform_0(%arg0: i32, %arg1: i32) -> (i32, i32, i32) {
    %c0_i32 = arith.constant 0 : i32
    %c0_i32_0 = arith.constant 0 : i32
    return %arg1, %arg0, %c0_i32 : i32, i32, i32
  }
  func.func @transform_1(%arg0: i32, %arg1: i32) -> (i32, i32) {
    %c0_i32 = arith.constant 0 : i32
    %c0_i32_0 = arith.constant 0 : i32
    return %arg0, %c0_i32 : i32, i32
  }
  func.func @transform_2(%arg0: i32, %arg1: i32) -> (i32, i32) {
    %c0_i32 = arith.constant 0 : i32
    %c0_i32_0 = arith.constant 0 : i32
    return %arg0, %c0_i32 : i32, i32
  }
  func.func @transform_4(%arg0: i32, %arg1: i32) -> (i32, i32, i32) {
    %c0_i32 = arith.constant 0 : i32
    %c0_i32_0 = arith.constant 0 : i32
    return %arg1, %arg0, %c0_i32 : i32, i32, i32
  }
  func.func @transform_5(%arg0: i32, %arg1: i32) -> (i32, i32) {
    %c0_i32 = arith.constant 0 : i32
    %c0_i32_0 = arith.constant 0 : i32
    return %arg0, %c0_i32 : i32, i32
  }
  func.func @transform_6(%arg0: i32, %arg1: i32) -> (i32, i32) {
    %c0_i32 = arith.constant 0 : i32
    %c0_i32_0 = arith.constant 0 : i32
    return %arg0, %c0_i32 : i32, i32
  }
}

</mosaic_0001>

<llo_original>
// kernel: rnn_model_forward.5
$region0: #{rnn_model_forward.5}
  #allocation0 [shape = 'u32[]', space=smem, size = 0x4, offset = 0x4, fixed_abs, tag = 'smem constant byte address 0x4 - core index']
  #allocation1 [shape = 'u32[144,128]{1,0:T(1,128)}', space=vmem, size = 0x12000, scoped, tag = 'internal scratch']
  %s0 = inlined_call_operand.vmem [shape: bf16[256,128], index: 0, kind: input, shape index: {}]
  %s1 = inlined_call_operand.vmem [shape: bf16[128,512], index: 1, kind: input, shape index: {}]
  %s2 = inlined_call_operand.vmem [shape: f32[1,512], index: 2, kind: input, shape index: {}]
  %s3 = inlined_call_operand.hbm [shape: f32[256,512], index: 3, kind: output, shape index: {}]
  %s4 = sld [smem:[#allocation0]]
  $region22: #{rnn_model_forward.5} parent=0
    _
  %s6 = ssub.s32 1, %s4
  %s7 = scalar_select 0, %s6, %s4
  $region1: #{rnn_model_forward.5} parent=0
    #allocation2 [shape = 'u8[524288]{0}', space=vmem, size = 0x80000, scoped, tag = 'output window, operand 0, single buffered']
    #allocation3 [shape = 's32[1]{0}', space=sflag, size = 0x4, scoped, tag = 'scoped memory for rnn_model_forward.5']
    %8 = vsyncpa [#allocation3], 0
    // Predicated region
    $region2: #{rnn_model_forward.5} parent=1 // pred_check
      _
    $region3: #{rnn_model_forward.5} parent=1 // pred_check_branch
      %10 = sbr.rel (0) target = $region5
    $region4: #{rnn_model_forward.5} parent=1 // pred_region
      _
    $region5: #{rnn_model_forward.5} parent=1 // pred_fallthru
      _
    // Predicated region
    $region6: #{rnn_model_forward.5} parent=1 // pred_check
      _
    $region7: #{rnn_model_forward.5} parent=1 // pred_check_branch
      %12 = sbr.rel (0) target = $region9
    $region8: #{rnn_model_forward.5} parent=1 // pred_region
      _
    $region9: #{rnn_model_forward.5} parent=1 // pred_fallthru
      _
    // Predicated region
    $region10: #{rnn_model_forward.5} parent=1 // pred_check
      _
    $region11: #{rnn_model_forward.5} parent=1 // pred_check_branch
      %14 = sbr.rel (0) target = $region13
    $region12: #{rnn_model_forward.5} parent=1 // pred_region
      _
    $region13: #{rnn_model_forward.5} parent=1 // pred_fallthru
      _
    %v16 = vld [vmem:[%s0] sm:$0xf]
    %v17 = vld [vmem:[%s0 + $0x4] sm:$0xf]
    %v18 = vld [vmem:[%s0 + $0x8] sm:$0xf]
    %v19 = vld [vmem:[%s0 + $0xc] sm:$0xf]
    %v20 = vld [vmem:[%s0 + $0x10] sm:$0xf]
    %v21 = vld [vmem:[%s0 + $0x14] sm:$0xf]
    %v22 = vld [vmem:[%s0 + $0x18] sm:$0xf]
    %v23 = vld [vmem:[%s0 + $0x1c] sm:$0xf]
    %v24 = vld [vmem:[%s0 + $0x20] sm:$0xf]
    %v25 = vld [vmem:[%s0 + $0x24] sm:$0xf]
    %v26 = vld [vmem:[%s0 + $0x28] sm:$0xf]
    %v27 = vld [vmem:[%s0 + $0x2c] sm:$0xf]
    %v28 = vld [vmem:[%s0 + $0x30] sm:$0xf]
    %v29 = vld [vmem:[%s0 + $0x34] sm:$0xf]
    %v30 = vld [vmem:[%s0 + $0x38] sm:$0xf]
    %v31 = vld [vmem:[%s0 + $0x3c] sm:$0xf]
    %v32 = vld [vmem:[%s0 + $0x40] sm:$0xf]
    %v33 = vld [vmem:[%s0 + $0x44] sm:$0xf]
    %v34 = vld [vmem:[%s0 + $0x48] sm:$0xf]
    %v35 = vld [vmem:[%s0 + $0x4c] sm:$0xf]
    %v36 = vld [vmem:[%s0 + $0x50] sm:$0xf]
    %v37 = vld [vmem:[%s0 + $0x54] sm:$0xf]
    %v38 = vld [vmem:[%s0 + $0x58] sm:$0xf]
    %v39 = vld [vmem:[%s0 + $0x5c] sm:$0xf]
    %v40 = vld [vmem:[%s0 + $0x60] sm:$0xf]
    %v41 = vld [vmem:[%s0 + $0x64] sm:$0xf]
    %v42 = vld [vmem:[%s0 + $0x68] sm:$0xf]
    %v43 = vld [vmem:[%s0 + $0x6c] sm:$0xf]
    %v44 = vld [vmem:[%s0 + $0x70] sm:$0xf]
    %v45 = vld [vmem:[%s0 + $0x74] sm:$0xf]
    %v46 = vld [vmem:[%s0 + $0x78] sm:$0xf]
    %v47 = vld [vmem:[%s0 + $0x7c] sm:$0xf]
    %v48 = vld [vmem:[%s1] sm:$0xff]
    %v49 = vld [vmem:[%s1 + $0x8] sm:$0xff]
    %v50 = vld [vmem:[%s1 + $0x10] sm:$0xff]
    %v51 = vld [vmem:[%s1 + $0x18] sm:$0xff]
    %v52 = vld [vmem:[%s1 + $0x20] sm:$0xff]
    %v53 = vld [vmem:[%s1 + $0x28] sm:$0xff]
    %v54 = vld [vmem:[%s1 + $0x30] sm:$0xff]
    %v55 = vld [vmem:[%s1 + $0x38] sm:$0xff]
    %v56 = vld [vmem:[%s1 + $0x40] sm:$0xff]
    %v57 = vld [vmem:[%s1 + $0x48] sm:$0xff]
    %v58 = vld [vmem:[%s1 + $0x50] sm:$0xff]
    %v59 = vld [vmem:[%s1 + $0x58] sm:$0xff]
    %v60 = vld [vmem:[%s1 + $0x60] sm:$0xff]
    %v61 = vld [vmem:[%s1 + $0x68] sm:$0xff]
    %v62 = vld [vmem:[%s1 + $0x70] sm:$0xff]
    %v63 = vld [vmem:[%s1 + $0x78] sm:$0xff]
    %v64 = vld [vmem:[%s1 + $0x80] sm:$0xff]
    %v65 = vld [vmem:[%s1 + $0x88] sm:$0xff]
    %v66 = vld [vmem:[%s1 + $0x90] sm:$0xff]
    %v67 = vld [vmem:[%s1 + $0x98] sm:$0xff]
    %v68 = vld [vmem:[%s1 + $0xa0] sm:$0xff]
    %v69 = vld [vmem:[%s1 + $0xa8] sm:$0xff]
    %v70 = vld [vmem:[%s1 + $0xb0] sm:$0xff]
    %v71 = vld [vmem:[%s1 + $0xb8] sm:$0xff]
    %v72 = vld [vmem:[%s1 + $0xc0] sm:$0xff]
    %v73 = vld [vmem:[%s1 + $0xc8] sm:$0xff]
    %v74 = vld [vmem:[%s1 + $0xd0] sm:$0xff]
    %v75 = vld [vmem:[%s1 + $0xd8] sm:$0xff]
    %v76 = vld [vmem:[%s1 + $0xe0] sm:$0xff]
    %v77 = vld [vmem:[%s1 + $0xe8] sm:$0xff]
    %v78 = vld [vmem:[%s1 + $0xf0] sm:$0xff]
    %v79 = vld [vmem:[%s1 + $0xf8] sm:$0xff]
    %v80 = vld [vmem:[%s2] sm:$0xf]
    %v82 = vlaneseq
    %v83 = vshrl.u32 %v82, 7
    %v84 = vsub.s32 0, %v83
    %v85 = vrot.slane %v80, %v84
    %v86 = vlaneseq
    %v87 = vshrl.u32 %v86, 7
    %v88 = vsub.s32 1, %v87
    %v89 = vrot.slane %v80, %v88
    %v90 = vlaneseq
    %v91 = vshrl.u32 %v90, 7
    %v92 = vsub.s32 2, %v91
    %v93 = vrot.slane %v80, %v92
    %v94 = vlaneseq
    %v95 = vshrl.u32 %v94, 7
    %v96 = vsub.s32 3, %v95
    %v97 = vrot.slane %v80, %v96
    %v134 = vunpack.c.l.b16 %v16
    %v135 = vunpack.c.l.b16 %v17
    %v136 = vunpack.c.l.b16 %v18
    %v137 = vunpack.c.l.b16 %v19
    %v138 = vunpack.c.l.b16 %v20
    %v139 = vunpack.c.l.b16 %v21
    %v140 = vunpack.c.l.b16 %v22
    %v141 = vunpack.c.l.b16 %v23
    %v142 = vunpack.c.l.b16 %v24
    %v143 = vunpack.c.l.b16 %v25
    %v144 = vunpack.c.l.b16 %v26
    %v145 = vunpack.c.l.b16 %v27
    %v146 = vunpack.c.l.b16 %v28
    %v147 = vunpack.c.l.b16 %v29
    %v148 = vunpack.c.l.b16 %v30
    %v149 = vunpack.c.l.b16 %v31
    %v150 = vunpack.c.l.b16 %v32
    %v151 = vunpack.c.l.b16 %v33
    %v152 = vunpack.c.l.b16 %v34
    %v153 = vunpack.c.l.b16 %v35
    %v154 = vunpack.c.l.b16 %v36
    %v155 = vunpack.c.l.b16 %v37
    %v156 = vunpack.c.l.b16 %v38
    %v157 = vunpack.c.l.b16 %v39
    %v158 = vunpack.c.l.b16 %v40
    %v159 = vunpack.c.l.b16 %v41
    %v160 = vunpack.c.l.b16 %v42
    %v161 = vunpack.c.l.b16 %v43
    %v162 = vunpack.c.l.b16 %v44
    %v163 = vunpack.c.l.b16 %v45
    %v164 = vunpack.c.l.b16 %v46
    %v165 = vunpack.c.l.b16 %v47
    %v166 = vpack.c.b16 %v135, %v134
    %v167 = vpack.c.b16 %v137, %v136
    %v168 = vpack.c.b16 %v139, %v138
    %v169 = vpack.c.b16 %v141, %v140
    %v170 = vpack.c.b16 %v143, %v142
    %v171 = vpack.c.b16 %v145, %v144
    %v172 = vpack.c.b16 %v147, %v146
    %v173 = vpack.c.b16 %v149, %v148
    %v174 = vpack.c.b16 %v151, %v150
    %v175 = vpack.c.b16 %v153, %v152
    %v176 = vpack.c.b16 %v155, %v154
    %v177 = vpack.c.b16 %v157, %v156
    %v178 = vpack.c.b16 %v159, %v158
    %v179 = vpack.c.b16 %v161, %v160
    %v180 = vpack.c.b16 %v163, %v162
    %v181 = vpack.c.b16 %v165, %v164
    %v230 = vunpack.c.l.b16 %v48
    %v231 = vunpack.c.h.b16 %v48
    %v232 = vunpack.c.l.b16 %v49
    %v233 = vunpack.c.h.b16 %v49
    %v234 = vunpack.c.l.b16 %v50
    %v235 = vunpack.c.h.b16 %v50
    %v236 = vunpack.c.l.b16 %v51
    %v237 = vunpack.c.h.b16 %v51
    %v238 = vunpack.c.l.b16 %v52
    %v239 = vunpack.c.h.b16 %v52
    %v240 = vunpack.c.l.b16 %v53
    %v241 = vunpack.c.h.b16 %v53
    %v242 = vunpack.c.l.b16 %v54
    %v243 = vunpack.c.h.b16 %v54
    %v244 = vunpack.c.l.b16 %v55
    %v245 = vunpack.c.h.b16 %v55
    %v246 = vunpack.c.l.b16 %v56
    %v247 = vunpack.c.h.b16 %v56
    %v248 = vunpack.c.l.b16 %v57
    %v249 = vunpack.c.h.b16 %v57
    %v250 = vunpack.c.l.b16 %v58
    %v251 = vunpack.c.h.b16 %v58
    %v252 = vunpack.c.l.b16 %v59
    %v253 = vunpack.c.h.b16 %v59
    %v254 = vunpack.c.l.b16 %v60
    %v255 = vunpack.c.h.b16 %v60
    %v256 = vunpack.c.l.b16 %v61
    %v257 = vunpack.c.h.b16 %v61
    %v258 = vunpack.c.l.b16 %v62
    %v259 = vunpack.c.h.b16 %v62
    %v260 = vunpack.c.l.b16 %v63
    %v261 = vunpack.c.h.b16 %v63
    %v262 = vunpack.c.l.b16 %v64
    %v263 = vunpack.c.h.b16 %v64
    %v264 = vunpack.c.l.b16 %v65
    %v265 = vunpack.c.h.b16 %v65
    %v266 = vunpack.c.l.b16 %v66
    %v267 = vunpack.c.h.b16 %v66
    %v268 = vunpack.c.l.b16 %v67
    %v269 = vunpack.c.h.b16 %v67
    %v270 = vunpack.c.l.b16 %v68
    %v271 = vunpack.c.h.b16 %v68
    %v272 = vunpack.c.l.b16 %v69
    %v273 = vunpack.c.h.b16 %v69
    %v274 = vunpack.c.l.b16 %v70
    %v275 = vunpack.c.h.b16 %v70
    %v276 = vunpack.c.l.b16 %v71
    %v277 = vunpack.c.h.b16 %v71
    %v278 = vunpack.c.l.b16 %v72
    %v279 = vunpack.c.h.b16 %v72
    %v280 = vunpack.c.l.b16 %v73
    %v281 = vunpack.c.h.b16 %v73
    %v282 = vunpack.c.l.b16 %v74
    %v283 = vunpack.c.h.b16 %v74
    %v284 = vunpack.c.l.b16 %v75
    %v285 = vunpack.c.h.b16 %v75
    %v286 = vunpack.c.l.b16 %v76
    %v287 = vunpack.c.h.b16 %v76
    %v288 = vunpack.c.l.b16 %v77
    %v289 = vunpack.c.h.b16 %v77
    %v290 = vunpack.c.l.b16 %v78
    %v291 = vunpack.c.h.b16 %v78
    %v292 = vunpack.c.l.b16 %v79
    %v293 = vunpack.c.h.b16 %v79
    %v294 = vpack.c.b16 %v234, %v230
    %v295 = vpack.c.b16 %v235, %v231
    %v296 = vpack.c.b16 %v236, %v232
    %v297 = vpack.c.b16 %v237, %v233
    %v298 = vpack.c.b16 %v242, %v238
    %v299 = vpack.c.b16 %v243, %v239
    %v300 = vpack.c.b16 %v244, %v240
    %v301 = vpack.c.b16 %v245, %v241
    %v302 = vpack.c.b16 %v250, %v246
    %v303 = vpack.c.b16 %v251, %v247
    %v304 = vpack.c.b16 %v252, %v248
    %v305 = vpack.c.b16 %v253, %v249
    %v306 = vpack.c.b16 %v258, %v254
    %v307 = vpack.c.b16 %v259, %v255
    %v308 = vpack.c.b16 %v260, %v256
    %v309 = vpack.c.b16 %v261, %v257
    %v310 = vpack.c.b16 %v266, %v262
    %v311 = vpack.c.b16 %v267, %v263
    %v312 = vpack.c.b16 %v268, %v264
    %v313 = vpack.c.b16 %v269, %v265
    %v314 = vpack.c.b16 %v274, %v270
    %v315 = vpack.c.b16 %v275, %v271
    %v316 = vpack.c.b16 %v276, %v272
    %v317 = vpack.c.b16 %v277, %v273
    %v318 = vpack.c.b16 %v282, %v278
    %v319 = vpack.c.b16 %v283, %v279
    %v320 = vpack.c.b16 %v284, %v280
    %v321 = vpack.c.b16 %v285, %v281
    %v322 = vpack.c.b16 %v290, %v286
    %v323 = vpack.c.b16 %v291, %v287
    %v324 = vpack.c.b16 %v292, %v288
    %v325 = vpack.c.b16 %v293, %v289
    %358 = vmatprep.subr.bf16.mxu0 %v323
    %359 = vmatpush1.bf16.msra.mxu0 %v322
    %360 = vmatprep.subr.bf16.mxu0 %v319
    %361 = vmatpush1.bf16.msra.mxu0 %v318
    %362 = vmatprep.subr.bf16.mxu0 %v315
    %363 = vmatpush1.bf16.msra.mxu0 %v314
    %364 = vmatprep.subr.bf16.mxu0 %v311
    %365 = vmatpush1.bf16.msra.mxu0 %v310
    %366 = vmatprep.subr.bf16.mxu0 %v307
    %367 = vmatpush1.bf16.msra.mxu0 %v306
    %368 = vmatprep.subr.bf16.mxu0 %v303
    %369 = vmatpush1.bf16.msra.mxu0 %v302
    %370 = vmatprep.subr.bf16.mxu0 %v299
    %371 = vmatpush1.bf16.msra.mxu0 %v298
    %372 = vmatprep.subr.bf16.mxu0 %v295
    %373 = vmatpush1.bf16.msra.mxu0 %v294
    %374 = vmatprep.subr.bf16.mxu0 0
    %375 = vmatpush2.bf16.msra.mxu0 0
    %376 = vmatprep.subr.bf16.mxu0 0
    %377 = vmatpush2.bf16.msra.mxu0 0
    %378 = vmatprep.subr.bf16.mxu0 0
    %379 = vmatpush2.bf16.msra.mxu0 0
    %380 = vmatprep.subr.bf16.mxu0 0
    %381 = vmatpush2.bf16.msra.mxu0 0
    %382 = vmatprep.subr.bf16.mxu0 0
    %383 = vmatpush2.bf16.msra.mxu0 0
    %384 = vmatprep.subr.bf16.mxu0 0
    %385 = vmatpush2.bf16.msra.mxu0 0
    %386 = vmatprep.subr.bf16.mxu0 0
    %387 = vmatpush2.bf16.msra.mxu0 0
    %388 = vmatprep.subr.bf16.mxu0 0
    %389 = vmatpush2.bf16.msra.mxu0 0
    %390 = vmatprep.mubr.bf16.mxu0 0
    %391 = vmatmul.mubr.bf16.gmra.mxu0 %v166
    %v392 = vpop.f32.mrf.mxu0
    %v393 = vadd.f32 %v85, %v392
    %v394 = vpop.f32.mrf.mxu0
    %v395 = vadd.f32 %v89, %v394
    %v396 = vpop.f32.mrf.mxu0
    %v397 = vadd.f32 %v85, %v396
    %v398 = vpop.f32.mrf.mxu0
    %v399 = vadd.f32 %v89, %v398
    %400 = vmatprep.mubr.bf16.mxu0 0
    %401 = vmatmul.mubr.bf16.gmra.mxu0 %v167
    %v402 = vpop.f32.mrf.mxu0
    %v403 = vadd.f32 %v85, %v402
    %v404 = vpop.f32.mrf.mxu0
    %v405 = vadd.f32 %v89, %v404
    %v406 = vpop.f32.mrf.mxu0
    %v407 = vadd.f32 %v85, %v406
    %v408 = vpop.f32.mrf.mxu0
    %v409 = vadd.f32 %v89, %v408
    %410 = vmatprep.mubr.bf16.mxu0 0
    %411 = vmatmul.mubr.bf16.gmra.mxu0 %v168
    %v412 = vpop.f32.mrf.mxu0
    %v413 = vadd.f32 %v85, %v412
    %v414 = vpop.f32.mrf.mxu0
    %v415 = vadd.f32 %v89, %v414
    %v416 = vpop.f32.mrf.mxu0
    %v417 = vadd.f32 %v85, %v416
    %v418 = vpop.f32.mrf.mxu0
    %v419 = vadd.f32 %v89, %v418
    %420 = vmatprep.mubr.bf16.mxu0 0
    %421 = vmatmul.mubr.bf16.gmra.mxu0 %v169
    %v422 = vpop.f32.mrf.mxu0
    %v423 = vadd.f32 %v85, %v422
    %v424 = vpop.f32.mrf.mxu0
    %v425 = vadd.f32 %v89, %v424
    %v426 = vpop.f32.mrf.mxu0
    %v427 = vadd.f32 %v85, %v426
    %v428 = vpop.f32.mrf.mxu0
    %v429 = vadd.f32 %v89, %v428
    %430 = vmatprep.mubr.bf16.mxu0 0
    %431 = vmatmul.mubr.bf16.gmra.mxu0 %v170
    %v432 = vpop.f32.mrf.mxu0
    %v433 = vadd.f32 %v85, %v432
    %v434 = vpop.f32.mrf.mxu0
    %v435 = vadd.f32 %v89, %v434
    %v436 = vpop.f32.mrf.mxu0
    %v437 = vadd.f32 %v85, %v436
    %v438 = vpop.f32.mrf.mxu0
    %v439 = vadd.f32 %v89, %v438
    %440 = vmatprep.mubr.bf16.mxu0 0
    %441 = vmatmul.mubr.bf16.gmra.mxu0 %v171
    %v442 = vpop.f32.mrf.mxu0
    %v443 = vadd.f32 %v85, %v442
    %v444 = vpop.f32.mrf.mxu0
    %v445 = vadd.f32 %v89, %v444
    %v446 = vpop.f32.mrf.mxu0
    %v447 = vadd.f32 %v85, %v446
    %v448 = vpop.f32.mrf.mxu0
    %v449 = vadd.f32 %v89, %v448
    %450 = vmatprep.mubr.bf16.mxu0 0
    %451 = vmatmul.mubr.bf16.gmra.mxu0 %v172
    %v452 = vpop.f32.mrf.mxu0
    %v453 = vadd.f32 %v85, %v452
    %v454 = vpop.f32.mrf.mxu0
    %v455 = vadd.f32 %v89, %v454
    %v456 = vpop.f32.mrf.mxu0
    %v457 = vadd.f32 %v85, %v456
    %v458 = vpop.f32.mrf.mxu0
    %v459 = vadd.f32 %v89, %v458
    %460 = vmatprep.mubr.bf16.mxu0 0
    %461 = vmatmul.mubr.bf16.gmra.mxu0 %v173
    %v462 = vpop.f32.mrf.mxu0
    %v463 = vadd.f32 %v85, %v462
    %v464 = vpop.f32.mrf.mxu0
    %v465 = vadd.f32 %v89, %v464
    %v466 = vpop.f32.mrf.mxu0
    %v467 = vadd.f32 %v85, %v466
    %v468 = vpop.f32.mrf.mxu0
    %v469 = vadd.f32 %v89, %v468
    %470 = vmatprep.mubr.bf16.mxu0 0
    %471 = vmatmul.mubr.bf16.gmra.mxu0 %v174
    %v472 = vpop.f32.mrf.mxu0
    %v473 = vadd.f32 %v85, %v472
    %v474 = vpop.f32.mrf.mxu0
    %v475 = vadd.f32 %v89, %v474
    %v476 = vpop.f32.mrf.mxu0
    %v477 = vadd.f32 %v85, %v476
    %v478 = vpop.f32.mrf.mxu0
    %v479 = vadd.f32 %v89, %v478
    %480 = vmatprep.mubr.bf16.mxu0 0
    %481 = vmatmul.mubr.bf16.gmra.mxu0 %v175
    %v482 = vpop.f32.mrf.mxu0
    %v483 = vadd.f32 %v85, %v482
    %v484 = vpop.f32.mrf.mxu0
    %v485 = vadd.f32 %v89, %v484
    %v486 = vpop.f32.mrf.mxu0
    %v487 = vadd.f32 %v85, %v486
    %v488 = vpop.f32.mrf.mxu0
    %v489 = vadd.f32 %v89, %v488
    %490 = vmatprep.mubr.bf16.mxu0 0
    %491 = vmatmul.mubr.bf16.gmra.mxu0 %v176
    %v492 = vpop.f32.mrf.mxu0
    %v493 = vadd.f32 %v85, %v492
    %v494 = vpop.f32.mrf.mxu0
    %v495 = vadd.f32 %v89, %v494
    %v496 = vpop.f32.mrf.mxu0
    %v497 = vadd.f32 %v85, %v496
    %v498 = vpop.f32.mrf.mxu0
    %v499 = vadd.f32 %v89, %v498
    %500 = vmatprep.mubr.bf16.mxu0 0
    %501 = vmatmul.mubr.bf16.gmra.mxu0 %v177
    %v502 = vpop.f32.mrf.mxu0
    %v503 = vadd.f32 %v85, %v502
    %v504 = vpop.f32.mrf.mxu0
    %v505 = vadd.f32 %v89, %v504
    %v506 = vpop.f32.mrf.mxu0
    %v507 = vadd.f32 %v85, %v506
    %v508 = vpop.f32.mrf.mxu0
    %v509 = vadd.f32 %v89, %v508
    %510 = vmatprep.mubr.bf16.mxu0 0
    %511 = vmatmul.mubr.bf16.gmra.mxu0 %v178
    %v512 = vpop.f32.mrf.mxu0
    %v513 = vadd.f32 %v85, %v512
    %v514 = vpop.f32.mrf.mxu0
    %v515 = vadd.f32 %v89, %v514
    %v516 = vpop.f32.mrf.mxu0
    %v517 = vadd.f32 %v85, %v516
    %v518 = vpop.f32.mrf.mxu0
    %v519 = vadd.f32 %v89, %v518
    %520 = vmatprep.mubr.bf16.mxu0 0
    %521 = vmatmul.mubr.bf16.gmra.mxu0 %v179
    %v522 = vpop.f32.mrf.mxu0
    %v523 = vadd.f32 %v85, %v522
    %v524 = vpop.f32.mrf.mxu0
    %v525 = vadd.f32 %v89, %v524
    %v526 = vpop.f32.mrf.mxu0
    %v527 = vadd.f32 %v85, %v526
    %v528 = vpop.f32.mrf.mxu0
    %v529 = vadd.f32 %v89, %v528
    %530 = vmatprep.mubr.bf16.mxu0 0
    %531 = vmatmul.mubr.bf16.gmra.mxu0 %v180
    %v532 = vpop.f32.mrf.mxu0
    %v533 = vadd.f32 %v85, %v532
    %v534 = vpop.f32.mrf.mxu0
    %v535 = vadd.f32 %v89, %v534
    %v536 = vpop.f32.mrf.mxu0
    %v537 = vadd.f32 %v85, %v536
    %v538 = vpop.f32.mrf.mxu0
    %v539 = vadd.f32 %v89, %v538
    %540 = vmatprep.mubr.bf16.mxu0 0
    %541 = vmatmul.mubr.bf16.gmra.mxu0 %v181
    %v542 = vpop.f32.mrf.mxu0
    %v543 = vadd.f32 %v85, %v542
    %v544 = vpop.f32.mrf.mxu0
    %v545 = vadd.f32 %v89, %v544
    %v546 = vpop.f32.mrf.mxu0
    %v547 = vadd.f32 %v85, %v546
    %v548 = vpop.f32.mrf.mxu0
    %v549 = vadd.f32 %v89, %v548
    %550 = vdwg.mxu0
    %551 = vmatprep.subr.bf16.mxu0 %v325
    %552 = vmatpush1.bf16.msra.mxu0 %v324
    %553 = vmatprep.subr.bf16.mxu0 %v321
    %554 = vmatpush1.bf16.msra.mxu0 %v320
    %555 = vmatprep.subr.bf16.mxu0 %v317
    %556 = vmatpush1.bf16.msra.mxu0 %v316
    %557 = vmatprep.subr.bf16.mxu0 %v313
    %558 = vmatpush1.bf16.msra.mxu0 %v312
    %559 = vmatprep.subr.bf16.mxu0 %v309
    %560 = vmatpush1.bf16.msra.mxu0 %v308
    %561 = vmatprep.subr.bf16.mxu0 %v305
    %562 = vmatpush1.bf16.msra.mxu0 %v304
    %563 = vmatprep.subr.bf16.mxu0 %v301
    %564 = vmatpush1.bf16.msra.mxu0 %v300
    %565 = vmatprep.subr.bf16.mxu0 %v297
    %566 = vmatpush1.bf16.msra.mxu0 %v296
    %567 = vmatprep.subr.bf16.mxu0 0
    %568 = vmatpush2.bf16.msra.mxu0 0
    %569 = vmatprep.subr.bf16.mxu0 0
    %570 = vmatpush2.bf16.msra.mxu0 0
    %571 = vmatprep.subr.bf16.mxu0 0
    %572 = vmatpush2.bf16.msra.mxu0 0
    %573 = vmatprep.subr.bf16.mxu0 0
    %574 = vmatpush2.bf16.msra.mxu0 0
    %575 = vmatprep.subr.bf16.mxu0 0
    %576 = vmatpush2.bf16.msra.mxu0 0
    %577 = vmatprep.subr.bf16.mxu0 0
    %578 = vmatpush2.bf16.msra.mxu0 0
    %579 = vmatprep.subr.bf16.mxu0 0
    %580 = vmatpush2.bf16.msra.mxu0 0
    %581 = vmatprep.subr.bf16.mxu0 0
    %582 = vmatpush2.bf16.msra.mxu0 0
    %583 = vmatprep.mubr.bf16.mxu0 0
    %584 = vmatmul.mubr.bf16.gmra.mxu0 %v166
    %v585 = vpop.f32.mrf.mxu0
    %v586 = vadd.f32 %v93, %v585
    %v587 = vpop.f32.mrf.mxu0
    %v588 = vadd.f32 %v97, %v587
    %v589 = vpop.f32.mrf.mxu0
    %v590 = vadd.f32 %v93, %v589
    %v591 = vpop.f32.mrf.mxu0
    %v592 = vadd.f32 %v97, %v591
    %593 = vmatprep.mubr.bf16.mxu0 0
    %594 = vmatmul.mubr.bf16.gmra.mxu0 %v167
    %v595 = vpop.f32.mrf.mxu0
    %v596 = vadd.f32 %v93, %v595
    %v597 = vpop.f32.mrf.mxu0
    %v598 = vadd.f32 %v97, %v597
    %v599 = vpop.f32.mrf.mxu0
    %v600 = vadd.f32 %v93, %v599
    %v601 = vpop.f32.mrf.mxu0
    %v602 = vadd.f32 %v97, %v601
    %603 = vmatprep.mubr.bf16.mxu0 0
    %604 = vmatmul.mubr.bf16.gmra.mxu0 %v168
    %v605 = vpop.f32.mrf.mxu0
    %v606 = vadd.f32 %v93, %v605
    %v607 = vpop.f32.mrf.mxu0
    %v608 = vadd.f32 %v97, %v607
    %v609 = vpop.f32.mrf.mxu0
    %v610 = vadd.f32 %v93, %v609
    %v611 = vpop.f32.mrf.mxu0
    %v612 = vadd.f32 %v97, %v611
    %613 = vmatprep.mubr.bf16.mxu0 0
    %614 = vmatmul.mubr.bf16.gmra.mxu0 %v169
    %v615 = vpop.f32.mrf.mxu0
    %v616 = vadd.f32 %v93, %v615
    %v617 = vpop.f32.mrf.mxu0
    %v618 = vadd.f32 %v97, %v617
    %v619 = vpop.f32.mrf.mxu0
    %v620 = vadd.f32 %v93, %v619
    %v621 = vpop.f32.mrf.mxu0
    %v622 = vadd.f32 %v97, %v621
    %623 = vmatprep.mubr.bf16.mxu0 0
    %624 = vmatmul.mubr.bf16.gmra.mxu0 %v170
    %v625 = vpop.f32.mrf.mxu0
    %v626 = vadd.f32 %v93, %v625
    %v627 = vpop.f32.mrf.mxu0
    %v628 = vadd.f32 %v97, %v627
    %v629 = vpop.f32.mrf.mxu0
    %v630 = vadd.f32 %v93, %v629
    %v631 = vpop.f32.mrf.mxu0
    %v632 = vadd.f32 %v97, %v631
    %633 = vmatprep.mubr.bf16.mxu0 0
    %634 = vmatmul.mubr.bf16.gmra.mxu0 %v171
    %v635 = vpop.f32.mrf.mxu0
    %v636 = vadd.f32 %v93, %v635
    %v637 = vpop.f32.mrf.mxu0
    %v638 = vadd.f32 %v97, %v637
    %v639 = vpop.f32.mrf.mxu0
    %v640 = vadd.f32 %v93, %v639
    %v641 = vpop.f32.mrf.mxu0
    %v642 = vadd.f32 %v97, %v641
    %643 = vmatprep.mubr.bf16.mxu0 0
    %644 = vmatmul.mubr.bf16.gmra.mxu0 %v172
    %v645 = vpop.f32.mrf.mxu0
    %v646 = vadd.f32 %v93, %v645
    %v647 = vpop.f32.mrf.mxu0
    %v648 = vadd.f32 %v97, %v647
    %v649 = vpop.f32.mrf.mxu0
    %v650 = vadd.f32 %v93, %v649
    %v651 = vpop.f32.mrf.mxu0
    %v652 = vadd.f32 %v97, %v651
    %653 = vmatprep.mubr.bf16.mxu0 0
    %654 = vmatmul.mubr.bf16.gmra.mxu0 %v173
    %v655 = vpop.f32.mrf.mxu0
    %v656 = vadd.f32 %v93, %v655
    %v657 = vpop.f32.mrf.mxu0
    %v658 = vadd.f32 %v97, %v657
    %v659 = vpop.f32.mrf.mxu0
    %v660 = vadd.f32 %v93, %v659
    %v661 = vpop.f32.mrf.mxu0
    %v662 = vadd.f32 %v97, %v661
    %663 = vmatprep.mubr.bf16.mxu0 0
    %664 = vmatmul.mubr.bf16.gmra.mxu0 %v174
    %v665 = vpop.f32.mrf.mxu0
    %v666 = vadd.f32 %v93, %v665
    %v667 = vpop.f32.mrf.mxu0
    %v668 = vadd.f32 %v97, %v667
    %v669 = vpop.f32.mrf.mxu0
    %v670 = vadd.f32 %v93, %v669
    %v671 = vpop.f32.mrf.mxu0
    %v672 = vadd.f32 %v97, %v671
    %673 = vmatprep.mubr.bf16.mxu0 0
    %674 = vmatmul.mubr.bf16.gmra.mxu0 %v175
    %v675 = vpop.f32.mrf.mxu0
    %v676 = vadd.f32 %v93, %v675
    %v677 = vpop.f32.mrf.mxu0
    %v678 = vadd.f32 %v97, %v677
    %v679 = vpop.f32.mrf.mxu0
    %v680 = vadd.f32 %v93, %v679
    %v681 = vpop.f32.mrf.mxu0
    %v682 = vadd.f32 %v97, %v681
    %683 = vmatprep.mubr.bf16.mxu0 0
    %684 = vmatmul.mubr.bf16.gmra.mxu0 %v176
    %v685 = vpop.f32.mrf.mxu0
    %v686 = vadd.f32 %v93, %v685
    %v687 = vpop.f32.mrf.mxu0
    %v688 = vadd.f32 %v97, %v687
    %v689 = vpop.f32.mrf.mxu0
    %v690 = vadd.f32 %v93, %v689
    %v691 = vpop.f32.mrf.mxu0
    %v692 = vadd.f32 %v97, %v691
    %693 = vmatprep.mubr.bf16.mxu0 0
    %694 = vmatmul.mubr.bf16.gmra.mxu0 %v177
    %v695 = vpop.f32.mrf.mxu0
    %v696 = vadd.f32 %v93, %v695
    %v697 = vpop.f32.mrf.mxu0
    %v698 = vadd.f32 %v97, %v697
    %v699 = vpop.f32.mrf.mxu0
    %v700 = vadd.f32 %v93, %v699
    %v701 = vpop.f32.mrf.mxu0
    %v702 = vadd.f32 %v97, %v701
    %703 = vmatprep.mubr.bf16.mxu0 0
    %704 = vmatmul.mubr.bf16.gmra.mxu0 %v178
    %v705 = vpop.f32.mrf.mxu0
    %v706 = vadd.f32 %v93, %v705
    %v707 = vpop.f32.mrf.mxu0
    %v708 = vadd.f32 %v97, %v707
    %v709 = vpop.f32.mrf.mxu0
    %v710 = vadd.f32 %v93, %v709
    %v711 = vpop.f32.mrf.mxu0
    %v712 = vadd.f32 %v97, %v711
    %713 = vmatprep.mubr.bf16.mxu0 0
    %714 = vmatmul.mubr.bf16.gmra.mxu0 %v179
    %v715 = vpop.f32.mrf.mxu0
    %v716 = vadd.f32 %v93, %v715
    %v717 = vpop.f32.mrf.mxu0
    %v718 = vadd.f32 %v97, %v717
    %v719 = vpop.f32.mrf.mxu0
    %v720 = vadd.f32 %v93, %v719
    %v721 = vpop.f32.mrf.mxu0
    %v722 = vadd.f32 %v97, %v721
    %723 = vmatprep.mubr.bf16.mxu0 0
    %724 = vmatmul.mubr.bf16.gmra.mxu0 %v180
    %v725 = vpop.f32.mrf.mxu0
    %v726 = vadd.f32 %v93, %v725
    %v727 = vpop.f32.mrf.mxu0
    %v728 = vadd.f32 %v97, %v727
    %v729 = vpop.f32.mrf.mxu0
    %v730 = vadd.f32 %v93, %v729
    %v731 = vpop.f32.mrf.mxu0
    %v732 = vadd.f32 %v97, %v731
    %733 = vmatprep.mubr.bf16.mxu0 0
    %734 = vmatmul.mubr.bf16.gmra.mxu0 %v181
    %v735 = vpop.f32.mrf.mxu0
    %v736 = vadd.f32 %v93, %v735
    %v737 = vpop.f32.mrf.mxu0
    %v738 = vadd.f32 %v97, %v737
    %v739 = vpop.f32.mrf.mxu0
    %v740 = vadd.f32 %v93, %v739
    %v741 = vpop.f32.mrf.mxu0
    %v742 = vadd.f32 %v97, %v741
    %743 = vdwg.mxu0
    %744 = vst [vmem:[#allocation2] sm:$0xff] %v393
    %745 = vst [vmem:[#allocation2 + $0x8] sm:$0xff] %v395
    %746 = vst [vmem:[#allocation2 + $0x10] sm:$0xff] %v586
    %747 = vst [vmem:[#allocation2 + $0x18] sm:$0xff] %v588
    %748 = vst [vmem:[#allocation2 + $0x20] sm:$0xff] %v397
    %749 = vst [vmem:[#allocation2 + $0x28] sm:$0xff] %v399
    %750 = vst [vmem:[#allocation2 + $0x30] sm:$0xff] %v590
    %751 = vst [vmem:[#allocation2 + $0x38] sm:$0xff] %v592
    %752 = vst [vmem:[#allocation2 + $0x40] sm:$0xff] %v403
    %753 = vst [vmem:[#allocation2 + $0x48] sm:$0xff] %v405
    %754 = vst [vmem:[#allocation2 + $0x50] sm:$0xff] %v596
    %755 = vst [vmem:[#allocation2 + $0x58] sm:$0xff] %v598
    %756 = vst [vmem:[#allocation2 + $0x60] sm:$0xff] %v407
    %757 = vst [vmem:[#allocation2 + $0x68] sm:$0xff] %v409
    %758 = vst [vmem:[#allocation2 + $0x70] sm:$0xff] %v600
    %759 = vst [vmem:[#allocation2 + $0x78] sm:$0xff] %v602
    %760 = vst [vmem:[#allocation2 + $0x80] sm:$0xff] %v413
    %761 = vst [vmem:[#allocation2 + $0x88] sm:$0xff] %v415
    %762 = vst [vmem:[#allocation2 + $0x90] sm:$0xff] %v606
    %763 = vst [vmem:[#allocation2 + $0x98] sm:$0xff] %v608
    %764 = vst [vmem:[#allocation2 + $0xa0] sm:$0xff] %v417
    %765 = vst [vmem:[#allocation2 + $0xa8] sm:$0xff] %v419
    %766 = vst [vmem:[#allocation2 + $0xb0] sm:$0xff] %v610
    %767 = vst [vmem:[#allocation2 + $0xb8] sm:$0xff] %v612
    %768 = vst [vmem:[#allocation2 + $0xc0] sm:$0xff] %v423
    %769 = vst [vmem:[#allocation2 + $0xc8] sm:$0xff] %v425
    %770 = vst [vmem:[#allocation2 + $0xd0] sm:$0xff] %v616
    %771 = vst [vmem:[#allocation2 + $0xd8] sm:$0xff] %v618
    %772 = vst [vmem:[#allocation2 + $0xe0] sm:$0xff] %v427
    %773 = vst [vmem:[#allocation2 + $0xe8] sm:$0xff] %v429
    %774 = vst [vmem:[#allocation2 + $0xf0] sm:$0xff] %v620
    %775 = vst [vmem:[#allocation2 + $0xf8] sm:$0xff] %v622
    %776 = vst [vmem:[#allocation2 + $0x100] sm:$0xff] %v433
    %777 = vst [vmem:[#allocation2 + $0x108] sm:$0xff] %v435
    %778 = vst [vmem:[#allocation2 + $0x110] sm:$0xff] %v626
    %779 = vst [vmem:[#allocation2 + $0x118] sm:$0xff] %v628
    %780 = vst [vmem:[#allocation2 + $0x120] sm:$0xff] %v437
    %781 = vst [vmem:[#allocation2 + $0x128] sm:$0xff] %v439
    %782 = vst [vmem:[#allocation2 + $0x130] sm:$0xff] %v630
    %783 = vst [vmem:[#allocation2 + $0x138] sm:$0xff] %v632
    %784 = vst [vmem:[#allocation2 + $0x140] sm:$0xff] %v443
    %785 = vst [vmem:[#allocation2 + $0x148] sm:$0xff] %v445
    %786 = vst [vmem:[#allocation2 + $0x150] sm:$0xff] %v636
    %787 = vst [vmem:[#allocation2 + $0x158] sm:$0xff] %v638
    %788 = vst [vmem:[#allocation2 + $0x160] sm:$0xff] %v447
    %789 = vst [vmem:[#allocation2 + $0x168] sm:$0xff] %v449
    %790 = vst [vmem:[#allocation2 + $0x170] sm:$0xff] %v640
    %791 = vst [vmem:[#allocation2 + $0x178] sm:$0xff] %v642
    %792 = vst [vmem:[#allocation2 + $0x180] sm:$0xff] %v453
    %793 = vst [vmem:[#allocation2 + $0x188] sm:$0xff] %v455
    %794 = vst [vmem:[#allocation2 + $0x190] sm:$0xff] %v646
    %795 = vst [vmem:[#allocation2 + $0x198] sm:$0xff] %v648
    %796 = vst [vmem:[#allocation2 + $0x1a0] sm:$0xff] %v457
    %797 = vst [vmem:[#allocation2 + $0x1a8] sm:$0xff] %v459
    %798 = vst [vmem:[#allocation2 + $0x1b0] sm:$0xff] %v650
    %799 = vst [vmem:[#allocation2 + $0x1b8] sm:$0xff] %v652
    %800 = vst [vmem:[#allocation2 + $0x1c0] sm:$0xff] %v463
    %801 = vst [vmem:[#allocation2 + $0x1c8] sm:$0xff] %v465
    %802 = vst [vmem:[#allocation2 + $0x1d0] sm:$0xff] %v656
    %803 = vst [vmem:[#allocation2 + $0x1d8] sm:$0xff] %v658
    %804 = vst [vmem:[#allocation2 + $0x1e0] sm:$0xff] %v467
    %805 = vst [vmem:[#allocation2 + $0x1e8] sm:$0xff] %v469
    %806 = vst [vmem:[#allocation2 + $0x1f0] sm:$0xff] %v660
    %807 = vst [vmem:[#allocation2 + $0x1f8] sm:$0xff] %v662
    %808 = vst [vmem:[#allocation2 + $0x200] sm:$0xff] %v473
    %809 = vst [vmem:[#allocation2 + $0x208] sm:$0xff] %v475
    %810 = vst [vmem:[#allocation2 + $0x210] sm:$0xff] %v666
    %811 = vst [vmem:[#allocation2 + $0x218] sm:$0xff] %v668
    %812 = vst [vmem:[#allocation2 + $0x220] sm:$0xff] %v477
    %813 = vst [vmem:[#allocation2 + $0x228] sm:$0xff] %v479
    %814 = vst [vmem:[#allocation2 + $0x230] sm:$0xff] %v670
    %815 = vst [vmem:[#allocation2 + $0x238] sm:$0xff] %v672
    %816 = vst [vmem:[#allocation2 + $0x240] sm:$0xff] %v483
    %817 = vst [vmem:[#allocation2 + $0x248] sm:$0xff] %v485
    %818 = vst [vmem:[#allocation2 + $0x250] sm:$0xff] %v676
    %819 = vst [vmem:[#allocation2 + $0x258] sm:$0xff] %v678
    %820 = vst [vmem:[#allocation2 + $0x260] sm:$0xff] %v487
    %821 = vst [vmem:[#allocation2 + $0x268] sm:$0xff] %v489
    %822 = vst [vmem:[#allocation2 + $0x270] sm:$0xff] %v680
    %823 = vst [vmem:[#allocation2 + $0x278] sm:$0xff] %v682
    %824 = vst [vmem:[#allocation2 + $0x280] sm:$0xff] %v493
    %825 = vst [vmem:[#allocation2 + $0x288] sm:$0xff] %v495
    %826 = vst [vmem:[#allocation2 + $0x290] sm:$0xff] %v686
    %827 = vst [vmem:[#allocation2 + $0x298] sm:$0xff] %v688
    %828 = vst [vmem:[#allocation2 + $0x2a0] sm:$0xff] %v497
    %829 = vst [vmem:[#allocation2 + $0x2a8] sm:$0xff] %v499
    %830 = vst [vmem:[#allocation2 + $0x2b0] sm:$0xff] %v690
    %831 = vst [vmem:[#allocation2 + $0x2b8] sm:$0xff] %v692
    %832 = vst [vmem:[#allocation2 + $0x2c0] sm:$0xff] %v503
    %833 = vst [vmem:[#allocation2 + $0x2c8] sm:$0xff] %v505
    %834 = vst [vmem:[#allocation2 + $0x2d0] sm:$0xff] %v696
    %835 = vst [vmem:[#allocation2 + $0x2d8] sm:$0xff] %v698
    %836 = vst [vmem:[#allocation2 + $0x2e0] sm:$0xff] %v507
    %837 = vst [vmem:[#allocation2 + $0x2e8] sm:$0xff] %v509
    %838 = vst [vmem:[#allocation2 + $0x2f0] sm:$0xff] %v700
    %839 = vst [vmem:[#allocation2 + $0x2f8] sm:$0xff] %v702
    %840 = vst [vmem:[#allocation2 + $0x300] sm:$0xff] %v513
    %841 = vst [vmem:[#allocation2 + $0x308] sm:$0xff] %v515
    %842 = vst [vmem:[#allocation2 + $0x310] sm:$0xff] %v706
    %843 = vst [vmem:[#allocation2 + $0x318] sm:$0xff] %v708
    %844 = vst [vmem:[#allocation2 + $0x320] sm:$0xff] %v517
    %845 = vst [vmem:[#allocation2 + $0x328] sm:$0xff] %v519
    %846 = vst [vmem:[#allocation2 + $0x330] sm:$0xff] %v710
    %847 = vst [vmem:[#allocation2 + $0x338] sm:$0xff] %v712
    %848 = vst [vmem:[#allocation2 + $0x340] sm:$0xff] %v523
    %849 = vst [vmem:[#allocation2 + $0x348] sm:$0xff] %v525
    %850 = vst [vmem:[#allocation2 + $0x350] sm:$0xff] %v716
    %851 = vst [vmem:[#allocation2 + $0x358] sm:$0xff] %v718
    %852 = vst [vmem:[#allocation2 + $0x360] sm:$0xff] %v527
    %853 = vst [vmem:[#allocation2 + $0x368] sm:$0xff] %v529
    %854 = vst [vmem:[#allocation2 + $0x370] sm:$0xff] %v720
    %855 = vst [vmem:[#allocation2 + $0x378] sm:$0xff] %v722
    %856 = vst [vmem:[#allocation2 + $0x380] sm:$0xff] %v533
    %857 = vst [vmem:[#allocation2 + $0x388] sm:$0xff] %v535
    %858 = vst [vmem:[#allocation2 + $0x390] sm:$0xff] %v726
    %859 = vst [vmem:[#allocation2 + $0x398] sm:$0xff] %v728
    %860 = vst [vmem:[#allocation2 + $0x3a0] sm:$0xff] %v537
    %861 = vst [vmem:[#allocation2 + $0x3a8] sm:$0xff] %v539
    %862 = vst [vmem:[#allocation2 + $0x3b0] sm:$0xff] %v730
    %863 = vst [vmem:[#allocation2 + $0x3b8] sm:$0xff] %v732
    %864 = vst [vmem:[#allocation2 + $0x3c0] sm:$0xff] %v543
    %865 = vst [vmem:[#allocation2 + $0x3c8] sm:$0xff] %v545
    %866 = vst [vmem:[#allocation2 + $0x3d0] sm:$0xff] %v736
    %867 = vst [vmem:[#allocation2 + $0x3d8] sm:$0xff] %v738
    %868 = vst [vmem:[#allocation2 + $0x3e0] sm:$0xff] %v547
    %869 = vst [vmem:[#allocation2 + $0x3e8] sm:$0xff] %v549
    %870 = vst [vmem:[#allocation2 + $0x3f0] sm:$0xff] %v740
    %871 = vst [vmem:[#allocation2 + $0x3f8] sm:$0xff] %v742
    // Predicated region
    $region14: #{rnn_model_forward.5} parent=1 // pred_check
      _
    $region15: #{rnn_model_forward.5} parent=1 // pred_check_branch
      %873 = sbr.rel (0) target = $region17
    $region16: #{rnn_model_forward.5} parent=1 // pred_region
      %s875 = ssub.s32 16384, 16384
      %876 = vsyncadd [#allocation3], %s875
      %s877 = sshll.u32 [#allocation2], 4
      %s878 = int_to_ptr.vmem [resolvable:$true] %s877
      %883 = dma.vmem_to_hbm [thread:$0]  %s878, 16384, %s3, [#allocation3], 512, 512, 32
    $region17: #{rnn_model_forward.5} parent=1 // pred_fallthru
      _
    // Predicated region
    $region18: #{rnn_model_forward.5} parent=1 // pred_check
      _
    $region19: #{rnn_model_forward.5} parent=1 // pred_check_branch
      %885 = sbr.rel (0) target = $region21
    $region20: #{rnn_model_forward.5} parent=1 // pred_region
      %886 = dma.done [#allocation3], 16384
    $region21: #{rnn_model_forward.5} parent=1 // pred_fallthru
      _
    %887 = vsyncpa [#allocation3], 1

// kernel: rnn_model_forward.3
$region0: #{rnn_model_forward.3}
  #allocation0 [shape = 'u32[]', space=smem, size = 0x4, offset = 0x4, fixed_abs, tag = 'smem constant byte address 0x4 - core index']
  #allocation1 [shape = 'u32[144,128]{1,0:T(1,128)}', space=vmem, size = 0x12000, scoped, tag = 'internal scratch']
  %s0 = inlined_call_operand.vmem [shape: bf16[256,128], index: 0, kind: input, shape index: {}]
  %s1 = inlined_call_operand.vmem [shape: bf16[128,512], index: 1, kind: input, shape index: {}]
  %s2 = inlined_call_operand.vmem [shape: f32[1,512], index: 2, kind: input, shape index: {}]
  %s3 = inlined_call_operand.vmem [shape: bf16[256,512], index: 3, kind: output, shape index: {}]
  %s4 = sld [smem:[#allocation0]]
  $region22: #{rnn_model_forward.3} parent=0
    _
  %s6 = ssub.s32 1, %s4
  %s7 = scalar_select 0, %s6, %s4
  // Predicated region
  $region2: #{rnn_model_forward.3} parent=0 // pred_check
    _
  $region3: #{rnn_model_forward.3} parent=0 // pred_check_branch
    %9 = sbr.rel (0) target = $region5
  $region4: #{rnn_model_forward.3} parent=0 // pred_region
    _
  $region5: #{rnn_model_forward.3} parent=0 // pred_fallthru
    _
  // Predicated region
  $region6: #{rnn_model_forward.3} parent=0 // pred_check
    _
  $region7: #{rnn_model_forward.3} parent=0 // pred_check_branch
    %11 = sbr.rel (0) target = $region9
  $region8: #{rnn_model_forward.3} parent=0 // pred_region
    _
  $region9: #{rnn_model_forward.3} parent=0 // pred_fallthru
    _
  // Predicated region
  $region10: #{rnn_model_forward.3} parent=0 // pred_check
    _
  $region11: #{rnn_model_forward.3} parent=0 // pred_check_branch
    %13 = sbr.rel (0) target = $region13
  $region12: #{rnn_model_forward.3} parent=0 // pred_region
    _
  $region13: #{rnn_model_forward.3} parent=0 // pred_fallthru
    _
  %v15 = vld [vmem:[%s0] sm:$0xf]
  %v16 = vld [vmem:[%s0 + $0x4] sm:$0xf]
  %v17 = vld [vmem:[%s0 + $0x8] sm:$0xf]
  %v18 = vld [vmem:[%s0 + $0xc] sm:$0xf]
  %v19 = vld [vmem:[%s0 + $0x10] sm:$0xf]
  %v20 = vld [vmem:[%s0 + $0x14] sm:$0xf]
  %v21 = vld [vmem:[%s0 + $0x18] sm:$0xf]
  %v22 = vld [vmem:[%s0 + $0x1c] sm:$0xf]
  %v23 = vld [vmem:[%s0 + $0x20] sm:$0xf]
  %v24 = vld [vmem:[%s0 + $0x24] sm:$0xf]
  %v25 = vld [vmem:[%s0 + $0x28] sm:$0xf]
  %v26 = vld [vmem:[%s0 + $0x2c] sm:$0xf]
  %v27 = vld [vmem:[%s0 + $0x30] sm:$0xf]
  %v28 = vld [vmem:[%s0 + $0x34] sm:$0xf]
  %v29 = vld [vmem:[%s0 + $0x38] sm:$0xf]
  %v30 = vld [vmem:[%s0 + $0x3c] sm:$0xf]
  %v31 = vld [vmem:[%s0 + $0x40] sm:$0xf]
  %v32 = vld [vmem:[%s0 + $0x44] sm:$0xf]
  %v33 = vld [vmem:[%s0 + $0x48] sm:$0xf]
  %v34 = vld [vmem:[%s0 + $0x4c] sm:$0xf]
  %v35 = vld [vmem:[%s0 + $0x50] sm:$0xf]
  %v36 = vld [vmem:[%s0 + $0x54] sm:$0xf]
  %v37 = vld [vmem:[%s0 + $0x58] sm:$0xf]
  %v38 = vld [vmem:[%s0 + $0x5c] sm:$0xf]
  %v39 = vld [vmem:[%s0 + $0x60] sm:$0xf]
  %v40 = vld [vmem:[%s0 + $0x64] sm:$0xf]
  %v41 = vld [vmem:[%s0 + $0x68] sm:$0xf]
  %v42 = vld [vmem:[%s0 + $0x6c] sm:$0xf]
  %v43 = vld [vmem:[%s0 + $0x70] sm:$0xf]
  %v44 = vld [vmem:[%s0 + $0x74] sm:$0xf]
  %v45 = vld [vmem:[%s0 + $0x78] sm:$0xf]
  %v46 = vld [vmem:[%s0 + $0x7c] sm:$0xf]
  %v47 = vld [vmem:[%s1] sm:$0xff]
  %v48 = vld [vmem:[%s1 + $0x8] sm:$0xff]
  %v49 = vld [vmem:[%s1 + $0x10] sm:$0xff]
  %v50 = vld [vmem:[%s1 + $0x18] sm:$0xff]
  %v51 = vld [vmem:[%s1 + $0x20] sm:$0xff]
  %v52 = vld [vmem:[%s1 + $0x28] sm:$0xff]
  %v53 = vld [vmem:[%s1 + $0x30] sm:$0xff]
  %v54 = vld [vmem:[%s1 + $0x38] sm:$0xff]
  %v55 = vld [vmem:[%s1 + $0x40] sm:$0xff]
  %v56 = vld [vmem:[%s1 + $0x48] sm:$0xff]
  %v57 = vld [vmem:[%s1 + $0x50] sm:$0xff]
  %v58 = vld [vmem:[%s1 + $0x58] sm:$0xff]
  %v59 = vld [vmem:[%s1 + $0x60] sm:$0xff]
  %v60 = vld [vmem:[%s1 + $0x68] sm:$0xff]
  %v61 = vld [vmem:[%s1 + $0x70] sm:$0xff]
  %v62 = vld [vmem:[%s1 + $0x78] sm:$0xff]
  %v63 = vld [vmem:[%s1 + $0x80] sm:$0xff]
  %v64 = vld [vmem:[%s1 + $0x88] sm:$0xff]
  %v65 = vld [vmem:[%s1 + $0x90] sm:$0xff]
  %v66 = vld [vmem:[%s1 + $0x98] sm:$0xff]
  %v67 = vld [vmem:[%s1 + $0xa0] sm:$0xff]
  %v68 = vld [vmem:[%s1 + $0xa8] sm:$0xff]
  %v69 = vld [vmem:[%s1 + $0xb0] sm:$0xff]
  %v70 = vld [vmem:[%s1 + $0xb8] sm:$0xff]
  %v71 = vld [vmem:[%s1 + $0xc0] sm:$0xff]
  %v72 = vld [vmem:[%s1 + $0xc8] sm:$0xff]
  %v73 = vld [vmem:[%s1 + $0xd0] sm:$0xff]
  %v74 = vld [vmem:[%s1 + $0xd8] sm:$0xff]
  %v75 = vld [vmem:[%s1 + $0xe0] sm:$0xff]
  %v76 = vld [vmem:[%s1 + $0xe8] sm:$0xff]
  %v77 = vld [vmem:[%s1 + $0xf0] sm:$0xff]
  %v78 = vld [vmem:[%s1 + $0xf8] sm:$0xff]
  %v79 = vld [vmem:[%s2] sm:$0xf]
  %v81 = vlaneseq
  %v82 = vshrl.u32 %v81, 7
  %v83 = vsub.s32 0, %v82
  %v84 = vrot.slane %v79, %v83
  %v85 = vlaneseq
  %v86 = vshrl.u32 %v85, 7
  %v87 = vsub.s32 1, %v86
  %v88 = vrot.slane %v79, %v87
  %v89 = vlaneseq
  %v90 = vshrl.u32 %v89, 7
  %v91 = vsub.s32 2, %v90
  %v92 = vrot.slane %v79, %v91
  %v93 = vlaneseq
  %v94 = vshrl.u32 %v93, 7
  %v95 = vsub.s32 3, %v94
  %v96 = vrot.slane %v79, %v95
  %v133 = vunpack.c.l.b16 %v15
  %v134 = vunpack.c.l.b16 %v16
  %v135 = vunpack.c.l.b16 %v17
  %v136 = vunpack.c.l.b16 %v18
  %v137 = vunpack.c.l.b16 %v19
  %v138 = vunpack.c.l.b16 %v20
  %v139 = vunpack.c.l.b16 %v21
  %v140 = vunpack.c.l.b16 %v22
  %v141 = vunpack.c.l.b16 %v23
  %v142 = vunpack.c.l.b16 %v24
  %v143 = vunpack.c.l.b16 %v25
  %v144 = vunpack.c.l.b16 %v26
  %v145 = vunpack.c.l.b16 %v27
  %v146 = vunpack.c.l.b16 %v28
  %v147 = vunpack.c.l.b16 %v29
  %v148 = vunpack.c.l.b16 %v30
  %v149 = vunpack.c.l.b16 %v31
  %v150 = vunpack.c.l.b16 %v32
  %v151 = vunpack.c.l.b16 %v33
  %v152 = vunpack.c.l.b16 %v34
  %v153 = vunpack.c.l.b16 %v35
  %v154 = vunpack.c.l.b16 %v36
  %v155 = vunpack.c.l.b16 %v37
  %v156 = vunpack.c.l.b16 %v38
  %v157 = vunpack.c.l.b16 %v39
  %v158 = vunpack.c.l.b16 %v40
  %v159 = vunpack.c.l.b16 %v41
  %v160 = vunpack.c.l.b16 %v42
  %v161 = vunpack.c.l.b16 %v43
  %v162 = vunpack.c.l.b16 %v44
  %v163 = vunpack.c.l.b16 %v45
  %v164 = vunpack.c.l.b16 %v46
  %v165 = vpack.c.b16 %v134, %v133
  %v166 = vpack.c.b16 %v136, %v135
  %v167 = vpack.c.b16 %v138, %v137
  %v168 = vpack.c.b16 %v140, %v139
  %v169 = vpack.c.b16 %v142, %v141
  %v170 = vpack.c.b16 %v144, %v143
  %v171 = vpack.c.b16 %v146, %v145
  %v172 = vpack.c.b16 %v148, %v147
  %v173 = vpack.c.b16 %v150, %v149
  %v174 = vpack.c.b16 %v152, %v151
  %v175 = vpack.c.b16 %v154, %v153
  %v176 = vpack.c.b16 %v156, %v155
  %v177 = vpack.c.b16 %v158, %v157
  %v178 = vpack.c.b16 %v160, %v159
  %v179 = vpack.c.b16 %v162, %v161
  %v180 = vpack.c.b16 %v164, %v163
  %v229 = vunpack.c.l.b16 %v47
  %v230 = vunpack.c.h.b16 %v47
  %v231 = vunpack.c.l.b16 %v48
  %v232 = vunpack.c.h.b16 %v48
  %v233 = vunpack.c.l.b16 %v49
  %v234 = vunpack.c.h.b16 %v49
  %v235 = vunpack.c.l.b16 %v50
  %v236 = vunpack.c.h.b16 %v50
  %v237 = vunpack.c.l.b16 %v51
  %v238 = vunpack.c.h.b16 %v51
  %v239 = vunpack.c.l.b16 %v52
  %v240 = vunpack.c.h.b16 %v52
  %v241 = vunpack.c.l.b16 %v53
  %v242 = vunpack.c.h.b16 %v53
  %v243 = vunpack.c.l.b16 %v54
  %v244 = vunpack.c.h.b16 %v54
  %v245 = vunpack.c.l.b16 %v55
  %v246 = vunpack.c.h.b16 %v55
  %v247 = vunpack.c.l.b16 %v56
  %v248 = vunpack.c.h.b16 %v56
  %v249 = vunpack.c.l.b16 %v57
  %v250 = vunpack.c.h.b16 %v57
  %v251 = vunpack.c.l.b16 %v58
  %v252 = vunpack.c.h.b16 %v58
  %v253 = vunpack.c.l.b16 %v59
  %v254 = vunpack.c.h.b16 %v59
  %v255 = vunpack.c.l.b16 %v60
  %v256 = vunpack.c.h.b16 %v60
  %v257 = vunpack.c.l.b16 %v61
  %v258 = vunpack.c.h.b16 %v61
  %v259 = vunpack.c.l.b16 %v62
  %v260 = vunpack.c.h.b16 %v62
  %v261 = vunpack.c.l.b16 %v63
  %v262 = vunpack.c.h.b16 %v63
  %v263 = vunpack.c.l.b16 %v64
  %v264 = vunpack.c.h.b16 %v64
  %v265 = vunpack.c.l.b16 %v65
  %v266 = vunpack.c.h.b16 %v65
  %v267 = vunpack.c.l.b16 %v66
  %v268 = vunpack.c.h.b16 %v66
  %v269 = vunpack.c.l.b16 %v67
  %v270 = vunpack.c.h.b16 %v67
  %v271 = vunpack.c.l.b16 %v68
  %v272 = vunpack.c.h.b16 %v68
  %v273 = vunpack.c.l.b16 %v69
  %v274 = vunpack.c.h.b16 %v69
  %v275 = vunpack.c.l.b16 %v70
  %v276 = vunpack.c.h.b16 %v70
  %v277 = vunpack.c.l.b16 %v71
  %v278 = vunpack.c.h.b16 %v71
  %v279 = vunpack.c.l.b16 %v72
  %v280 = vunpack.c.h.b16 %v72
  %v281 = vunpack.c.l.b16 %v73
  %v282 = vunpack.c.h.b16 %v73
  %v283 = vunpack.c.l.b16 %v74
  %v284 = vunpack.c.h.b16 %v74
  %v285 = vunpack.c.l.b16 %v75
  %v286 = vunpack.c.h.b16 %v75
  %v287 = vunpack.c.l.b16 %v76
  %v288 = vunpack.c.h.b16 %v76
  %v289 = vunpack.c.l.b16 %v77
  %v290 = vunpack.c.h.b16 %v77
  %v291 = vunpack.c.l.b16 %v78
  %v292 = vunpack.c.h.b16 %v78
  %v293 = vpack.c.b16 %v233, %v229
  %v294 = vpack.c.b16 %v234, %v230
  %v295 = vpack.c.b16 %v235, %v231
  %v296 = vpack.c.b16 %v236, %v232
  %v297 = vpack.c.b16 %v241, %v237
  %v298 = vpack.c.b16 %v242, %v238
  %v299 = vpack.c.b16 %v243, %v239
  %v300 = vpack.c.b16 %v244, %v240
  %v301 = vpack.c.b16 %v249, %v245
  %v302 = vpack.c.b16 %v250, %v246
  %v303 = vpack.c.b16 %v251, %v247
  %v304 = vpack.c.b16 %v252, %v248
  %v305 = vpack.c.b16 %v257, %v253
  %v306 = vpack.c.b16 %v258, %v254
  %v307 = vpack.c.b16 %v259, %v255
  %v308 = vpack.c.b16 %v260, %v256
  %v309 = vpack.c.b16 %v265, %v261
  %v310 = vpack.c.b16 %v266, %v262
  %v311 = vpack.c.b16 %v267, %v263
  %v312 = vpack.c.b16 %v268, %v264
  %v313 = vpack.c.b16 %v273, %v269
  %v314 = vpack.c.b16 %v274, %v270
  %v315 = vpack.c.b16 %v275, %v271
  %v316 = vpack.c.b16 %v276, %v272
  %v317 = vpack.c.b16 %v281, %v277
  %v318 = vpack.c.b16 %v282, %v278
  %v319 = vpack.c.b16 %v283, %v279
  %v320 = vpack.c.b16 %v284, %v280
  %v321 = vpack.c.b16 %v289, %v285
  %v322 = vpack.c.b16 %v290, %v286
  %v323 = vpack.c.b16 %v291, %v287
  %v324 = vpack.c.b16 %v292, %v288
  %357 = vmatprep.subr.bf16.mxu0 %v322
  %358 = vmatpush1.bf16.msra.mxu0 %v321
  %359 = vmatprep.subr.bf16.mxu0 %v318
  %360 = vmatpush1.bf16.msra.mxu0 %v317
  %361 = vmatprep.subr.bf16.mxu0 %v314
  %362 = vmatpush1.bf16.msra.mxu0 %v313
  %363 = vmatprep.subr.bf16.mxu0 %v310
  %364 = vmatpush1.bf16.msra.mxu0 %v309
  %365 = vmatprep.subr.bf16.mxu0 %v306
  %366 = vmatpush1.bf16.msra.mxu0 %v305
  %367 = vmatprep.subr.bf16.mxu0 %v302
  %368 = vmatpush1.bf16.msra.mxu0 %v301
  %369 = vmatprep.subr.bf16.mxu0 %v298
  %370 = vmatpush1.bf16.msra.mxu0 %v297
  %371 = vmatprep.subr.bf16.mxu0 %v294
  %372 = vmatpush1.bf16.msra.mxu0 %v293
  %373 = vmatprep.subr.bf16.mxu0 0
  %374 = vmatpush2.bf16.msra.mxu0 0
  %375 = vmatprep.subr.bf16.mxu0 0
  %376 = vmatpush2.bf16.msra.mxu0 0
  %377 = vmatprep.subr.bf16.mxu0 0
  %378 = vmatpush2.bf16.msra.mxu0 0
  %379 = vmatprep.subr.bf16.mxu0 0
  %380 = vmatpush2.bf16.msra.mxu0 0
  %381 = vmatprep.subr.bf16.mxu0 0
  %382 = vmatpush2.bf16.msra.mxu0 0
  %383 = vmatprep.subr.bf16.mxu0 0
  %384 = vmatpush2.bf16.msra.mxu0 0
  %385 = vmatprep.subr.bf16.mxu0 0
  %386 = vmatpush2.bf16.msra.mxu0 0
  %387 = vmatprep.subr.bf16.mxu0 0
  %388 = vmatpush2.bf16.msra.mxu0 0
  %389 = vmatprep.mubr.bf16.mxu0 0
  %390 = vmatmul.mubr.bf16.gmra.mxu0 %v165
  %v391 = vpop.f32.mrf.mxu0
  %v392 = vadd.f32 %v84, %v391
  %v393 = vpop.f32.mrf.mxu0
  %v394 = vadd.f32 %v88, %v393
  %v395 = vpop.f32.mrf.mxu0
  %v396 = vadd.f32 %v84, %v395
  %v397 = vpop.f32.mrf.mxu0
  %v398 = vadd.f32 %v88, %v397
  %399 = vmatprep.mubr.bf16.mxu0 0
  %400 = vmatmul.mubr.bf16.gmra.mxu0 %v166
  %v401 = vpop.f32.mrf.mxu0
  %v402 = vadd.f32 %v84, %v401
  %v403 = vpop.f32.mrf.mxu0
  %v404 = vadd.f32 %v88, %v403
  %v405 = vpop.f32.mrf.mxu0
  %v406 = vadd.f32 %v84, %v405
  %v407 = vpop.f32.mrf.mxu0
  %v408 = vadd.f32 %v88, %v407
  %409 = vmatprep.mubr.bf16.mxu0 0
  %410 = vmatmul.mubr.bf16.gmra.mxu0 %v167
  %v411 = vpop.f32.mrf.mxu0
  %v412 = vadd.f32 %v84, %v411
  %v413 = vpop.f32.mrf.mxu0
  %v414 = vadd.f32 %v88, %v413
  %v415 = vpop.f32.mrf.mxu0
  %v416 = vadd.f32 %v84, %v415
  %v417 = vpop.f32.mrf.mxu0
  %v418 = vadd.f32 %v88, %v417
  %419 = vmatprep.mubr.bf16.mxu0 0
  %420 = vmatmul.mubr.bf16.gmra.mxu0 %v168
  %v421 = vpop.f32.mrf.mxu0
  %v422 = vadd.f32 %v84, %v421
  %v423 = vpop.f32.mrf.mxu0
  %v424 = vadd.f32 %v88, %v423
  %v425 = vpop.f32.mrf.mxu0
  %v426 = vadd.f32 %v84, %v425
  %v427 = vpop.f32.mrf.mxu0
  %v428 = vadd.f32 %v88, %v427
  %429 = vmatprep.mubr.bf16.mxu0 0
  %430 = vmatmul.mubr.bf16.gmra.mxu0 %v169
  %v431 = vpop.f32.mrf.mxu0
  %v432 = vadd.f32 %v84, %v431
  %v433 = vpop.f32.mrf.mxu0
  %v434 = vadd.f32 %v88, %v433
  %v435 = vpop.f32.mrf.mxu0
  %v436 = vadd.f32 %v84, %v435
  %v437 = vpop.f32.mrf.mxu0
  %v438 = vadd.f32 %v88, %v437
  %439 = vmatprep.mubr.bf16.mxu0 0
  %440 = vmatmul.mubr.bf16.gmra.mxu0 %v170
  %v441 = vpop.f32.mrf.mxu0
  %v442 = vadd.f32 %v84, %v441
  %v443 = vpop.f32.mrf.mxu0
  %v444 = vadd.f32 %v88, %v443
  %v445 = vpop.f32.mrf.mxu0
  %v446 = vadd.f32 %v84, %v445
  %v447 = vpop.f32.mrf.mxu0
  %v448 = vadd.f32 %v88, %v447
  %449 = vmatprep.mubr.bf16.mxu0 0
  %450 = vmatmul.mubr.bf16.gmra.mxu0 %v171
  %v451 = vpop.f32.mrf.mxu0
  %v452 = vadd.f32 %v84, %v451
  %v453 = vpop.f32.mrf.mxu0
  %v454 = vadd.f32 %v88, %v453
  %v455 = vpop.f32.mrf.mxu0
  %v456 = vadd.f32 %v84, %v455
  %v457 = vpop.f32.mrf.mxu0
  %v458 = vadd.f32 %v88, %v457
  %459 = vmatprep.mubr.bf16.mxu0 0
  %460 = vmatmul.mubr.bf16.gmra.mxu0 %v172
  %v461 = vpop.f32.mrf.mxu0
  %v462 = vadd.f32 %v84, %v461
  %v463 = vpop.f32.mrf.mxu0
  %v464 = vadd.f32 %v88, %v463
  %v465 = vpop.f32.mrf.mxu0
  %v466 = vadd.f32 %v84, %v465
  %v467 = vpop.f32.mrf.mxu0
  %v468 = vadd.f32 %v88, %v467
  %469 = vmatprep.mubr.bf16.mxu0 0
  %470 = vmatmul.mubr.bf16.gmra.mxu0 %v173
  %v471 = vpop.f32.mrf.mxu0
  %v472 = vadd.f32 %v84, %v471
  %v473 = vpop.f32.mrf.mxu0
  %v474 = vadd.f32 %v88, %v473
  %v475 = vpop.f32.mrf.mxu0
  %v476 = vadd.f32 %v84, %v475
  %v477 = vpop.f32.mrf.mxu0
  %v478 = vadd.f32 %v88, %v477
  %479 = vmatprep.mubr.bf16.mxu0 0
  %480 = vmatmul.mubr.bf16.gmra.mxu0 %v174
  %v481 = vpop.f32.mrf.mxu0
  %v482 = vadd.f32 %v84, %v481
  %v483 = vpop.f32.mrf.mxu0
  %v484 = vadd.f32 %v88, %v483
  %v485 = vpop.f32.mrf.mxu0
  %v486 = vadd.f32 %v84, %v485
  %v487 = vpop.f32.mrf.mxu0
  %v488 = vadd.f32 %v88, %v487
  %489 = vmatprep.mubr.bf16.mxu0 0
  %490 = vmatmul.mubr.bf16.gmra.mxu0 %v175
  %v491 = vpop.f32.mrf.mxu0
  %v492 = vadd.f32 %v84, %v491
  %v493 = vpop.f32.mrf.mxu0
  %v494 = vadd.f32 %v88, %v493
  %v495 = vpop.f32.mrf.mxu0
  %v496 = vadd.f32 %v84, %v495
  %v497 = vpop.f32.mrf.mxu0
  %v498 = vadd.f32 %v88, %v497
  %499 = vmatprep.mubr.bf16.mxu0 0
  %500 = vmatmul.mubr.bf16.gmra.mxu0 %v176
  %v501 = vpop.f32.mrf.mxu0
  %v502 = vadd.f32 %v84, %v501
  %v503 = vpop.f32.mrf.mxu0
  %v504 = vadd.f32 %v88, %v503
  %v505 = vpop.f32.mrf.mxu0
  %v506 = vadd.f32 %v84, %v505
  %v507 = vpop.f32.mrf.mxu0
  %v508 = vadd.f32 %v88, %v507
  %509 = vmatprep.mubr.bf16.mxu0 0
  %510 = vmatmul.mubr.bf16.gmra.mxu0 %v177
  %v511 = vpop.f32.mrf.mxu0
  %v512 = vadd.f32 %v84, %v511
  %v513 = vpop.f32.mrf.mxu0
  %v514 = vadd.f32 %v88, %v513
  %v515 = vpop.f32.mrf.mxu0
  %v516 = vadd.f32 %v84, %v515
  %v517 = vpop.f32.mrf.mxu0
  %v518 = vadd.f32 %v88, %v517
  %519 = vmatprep.mubr.bf16.mxu0 0
  %520 = vmatmul.mubr.bf16.gmra.mxu0 %v178
  %v521 = vpop.f32.mrf.mxu0
  %v522 = vadd.f32 %v84, %v521
  %v523 = vpop.f32.mrf.mxu0
  %v524 = vadd.f32 %v88, %v523
  %v525 = vpop.f32.mrf.mxu0
  %v526 = vadd.f32 %v84, %v525
  %v527 = vpop.f32.mrf.mxu0
  %v528 = vadd.f32 %v88, %v527
  %529 = vmatprep.mubr.bf16.mxu0 0
  %530 = vmatmul.mubr.bf16.gmra.mxu0 %v179
  %v531 = vpop.f32.mrf.mxu0
  %v532 = vadd.f32 %v84, %v531
  %v533 = vpop.f32.mrf.mxu0
  %v534 = vadd.f32 %v88, %v533
  %v535 = vpop.f32.mrf.mxu0
  %v536 = vadd.f32 %v84, %v535
  %v537 = vpop.f32.mrf.mxu0
  %v538 = vadd.f32 %v88, %v537
  %539 = vmatprep.mubr.bf16.mxu0 0
  %540 = vmatmul.mubr.bf16.gmra.mxu0 %v180
  %v541 = vpop.f32.mrf.mxu0
  %v542 = vadd.f32 %v84, %v541
  %v543 = vpop.f32.mrf.mxu0
  %v544 = vadd.f32 %v88, %v543
  %v545 = vpop.f32.mrf.mxu0
  %v546 = vadd.f32 %v84, %v545
  %v547 = vpop.f32.mrf.mxu0
  %v548 = vadd.f32 %v88, %v547
  %549 = vdwg.mxu0
  %550 = vmatprep.subr.bf16.mxu0 %v324
  %551 = vmatpush1.bf16.msra.mxu0 %v323
  %552 = vmatprep.subr.bf16.mxu0 %v320
  %553 = vmatpush1.bf16.msra.mxu0 %v319
  %554 = vmatprep.subr.bf16.mxu0 %v316
  %555 = vmatpush1.bf16.msra.mxu0 %v315
  %556 = vmatprep.subr.bf16.mxu0 %v312
  %557 = vmatpush1.bf16.msra.mxu0 %v311
  %558 = vmatprep.subr.bf16.mxu0 %v308
  %559 = vmatpush1.bf16.msra.mxu0 %v307
  %560 = vmatprep.subr.bf16.mxu0 %v304
  %561 = vmatpush1.bf16.msra.mxu0 %v303
  %562 = vmatprep.subr.bf16.mxu0 %v300
  %563 = vmatpush1.bf16.msra.mxu0 %v299
  %564 = vmatprep.subr.bf16.mxu0 %v296
  %565 = vmatpush1.bf16.msra.mxu0 %v295
  %566 = vmatprep.subr.bf16.mxu0 0
  %567 = vmatpush2.bf16.msra.mxu0 0
  %568 = vmatprep.subr.bf16.mxu0 0
  %569 = vmatpush2.bf16.msra.mxu0 0
  %570 = vmatprep.subr.bf16.mxu0 0
  %571 = vmatpush2.bf16.msra.mxu0 0
  %572 = vmatprep.subr.bf16.mxu0 0
  %573 = vmatpush2.bf16.msra.mxu0 0
  %574 = vmatprep.subr.bf16.mxu0 0
  %575 = vmatpush2.bf16.msra.mxu0 0
  %576 = vmatprep.subr.bf16.mxu0 0
  %577 = vmatpush2.bf16.msra.mxu0 0
  %578 = vmatprep.subr.bf16.mxu0 0
  %579 = vmatpush2.bf16.msra.mxu0 0
  %580 = vmatprep.subr.bf16.mxu0 0
  %581 = vmatpush2.bf16.msra.mxu0 0
  %582 = vmatprep.mubr.bf16.mxu0 0
  %583 = vmatmul.mubr.bf16.gmra.mxu0 %v165
  %v584 = vpop.f32.mrf.mxu0
  %v585 = vadd.f32 %v92, %v584
  %v586 = vpop.f32.mrf.mxu0
  %v587 = vadd.f32 %v96, %v586
  %v588 = vpop.f32.mrf.mxu0
  %v589 = vadd.f32 %v92, %v588
  %v590 = vpop.f32.mrf.mxu0
  %v591 = vadd.f32 %v96, %v590
  %592 = vmatprep.mubr.bf16.mxu0 0
  %593 = vmatmul.mubr.bf16.gmra.mxu0 %v166
  %v594 = vpop.f32.mrf.mxu0
  %v595 = vadd.f32 %v92, %v594
  %v596 = vpop.f32.mrf.mxu0
  %v597 = vadd.f32 %v96, %v596
  %v598 = vpop.f32.mrf.mxu0
  %v599 = vadd.f32 %v92, %v598
  %v600 = vpop.f32.mrf.mxu0
  %v601 = vadd.f32 %v96, %v600
  %602 = vmatprep.mubr.bf16.mxu0 0
  %603 = vmatmul.mubr.bf16.gmra.mxu0 %v167
  %v604 = vpop.f32.mrf.mxu0
  %v605 = vadd.f32 %v92, %v604
  %v606 = vpop.f32.mrf.mxu0
  %v607 = vadd.f32 %v96, %v606
  %v608 = vpop.f32.mrf.mxu0
  %v609 = vadd.f32 %v92, %v608
  %v610 = vpop.f32.mrf.mxu0
  %v611 = vadd.f32 %v96, %v610
  %612 = vmatprep.mubr.bf16.mxu0 0
  %613 = vmatmul.mubr.bf16.gmra.mxu0 %v168
  %v614 = vpop.f32.mrf.mxu0
  %v615 = vadd.f32 %v92, %v614
  %v616 = vpop.f32.mrf.mxu0
  %v617 = vadd.f32 %v96, %v616
  %v618 = vpop.f32.mrf.mxu0
  %v619 = vadd.f32 %v92, %v618
  %v620 = vpop.f32.mrf.mxu0
  %v621 = vadd.f32 %v96, %v620
  %622 = vmatprep.mubr.bf16.mxu0 0
  %623 = vmatmul.mubr.bf16.gmra.mxu0 %v169
  %v624 = vpop.f32.mrf.mxu0
  %v625 = vadd.f32 %v92, %v624
  %v626 = vpop.f32.mrf.mxu0
  %v627 = vadd.f32 %v96, %v626
  %v628 = vpop.f32.mrf.mxu0
  %v629 = vadd.f32 %v92, %v628
  %v630 = vpop.f32.mrf.mxu0
  %v631 = vadd.f32 %v96, %v630
  %632 = vmatprep.mubr.bf16.mxu0 0
  %633 = vmatmul.mubr.bf16.gmra.mxu0 %v170
  %v634 = vpop.f32.mrf.mxu0
  %v635 = vadd.f32 %v92, %v634
  %v636 = vpop.f32.mrf.mxu0
  %v637 = vadd.f32 %v96, %v636
  %v638 = vpop.f32.mrf.mxu0
  %v639 = vadd.f32 %v92, %v638
  %v640 = vpop.f32.mrf.mxu0
  %v641 = vadd.f32 %v96, %v640
  %642 = vmatprep.mubr.bf16.mxu0 0
  %643 = vmatmul.mubr.bf16.gmra.mxu0 %v171
  %v644 = vpop.f32.mrf.mxu0
  %v645 = vadd.f32 %v92, %v644
  %v646 = vpop.f32.mrf.mxu0
  %v647 = vadd.f32 %v96, %v646
  %v648 = vpop.f32.mrf.mxu0
  %v649 = vadd.f32 %v92, %v648
  %v650 = vpop.f32.mrf.mxu0
  %v651 = vadd.f32 %v96, %v650
  %652 = vmatprep.mubr.bf16.mxu0 0
  %653 = vmatmul.mubr.bf16.gmra.mxu0 %v172
  %v654 = vpop.f32.mrf.mxu0
  %v655 = vadd.f32 %v92, %v654
  %v656 = vpop.f32.mrf.mxu0
  %v657 = vadd.f32 %v96, %v656
  %v658 = vpop.f32.mrf.mxu0
  %v659 = vadd.f32 %v92, %v658
  %v660 = vpop.f32.mrf.mxu0
  %v661 = vadd.f32 %v96, %v660
  %662 = vmatprep.mubr.bf16.mxu0 0
  %663 = vmatmul.mubr.bf16.gmra.mxu0 %v173
  %v664 = vpop.f32.mrf.mxu0
  %v665 = vadd.f32 %v92, %v664
  %v666 = vpop.f32.mrf.mxu0
  %v667 = vadd.f32 %v96, %v666
  %v668 = vpop.f32.mrf.mxu0
  %v669 = vadd.f32 %v92, %v668
  %v670 = vpop.f32.mrf.mxu0
  %v671 = vadd.f32 %v96, %v670
  %672 = vmatprep.mubr.bf16.mxu0 0
  %673 = vmatmul.mubr.bf16.gmra.mxu0 %v174
  %v674 = vpop.f32.mrf.mxu0
  %v675 = vadd.f32 %v92, %v674
  %v676 = vpop.f32.mrf.mxu0
  %v677 = vadd.f32 %v96, %v676
  %v678 = vpop.f32.mrf.mxu0
  %v679 = vadd.f32 %v92, %v678
  %v680 = vpop.f32.mrf.mxu0
  %v681 = vadd.f32 %v96, %v680
  %682 = vmatprep.mubr.bf16.mxu0 0
  %683 = vmatmul.mubr.bf16.gmra.mxu0 %v175
  %v684 = vpop.f32.mrf.mxu0
  %v685 = vadd.f32 %v92, %v684
  %v686 = vpop.f32.mrf.mxu0
  %v687 = vadd.f32 %v96, %v686
  %v688 = vpop.f32.mrf.mxu0
  %v689 = vadd.f32 %v92, %v688
  %v690 = vpop.f32.mrf.mxu0
  %v691 = vadd.f32 %v96, %v690
  %692 = vmatprep.mubr.bf16.mxu0 0
  %693 = vmatmul.mubr.bf16.gmra.mxu0 %v176
  %v694 = vpop.f32.mrf.mxu0
  %v695 = vadd.f32 %v92, %v694
  %v696 = vpop.f32.mrf.mxu0
  %v697 = vadd.f32 %v96, %v696
  %v698 = vpop.f32.mrf.mxu0
  %v699 = vadd.f32 %v92, %v698
  %v700 = vpop.f32.mrf.mxu0
  %v701 = vadd.f32 %v96, %v700
  %702 = vmatprep.mubr.bf16.mxu0 0
  %703 = vmatmul.mubr.bf16.gmra.mxu0 %v177
  %v704 = vpop.f32.mrf.mxu0
  %v705 = vadd.f32 %v92, %v704
  %v706 = vpop.f32.mrf.mxu0
  %v707 = vadd.f32 %v96, %v706
  %v708 = vpop.f32.mrf.mxu0
  %v709 = vadd.f32 %v92, %v708
  %v710 = vpop.f32.mrf.mxu0
  %v711 = vadd.f32 %v96, %v710
  %712 = vmatprep.mubr.bf16.mxu0 0
  %713 = vmatmul.mubr.bf16.gmra.mxu0 %v178
  %v714 = vpop.f32.mrf.mxu0
  %v715 = vadd.f32 %v92, %v714
  %v716 = vpop.f32.mrf.mxu0
  %v717 = vadd.f32 %v96, %v716
  %v718 = vpop.f32.mrf.mxu0
  %v719 = vadd.f32 %v92, %v718
  %v720 = vpop.f32.mrf.mxu0
  %v721 = vadd.f32 %v96, %v720
  %722 = vmatprep.mubr.bf16.mxu0 0
  %723 = vmatmul.mubr.bf16.gmra.mxu0 %v179
  %v724 = vpop.f32.mrf.mxu0
  %v725 = vadd.f32 %v92, %v724
  %v726 = vpop.f32.mrf.mxu0
  %v727 = vadd.f32 %v96, %v726
  %v728 = vpop.f32.mrf.mxu0
  %v729 = vadd.f32 %v92, %v728
  %v730 = vpop.f32.mrf.mxu0
  %v731 = vadd.f32 %v96, %v730
  %732 = vmatprep.mubr.bf16.mxu0 0
  %733 = vmatmul.mubr.bf16.gmra.mxu0 %v180
  %v734 = vpop.f32.mrf.mxu0
  %v735 = vadd.f32 %v92, %v734
  %v736 = vpop.f32.mrf.mxu0
  %v737 = vadd.f32 %v96, %v736
  %v738 = vpop.f32.mrf.mxu0
  %v739 = vadd.f32 %v92, %v738
  %v740 = vpop.f32.mrf.mxu0
  %v741 = vadd.f32 %v96, %v740
  %742 = vdwg.mxu0
  %v743 = vpack.c.bf16 %v396, %v392
  %v744 = vpack.c.bf16 %v398, %v394
  %v745 = vpack.c.bf16 %v589, %v585
  %v746 = vpack.c.bf16 %v591, %v587
  %v747 = vpack.c.bf16 %v406, %v402
  %v748 = vpack.c.bf16 %v408, %v404
  %v749 = vpack.c.bf16 %v599, %v595
  %v750 = vpack.c.bf16 %v601, %v597
  %v751 = vpack.c.bf16 %v416, %v412
  %v752 = vpack.c.bf16 %v418, %v414
  %v753 = vpack.c.bf16 %v609, %v605
  %v754 = vpack.c.bf16 %v611, %v607
  %v755 = vpack.c.bf16 %v426, %v422
  %v756 = vpack.c.bf16 %v428, %v424
  %v757 = vpack.c.bf16 %v619, %v615
  %v758 = vpack.c.bf16 %v621, %v617
  %v759 = vpack.c.bf16 %v436, %v432
  %v760 = vpack.c.bf16 %v438, %v434
  %v761 = vpack.c.bf16 %v629, %v625
  %v762 = vpack.c.bf16 %v631, %v627
  %v763 = vpack.c.bf16 %v446, %v442
  %v764 = vpack.c.bf16 %v448, %v444
  %v765 = vpack.c.bf16 %v639, %v635
  %v766 = vpack.c.bf16 %v641, %v637
  %v767 = vpack.c.bf16 %v456, %v452
  %v768 = vpack.c.bf16 %v458, %v454
  %v769 = vpack.c.bf16 %v649, %v645
  %v770 = vpack.c.bf16 %v651, %v647
  %v771 = vpack.c.bf16 %v466, %v462
  %v772 = vpack.c.bf16 %v468, %v464
  %v773 = vpack.c.bf16 %v659, %v655
  %v774 = vpack.c.bf16 %v661, %v657
  %v775 = vpack.c.bf16 %v476, %v472
  %v776 = vpack.c.bf16 %v478, %v474
  %v777 = vpack.c.bf16 %v669, %v665
  %v778 = vpack.c.bf16 %v671, %v667
  %v779 = vpack.c.bf16 %v486, %v482
  %v780 = vpack.c.bf16 %v488, %v484
  %v781 = vpack.c.bf16 %v679, %v675
  %v782 = vpack.c.bf16 %v681, %v677
  %v783 = vpack.c.bf16 %v496, %v492
  %v784 = vpack.c.bf16 %v498, %v494
  %v785 = vpack.c.bf16 %v689, %v685
  %v786 = vpack.c.bf16 %v691, %v687
  %v787 = vpack.c.bf16 %v506, %v502
  %v788 = vpack.c.bf16 %v508, %v504
  %v789 = vpack.c.bf16 %v699, %v695
  %v790 = vpack.c.bf16 %v701, %v697
  %v791 = vpack.c.bf16 %v516, %v512
  %v792 = vpack.c.bf16 %v518, %v514
  %v793 = vpack.c.bf16 %v709, %v705
  %v794 = vpack.c.bf16 %v711, %v707
  %v795 = vpack.c.bf16 %v526, %v522
  %v796 = vpack.c.bf16 %v528, %v524
  %v797 = vpack.c.bf16 %v719, %v715
  %v798 = vpack.c.bf16 %v721, %v717
  %v799 = vpack.c.bf16 %v536, %v532
  %v800 = vpack.c.bf16 %v538, %v534
  %v801 = vpack.c.bf16 %v729, %v725
  %v802 = vpack.c.bf16 %v731, %v727
  %v803 = vpack.c.bf16 %v546, %v542
  %v804 = vpack.c.bf16 %v548, %v544
  %v805 = vpack.c.bf16 %v739, %v735
  %v806 = vpack.c.bf16 %v741, %v737
  %v871 = vunpack.c.l.b16 %v743
  %v872 = vunpack.c.l.b16 %v744
  %v873 = vunpack.c.l.b16 %v745
  %v874 = vunpack.c.l.b16 %v746
  %v875 = vunpack.c.h.b16 %v743
  %v876 = vunpack.c.h.b16 %v744
  %v877 = vunpack.c.h.b16 %v745
  %v878 = vunpack.c.h.b16 %v746
  %v879 = vunpack.c.l.b16 %v747
  %v880 = vunpack.c.l.b16 %v748
  %v881 = vunpack.c.l.b16 %v749
  %v882 = vunpack.c.l.b16 %v750
  %v883 = vunpack.c.h.b16 %v747
  %v884 = vunpack.c.h.b16 %v748
  %v885 = vunpack.c.h.b16 %v749
  %v886 = vunpack.c.h.b16 %v750
  %v887 = vunpack.c.l.b16 %v751
  %v888 = vunpack.c.l.b16 %v752
  %v889 = vunpack.c.l.b16 %v753
  %v890 = vunpack.c.l.b16 %v754
  %v891 = vunpack.c.h.b16 %v751
  %v892 = vunpack.c.h.b16 %v752
  %v893 = vunpack.c.h.b16 %v753
  %v894 = vunpack.c.h.b16 %v754
  %v895 = vunpack.c.l.b16 %v755
  %v896 = vunpack.c.l.b16 %v756
  %v897 = vunpack.c.l.b16 %v757
  %v898 = vunpack.c.l.b16 %v758
  %v899 = vunpack.c.h.b16 %v755
  %v900 = vunpack.c.h.b16 %v756
  %v901 = vunpack.c.h.b16 %v757
  %v902 = vunpack.c.h.b16 %v758
  %v903 = vunpack.c.l.b16 %v759
  %v904 = vunpack.c.l.b16 %v760
  %v905 = vunpack.c.l.b16 %v761
  %v906 = vunpack.c.l.b16 %v762
  %v907 = vunpack.c.h.b16 %v759
  %v908 = vunpack.c.h.b16 %v760
  %v909 = vunpack.c.h.b16 %v761
  %v910 = vunpack.c.h.b16 %v762
  %v911 = vunpack.c.l.b16 %v763
  %v912 = vunpack.c.l.b16 %v764
  %v913 = vunpack.c.l.b16 %v765
  %v914 = vunpack.c.l.b16 %v766
  %v915 = vunpack.c.h.b16 %v763
  %v916 = vunpack.c.h.b16 %v764
  %v917 = vunpack.c.h.b16 %v765
  %v918 = vunpack.c.h.b16 %v766
  %v919 = vunpack.c.l.b16 %v767
  %v920 = vunpack.c.l.b16 %v768
  %v921 = vunpack.c.l.b16 %v769
  %v922 = vunpack.c.l.b16 %v770
  %v923 = vunpack.c.h.b16 %v767
  %v924 = vunpack.c.h.b16 %v768
  %v925 = vunpack.c.h.b16 %v769
  %v926 = vunpack.c.h.b16 %v770
  %v927 = vunpack.c.l.b16 %v771
  %v928 = vunpack.c.l.b16 %v772
  %v929 = vunpack.c.l.b16 %v773
  %v930 = vunpack.c.l.b16 %v774
  %v931 = vunpack.c.h.b16 %v771
  %v932 = vunpack.c.h.b16 %v772
  %v933 = vunpack.c.h.b16 %v773
  %v934 = vunpack.c.h.b16 %v774
  %v935 = vunpack.c.l.b16 %v775
  %v936 = vunpack.c.l.b16 %v776
  %v937 = vunpack.c.l.b16 %v777
  %v938 = vunpack.c.l.b16 %v778
  %v939 = vunpack.c.h.b16 %v775
  %v940 = vunpack.c.h.b16 %v776
  %v941 = vunpack.c.h.b16 %v777
  %v942 = vunpack.c.h.b16 %v778
  %v943 = vunpack.c.l.b16 %v779
  %v944 = vunpack.c.l.b16 %v780
  %v945 = vunpack.c.l.b16 %v781
  %v946 = vunpack.c.l.b16 %v782
  %v947 = vunpack.c.h.b16 %v779
  %v948 = vunpack.c.h.b16 %v780
  %v949 = vunpack.c.h.b16 %v781
  %v950 = vunpack.c.h.b16 %v782
  %v951 = vunpack.c.l.b16 %v783
  %v952 = vunpack.c.l.b16 %v784
  %v953 = vunpack.c.l.b16 %v785
  %v954 = vunpack.c.l.b16 %v786
  %v955 = vunpack.c.h.b16 %v783
  %v956 = vunpack.c.h.b16 %v784
  %v957 = vunpack.c.h.b16 %v785
  %v958 = vunpack.c.h.b16 %v786
  %v959 = vunpack.c.l.b16 %v787
  %v960 = vunpack.c.l.b16 %v788
  %v961 = vunpack.c.l.b16 %v789
  %v962 = vunpack.c.l.b16 %v790
  %v963 = vunpack.c.h.b16 %v787
  %v964 = vunpack.c.h.b16 %v788
  %v965 = vunpack.c.h.b16 %v789
  %v966 = vunpack.c.h.b16 %v790
  %v967 = vunpack.c.l.b16 %v791
  %v968 = vunpack.c.l.b16 %v792
  %v969 = vunpack.c.l.b16 %v793
  %v970 = vunpack.c.l.b16 %v794
  %v971 = vunpack.c.h.b16 %v791
  %v972 = vunpack.c.h.b16 %v792
  %v973 = vunpack.c.h.b16 %v793
  %v974 = vunpack.c.h.b16 %v794
  %v975 = vunpack.c.l.b16 %v795
  %v976 = vunpack.c.l.b16 %v796
  %v977 = vunpack.c.l.b16 %v797
  %v978 = vunpack.c.l.b16 %v798
  %v979 = vunpack.c.h.b16 %v795
  %v980 = vunpack.c.h.b16 %v796
  %v981 = vunpack.c.h.b16 %v797
  %v982 = vunpack.c.h.b16 %v798
  %v983 = vunpack.c.l.b16 %v799
  %v984 = vunpack.c.l.b16 %v800
  %v985 = vunpack.c.l.b16 %v801
  %v986 = vunpack.c.l.b16 %v802
  %v987 = vunpack.c.h.b16 %v799
  %v988 = vunpack.c.h.b16 %v800
  %v989 = vunpack.c.h.b16 %v801
  %v990 = vunpack.c.h.b16 %v802
  %v991 = vunpack.c.l.b16 %v803
  %v992 = vunpack.c.l.b16 %v804
  %v993 = vunpack.c.l.b16 %v805
  %v994 = vunpack.c.l.b16 %v806
  %v995 = vunpack.c.h.b16 %v803
  %v996 = vunpack.c.h.b16 %v804
  %v997 = vunpack.c.h.b16 %v805
  %v998 = vunpack.c.h.b16 %v806
  %v999 = vpack.c.b16 %v872, %v871
  %v1000 = vpack.c.b16 %v874, %v873
  %v1001 = vpack.c.b16 %v876, %v875
  %v1002 = vpack.c.b16 %v878, %v877
  %v1003 = vpack.c.b16 %v880, %v879
  %v1004 = vpack.c.b16 %v882, %v881
  %v1005 = vpack.c.b16 %v884, %v883
  %v1006 = vpack.c.b16 %v886, %v885
  %v1007 = vpack.c.b16 %v888, %v887
  %v1008 = vpack.c.b16 %v890, %v889
  %v1009 = vpack.c.b16 %v892, %v891
  %v1010 = vpack.c.b16 %v894, %v893
  %v1011 = vpack.c.b16 %v896, %v895
  %v1012 = vpack.c.b16 %v898, %v897
  %v1013 = vpack.c.b16 %v900, %v899
  %v1014 = vpack.c.b16 %v902, %v901
  %v1015 = vpack.c.b16 %v904, %v903
  %v1016 = vpack.c.b16 %v906, %v905
  %v1017 = vpack.c.b16 %v908, %v907
  %v1018 = vpack.c.b16 %v910, %v909
  %v1019 = vpack.c.b16 %v912, %v911
  %v1020 = vpack.c.b16 %v914, %v913
  %v1021 = vpack.c.b16 %v916, %v915
  %v1022 = vpack.c.b16 %v918, %v917
  %v1023 = vpack.c.b16 %v920, %v919
  %v1024 = vpack.c.b16 %v922, %v921
  %v1025 = vpack.c.b16 %v924, %v923
  %v1026 = vpack.c.b16 %v926, %v925
  %v1027 = vpack.c.b16 %v928, %v927
  %v1028 = vpack.c.b16 %v930, %v929
  %v1029 = vpack.c.b16 %v932, %v931
  %v1030 = vpack.c.b16 %v934, %v933
  %v1031 = vpack.c.b16 %v936, %v935
  %v1032 = vpack.c.b16 %v938, %v937
  %v1033 = vpack.c.b16 %v940, %v939
  %v1034 = vpack.c.b16 %v942, %v941
  %v1035 = vpack.c.b16 %v944, %v943
  %v1036 = vpack.c.b16 %v946, %v945
  %v1037 = vpack.c.b16 %v948, %v947
  %v1038 = vpack.c.b16 %v950, %v949
  %v1039 = vpack.c.b16 %v952, %v951
  %v1040 = vpack.c.b16 %v954, %v953
  %v1041 = vpack.c.b16 %v956, %v955
  %v1042 = vpack.c.b16 %v958, %v957
  %v1043 = vpack.c.b16 %v960, %v959
  %v1044 = vpack.c.b16 %v962, %v961
  %v1045 = vpack.c.b16 %v964, %v963
  %v1046 = vpack.c.b16 %v966, %v965
  %v1047 = vpack.c.b16 %v968, %v967
  %v1048 = vpack.c.b16 %v970, %v969
  %v1049 = vpack.c.b16 %v972, %v971
  %v1050 = vpack.c.b16 %v974, %v973
  %v1051 = vpack.c.b16 %v976, %v975
  %v1052 = vpack.c.b16 %v978, %v977
  %v1053 = vpack.c.b16 %v980, %v979
  %v1054 = vpack.c.b16 %v982, %v981
  %v1055 = vpack.c.b16 %v984, %v983
  %v1056 = vpack.c.b16 %v986, %v985
  %v1057 = vpack.c.b16 %v988, %v987
  %v1058 = vpack.c.b16 %v990, %v989
  %v1059 = vpack.c.b16 %v992, %v991
  %v1060 = vpack.c.b16 %v994, %v993
  %v1061 = vpack.c.b16 %v996, %v995
  %v1062 = vpack.c.b16 %v998, %v997
  %1127 = vst [vmem:[%s3] sm:$0xff] %v999
  %1128 = vst [vmem:[%s3 + $0x8] sm:$0xff] %v1000
  %1129 = vst [vmem:[%s3 + $0x10] sm:$0xff] %v1001
  %1130 = vst [vmem:[%s3 + $0x18] sm:$0xff] %v1002
  %1131 = vst [vmem:[%s3 + $0x20] sm:$0xff] %v1003
  %1132 = vst [vmem:[%s3 + $0x28] sm:$0xff] %v1004
  %1133 = vst [vmem:[%s3 + $0x30] sm:$0xff] %v1005
  %1134 = vst [vmem:[%s3 + $0x38] sm:$0xff] %v1006
  %1135 = vst [vmem:[%s3 + $0x40] sm:$0xff] %v1007
  %1136 = vst [vmem:[%s3 + $0x48] sm:$0xff] %v1008
  %1137 = vst [vmem:[%s3 + $0x50] sm:$0xff] %v1009
  %1138 = vst [vmem:[%s3 + $0x58] sm:$0xff] %v1010
  %1139 = vst [vmem:[%s3 + $0x60] sm:$0xff] %v1011
  %1140 = vst [vmem:[%s3 + $0x68] sm:$0xff] %v1012
  %1141 = vst [vmem:[%s3 + $0x70] sm:$0xff] %v1013
  %1142 = vst [vmem:[%s3 + $0x78] sm:$0xff] %v1014
  %1143 = vst [vmem:[%s3 + $0x80] sm:$0xff] %v1015
  %1144 = vst [vmem:[%s3 + $0x88] sm:$0xff] %v1016
  %1145 = vst [vmem:[%s3 + $0x90] sm:$0xff] %v1017
  %1146 = vst [vmem:[%s3 + $0x98] sm:$0xff] %v1018
  %1147 = vst [vmem:[%s3 + $0xa0] sm:$0xff] %v1019
  %1148 = vst [vmem:[%s3 + $0xa8] sm:$0xff] %v1020
  %1149 = vst [vmem:[%s3 + $0xb0] sm:$0xff] %v1021
  %1150 = vst [vmem:[%s3 + $0xb8] sm:$0xff] %v1022
  %1151 = vst [vmem:[%s3 + $0xc0] sm:$0xff] %v1023
  %1152 = vst [vmem:[%s3 + $0xc8] sm:$0xff] %v1024
  %1153 = vst [vmem:[%s3 + $0xd0] sm:$0xff] %v1025
  %1154 = vst [vmem:[%s3 + $0xd8] sm:$0xff] %v1026
  %1155 = vst [vmem:[%s3 + $0xe0] sm:$0xff] %v1027
  %1156 = vst [vmem:[%s3 + $0xe8] sm:$0xff] %v1028
  %1157 = vst [vmem:[%s3 + $0xf0] sm:$0xff] %v1029
  %1158 = vst [vmem:[%s3 + $0xf8] sm:$0xff] %v1030
  %1159 = vst [vmem:[%s3 + $0x100] sm:$0xff] %v1031
  %1160 = vst [vmem:[%s3 + $0x108] sm:$0xff] %v1032
  %1161 = vst [vmem:[%s3 + $0x110] sm:$0xff] %v1033
  %1162 = vst [vmem:[%s3 + $0x118] sm:$0xff] %v1034
  %1163 = vst [vmem:[%s3 + $0x120] sm:$0xff] %v1035
  %1164 = vst [vmem:[%s3 + $0x128] sm:$0xff] %v1036
  %1165 = vst [vmem:[%s3 + $0x130] sm:$0xff] %v1037
  %1166 = vst [vmem:[%s3 + $0x138] sm:$0xff] %v1038
  %1167 = vst [vmem:[%s3 + $0x140] sm:$0xff] %v1039
  %1168 = vst [vmem:[%s3 + $0x148] sm:$0xff] %v1040
  %1169 = vst [vmem:[%s3 + $0x150] sm:$0xff] %v1041
  %1170 = vst [vmem:[%s3 + $0x158] sm:$0xff] %v1042
  %1171 = vst [vmem:[%s3 + $0x160] sm:$0xff] %v1043
  %1172 = vst [vmem:[%s3 + $0x168] sm:$0xff] %v1044
  %1173 = vst [vmem:[%s3 + $0x170] sm:$0xff] %v1045
  %1174 = vst [vmem:[%s3 + $0x178] sm:$0xff] %v1046
  %1175 = vst [vmem:[%s3 + $0x180] sm:$0xff] %v1047
  %1176 = vst [vmem:[%s3 + $0x188] sm:$0xff] %v1048
  %1177 = vst [vmem:[%s3 + $0x190] sm:$0xff] %v1049
  %1178 = vst [vmem:[%s3 + $0x198] sm:$0xff] %v1050
  %1179 = vst [vmem:[%s3 + $0x1a0] sm:$0xff] %v1051
  %1180 = vst [vmem:[%s3 + $0x1a8] sm:$0xff] %v1052
  %1181 = vst [vmem:[%s3 + $0x1b0] sm:$0xff] %v1053
  %1182 = vst [vmem:[%s3 + $0x1b8] sm:$0xff] %v1054
  %1183 = vst [vmem:[%s3 + $0x1c0] sm:$0xff] %v1055
  %1184 = vst [vmem:[%s3 + $0x1c8] sm:$0xff] %v1056
  %1185 = vst [vmem:[%s3 + $0x1d0] sm:$0xff] %v1057
  %1186 = vst [vmem:[%s3 + $0x1d8] sm:$0xff] %v1058
  %1187 = vst [vmem:[%s3 + $0x1e0] sm:$0xff] %v1059
  %1188 = vst [vmem:[%s3 + $0x1e8] sm:$0xff] %v1060
  %1189 = vst [vmem:[%s3 + $0x1f0] sm:$0xff] %v1061
  %1190 = vst [vmem:[%s3 + $0x1f8] sm:$0xff] %v1062
  // Predicated region
  $region14: #{rnn_model_forward.3} parent=0 // pred_check
    _
  $region15: #{rnn_model_forward.3} parent=0 // pred_check_branch
    %1192 = sbr.rel (0) target = $region17
  $region16: #{rnn_model_forward.3} parent=0 // pred_region
    _
  $region17: #{rnn_model_forward.3} parent=0 // pred_fallthru
    _
  // Predicated region
  $region18: #{rnn_model_forward.3} parent=0 // pred_check
    _
  $region19: #{rnn_model_forward.3} parent=0 // pred_check_branch
    %1194 = sbr.rel (0) target = $region21
  $region20: #{rnn_model_forward.3} parent=0 // pred_region
    _
  $region21: #{rnn_model_forward.3} parent=0 // pred_fallthru
    _

// kernel: rnn_model_forward.4
$region0: #{rnn_model_forward.4}
  #allocation0 [shape = 'u32[]', space=smem, size = 0x4, offset = 0x4, fixed_abs, tag = 'smem constant byte address 0x4 - core index']
  #allocation1 [shape = 'u32[144,128]{1,0:T(1,128)}', space=vmem, size = 0x12000, scoped, tag = 'internal scratch']
  #allocation2 [shape = 'f32[8,128]{1,0:T(8,128)}', space=vmem, size = 0x1000, scoped, tag = 'scratch operand']
  #allocation3 [shape = 'f32[8,128]{1,0:T(8,128)}', space=vmem, size = 0x1000, scoped, tag = 'scratch operand']
  #allocation4 [shape = 'bf16[128,512]{1,0:T(8,128)(2,1)}', space=vmem, size = 0x20000, scoped, tag = 'scratch operand']
  #allocation5 [shape = 's32[1]{0}', space=sflag, size = 0x4, scoped, tag = 'scratch operand']
  #allocation12 [shape = 's32[]', space=sflag, size = 0x4, offset = 0, fixed_abs, tag = 'sflag constant byte address 0x0 - dummy sync flag']
  %s0 = inlined_call_operand.vmem [shape: bf16[16,16,512], index: 0, kind: input, shape index: {}]
  %s1 = inlined_call_operand.vmem [shape: f32[16,128], index: 1, kind: input, shape index: {}]
  %s2 = inlined_call_operand.vmem [shape: f32[16,128], index: 2, kind: input, shape index: {}]
  %s3 = inlined_call_operand.vmem [shape: bf16[128,512], index: 3, kind: input, shape index: {}]
  %s4 = inlined_call_operand.vmem [shape: bf16[16,16,128], index: 4, kind: output, shape index: {0}]
  %s5 = inlined_call_operand.hbm [shape: f32[16,128], index: 5, kind: output, shape index: {1}]
  %s6 = inlined_call_operand.hbm [shape: f32[16,128], index: 6, kind: output, shape index: {2}]
  %7 = xla_tuple %s4, %s5, %s6
  %s8 = sld [smem:[#allocation0]]
  $region163: #{rnn_model_forward.4} parent=0
    _
  %s10 = ssub.s32 1, %s8
  %s11 = scalar_select 0, %s10, %s8
  $region1: #{rnn_model_forward.4} parent=0
    #allocation6 [shape = 'u8[262144]{0}', space=vmem, size = 0x40000, scoped, tag = 'input window, operand 0']
    #allocation7 [shape = 'u8[65536]{0}', space=vmem, size = 0x10000, scoped, tag = 'output window, operand 0']
    #allocation8 [shape = 'u8[8192]{0}', space=vmem, size = 0x2000, scoped, tag = 'output window, operand 1']
    #allocation9 [shape = 's32[2]{0}', space=sflag, size = 0x8, scoped, tag = 'scoped memory for rnn_model_forward.4']
    #allocation10 [shape = 'u8[8192]{0}', space=vmem, size = 0x2000, scoped, tag = 'output window, operand 2']
    #allocation11 [shape = 's32[2]{0}', space=sflag, size = 0x8, scoped, tag = 'scoped memory for rnn_model_forward.4']
    %12 = vsyncpa [#allocation9], 0
    %s13 = scalar_lea.sflag [#allocation9], 1
    %14 = vsyncpa %s13, 0
    %15 = vsyncpa [#allocation11], 0
    %s16 = scalar_lea.sflag [#allocation11], 1
    %17 = vsyncpa %s16, 0
    loop: start=0, step=1, limit=4
    $region2: #{rnn_model_forward.4} parent=1 // loop_pre_header
      _
    $region3: #{rnn_model_forward.4} parent=1 // loop_header
      %s19 = sphi 0, %s23
      %p20 = scmp.ge.s32.totalorder %s19, 4
      %s26 = sphi 0, %s38
      %s27 = sphi 0, %s34
      %s28 = sphi 0, %s26
      %s29 = sphi 0, %s27
      %s30 = sphi 0, %s28
      %s31 = sphi 0, %s29
      %s43 = sphi 0, %s45
      %s46 = sphi 0, %s43
      %s47 = sphi 0, %s46
      %s63 = sphi 0, %s47
      %s69 = sphi 0, %s71
      %s72 = sphi 0, %s69
      %s73 = sphi 0, %s72
      %s89 = sphi 0, %s73
      %s95 = sphi 0, %s97
      %s98 = sphi 0, %s95
      %s99 = sphi 0, %s98
      %s115 = sphi 0, %s99
      %s123 = sphi 0, %s125
      %s126 = sphi 0, %s123
      %s127 = sphi 0, %s126
      %s143 = sphi 0, %s127
      %s149 = sphi 0, %s151
      %s152 = sphi 0, %s149
      %s153 = sphi 0, %s152
      %s169 = sphi 0, %s153
      %s175 = sphi 0, %s177
      %s178 = sphi 0, %s175
      %s179 = sphi 0, %s178
      %s195 = sphi 0, %s179
    $region4: #{rnn_model_forward.4} parent=1 // loop_header_branch
      %22 = sbr.rel (%p20) target = $region8
    $region5: #{rnn_model_forward.4} parent=1 // loop_body
      %s24 = ssub.s32 %s19, 1
      %s25 = ssub.s32 %s19, 2
      %s32 = sadd.s32 1, %s27
      %p33 = scmp.ge.s32.totalorder %s32, 1
      %s34 = scalar_select %p33, 0, %s32
      %s35 = sadd.s32 1, %s26
      %s36 = scalar_select %p33, %s35, %s26
      %p37 = scmp.ge.s32.totalorder %s36, 2
      %s38 = scalar_select %p37, 0, %s36
      %s39 = ssub.s32 %s27, %s34
      %s40 = ssub.s32 %s26, %s38
      %s41 = sor.u32 %s39, %s40
      %p42 = scmp.eq.s32.totalorder %s41, 0
      %s44 = sadd.s32 %s43, 1
      %s45 = scalar_select %p42, %s43, %s44
      %p48 = pneg %p42
      %p49 = scmp.eq.s32.totalorder %s19, 1
      %p50 = por %p48, %p49
      %p51 = scmp.ne.s32.totalorder %s43, %s46
      %p52 = scmp.eq.s32.totalorder %s19, 0
      %p53 = por %p51, %p52
      %p54 = scmp.ne.s32.totalorder %s43, %s46
      %p55 = scmp.eq.s32.totalorder %s24, 1
      %p56 = por %p54, %p55
      %p57 = scmp.ne.s32.totalorder %s46, %s47
      %p58 = scmp.eq.s32.totalorder %s24, 0
      %p59 = por %p57, %p58
      %p60 = scmp.ne.s32.totalorder %s46, %s47
      %p61 = scmp.eq.s32.totalorder %s25, 1
      %p62 = por %p60, %p61
      %p64 = scmp.ne.s32.totalorder %s47, %s63
      %p65 = scmp.eq.s32.totalorder %s25, 0
      %p66 = por %p64, %p65
      %s67 = ssub.s32 %s26, %s38
      %p68 = scmp.eq.s32.totalorder %s67, 0
      %s70 = sadd.s32 %s69, 1
      %s71 = scalar_select %p68, %s69, %s70
      %p74 = pneg %p68
      %p75 = scmp.eq.s32.totalorder %s19, 1
      %p76 = por %p74, %p75
      %p77 = scmp.ne.s32.totalorder %s69, %s72
      %p78 = scmp.eq.s32.totalorder %s19, 0
      %p79 = por %p77, %p78
      %p80 = scmp.ne.s32.totalorder %s69, %s72
      %p81 = scmp.eq.s32.totalorder %s24, 1
      %p82 = por %p80, %p81
      %p83 = scmp.ne.s32.totalorder %s72, %s73
      %p84 = scmp.eq.s32.totalorder %s24, 0
      %p85 = por %p83, %p84
      %p86 = scmp.ne.s32.totalorder %s72, %s73
      %p87 = scmp.eq.s32.totalorder %s25, 1
      %p88 = por %p86, %p87
      %p90 = scmp.ne.s32.totalorder %s73, %s89
      %p91 = scmp.eq.s32.totalorder %s25, 0
      %p92 = por %p90, %p91
      %s93 = ssub.s32 %s26, %s38
      %p94 = scmp.eq.s32.totalorder %s93, 0
      %s96 = sadd.s32 %s95, 1
      %s97 = scalar_select %p94, %s95, %s96
      %p100 = pneg %p94
      %p101 = scmp.eq.s32.totalorder %s19, 1
      %p102 = por %p100, %p101
      %p103 = scmp.ne.s32.totalorder %s95, %s98
      %p104 = scmp.eq.s32.totalorder %s19, 0
      %p105 = por %p103, %p104
      %p106 = scmp.ne.s32.totalorder %s95, %s98
      %p107 = scmp.eq.s32.totalorder %s24, 1
      %p108 = por %p106, %p107
      %p109 = scmp.ne.s32.totalorder %s98, %s99
      %p110 = scmp.eq.s32.totalorder %s24, 0
      %p111 = por %p109, %p110
      %p112 = scmp.ne.s32.totalorder %s98, %s99
      %p113 = scmp.eq.s32.totalorder %s25, 1
      %p114 = por %p112, %p113
      %p116 = scmp.ne.s32.totalorder %s99, %s115
      %p117 = scmp.eq.s32.totalorder %s25, 0
      %p118 = por %p116, %p117
      %s119 = ssub.s32 %s27, %s34
      %s120 = ssub.s32 %s26, %s38
      %s121 = sor.u32 %s119, %s120
      %p122 = scmp.eq.s32.totalorder %s121, 0
      %s124 = sadd.s32 %s123, 1
      %s125 = scalar_select %p122, %s123, %s124
      %p128 = pneg %p122
      %p129 = scmp.eq.s32.totalorder %s19, 1
      %p130 = por %p128, %p129
      %p131 = scmp.ne.s32.totalorder %s123, %s126
      %p132 = scmp.eq.s32.totalorder %s19, 0
      %p133 = por %p131, %p132
      %p134 = scmp.ne.s32.totalorder %s123, %s126
      %p135 = scmp.eq.s32.totalorder %s24, 1
      %p136 = por %p134, %p135
      %p137 = scmp.ne.s32.totalorder %s126, %s127
      %p138 = scmp.eq.s32.totalorder %s24, 0
      %p139 = por %p137, %p138
      %p140 = scmp.ne.s32.totalorder %s126, %s127
      %p141 = scmp.eq.s32.totalorder %s25, 1
      %p142 = por %p140, %p141
      %p144 = scmp.ne.s32.totalorder %s127, %s143
      %p145 = scmp.eq.s32.totalorder %s25, 0
      %p146 = por %p144, %p145
      %s147 = ssub.s32 %s26, %s38
      %p148 = scmp.eq.s32.totalorder %s147, 0
      %s150 = sadd.s32 %s149, 1
      %s151 = scalar_select %p148, %s149, %s150
      %p154 = pneg %p148
      %p155 = scmp.eq.s32.totalorder %s19, 1
      %p156 = por %p154, %p155
      %p157 = scmp.ne.s32.totalorder %s149, %s152
      %p158 = scmp.eq.s32.totalorder %s19, 0
      %p159 = por %p157, %p158
      %p160 = scmp.ne.s32.totalorder %s149, %s152
      %p161 = scmp.eq.s32.totalorder %s24, 1
      %p162 = por %p160, %p161
      %p163 = scmp.ne.s32.totalorder %s152, %s153
      %p164 = scmp.eq.s32.totalorder %s24, 0
      %p165 = por %p163, %p164
      %p166 = scmp.ne.s32.totalorder %s152, %s153
      %p167 = scmp.eq.s32.totalorder %s25, 1
      %p168 = por %p166, %p167
      %p170 = scmp.ne.s32.totalorder %s153, %s169
      %p171 = scmp.eq.s32.totalorder %s25, 0
      %p172 = por %p170, %p171
      %s173 = ssub.s32 %s26, %s38
      %p174 = scmp.eq.s32.totalorder %s173, 0
      %s176 = sadd.s32 %s175, 1
      %s177 = scalar_select %p174, %s175, %s176
      %p180 = pneg %p174
      %p181 = scmp.eq.s32.totalorder %s19, 1
      %p182 = por %p180, %p181
      %p183 = scmp.ne.s32.totalorder %s175, %s178
      %p184 = scmp.eq.s32.totalorder %s19, 0
      %p185 = por %p183, %p184
      %p186 = scmp.ne.s32.totalorder %s175, %s178
      %p187 = scmp.eq.s32.totalorder %s24, 1
      %p188 = por %p186, %p187
      %p189 = scmp.ne.s32.totalorder %s178, %s179
      %p190 = scmp.eq.s32.totalorder %s24, 0
      %p191 = por %p189, %p190
      %p192 = scmp.ne.s32.totalorder %s178, %s179
      %p193 = scmp.eq.s32.totalorder %s25, 1
      %p194 = por %p192, %p193
      %p196 = scmp.ne.s32.totalorder %s179, %s195
      %p197 = scmp.eq.s32.totalorder %s25, 0
      %p198 = por %p196, %p197
      %p199 = scmp.le.s32.totalorder 1, %s19
      %p200 = scmp.lt.s32.totalorder %s19, 3
      %p201 = pnand %p199, %p200
      %p202 = pneg %p201
      // Predicated region
      $region9: #{rnn_model_forward.4} parent=5 // pred_check
        _
      $region10: #{rnn_model_forward.4} parent=5 // pred_check_branch
        %204 = sbr.rel (%p201) target = $region12
      $region11: #{rnn_model_forward.4} parent=5 // pred_region
        %s205 = ssub.s32 %s19, 1
      $region12: #{rnn_model_forward.4} parent=5 // pred_fallthru
        _
      %p206 = scmp.lt.s32.totalorder %s19, 2
      // Predicated region
      $region13: #{rnn_model_forward.4} parent=5 // pred_check
        %p207 = pneg %p206
      $region14: #{rnn_model_forward.4} parent=5 // pred_check_branch
        %209 = sbr.rel (%p207) target = $region16
      $region15: #{rnn_model_forward.4} parent=5 // pred_region
        // Predicated region
        $region17: #{rnn_model_forward.4} parent=15 // pred_check
          %p210 = pneg %p53
        $region18: #{rnn_model_forward.4} parent=15 // pred_check_branch
          %212 = sbr.rel (%p210) target = $region20
        $region19: #{rnn_model_forward.4} parent=15 // pred_region
          %s213 = sand.u32 %s43, 1
          %s214 = sand.u32 %s43, 1
          %s215 = smul.addr %s214, 256
          %s216 = scalar_lea.vmem [#allocation6], %s215
          %s217 = smul.u32 16, %s27
          %s218 = smul.addr %s26, 4
          %s219 = smul.addr %s217, 8
          %s220 = sadd.s32 %s218, %s219
          %s221 = smul.addr %s220, 4
          %s222 = scalar_lea.vmem %s0, %s221
          // Predicated region
          $region21: #{rnn_model_forward.4} parent=19 // pred_check
            _
          $region22: #{rnn_model_forward.4} parent=19 // pred_check_branch
            %224 = sbr.rel (0) target = $region24
          $region23: #{rnn_model_forward.4} parent=19 // pred_region
            // Predicated region
            $region25: #{rnn_model_forward.4} parent=23 // pred_check
              _
            $region26: #{rnn_model_forward.4} parent=23 // pred_check_branch
              %226 = sbr.rel (0) target = $region28
            $region27: #{rnn_model_forward.4} parent=23 // pred_region
              loop: start=0, step=1, limit=1
              $region29: #{rnn_model_forward.4} parent=27 // loop_pre_header
                _
              $region30: #{rnn_model_forward.4} parent=27 // loop_header
                %s228 = sphi 0, %s232
                %p229 = scmp.ge.s32.totalorder %s228, 1
                %s233 = sphi %s222, %s222
                %s234 = sphi %s216, %s216
              $region31: #{rnn_model_forward.4} parent=27 // loop_header_branch
                %231 = sbr.rel (%p229) target = $region35
              $region32: #{rnn_model_forward.4} parent=27 // loop_body
                %v235 = vld [vmem:[%s233] sm:$0xff]
                %236 = vst [vmem:[%s234] sm:$0xff] %v235
                %v237 = vld [vmem:[%s233 + $0x8] sm:$0xff]
                %238 = vst [vmem:[%s234 + $0x8] sm:$0xff] %v237
                %v239 = vld [vmem:[%s233 + $0x20] sm:$0xff]
                %240 = vst [vmem:[%s234 + $0x10] sm:$0xff] %v239
                %v241 = vld [vmem:[%s233 + $0x28] sm:$0xff]
                %242 = vst [vmem:[%s234 + $0x18] sm:$0xff] %v241
                %v243 = vld [vmem:[%s233 + $0x40] sm:$0xff]
                %244 = vst [vmem:[%s234 + $0x20] sm:$0xff] %v243
                %v245 = vld [vmem:[%s233 + $0x48] sm:$0xff]
                %246 = vst [vmem:[%s234 + $0x28] sm:$0xff] %v245
                %v247 = vld [vmem:[%s233 + $0x60] sm:$0xff]
                %248 = vst [vmem:[%s234 + $0x30] sm:$0xff] %v247
                %v249 = vld [vmem:[%s233 + $0x68] sm:$0xff]
                %250 = vst [vmem:[%s234 + $0x38] sm:$0xff] %v249
                %v251 = vld [vmem:[%s233 + $0x80] sm:$0xff]
                %252 = vst [vmem:[%s234 + $0x40] sm:$0xff] %v251
                %v253 = vld [vmem:[%s233 + $0x88] sm:$0xff]
                %254 = vst [vmem:[%s234 + $0x48] sm:$0xff] %v253
                %v255 = vld [vmem:[%s233 + $0xa0] sm:$0xff]
                %256 = vst [vmem:[%s234 + $0x50] sm:$0xff] %v255
                %v257 = vld [vmem:[%s233 + $0xa8] sm:$0xff]
                %258 = vst [vmem:[%s234 + $0x58] sm:$0xff] %v257
                %v259 = vld [vmem:[%s233 + $0xc0] sm:$0xff]
                %260 = vst [vmem:[%s234 + $0x60] sm:$0xff] %v259
                %v261 = vld [vmem:[%s233 + $0xc8] sm:$0xff]
                %262 = vst [vmem:[%s234 + $0x68] sm:$0xff] %v261
                %v263 = vld [vmem:[%s233 + $0xe0] sm:$0xff]
                %264 = vst [vmem:[%s234 + $0x70] sm:$0xff] %v263
                %v265 = vld [vmem:[%s233 + $0xe8] sm:$0xff]
                %266 = vst [vmem:[%s234 + $0x78] sm:$0xff] %v265
                %v267 = vld [vmem:[%s233 + $0x100] sm:$0xff]
                %268 = vst [vmem:[%s234 + $0x80] sm:$0xff] %v267
                %v269 = vld [vmem:[%s233 + $0x108] sm:$0xff]
                %270 = vst [vmem:[%s234 + $0x88] sm:$0xff] %v269
                %v271 = vld [vmem:[%s233 + $0x120] sm:$0xff]
                %272 = vst [vmem:[%s234 + $0x90] sm:$0xff] %v271
                %v273 = vld [vmem:[%s233 + $0x128] sm:$0xff]
                %274 = vst [vmem:[%s234 + $0x98] sm:$0xff] %v273
                %v275 = vld [vmem:[%s233 + $0x140] sm:$0xff]
                %276 = vst [vmem:[%s234 + $0xa0] sm:$0xff] %v275
                %v277 = vld [vmem:[%s233 + $0x148] sm:$0xff]
                %278 = vst [vmem:[%s234 + $0xa8] sm:$0xff] %v277
                %v279 = vld [vmem:[%s233 + $0x160] sm:$0xff]
                %280 = vst [vmem:[%s234 + $0xb0] sm:$0xff] %v279
                %v281 = vld [vmem:[%s233 + $0x168] sm:$0xff]
                %282 = vst [vmem:[%s234 + $0xb8] sm:$0xff] %v281
                %v283 = vld [vmem:[%s233 + $0x180] sm:$0xff]
                %284 = vst [vmem:[%s234 + $0xc0] sm:$0xff] %v283
                %v285 = vld [vmem:[%s233 + $0x188] sm:$0xff]
                %286 = vst [vmem:[%s234 + $0xc8] sm:$0xff] %v285
                %v287 = vld [vmem:[%s233 + $0x1a0] sm:$0xff]
                %288 = vst [vmem:[%s234 + $0xd0] sm:$0xff] %v287
                %v289 = vld [vmem:[%s233 + $0x1a8] sm:$0xff]
                %290 = vst [vmem:[%s234 + $0xd8] sm:$0xff] %v289
                %v291 = vld [vmem:[%s233 + $0x1c0] sm:$0xff]
                %292 = vst [vmem:[%s234 + $0xe0] sm:$0xff] %v291
                %v293 = vld [vmem:[%s233 + $0x1c8] sm:$0xff]
                %294 = vst [vmem:[%s234 + $0xe8] sm:$0xff] %v293
                %v295 = vld [vmem:[%s233 + $0x1e0] sm:$0xff]
                %296 = vst [vmem:[%s234 + $0xf0] sm:$0xff] %v295
                %v297 = vld [vmem:[%s233 + $0x1e8] sm:$0xff]
                %298 = vst [vmem:[%s234 + $0xf8] sm:$0xff] %v297
              $region33: #{rnn_model_forward.4} parent=27 // loop_footer
                %s232 = sadd.s32 1, %s228
              $region34: #{rnn_model_forward.4} parent=27 // loop_footer_branch
                %227 = sbr.rel target = $region30
              $region35: #{rnn_model_forward.4} parent=27 // loop_exit
                _
            $region28: #{rnn_model_forward.4} parent=23 // pred_fallthru
              _
            // Predicated region
            $region36: #{rnn_model_forward.4} parent=23 // pred_check
              _
            $region37: #{rnn_model_forward.4} parent=23 // pred_check_branch
              %300 = sbr.rel target = $region39
            $region38: #{rnn_model_forward.4} parent=23 // pred_region
              _
            $region39: #{rnn_model_forward.4} parent=23 // pred_fallthru
              _
          $region24: #{rnn_model_forward.4} parent=19 // pred_fallthru
            _
          %301 = vnop
        $region20: #{rnn_model_forward.4} parent=15 // pred_fallthru
          _
        // Predicated region
        $region40: #{rnn_model_forward.4} parent=15 // pred_check
          %p302 = pneg %p79
        $region41: #{rnn_model_forward.4} parent=15 // pred_check_branch
          %304 = sbr.rel (%p302) target = $region43
        $region42: #{rnn_model_forward.4} parent=15 // pred_region
          %p305 = scmp.lt.s32.totalorder %s26, 1
          %s306 = scalar_select %p305, %s26, 1
          %s307 = smul.addr %s306, 8
          %s308 = scalar_lea.vmem %s1, %s307
        $region43: #{rnn_model_forward.4} parent=15 // pred_fallthru
          _
        // Predicated region
        $region44: #{rnn_model_forward.4} parent=15 // pred_check
          %p309 = pneg %p105
        $region45: #{rnn_model_forward.4} parent=15 // pred_check_branch
          %311 = sbr.rel (%p309) target = $region47
        $region46: #{rnn_model_forward.4} parent=15 // pred_region
          %p312 = scmp.lt.s32.totalorder %s26, 1
          %s313 = scalar_select %p312, %s26, 1
          %s314 = smul.addr %s313, 8
          %s315 = scalar_lea.vmem %s2, %s314
        $region47: #{rnn_model_forward.4} parent=15 // pred_fallthru
          _
      $region16: #{rnn_model_forward.4} parent=5 // pred_fallthru
        _
      %p316 = scmp.le.s32.totalorder 1, %s19
      %p317 = scmp.lt.s32.totalorder %s19, 3
      %p318 = pnand %p316, %p317
      %p319 = pneg %p318
      // Predicated region
      $region48: #{rnn_model_forward.4} parent=5 // pred_check
        _
      $region49: #{rnn_model_forward.4} parent=5 // pred_check_branch
        %321 = sbr.rel (%p318) target = $region51
      $region50: #{rnn_model_forward.4} parent=5 // pred_region
        %s322 = ssub.s32 %s19, 1
        %s323 = sand.u32 %s46, 1
        %s324 = sand.u32 %s46, 1
        %s325 = smul.addr %s324, 256
        %s326 = scalar_lea.vmem [#allocation6], %s325
        // Predicated region
        $region52: #{rnn_model_forward.4} parent=50 // pred_check
          %p327 = pneg %p59
        $region53: #{rnn_model_forward.4} parent=50 // pred_check_branch
          %329 = sbr.rel (%p327) target = $region55
        $region54: #{rnn_model_forward.4} parent=50 // pred_region
          _
        $region55: #{rnn_model_forward.4} parent=50 // pred_fallthru
          _
        %s330 = sand.u32 %s46, 1
        %s331 = sand.u32 %s46, 1
        %s332 = smul.addr %s331, 256
        %s333 = scalar_lea.vmem [#allocation6], %s332
        %p334 = pneg %p59
        %p335 = pneg %p56
        %p336 = scmp.lt.s32.totalorder %s28, 1
        %s337 = scalar_select %p336, %s28, 1
        %s338 = smul.addr %s337, 8
        %s339 = scalar_lea.vmem %s1, %s338
        %p340 = pneg %p85
        %p341 = pneg %p82
        %p342 = scmp.lt.s32.totalorder %s28, 1
        %s343 = scalar_select %p342, %s28, 1
        %s344 = smul.addr %s343, 8
        %s345 = scalar_lea.vmem %s2, %s344
        %p346 = pneg %p111
        %p347 = pneg %p108
        %p348 = pneg %p139
        %p349 = pneg %p136
        %s350 = sand.u32 %s126, 1
        %s351 = sand.u32 %s126, 1
        %s352 = smul.addr %s351, 64
        %s353 = scalar_lea.vmem [#allocation7], %s352
        %p354 = pneg %p165
        %p355 = pneg %p162
        %s356 = sand.u32 %s152, 1
        %s357 = scalar_lea.sflag [#allocation9], %s356
        %s358 = sand.u32 %s152, 1
        %s359 = smul.addr %s358, 8
        %s360 = scalar_lea.vmem [#allocation8], %s359
        %p361 = pneg %p191
        %p362 = pneg %p188
        %s363 = sand.u32 %s178, 1
        %s364 = scalar_lea.sflag [#allocation11], %s363
        %s365 = sand.u32 %s178, 1
        %s366 = smul.addr %s365, 8
        %s367 = scalar_lea.vmem [#allocation10], %s366
        %s368 = smul.u32 16, %s29
        %p369 = scmp.lt.s32.totalorder %s28, 1
        %s370 = scalar_select %p369, %s28, 1
        %s371 = smul.addr %s370, 8
        %s372 = scalar_lea.vmem %s1, %s371
        %p373 = scmp.lt.s32.totalorder %s28, 1
        %s374 = scalar_select %p373, %s28, 1
        %s375 = smul.addr %s374, 8
        %s376 = scalar_lea.vmem %s2, %s375
        %s377 = smul.u32 16, %s29
        %p379 = scmp.eq.s32.totalorder %s29, 0
        // Predicated region
        $region56: #{rnn_model_forward.4} parent=50 // pred_check
          %p380 = pneg %p379
        $region57: #{rnn_model_forward.4} parent=50 // pred_check_branch
          %382 = sbr.rel (%p380) target = $region59
        $region58: #{rnn_model_forward.4} parent=50 // pred_region
          %p384 = scmp.lt.u32.totalorder 256, 8
          %p385 = pneg %p384
          // Predicated region
          $region60: #{rnn_model_forward.4} parent=58 // pred_check
            _
          $region61: #{rnn_model_forward.4} parent=58 // pred_check_branch
            %387 = sbr.rel (%p384) target = $region63
          $region62: #{rnn_model_forward.4} parent=58 // pred_region
            %s403 = sand.u32 256, 7
            %p404 = scmp.eq.s32.totalorder %s403, 0
            // Predicated region
            $region75: #{rnn_model_forward.4} parent=62 // pred_check
              %p405 = pneg %p404
            $region76: #{rnn_model_forward.4} parent=62 // pred_check_branch
              %407 = sbr.rel (%p405) target = $region78
            $region77: #{rnn_model_forward.4} parent=62 // pred_region
              loop: start=0, step=1, limit=1
              $region79: #{rnn_model_forward.4} parent=77 // loop_pre_header
                _
              $region80: #{rnn_model_forward.4} parent=77 // loop_header
                %s409 = sphi 0, %s413
                %p410 = scmp.ge.s32.totalorder %s409, 1
                %s414 = sphi %s3, %s3
                %s415 = sphi [#allocation4], [#allocation4]
              $region81: #{rnn_model_forward.4} parent=77 // loop_header_branch
                %412 = sbr.rel (%p410) target = $region85
              $region82: #{rnn_model_forward.4} parent=77 // loop_body
                %v416 = vld [vmem:[%s414] sm:$0xff]
                %417 = vst [vmem:[%s415] sm:$0xff] %v416
                %v418 = vld [vmem:[%s414 + $0x8] sm:$0xff]
                %419 = vst [vmem:[%s415 + $0x8] sm:$0xff] %v418
                %v420 = vld [vmem:[%s414 + $0x10] sm:$0xff]
                %421 = vst [vmem:[%s415 + $0x10] sm:$0xff] %v420
                %v422 = vld [vmem:[%s414 + $0x18] sm:$0xff]
                %423 = vst [vmem:[%s415 + $0x18] sm:$0xff] %v422
                %v424 = vld [vmem:[%s414 + $0x20] sm:$0xff]
                %425 = vst [vmem:[%s415 + $0x20] sm:$0xff] %v424
                %v426 = vld [vmem:[%s414 + $0x28] sm:$0xff]
                %427 = vst [vmem:[%s415 + $0x28] sm:$0xff] %v426
                %v428 = vld [vmem:[%s414 + $0x30] sm:$0xff]
                %429 = vst [vmem:[%s415 + $0x30] sm:$0xff] %v428
                %v430 = vld [vmem:[%s414 + $0x38] sm:$0xff]
                %431 = vst [vmem:[%s415 + $0x38] sm:$0xff] %v430
                %v432 = vld [vmem:[%s414 + $0x40] sm:$0xff]
                %433 = vst [vmem:[%s415 + $0x40] sm:$0xff] %v432
                %v434 = vld [vmem:[%s414 + $0x48] sm:$0xff]
                %435 = vst [vmem:[%s415 + $0x48] sm:$0xff] %v434
                %v436 = vld [vmem:[%s414 + $0x50] sm:$0xff]
                %437 = vst [vmem:[%s415 + $0x50] sm:$0xff] %v436
                %v438 = vld [vmem:[%s414 + $0x58] sm:$0xff]
                %439 = vst [vmem:[%s415 + $0x58] sm:$0xff] %v438
                %v440 = vld [vmem:[%s414 + $0x60] sm:$0xff]
                %441 = vst [vmem:[%s415 + $0x60] sm:$0xff] %v440
                %v442 = vld [vmem:[%s414 + $0x68] sm:$0xff]
                %443 = vst [vmem:[%s415 + $0x68] sm:$0xff] %v442
                %v444 = vld [vmem:[%s414 + $0x70] sm:$0xff]
                %445 = vst [vmem:[%s415 + $0x70] sm:$0xff] %v444
                %v446 = vld [vmem:[%s414 + $0x78] sm:$0xff]
                %447 = vst [vmem:[%s415 + $0x78] sm:$0xff] %v446
                %v448 = vld [vmem:[%s414 + $0x80] sm:$0xff]
                %449 = vst [vmem:[%s415 + $0x80] sm:$0xff] %v448
                %v450 = vld [vmem:[%s414 + $0x88] sm:$0xff]
                %451 = vst [vmem:[%s415 + $0x88] sm:$0xff] %v450
                %v452 = vld [vmem:[%s414 + $0x90] sm:$0xff]
                %453 = vst [vmem:[%s415 + $0x90] sm:$0xff] %v452
                %v454 = vld [vmem:[%s414 + $0x98] sm:$0xff]
                %455 = vst [vmem:[%s415 + $0x98] sm:$0xff] %v454
                %v456 = vld [vmem:[%s414 + $0xa0] sm:$0xff]
                %457 = vst [vmem:[%s415 + $0xa0] sm:$0xff] %v456
                %v458 = vld [vmem:[%s414 + $0xa8] sm:$0xff]
                %459 = vst [vmem:[%s415 + $0xa8] sm:$0xff] %v458
                %v460 = vld [vmem:[%s414 + $0xb0] sm:$0xff]
                %461 = vst [vmem:[%s415 + $0xb0] sm:$0xff] %v460
                %v462 = vld [vmem:[%s414 + $0xb8] sm:$0xff]
                %463 = vst [vmem:[%s415 + $0xb8] sm:$0xff] %v462
                %v464 = vld [vmem:[%s414 + $0xc0] sm:$0xff]
                %465 = vst [vmem:[%s415 + $0xc0] sm:$0xff] %v464
                %v466 = vld [vmem:[%s414 + $0xc8] sm:$0xff]
                %467 = vst [vmem:[%s415 + $0xc8] sm:$0xff] %v466
                %v468 = vld [vmem:[%s414 + $0xd0] sm:$0xff]
                %469 = vst [vmem:[%s415 + $0xd0] sm:$0xff] %v468
                %v470 = vld [vmem:[%s414 + $0xd8] sm:$0xff]
                %471 = vst [vmem:[%s415 + $0xd8] sm:$0xff] %v470
                %v472 = vld [vmem:[%s414 + $0xe0] sm:$0xff]
                %473 = vst [vmem:[%s415 + $0xe0] sm:$0xff] %v472
                %v474 = vld [vmem:[%s414 + $0xe8] sm:$0xff]
                %475 = vst [vmem:[%s415 + $0xe8] sm:$0xff] %v474
                %v476 = vld [vmem:[%s414 + $0xf0] sm:$0xff]
                %477 = vst [vmem:[%s415 + $0xf0] sm:$0xff] %v476
                %v478 = vld [vmem:[%s414 + $0xf8] sm:$0xff]
                %479 = vst [vmem:[%s415 + $0xf8] sm:$0xff] %v478
              $region83: #{rnn_model_forward.4} parent=77 // loop_footer
                %s413 = sadd.s32 1, %s409
              $region84: #{rnn_model_forward.4} parent=77 // loop_footer_branch
                %408 = sbr.rel target = $region80
              $region85: #{rnn_model_forward.4} parent=77 // loop_exit
                _
            $region78: #{rnn_model_forward.4} parent=62 // pred_fallthru
              _
            %p480 = pneg %p404
            // Predicated region
            $region86: #{rnn_model_forward.4} parent=62 // pred_check
              _
            $region87: #{rnn_model_forward.4} parent=62 // pred_check_branch
              %482 = sbr.rel (%p404) target = $region89
            $region88: #{rnn_model_forward.4} parent=62 // pred_region
              %s483 = sand.u32 256, 7
            $region89: #{rnn_model_forward.4} parent=62 // pred_fallthru
              _
          $region63: #{rnn_model_forward.4} parent=58 // pred_fallthru
            _
          // Predicated region
          $region64: #{rnn_model_forward.4} parent=58 // pred_check
            %p388 = pneg %p384
          $region65: #{rnn_model_forward.4} parent=58 // pred_check_branch
            %390 = sbr.rel (%p388) target = $region67
          $region66: #{rnn_model_forward.4} parent=58 // pred_region
            %s391 = sshll.u32 1, 256
            %s392 = ssub.s32 %s391, 1
            loop: start=0, step=1, limit=1
            $region68: #{rnn_model_forward.4} parent=66 // loop_pre_header
              _
            $region69: #{rnn_model_forward.4} parent=66 // loop_header
              %s394 = sphi 0, %s398
              %p395 = scmp.ge.s32.totalorder %s394, 1
              %s399 = sphi %s3, %s3
              %s400 = sphi [#allocation4], [#allocation4]
            $region70: #{rnn_model_forward.4} parent=66 // loop_header_branch
              %397 = sbr.rel (%p395) target = $region74
            $region71: #{rnn_model_forward.4} parent=66 // loop_body
              %v401 = vld [vmem:[%s399] sm:%s392]
              %402 = vst [vmem:[%s400] sm:%s392] %v401
            $region72: #{rnn_model_forward.4} parent=66 // loop_footer
              %s398 = sadd.s32 1, %s394
            $region73: #{rnn_model_forward.4} parent=66 // loop_footer_branch
              %393 = sbr.rel target = $region69
            $region74: #{rnn_model_forward.4} parent=66 // loop_exit
              _
          $region67: #{rnn_model_forward.4} parent=58 // pred_fallthru
            _
          // Predicated region
          $region90: #{rnn_model_forward.4} parent=58 // pred_check
            _
          $region91: #{rnn_model_forward.4} parent=58 // pred_check_branch
            %486 = sbr.rel (0) target = $region93
          $region92: #{rnn_model_forward.4} parent=58 // pred_region
            %487 = vsyncadd [#allocation5], 4096
          $region93: #{rnn_model_forward.4} parent=58 // pred_fallthru
            _
          %v488 = vld [vmem:[%s372] sm:$0xff]
          %489 = vst [vmem:[#allocation2] sm:$0xff] %v488
          %v490 = vld [vmem:[%s376] sm:$0xff]
          %491 = vst [vmem:[#allocation3] sm:$0xff] %v490
          %s492 = smul.u32 4, 16
          %s493 = smul.u32 %s492, 4
          %s494 = sshll.u32 %s493, 4
          %495 = dma.done [#allocation5], %s494
        $region59: #{rnn_model_forward.4} parent=50 // pred_fallthru
          _
        %v496 = vld [vmem:[#allocation2] sm:$0xff]
        %v497 = vld [vmem:[#allocation3] sm:$0xff]
        %v498 = vld [vmem:[%s326] sm:$0xff]
        %v499 = vld [vmem:[%s326 + $0x8] sm:$0xff]
        %v500 = vunpack.c.l.bf16 %v498
        %v501 = vunpack.c.h.bf16 %v498
        %v502 = vunpack.c.l.bf16 %v499
        %v503 = vunpack.c.h.bf16 %v499
        %v504 = vpack.c.bf16 %v496, %v496
        %v505 = vld [vmem:[#allocation4] sm:$0xff]
        %v506 = vld [vmem:[#allocation4 + $0x8] sm:$0xff]
        %v507 = vld [vmem:[#allocation4 + $0x10] sm:$0xff]
        %v508 = vld [vmem:[#allocation4 + $0x18] sm:$0xff]
        %v509 = vld [vmem:[#allocation4 + $0x20] sm:$0xff]
        %v510 = vld [vmem:[#allocation4 + $0x28] sm:$0xff]
        %v511 = vld [vmem:[#allocation4 + $0x30] sm:$0xff]
        %v512 = vld [vmem:[#allocation4 + $0x38] sm:$0xff]
        %v513 = vld [vmem:[#allocation4 + $0x40] sm:$0xff]
        %v514 = vld [vmem:[#allocation4 + $0x48] sm:$0xff]
        %v515 = vld [vmem:[#allocation4 + $0x50] sm:$0xff]
        %v516 = vld [vmem:[#allocation4 + $0x58] sm:$0xff]
        %v517 = vld [vmem:[#allocation4 + $0x60] sm:$0xff]
        %v518 = vld [vmem:[#allocation4 + $0x68] sm:$0xff]
        %v519 = vld [vmem:[#allocation4 + $0x70] sm:$0xff]
        %v520 = vld [vmem:[#allocation4 + $0x78] sm:$0xff]
        %v521 = vld [vmem:[#allocation4 + $0x80] sm:$0xff]
        %v522 = vld [vmem:[#allocation4 + $0x88] sm:$0xff]
        %v523 = vld [vmem:[#allocation4 + $0x90] sm:$0xff]
        %v524 = vld [vmem:[#allocation4 + $0x98] sm:$0xff]
        %v525 = vld [vmem:[#allocation4 + $0xa0] sm:$0xff]
        %v526 = vld [vmem:[#allocation4 + $0xa8] sm:$0xff]
        %v527 = vld [vmem:[#allocation4 + $0xb0] sm:$0xff]
        %v528 = vld [vmem:[#allocation4 + $0xb8] sm:$0xff]
        %v529 = vld [vmem:[#allocation4 + $0xc0] sm:$0xff]
        %v530 = vld [vmem:[#allocation4 + $0xc8] sm:$0xff]
        %v531 = vld [vmem:[#allocation4 + $0xd0] sm:$0xff]
        %v532 = vld [vmem:[#allocation4 + $0xd8] sm:$0xff]
        %v533 = vld [vmem:[#allocation4 + $0xe0] sm:$0xff]
        %v534 = vld [vmem:[#allocation4 + $0xe8] sm:$0xff]
        %v535 = vld [vmem:[#allocation4 + $0xf0] sm:$0xff]
        %v536 = vld [vmem:[#allocation4 + $0xf8] sm:$0xff]
        %v569 = vunpack.c.l.b16 %v505
        %v570 = vunpack.c.h.b16 %v505
        %v571 = vunpack.c.l.b16 %v506
        %v572 = vunpack.c.h.b16 %v506
        %v573 = vunpack.c.l.b16 %v507
        %v574 = vunpack.c.h.b16 %v507
        %v575 = vunpack.c.l.b16 %v508
        %v576 = vunpack.c.h.b16 %v508
        %v577 = vunpack.c.l.b16 %v509
        %v578 = vunpack.c.h.b16 %v509
        %v579 = vunpack.c.l.b16 %v510
        %v580 = vunpack.c.h.b16 %v510
        %v581 = vunpack.c.l.b16 %v511
        %v582 = vunpack.c.h.b16 %v511
        %v583 = vunpack.c.l.b16 %v512
        %v584 = vunpack.c.h.b16 %v512
        %v585 = vunpack.c.l.b16 %v513
        %v586 = vunpack.c.h.b16 %v513
        %v587 = vunpack.c.l.b16 %v514
        %v588 = vunpack.c.h.b16 %v514
        %v589 = vunpack.c.l.b16 %v515
        %v590 = vunpack.c.h.b16 %v515
        %v591 = vunpack.c.l.b16 %v516
        %v592 = vunpack.c.h.b16 %v516
        %v593 = vunpack.c.l.b16 %v517
        %v594 = vunpack.c.h.b16 %v517
        %v595 = vunpack.c.l.b16 %v518
        %v596 = vunpack.c.h.b16 %v518
        %v597 = vunpack.c.l.b16 %v519
        %v598 = vunpack.c.h.b16 %v519
        %v599 = vunpack.c.l.b16 %v520
        %v600 = vunpack.c.h.b16 %v520
        %v601 = vunpack.c.l.b16 %v521
        %v602 = vunpack.c.h.b16 %v521
        %v603 = vunpack.c.l.b16 %v522
        %v604 = vunpack.c.h.b16 %v522
        %v605 = vunpack.c.l.b16 %v523
        %v606 = vunpack.c.h.b16 %v523
        %v607 = vunpack.c.l.b16 %v524
        %v608 = vunpack.c.h.b16 %v524
        %v609 = vunpack.c.l.b16 %v525
        %v610 = vunpack.c.h.b16 %v525
        %v611 = vunpack.c.l.b16 %v526
        %v612 = vunpack.c.h.b16 %v526
        %v613 = vunpack.c.l.b16 %v527
        %v614 = vunpack.c.h.b16 %v527
        %v615 = vunpack.c.l.b16 %v528
        %v616 = vunpack.c.h.b16 %v528
        %v617 = vunpack.c.l.b16 %v529
        %v618 = vunpack.c.h.b16 %v529
        %v619 = vunpack.c.l.b16 %v530
        %v620 = vunpack.c.h.b16 %v530
        %v621 = vunpack.c.l.b16 %v531
        %v622 = vunpack.c.h.b16 %v531
        %v623 = vunpack.c.l.b16 %v532
        %v624 = vunpack.c.h.b16 %v532
        %v625 = vunpack.c.l.b16 %v533
        %v626 = vunpack.c.h.b16 %v533
        %v627 = vunpack.c.l.b16 %v534
        %v628 = vunpack.c.h.b16 %v534
        %v629 = vunpack.c.l.b16 %v535
        %v630 = vunpack.c.h.b16 %v535
        %v631 = vunpack.c.l.b16 %v536
        %v632 = vunpack.c.h.b16 %v536
        %v633 = vpack.c.b16 %v573, %v569
        %v634 = vpack.c.b16 %v574, %v570
        %v635 = vpack.c.b16 %v575, %v571
        %v636 = vpack.c.b16 %v576, %v572
        %v637 = vpack.c.b16 %v581, %v577
        %v638 = vpack.c.b16 %v582, %v578
        %v639 = vpack.c.b16 %v583, %v579
        %v640 = vpack.c.b16 %v584, %v580
        %v641 = vpack.c.b16 %v589, %v585
        %v642 = vpack.c.b16 %v590, %v586
        %v643 = vpack.c.b16 %v591, %v587
        %v644 = vpack.c.b16 %v592, %v588
        %v645 = vpack.c.b16 %v597, %v593
        %v646 = vpack.c.b16 %v598, %v594
        %v647 = vpack.c.b16 %v599, %v595
        %v648 = vpack.c.b16 %v600, %v596
        %v649 = vpack.c.b16 %v605, %v601
        %v650 = vpack.c.b16 %v606, %v602
        %v651 = vpack.c.b16 %v607, %v603
        %v652 = vpack.c.b16 %v608, %v604
        %v653 = vpack.c.b16 %v613, %v609
        %v654 = vpack.c.b16 %v614, %v610
        %v655 = vpack.c.b16 %v615, %v611
        %v656 = vpack.c.b16 %v616, %v612
        %v657 = vpack.c.b16 %v621, %v617
        %v658 = vpack.c.b16 %v622, %v618
        %v659 = vpack.c.b16 %v623, %v619
        %v660 = vpack.c.b16 %v624, %v620
        %v661 = vpack.c.b16 %v629, %v625
        %v662 = vpack.c.b16 %v630, %v626
        %v663 = vpack.c.b16 %v631, %v627
        %v664 = vpack.c.b16 %v632, %v628
        %697 = vmatprep.subr.bf16.mxu0 %v662
        %698 = vmatpush1.bf16.msra.mxu0 %v661
        %699 = vmatprep.subr.bf16.mxu0 %v658
        %700 = vmatpush1.bf16.msra.mxu0 %v657
        %701 = vmatprep.subr.bf16.mxu0 %v654
        %702 = vmatpush1.bf16.msra.mxu0 %v653
        %703 = vmatprep.subr.bf16.mxu0 %v650
        %704 = vmatpush1.bf16.msra.mxu0 %v649
        %705 = vmatprep.subr.bf16.mxu0 %v646
        %706 = vmatpush1.bf16.msra.mxu0 %v645
        %707 = vmatprep.subr.bf16.mxu0 %v642
        %708 = vmatpush1.bf16.msra.mxu0 %v641
        %709 = vmatprep.subr.bf16.mxu0 %v638
        %710 = vmatpush1.bf16.msra.mxu0 %v637
        %711 = vmatprep.subr.bf16.mxu0 %v634
        %712 = vmatpush1.bf16.msra.mxu0 %v633
        %713 = vmatprep.subr.bf16.mxu0 0
        %714 = vmatpush2.bf16.msra.mxu0 0
        %715 = vmatprep.subr.bf16.mxu0 0
        %716 = vmatpush2.bf16.msra.mxu0 0
        %717 = vmatprep.subr.bf16.mxu0 0
        %718 = vmatpush2.bf16.msra.mxu0 0
        %719 = vmatprep.subr.bf16.mxu0 0
        %720 = vmatpush2.bf16.msra.mxu0 0
        %721 = vmatprep.subr.bf16.mxu0 0
        %722 = vmatpush2.bf16.msra.mxu0 0
        %723 = vmatprep.subr.bf16.mxu0 0
        %724 = vmatpush2.bf16.msra.mxu0 0
        %725 = vmatprep.subr.bf16.mxu0 0
        %726 = vmatpush2.bf16.msra.mxu0 0
        %727 = vmatprep.subr.bf16.mxu0 0
        %728 = vmatpush2.bf16.msra.mxu0 0
        %729 = vmatprep.mubr.bf16.mxu0 0
        %730 = vmatmul.mubr.bf16.gmra.mxu0 %v504
        %v731 = vpop.f32.mrf.mxu0
        %v732 = vadd.f32 0.0, %v731
        %v733 = vpop.f32.mrf.mxu0
        %v734 = vadd.f32 0.0, %v733
        %v735 = vpop.f32.mrf.mxu0
        %v736 = vpop.f32.mrf.mxu0
        %737 = vdwg.mxu0
        %738 = vmatprep.subr.bf16.mxu0 %v664
        %739 = vmatpush1.bf16.msra.mxu0 %v663
        %740 = vmatprep.subr.bf16.mxu0 %v660
        %741 = vmatpush1.bf16.msra.mxu0 %v659
        %742 = vmatprep.subr.bf16.mxu0 %v656
        %743 = vmatpush1.bf16.msra.mxu0 %v655
        %744 = vmatprep.subr.bf16.mxu0 %v652
        %745 = vmatpush1.bf16.msra.mxu0 %v651
        %746 = vmatprep.subr.bf16.mxu0 %v648
        %747 = vmatpush1.bf16.msra.mxu0 %v647
        %748 = vmatprep.subr.bf16.mxu0 %v644
        %749 = vmatpush1.bf16.msra.mxu0 %v643
        %750 = vmatprep.subr.bf16.mxu0 %v640
        %751 = vmatpush1.bf16.msra.mxu0 %v639
        %752 = vmatprep.subr.bf16.mxu0 %v636
        %753 = vmatpush1.bf16.msra.mxu0 %v635
        %754 = vmatprep.subr.bf16.mxu0 0
        %755 = vmatpush2.bf16.msra.mxu0 0
        %756 = vmatprep.subr.bf16.mxu0 0
        %757 = vmatpush2.bf16.msra.mxu0 0
        %758 = vmatprep.subr.bf16.mxu0 0
        %759 = vmatpush2.bf16.msra.mxu0 0
        %760 = vmatprep.subr.bf16.mxu0 0
        %761 = vmatpush2.bf16.msra.mxu0 0
        %762 = vmatprep.subr.bf16.mxu0 0
        %763 = vmatpush2.bf16.msra.mxu0 0
        %764 = vmatprep.subr.bf16.mxu0 0
        %765 = vmatpush2.bf16.msra.mxu0 0
        %766 = vmatprep.subr.bf16.mxu0 0
        %767 = vmatpush2.bf16.msra.mxu0 0
        %768 = vmatprep.subr.bf16.mxu0 0
        %769 = vmatpush2.bf16.msra.mxu0 0
        %770 = vmatprep.mubr.bf16.mxu0 0
        %771 = vmatmul.mubr.bf16.gmra.mxu0 %v504
        %v772 = vpop.f32.mrf.mxu0
        %v773 = vadd.f32 0.0, %v772
        %v774 = vpop.f32.mrf.mxu0
        %v775 = vadd.f32 0.0, %v774
        %v776 = vpop.f32.mrf.mxu0
        %v777 = vpop.f32.mrf.mxu0
        %778 = vdwg.mxu0
        %v779 = vadd.f32 %v500, %v732
        %v780 = vadd.f32 %v501, %v734
        %v781 = vadd.f32 %v502, %v773
        %v782 = vadd.f32 %v503, %v775
        %v783 = vxor.u32 %v779, 2147483648
        %v784 = vmul.f32 %v783, 1.442695
        %v785 = vpow.pop %v784
        %v786 = vadd.f32 %v785, 1.0
        %v787 = vrcp.pop %v786
        %v788 = vmul.f32 1.0, %v787
        %v789 = vxor.u32 %v780, 2147483648
        %v790 = vmul.f32 %v789, 1.442695
        %v791 = vpow.pop %v790
        %v792 = vadd.f32 %v791, 1.0
        %v793 = vrcp.pop %v792
        %v794 = vmul.f32 1.0, %v793
        %v795 = vtanh.pop %v781
        %v796 = vxor.u32 %v782, 2147483648
        %v797 = vmul.f32 %v796, 1.442695
        %v798 = vpow.pop %v797
        %v799 = vadd.f32 %v798, 1.0
        %v800 = vrcp.pop %v799
        %v801 = vmul.f32 1.0, %v800
        %v802 = vmul.f32 %v794, %v497
        %v803 = vmul.f32 %v788, %v795
        %v804 = vadd.f32 %v802, %v803
        %v805 = vtanh.pop %v804
        %v806 = vmul.f32 %v801, %v805
        %807 = vst [vmem:[#allocation3] sm:$0xff] %v804
        %808 = vst [vmem:[#allocation2] sm:$0xff] %v806
        %v809 = vpack.c.bf16 %v806, %v806
        %810 = vst [vmem:[%s353] sm:$0xf] %v809
        %v811 = vld [vmem:[#allocation2] sm:$0xff]
        %v812 = vld [vmem:[#allocation3] sm:$0xff]
        %s813 = scalar_lea.vmem %s326, 16 [#allocation6]
        %v814 = vld [vmem:[%s813] sm:$0xff]
        %v815 = vld [vmem:[%s813 + $0x8] sm:$0xff]
        %v816 = vunpack.c.l.bf16 %v814
        %v817 = vunpack.c.h.bf16 %v814
        %v818 = vunpack.c.l.bf16 %v815
        %v819 = vunpack.c.h.bf16 %v815
        %v820 = vpack.c.bf16 %v811, %v811
        %v821 = vld [vmem:[#allocation4] sm:$0xff]
        %v822 = vld [vmem:[#allocation4 + $0x8] sm:$0xff]
        %v823 = vld [vmem:[#allocation4 + $0x10] sm:$0xff]
        %v824 = vld [vmem:[#allocation4 + $0x18] sm:$0xff]
        %v825 = vld [vmem:[#allocation4 + $0x20] sm:$0xff]
        %v826 = vld [vmem:[#allocation4 + $0x28] sm:$0xff]
        %v827 = vld [vmem:[#allocation4 + $0x30] sm:$0xff]
        %v828 = vld [vmem:[#allocation4 + $0x38] sm:$0xff]
        %v829 = vld [vmem:[#allocation4 + $0x40] sm:$0xff]
        %v830 = vld [vmem:[#allocation4 + $0x48] sm:$0xff]
        %v831 = vld [vmem:[#allocation4 + $0x50] sm:$0xff]
        %v832 = vld [vmem:[#allocation4 + $0x58] sm:$0xff]
        %v833 = vld [vmem:[#allocation4 + $0x60] sm:$0xff]
        %v834 = vld [vmem:[#allocation4 + $0x68] sm:$0xff]
        %v835 = vld [vmem:[#allocation4 + $0x70] sm:$0xff]
        %v836 = vld [vmem:[#allocation4 + $0x78] sm:$0xff]
        %v837 = vld [vmem:[#allocation4 + $0x80] sm:$0xff]
        %v838 = vld [vmem:[#allocation4 + $0x88] sm:$0xff]
        %v839 = vld [vmem:[#allocation4 + $0x90] sm:$0xff]
        %v840 = vld [vmem:[#allocation4 + $0x98] sm:$0xff]
        %v841 = vld [vmem:[#allocation4 + $0xa0] sm:$0xff]
        %v842 = vld [vmem:[#allocation4 + $0xa8] sm:$0xff]
        %v843 = vld [vmem:[#allocation4 + $0xb0] sm:$0xff]
        %v844 = vld [vmem:[#allocation4 + $0xb8] sm:$0xff]
        %v845 = vld [vmem:[#allocation4 + $0xc0] sm:$0xff]
        %v846 = vld [vmem:[#allocation4 + $0xc8] sm:$0xff]
        %v847 = vld [vmem:[#allocation4 + $0xd0] sm:$0xff]
        %v848 = vld [vmem:[#allocation4 + $0xd8] sm:$0xff]
        %v849 = vld [vmem:[#allocation4 + $0xe0] sm:$0xff]
        %v850 = vld [vmem:[#allocation4 + $0xe8] sm:$0xff]
        %v851 = vld [vmem:[#allocation4 + $0xf0] sm:$0xff]
        %v852 = vld [vmem:[#allocation4 + $0xf8] sm:$0xff]
        %v885 = vunpack.c.l.b16 %v821
        %v886 = vunpack.c.h.b16 %v821
        %v887 = vunpack.c.l.b16 %v822
        %v888 = vunpack.c.h.b16 %v822
        %v889 = vunpack.c.l.b16 %v823
        %v890 = vunpack.c.h.b16 %v823
        %v891 = vunpack.c.l.b16 %v824
        %v892 = vunpack.c.h.b16 %v824
        %v893 = vunpack.c.l.b16 %v825
        %v894 = vunpack.c.h.b16 %v825
        %v895 = vunpack.c.l.b16 %v826
        %v896 = vunpack.c.h.b16 %v826
        %v897 = vunpack.c.l.b16 %v827
        %v898 = vunpack.c.h.b16 %v827
        %v899 = vunpack.c.l.b16 %v828
        %v900 = vunpack.c.h.b16 %v828
        %v901 = vunpack.c.l.b16 %v829
        %v902 = vunpack.c.h.b16 %v829
        %v903 = vunpack.c.l.b16 %v830
        %v904 = vunpack.c.h.b16 %v830
        %v905 = vunpack.c.l.b16 %v831
        %v906 = vunpack.c.h.b16 %v831
        %v907 = vunpack.c.l.b16 %v832
        %v908 = vunpack.c.h.b16 %v832
        %v909 = vunpack.c.l.b16 %v833
        %v910 = vunpack.c.h.b16 %v833
        %v911 = vunpack.c.l.b16 %v834
        %v912 = vunpack.c.h.b16 %v834
        %v913 = vunpack.c.l.b16 %v835
        %v914 = vunpack.c.h.b16 %v835
        %v915 = vunpack.c.l.b16 %v836
        %v916 = vunpack.c.h.b16 %v836
        %v917 = vunpack.c.l.b16 %v837
        %v918 = vunpack.c.h.b16 %v837
        %v919 = vunpack.c.l.b16 %v838
        %v920 = vunpack.c.h.b16 %v838
        %v921 = vunpack.c.l.b16 %v839
        %v922 = vunpack.c.h.b16 %v839
        %v923 = vunpack.c.l.b16 %v840
        %v924 = vunpack.c.h.b16 %v840
        %v925 = vunpack.c.l.b16 %v841
        %v926 = vunpack.c.h.b16 %v841
        %v927 = vunpack.c.l.b16 %v842
        %v928 = vunpack.c.h.b16 %v842
        %v929 = vunpack.c.l.b16 %v843
        %v930 = vunpack.c.h.b16 %v843
        %v931 = vunpack.c.l.b16 %v844
        %v932 = vunpack.c.h.b16 %v844
        %v933 = vunpack.c.l.b16 %v845
        %v934 = vunpack.c.h.b16 %v845
        %v935 = vunpack.c.l.b16 %v846
        %v936 = vunpack.c.h.b16 %v846
        %v937 = vunpack.c.l.b16 %v847
        %v938 = vunpack.c.h.b16 %v847
        %v939 = vunpack.c.l.b16 %v848
        %v940 = vunpack.c.h.b16 %v848
        %v941 = vunpack.c.l.b16 %v849
        %v942 = vunpack.c.h.b16 %v849
        %v943 = vunpack.c.l.b16 %v850
        %v944 = vunpack.c.h.b16 %v850
        %v945 = vunpack.c.l.b16 %v851
        %v946 = vunpack.c.h.b16 %v851
        %v947 = vunpack.c.l.b16 %v852
        %v948 = vunpack.c.h.b16 %v852
        %v949 = vpack.c.b16 %v889, %v885
        %v950 = vpack.c.b16 %v890, %v886
        %v951 = vpack.c.b16 %v891, %v887
        %v952 = vpack.c.b16 %v892, %v888
        %v953 = vpack.c.b16 %v897, %v893
        %v954 = vpack.c.b16 %v898, %v894
        %v955 = vpack.c.b16 %v899, %v895
        %v956 = vpack.c.b16 %v900, %v896
        %v957 = vpack.c.b16 %v905, %v901
        %v958 = vpack.c.b16 %v906, %v902
        %v959 = vpack.c.b16 %v907, %v903
        %v960 = vpack.c.b16 %v908, %v904
        %v961 = vpack.c.b16 %v913, %v909
        %v962 = vpack.c.b16 %v914, %v910
        %v963 = vpack.c.b16 %v915, %v911
        %v964 = vpack.c.b16 %v916, %v912
        %v965 = vpack.c.b16 %v921, %v917
        %v966 = vpack.c.b16 %v922, %v918
        %v967 = vpack.c.b16 %v923, %v919
        %v968 = vpack.c.b16 %v924, %v920
        %v969 = vpack.c.b16 %v929, %v925
        %v970 = vpack.c.b16 %v930, %v926
        %v971 = vpack.c.b16 %v931, %v927
        %v972 = vpack.c.b16 %v932, %v928
        %v973 = vpack.c.b16 %v937, %v933
        %v974 = vpack.c.b16 %v938, %v934
        %v975 = vpack.c.b16 %v939, %v935
        %v976 = vpack.c.b16 %v940, %v936
        %v977 = vpack.c.b16 %v945, %v941
        %v978 = vpack.c.b16 %v946, %v942
        %v979 = vpack.c.b16 %v947, %v943
        %v980 = vpack.c.b16 %v948, %v944
        %1013 = vmatprep.subr.bf16.mxu0 %v978
        %1014 = vmatpush1.bf16.msra.mxu0 %v977
        %1015 = vmatprep.subr.bf16.mxu0 %v974
        %1016 = vmatpush1.bf16.msra.mxu0 %v973
        %1017 = vmatprep.subr.bf16.mxu0 %v970
        %1018 = vmatpush1.bf16.msra.mxu0 %v969
        %1019 = vmatprep.subr.bf16.mxu0 %v966
        %1020 = vmatpush1.bf16.msra.mxu0 %v965
        %1021 = vmatprep.subr.bf16.mxu0 %v962
        %1022 = vmatpush1.bf16.msra.mxu0 %v961
        %1023 = vmatprep.subr.bf16.mxu0 %v958
        %1024 = vmatpush1.bf16.msra.mxu0 %v957
        %1025 = vmatprep.subr.bf16.mxu0 %v954
        %1026 = vmatpush1.bf16.msra.mxu0 %v953
        %1027 = vmatprep.subr.bf16.mxu0 %v950
        %1028 = vmatpush1.bf16.msra.mxu0 %v949
        %1029 = vmatprep.subr.bf16.mxu0 0
        %1030 = vmatpush2.bf16.msra.mxu0 0
        %1031 = vmatprep.subr.bf16.mxu0 0
        %1032 = vmatpush2.bf16.msra.mxu0 0
        %1033 = vmatprep.subr.bf16.mxu0 0
        %1034 = vmatpush2.bf16.msra.mxu0 0
        %1035 = vmatprep.subr.bf16.mxu0 0
        %1036 = vmatpush2.bf16.msra.mxu0 0
        %1037 = vmatprep.subr.bf16.mxu0 0
        %1038 = vmatpush2.bf16.msra.mxu0 0
        %1039 = vmatprep.subr.bf16.mxu0 0
        %1040 = vmatpush2.bf16.msra.mxu0 0
        %1041 = vmatprep.subr.bf16.mxu0 0
        %1042 = vmatpush2.bf16.msra.mxu0 0
        %1043 = vmatprep.subr.bf16.mxu0 0
        %1044 = vmatpush2.bf16.msra.mxu0 0
        %1045 = vmatprep.mubr.bf16.mxu0 0
        %1046 = vmatmul.mubr.bf16.gmra.mxu0 %v820
        %v1047 = vpop.f32.mrf.mxu0
        %v1048 = vadd.f32 0.0, %v1047
        %v1049 = vpop.f32.mrf.mxu0
        %v1050 = vadd.f32 0.0, %v1049
        %v1051 = vpop.f32.mrf.mxu0
        %v1052 = vpop.f32.mrf.mxu0
        %1053 = vdwg.mxu0
        %1054 = vmatprep.subr.bf16.mxu0 %v980
        %1055 = vmatpush1.bf16.msra.mxu0 %v979
        %1056 = vmatprep.subr.bf16.mxu0 %v976
        %1057 = vmatpush1.bf16.msra.mxu0 %v975
        %1058 = vmatprep.subr.bf16.mxu0 %v972
        %1059 = vmatpush1.bf16.msra.mxu0 %v971
        %1060 = vmatprep.subr.bf16.mxu0 %v968
        %1061 = vmatpush1.bf16.msra.mxu0 %v967
        %1062 = vmatprep.subr.bf16.mxu0 %v964
        %1063 = vmatpush1.bf16.msra.mxu0 %v963
        %1064 = vmatprep.subr.bf16.mxu0 %v960
        %1065 = vmatpush1.bf16.msra.mxu0 %v959
        %1066 = vmatprep.subr.bf16.mxu0 %v956
        %1067 = vmatpush1.bf16.msra.mxu0 %v955
        %1068 = vmatprep.subr.bf16.mxu0 %v952
        %1069 = vmatpush1.bf16.msra.mxu0 %v951
        %1070 = vmatprep.subr.bf16.mxu0 0
        %1071 = vmatpush2.bf16.msra.mxu0 0
        %1072 = vmatprep.subr.bf16.mxu0 0
        %1073 = vmatpush2.bf16.msra.mxu0 0
        %1074 = vmatprep.subr.bf16.mxu0 0
        %1075 = vmatpush2.bf16.msra.mxu0 0
        %1076 = vmatprep.subr.bf16.mxu0 0
        %1077 = vmatpush2.bf16.msra.mxu0 0
        %1078 = vmatprep.subr.bf16.mxu0 0
        %1079 = vmatpush2.bf16.msra.mxu0 0
        %1080 = vmatprep.subr.bf16.mxu0 0
        %1081 = vmatpush2.bf16.msra.mxu0 0
        %1082 = vmatprep.subr.bf16.mxu0 0
        %1083 = vmatpush2.bf16.msra.mxu0 0
        %1084 = vmatprep.subr.bf16.mxu0 0
        %1085 = vmatpush2.bf16.msra.mxu0 0
        %1086 = vmatprep.mubr.bf16.mxu0 0
        %1087 = vmatmul.mubr.bf16.gmra.mxu0 %v820
        %v1088 = vpop.f32.mrf.mxu0
        %v1089 = vadd.f32 0.0, %v1088
        %v1090 = vpop.f32.mrf.mxu0
        %v1091 = vadd.f32 0.0, %v1090
        %v1092 = vpop.f32.mrf.mxu0
        %v1093 = vpop.f32.mrf.mxu0
        %1094 = vdwg.mxu0
        %v1095 = vadd.f32 %v816, %v1048
        %v1096 = vadd.f32 %v817, %v1050
        %v1097 = vadd.f32 %v818, %v1089
        %v1098 = vadd.f32 %v819, %v1091
        %v1099 = vxor.u32 %v1095, 2147483648
        %v1100 = vmul.f32 %v1099, 1.442695
        %v1101 = vpow.pop %v1100
        %v1102 = vadd.f32 %v1101, 1.0
        %v1103 = vrcp.pop %v1102
        %v1104 = vmul.f32 1.0, %v1103
        %v1105 = vxor.u32 %v1096, 2147483648
        %v1106 = vmul.f32 %v1105, 1.442695
        %v1107 = vpow.pop %v1106
        %v1108 = vadd.f32 %v1107, 1.0
        %v1109 = vrcp.pop %v1108
        %v1110 = vmul.f32 1.0, %v1109
        %v1111 = vtanh.pop %v1097
        %v1112 = vxor.u32 %v1098, 2147483648
        %v1113 = vmul.f32 %v1112, 1.442695
        %v1114 = vpow.pop %v1113
        %v1115 = vadd.f32 %v1114, 1.0
        %v1116 = vrcp.pop %v1115
        %v1117 = vmul.f32 1.0, %v1116
        %v1118 = vmul.f32 %v1110, %v812
        %v1119 = vmul.f32 %v1104, %v1111
        %v1120 = vadd.f32 %v1118, %v1119
        %v1121 = vtanh.pop %v1120
        %v1122 = vmul.f32 %v1117, %v1121
        %1123 = vst [vmem:[#allocation3] sm:$0xff] %v1120
        %1124 = vst [vmem:[#allocation2] sm:$0xff] %v1122
        %v1125 = vpack.c.bf16 %v1122, %v1122
        %s1126 = scalar_lea.vmem %s353, 4 [#allocation7]
        %1127 = vst [vmem:[%s1126] sm:$0xf] %v1125
        %v1128 = vld [vmem:[#allocation2] sm:$0xff]
        %v1129 = vld [vmem:[#allocation3] sm:$0xff]
        %s1130 = scalar_lea.vmem %s326, 32 [#allocation6]
        %v1131 = vld [vmem:[%s1130] sm:$0xff]
        %v1132 = vld [vmem:[%s1130 + $0x8] sm:$0xff]
        %v1133 = vunpack.c.l.bf16 %v1131
        %v1134 = vunpack.c.h.bf16 %v1131
        %v1135 = vunpack.c.l.bf16 %v1132
        %v1136 = vunpack.c.h.bf16 %v1132
        %v1137 = vpack.c.bf16 %v1128, %v1128
        %v1138 = vld [vmem:[#allocation4] sm:$0xff]
        %v1139 = vld [vmem:[#allocation4 + $0x8] sm:$0xff]
        %v1140 = vld [vmem:[#allocation4 + $0x10] sm:$0xff]
        %v1141 = vld [vmem:[#allocation4 + $0x18] sm:$0xff]
        %v1142 = vld [vmem:[#allocation4 + $0x20] sm:$0xff]
        %v1143 = vld [vmem:[#allocation4 + $0x28] sm:$0xff]
        %v1144 = vld [vmem:[#allocation4 + $0x30] sm:$0xff]
        %v1145 = vld [vmem:[#allocation4 + $0x38] sm:$0xff]
        %v1146 = vld [vmem:[#allocation4 + $0x40] sm:$0xff]
        %v1147 = vld [vmem:[#allocation4 + $0x48] sm:$0xff]
        %v1148 = vld [vmem:[#allocation4 + $0x50] sm:$0xff]
        %v1149 = vld [vmem:[#allocation4 + $0x58] sm:$0xff]
        %v1150 = vld [vmem:[#allocation4 + $0x60] sm:$0xff]
        %v1151 = vld [vmem:[#allocation4 + $0x68] sm:$0xff]
        %v1152 = vld [vmem:[#allocation4 + $0x70] sm:$0xff]
        %v1153 = vld [vmem:[#allocation4 + $0x78] sm:$0xff]
        %v1154 = vld [vmem:[#allocation4 + $0x80] sm:$0xff]
        %v1155 = vld [vmem:[#allocation4 + $0x88] sm:$0xff]
        %v1156 = vld [vmem:[#allocation4 + $0x90] sm:$0xff]
        %v1157 = vld [vmem:[#allocation4 + $0x98] sm:$0xff]
        %v1158 = vld [vmem:[#allocation4 + $0xa0] sm:$0xff]
        %v1159 = vld [vmem:[#allocation4 + $0xa8] sm:$0xff]
        %v1160 = vld [vmem:[#allocation4 + $0xb0] sm:$0xff]
        %v1161 = vld [vmem:[#allocation4 + $0xb8] sm:$0xff]
        %v1162 = vld [vmem:[#allocation4 + $0xc0] sm:$0xff]
        %v1163 = vld [vmem:[#allocation4 + $0xc8] sm:$0xff]
        %v1164 = vld [vmem:[#allocation4 + $0xd0] sm:$0xff]
        %v1165 = vld [vmem:[#allocation4 + $0xd8] sm:$0xff]
        %v1166 = vld [vmem:[#allocation4 + $0xe0] sm:$0xff]
        %v1167 = vld [vmem:[#allocation4 + $0xe8] sm:$0xff]
        %v1168 = vld [vmem:[#allocation4 + $0xf0] sm:$0xff]
        %v1169 = vld [vmem:[#allocation4 + $0xf8] sm:$0xff]
        %v1202 = vunpack.c.l.b16 %v1138
        %v1203 = vunpack.c.h.b16 %v1138
        %v1204 = vunpack.c.l.b16 %v1139
        %v1205 = vunpack.c.h.b16 %v1139
        %v1206 = vunpack.c.l.b16 %v1140
        %v1207 = vunpack.c.h.b16 %v1140
        %v1208 = vunpack.c.l.b16 %v1141
        %v1209 = vunpack.c.h.b16 %v1141
        %v1210 = vunpack.c.l.b16 %v1142
        %v1211 = vunpack.c.h.b16 %v1142
        %v1212 = vunpack.c.l.b16 %v1143
        %v1213 = vunpack.c.h.b16 %v1143
        %v1214 = vunpack.c.l.b16 %v1144
        %v1215 = vunpack.c.h.b16 %v1144
        %v1216 = vunpack.c.l.b16 %v1145
        %v1217 = vunpack.c.h.b16 %v1145
        %v1218 = vunpack.c.l.b16 %v1146
        %v1219 = vunpack.c.h.b16 %v1146
        %v1220 = vunpack.c.l.b16 %v1147
        %v1221 = vunpack.c.h.b16 %v1147
        %v1222 = vunpack.c.l.b16 %v1148
        %v1223 = vunpack.c.h.b16 %v1148
        %v1224 = vunpack.c.l.b16 %v1149
        %v1225 = vunpack.c.h.b16 %v1149
        %v1226 = vunpack.c.l.b16 %v1150
        %v1227 = vunpack.c.h.b16 %v1150
        %v1228 = vunpack.c.l.b16 %v1151
        %v1229 = vunpack.c.h.b16 %v1151
        %v1230 = vunpack.c.l.b16 %v1152
        %v1231 = vunpack.c.h.b16 %v1152
        %v1232 = vunpack.c.l.b16 %v1153
        %v1233 = vunpack.c.h.b16 %v1153
        %v1234 = vunpack.c.l.b16 %v1154
        %v1235 = vunpack.c.h.b16 %v1154
        %v1236 = vunpack.c.l.b16 %v1155
        %v1237 = vunpack.c.h.b16 %v1155
        %v1238 = vunpack.c.l.b16 %v1156
        %v1239 = vunpack.c.h.b16 %v1156
        %v1240 = vunpack.c.l.b16 %v1157
        %v1241 = vunpack.c.h.b16 %v1157
        %v1242 = vunpack.c.l.b16 %v1158
        %v1243 = vunpack.c.h.b16 %v1158
        %v1244 = vunpack.c.l.b16 %v1159
        %v1245 = vunpack.c.h.b16 %v1159
        %v1246 = vunpack.c.l.b16 %v1160
        %v1247 = vunpack.c.h.b16 %v1160
        %v1248 = vunpack.c.l.b16 %v1161
        %v1249 = vunpack.c.h.b16 %v1161
        %v1250 = vunpack.c.l.b16 %v1162
        %v1251 = vunpack.c.h.b16 %v1162
        %v1252 = vunpack.c.l.b16 %v1163
        %v1253 = vunpack.c.h.b16 %v1163
        %v1254 = vunpack.c.l.b16 %v1164
        %v1255 = vunpack.c.h.b16 %v1164
        %v1256 = vunpack.c.l.b16 %v1165
        %v1257 = vunpack.c.h.b16 %v1165
        %v1258 = vunpack.c.l.b16 %v1166
        %v1259 = vunpack.c.h.b16 %v1166
        %v1260 = vunpack.c.l.b16 %v1167
        %v1261 = vunpack.c.h.b16 %v1167
        %v1262 = vunpack.c.l.b16 %v1168
        %v1263 = vunpack.c.h.b16 %v1168
        %v1264 = vunpack.c.l.b16 %v1169
        %v1265 = vunpack.c.h.b16 %v1169
        %v1266 = vpack.c.b16 %v1206, %v1202
        %v1267 = vpack.c.b16 %v1207, %v1203
        %v1268 = vpack.c.b16 %v1208, %v1204
        %v1269 = vpack.c.b16 %v1209, %v1205
        %v1270 = vpack.c.b16 %v1214, %v1210
        %v1271 = vpack.c.b16 %v1215, %v1211
        %v1272 = vpack.c.b16 %v1216, %v1212
        %v1273 = vpack.c.b16 %v1217, %v1213
        %v1274 = vpack.c.b16 %v1222, %v1218
        %v1275 = vpack.c.b16 %v1223, %v1219
        %v1276 = vpack.c.b16 %v1224, %v1220
        %v1277 = vpack.c.b16 %v1225, %v1221
        %v1278 = vpack.c.b16 %v1230, %v1226
        %v1279 = vpack.c.b16 %v1231, %v1227
        %v1280 = vpack.c.b16 %v1232, %v1228
        %v1281 = vpack.c.b16 %v1233, %v1229
        %v1282 = vpack.c.b16 %v1238, %v1234
        %v1283 = vpack.c.b16 %v1239, %v1235
        %v1284 = vpack.c.b16 %v1240, %v1236
        %v1285 = vpack.c.b16 %v1241, %v1237
        %v1286 = vpack.c.b16 %v1246, %v1242
        %v1287 = vpack.c.b16 %v1247, %v1243
        %v1288 = vpack.c.b16 %v1248, %v1244
        %v1289 = vpack.c.b16 %v1249, %v1245
        %v1290 = vpack.c.b16 %v1254, %v1250
        %v1291 = vpack.c.b16 %v1255, %v1251
        %v1292 = vpack.c.b16 %v1256, %v1252
        %v1293 = vpack.c.b16 %v1257, %v1253
        %v1294 = vpack.c.b16 %v1262, %v1258
        %v1295 = vpack.c.b16 %v1263, %v1259
        %v1296 = vpack.c.b16 %v1264, %v1260
        %v1297 = vpack.c.b16 %v1265, %v1261
        %1330 = vmatprep.subr.bf16.mxu0 %v1295
        %1331 = vmatpush1.bf16.msra.mxu0 %v1294
        %1332 = vmatprep.subr.bf16.mxu0 %v1291
        %1333 = vmatpush1.bf16.msra.mxu0 %v1290
        %1334 = vmatprep.subr.bf16.mxu0 %v1287
        %1335 = vmatpush1.bf16.msra.mxu0 %v1286
        %1336 = vmatprep.subr.bf16.mxu0 %v1283
        %1337 = vmatpush1.bf16.msra.mxu0 %v1282
        %1338 = vmatprep.subr.bf16.mxu0 %v1279
        %1339 = vmatpush1.bf16.msra.mxu0 %v1278
        %1340 = vmatprep.subr.bf16.mxu0 %v1275
        %1341 = vmatpush1.bf16.msra.mxu0 %v1274
        %1342 = vmatprep.subr.bf16.mxu0 %v1271
        %1343 = vmatpush1.bf16.msra.mxu0 %v1270
        %1344 = vmatprep.subr.bf16.mxu0 %v1267
        %1345 = vmatpush1.bf16.msra.mxu0 %v1266
        %1346 = vmatprep.subr.bf16.mxu0 0
        %1347 = vmatpush2.bf16.msra.mxu0 0
        %1348 = vmatprep.subr.bf16.mxu0 0
        %1349 = vmatpush2.bf16.msra.mxu0 0
        %1350 = vmatprep.subr.bf16.mxu0 0
        %1351 = vmatpush2.bf16.msra.mxu0 0
        %1352 = vmatprep.subr.bf16.mxu0 0
        %1353 = vmatpush2.bf16.msra.mxu0 0
        %1354 = vmatprep.subr.bf16.mxu0 0
        %1355 = vmatpush2.bf16.msra.mxu0 0
        %1356 = vmatprep.subr.bf16.mxu0 0
        %1357 = vmatpush2.bf16.msra.mxu0 0
        %1358 = vmatprep.subr.bf16.mxu0 0
        %1359 = vmatpush2.bf16.msra.mxu0 0
        %1360 = vmatprep.subr.bf16.mxu0 0
        %1361 = vmatpush2.bf16.msra.mxu0 0
        %1362 = vmatprep.mubr.bf16.mxu0 0
        %1363 = vmatmul.mubr.bf16.gmra.mxu0 %v1137
        %v1364 = vpop.f32.mrf.mxu0
        %v1365 = vadd.f32 0.0, %v1364
        %v1366 = vpop.f32.mrf.mxu0
        %v1367 = vadd.f32 0.0, %v1366
        %v1368 = vpop.f32.mrf.mxu0
        %v1369 = vpop.f32.mrf.mxu0
        %1370 = vdwg.mxu0
        %1371 = vmatprep.subr.bf16.mxu0 %v1297
        %1372 = vmatpush1.bf16.msra.mxu0 %v1296
        %1373 = vmatprep.subr.bf16.mxu0 %v1293
        %1374 = vmatpush1.bf16.msra.mxu0 %v1292
        %1375 = vmatprep.subr.bf16.mxu0 %v1289
        %1376 = vmatpush1.bf16.msra.mxu0 %v1288
        %1377 = vmatprep.subr.bf16.mxu0 %v1285
        %1378 = vmatpush1.bf16.msra.mxu0 %v1284
        %1379 = vmatprep.subr.bf16.mxu0 %v1281
        %1380 = vmatpush1.bf16.msra.mxu0 %v1280
        %1381 = vmatprep.subr.bf16.mxu0 %v1277
        %1382 = vmatpush1.bf16.msra.mxu0 %v1276
        %1383 = vmatprep.subr.bf16.mxu0 %v1273
        %1384 = vmatpush1.bf16.msra.mxu0 %v1272
        %1385 = vmatprep.subr.bf16.mxu0 %v1269
        %1386 = vmatpush1.bf16.msra.mxu0 %v1268
        %1387 = vmatprep.subr.bf16.mxu0 0
        %1388 = vmatpush2.bf16.msra.mxu0 0
        %1389 = vmatprep.subr.bf16.mxu0 0
        %1390 = vmatpush2.bf16.msra.mxu0 0
        %1391 = vmatprep.subr.bf16.mxu0 0
        %1392 = vmatpush2.bf16.msra.mxu0 0
        %1393 = vmatprep.subr.bf16.mxu0 0
        %1394 = vmatpush2.bf16.msra.mxu0 0
        %1395 = vmatprep.subr.bf16.mxu0 0
        %1396 = vmatpush2.bf16.msra.mxu0 0
        %1397 = vmatprep.subr.bf16.mxu0 0
        %1398 = vmatpush2.bf16.msra.mxu0 0
        %1399 = vmatprep.subr.bf16.mxu0 0
        %1400 = vmatpush2.bf16.msra.mxu0 0
        %1401 = vmatprep.subr.bf16.mxu0 0
        %1402 = vmatpush2.bf16.msra.mxu0 0
        %1403 = vmatprep.mubr.bf16.mxu0 0
        %1404 = vmatmul.mubr.bf16.gmra.mxu0 %v1137
        %v1405 = vpop.f32.mrf.mxu0
        %v1406 = vadd.f32 0.0, %v1405
        %v1407 = vpop.f32.mrf.mxu0
        %v1408 = vadd.f32 0.0, %v1407
        %v1409 = vpop.f32.mrf.mxu0
        %v1410 = vpop.f32.mrf.mxu0
        %1411 = vdwg.mxu0
        %v1412 = vadd.f32 %v1133, %v1365
        %v1413 = vadd.f32 %v1134, %v1367
        %v1414 = vadd.f32 %v1135, %v1406
        %v1415 = vadd.f32 %v1136, %v1408
        %v1416 = vxor.u32 %v1412, 2147483648
        %v1417 = vmul.f32 %v1416, 1.442695
        %v1418 = vpow.pop %v1417
        %v1419 = vadd.f32 %v1418, 1.0
        %v1420 = vrcp.pop %v1419
        %v1421 = vmul.f32 1.0, %v1420
        %v1422 = vxor.u32 %v1413, 2147483648
        %v1423 = vmul.f32 %v1422, 1.442695
        %v1424 = vpow.pop %v1423
        %v1425 = vadd.f32 %v1424, 1.0
        %v1426 = vrcp.pop %v1425
        %v1427 = vmul.f32 1.0, %v1426
        %v1428 = vtanh.pop %v1414
        %v1429 = vxor.u32 %v1415, 2147483648
        %v1430 = vmul.f32 %v1429, 1.442695
        %v1431 = vpow.pop %v1430
        %v1432 = vadd.f32 %v1431, 1.0
        %v1433 = vrcp.pop %v1432
        %v1434 = vmul.f32 1.0, %v1433
        %v1435 = vmul.f32 %v1427, %v1129
        %v1436 = vmul.f32 %v1421, %v1428
        %v1437 = vadd.f32 %v1435, %v1436
        %v1438 = vtanh.pop %v1437
        %v1439 = vmul.f32 %v1434, %v1438
        %1440 = vst [vmem:[#allocation3] sm:$0xff] %v1437
        %1441 = vst [vmem:[#allocation2] sm:$0xff] %v1439
        %v1442 = vpack.c.bf16 %v1439, %v1439
        %s1443 = scalar_lea.vmem %s353, 8 [#allocation7]
        %1444 = vst [vmem:[%s1443] sm:$0xf] %v1442
        %v1445 = vld [vmem:[#allocation2] sm:$0xff]
        %v1446 = vld [vmem:[#allocation3] sm:$0xff]
        %s1447 = scalar_lea.vmem %s326, 48 [#allocation6]
        %v1448 = vld [vmem:[%s1447] sm:$0xff]
        %v1449 = vld [vmem:[%s1447 + $0x8] sm:$0xff]
        %v1450 = vunpack.c.l.bf16 %v1448
        %v1451 = vunpack.c.h.bf16 %v1448
        %v1452 = vunpack.c.l.bf16 %v1449
        %v1453 = vunpack.c.h.bf16 %v1449
        %v1454 = vpack.c.bf16 %v1445, %v1445
        %v1455 = vld [vmem:[#allocation4] sm:$0xff]
        %v1456 = vld [vmem:[#allocation4 + $0x8] sm:$0xff]
        %v1457 = vld [vmem:[#allocation4 + $0x10] sm:$0xff]
        %v1458 = vld [vmem:[#allocation4 + $0x18] sm:$0xff]
        %v1459 = vld [vmem:[#allocation4 + $0x20] sm:$0xff]
        %v1460 = vld [vmem:[#allocation4 + $0x28] sm:$0xff]
        %v1461 = vld [vmem:[#allocation4 + $0x30] sm:$0xff]
        %v1462 = vld [vmem:[#allocation4 + $0x38] sm:$0xff]
        %v1463 = vld [vmem:[#allocation4 + $0x40] sm:$0xff]
        %v1464 = vld [vmem:[#allocation4 + $0x48] sm:$0xff]
        %v1465 = vld [vmem:[#allocation4 + $0x50] sm:$0xff]
        %v1466 = vld [vmem:[#allocation4 + $0x58] sm:$0xff]
        %v1467 = vld [vmem:[#allocation4 + $0x60] sm:$0xff]
        %v1468 = vld [vmem:[#allocation4 + $0x68] sm:$0xff]
        %v1469 = vld [vmem:[#allocation4 + $0x70] sm:$0xff]
        %v1470 = vld [vmem:[#allocation4 + $0x78] sm:$0xff]
        %v1471 = vld [vmem:[#allocation4 + $0x80] sm:$0xff]
        %v1472 = vld [vmem:[#allocation4 + $0x88] sm:$0xff]
        %v1473 = vld [vmem:[#allocation4 + $0x90] sm:$0xff]
        %v1474 = vld [vmem:[#allocation4 + $0x98] sm:$0xff]
        %v1475 = vld [vmem:[#allocation4 + $0xa0] sm:$0xff]
        %v1476 = vld [vmem:[#allocation4 + $0xa8] sm:$0xff]
        %v1477 = vld [vmem:[#allocation4 + $0xb0] sm:$0xff]
        %v1478 = vld [vmem:[#allocation4 + $0xb8] sm:$0xff]
        %v1479 = vld [vmem:[#allocation4 + $0xc0] sm:$0xff]
        %v1480 = vld [vmem:[#allocation4 + $0xc8] sm:$0xff]
        %v1481 = vld [vmem:[#allocation4 + $0xd0] sm:$0xff]
        %v1482 = vld [vmem:[#allocation4 + $0xd8] sm:$0xff]
        %v1483 = vld [vmem:[#allocation4 + $0xe0] sm:$0xff]
        %v1484 = vld [vmem:[#allocation4 + $0xe8] sm:$0xff]
        %v1485 = vld [vmem:[#allocation4 + $0xf0] sm:$0xff]
        %v1486 = vld [vmem:[#allocation4 + $0xf8] sm:$0xff]
        %v1519 = vunpack.c.l.b16 %v1455
        %v1520 = vunpack.c.h.b16 %v1455
        %v1521 = vunpack.c.l.b16 %v1456
        %v1522 = vunpack.c.h.b16 %v1456
        %v1523 = vunpack.c.l.b16 %v1457
        %v1524 = vunpack.c.h.b16 %v1457
        %v1525 = vunpack.c.l.b16 %v1458
        %v1526 = vunpack.c.h.b16 %v1458
        %v1527 = vunpack.c.l.b16 %v1459
        %v1528 = vunpack.c.h.b16 %v1459
        %v1529 = vunpack.c.l.b16 %v1460
        %v1530 = vunpack.c.h.b16 %v1460
        %v1531 = vunpack.c.l.b16 %v1461
        %v1532 = vunpack.c.h.b16 %v1461
        %v1533 = vunpack.c.l.b16 %v1462
        %v1534 = vunpack.c.h.b16 %v1462
        %v1535 = vunpack.c.l.b16 %v1463
        %v1536 = vunpack.c.h.b16 %v1463
        %v1537 = vunpack.c.l.b16 %v1464
        %v1538 = vunpack.c.h.b16 %v1464
        %v1539 = vunpack.c.l.b16 %v1465
        %v1540 = vunpack.c.h.b16 %v1465
        %v1541 = vunpack.c.l.b16 %v1466
        %v1542 = vunpack.c.h.b16 %v1466
        %v1543 = vunpack.c.l.b16 %v1467
        %v1544 = vunpack.c.h.b16 %v1467
        %v1545 = vunpack.c.l.b16 %v1468
        %v1546 = vunpack.c.h.b16 %v1468
        %v1547 = vunpack.c.l.b16 %v1469
        %v1548 = vunpack.c.h.b16 %v1469
        %v1549 = vunpack.c.l.b16 %v1470
        %v1550 = vunpack.c.h.b16 %v1470
        %v1551 = vunpack.c.l.b16 %v1471
        %v1552 = vunpack.c.h.b16 %v1471
        %v1553 = vunpack.c.l.b16 %v1472
        %v1554 = vunpack.c.h.b16 %v1472
        %v1555 = vunpack.c.l.b16 %v1473
        %v1556 = vunpack.c.h.b16 %v1473
        %v1557 = vunpack.c.l.b16 %v1474
        %v1558 = vunpack.c.h.b16 %v1474
        %v1559 = vunpack.c.l.b16 %v1475
        %v1560 = vunpack.c.h.b16 %v1475
        %v1561 = vunpack.c.l.b16 %v1476
        %v1562 = vunpack.c.h.b16 %v1476
        %v1563 = vunpack.c.l.b16 %v1477
        %v1564 = vunpack.c.h.b16 %v1477
        %v1565 = vunpack.c.l.b16 %v1478
        %v1566 = vunpack.c.h.b16 %v1478
        %v1567 = vunpack.c.l.b16 %v1479
        %v1568 = vunpack.c.h.b16 %v1479
        %v1569 = vunpack.c.l.b16 %v1480
        %v1570 = vunpack.c.h.b16 %v1480
        %v1571 = vunpack.c.l.b16 %v1481
        %v1572 = vunpack.c.h.b16 %v1481
        %v1573 = vunpack.c.l.b16 %v1482
        %v1574 = vunpack.c.h.b16 %v1482
        %v1575 = vunpack.c.l.b16 %v1483
        %v1576 = vunpack.c.h.b16 %v1483
        %v1577 = vunpack.c.l.b16 %v1484
        %v1578 = vunpack.c.h.b16 %v1484
        %v1579 = vunpack.c.l.b16 %v1485
        %v1580 = vunpack.c.h.b16 %v1485
        %v1581 = vunpack.c.l.b16 %v1486
        %v1582 = vunpack.c.h.b16 %v1486
        %v1583 = vpack.c.b16 %v1523, %v1519
        %v1584 = vpack.c.b16 %v1524, %v1520
        %v1585 = vpack.c.b16 %v1525, %v1521
        %v1586 = vpack.c.b16 %v1526, %v1522
        %v1587 = vpack.c.b16 %v1531, %v1527
        %v1588 = vpack.c.b16 %v1532, %v1528
        %v1589 = vpack.c.b16 %v1533, %v1529
        %v1590 = vpack.c.b16 %v1534, %v1530
        %v1591 = vpack.c.b16 %v1539, %v1535
        %v1592 = vpack.c.b16 %v1540, %v1536
        %v1593 = vpack.c.b16 %v1541, %v1537
        %v1594 = vpack.c.b16 %v1542, %v1538
        %v1595 = vpack.c.b16 %v1547, %v1543
        %v1596 = vpack.c.b16 %v1548, %v1544
        %v1597 = vpack.c.b16 %v1549, %v1545
        %v1598 = vpack.c.b16 %v1550, %v1546
        %v1599 = vpack.c.b16 %v1555, %v1551
        %v1600 = vpack.c.b16 %v1556, %v1552
        %v1601 = vpack.c.b16 %v1557, %v1553
        %v1602 = vpack.c.b16 %v1558, %v1554
        %v1603 = vpack.c.b16 %v1563, %v1559
        %v1604 = vpack.c.b16 %v1564, %v1560
        %v1605 = vpack.c.b16 %v1565, %v1561
        %v1606 = vpack.c.b16 %v1566, %v1562
        %v1607 = vpack.c.b16 %v1571, %v1567
        %v1608 = vpack.c.b16 %v1572, %v1568
        %v1609 = vpack.c.b16 %v1573, %v1569
        %v1610 = vpack.c.b16 %v1574, %v1570
        %v1611 = vpack.c.b16 %v1579, %v1575
        %v1612 = vpack.c.b16 %v1580, %v1576
        %v1613 = vpack.c.b16 %v1581, %v1577
        %v1614 = vpack.c.b16 %v1582, %v1578
        %1647 = vmatprep.subr.bf16.mxu0 %v1612
        %1648 = vmatpush1.bf16.msra.mxu0 %v1611
        %1649 = vmatprep.subr.bf16.mxu0 %v1608
        %1650 = vmatpush1.bf16.msra.mxu0 %v1607
        %1651 = vmatprep.subr.bf16.mxu0 %v1604
        %1652 = vmatpush1.bf16.msra.mxu0 %v1603
        %1653 = vmatprep.subr.bf16.mxu0 %v1600
        %1654 = vmatpush1.bf16.msra.mxu0 %v1599
        %1655 = vmatprep.subr.bf16.mxu0 %v1596
        %1656 = vmatpush1.bf16.msra.mxu0 %v1595
        %1657 = vmatprep.subr.bf16.mxu0 %v1592
        %1658 = vmatpush1.bf16.msra.mxu0 %v1591
        %1659 = vmatprep.subr.bf16.mxu0 %v1588
        %1660 = vmatpush1.bf16.msra.mxu0 %v1587
        %1661 = vmatprep.subr.bf16.mxu0 %v1584
        %1662 = vmatpush1.bf16.msra.mxu0 %v1583
        %1663 = vmatprep.subr.bf16.mxu0 0
        %1664 = vmatpush2.bf16.msra.mxu0 0
        %1665 = vmatprep.subr.bf16.mxu0 0
        %1666 = vmatpush2.bf16.msra.mxu0 0
        %1667 = vmatprep.subr.bf16.mxu0 0
        %1668 = vmatpush2.bf16.msra.mxu0 0
        %1669 = vmatprep.subr.bf16.mxu0 0
        %1670 = vmatpush2.bf16.msra.mxu0 0
        %1671 = vmatprep.subr.bf16.mxu0 0
        %1672 = vmatpush2.bf16.msra.mxu0 0
        %1673 = vmatprep.subr.bf16.mxu0 0
        %1674 = vmatpush2.bf16.msra.mxu0 0
        %1675 = vmatprep.subr.bf16.mxu0 0
        %1676 = vmatpush2.bf16.msra.mxu0 0
        %1677 = vmatprep.subr.bf16.mxu0 0
        %1678 = vmatpush2.bf16.msra.mxu0 0
        %1679 = vmatprep.mubr.bf16.mxu0 0
        %1680 = vmatmul.mubr.bf16.gmra.mxu0 %v1454
        %v1681 = vpop.f32.mrf.mxu0
        %v1682 = vadd.f32 0.0, %v1681
        %v1683 = vpop.f32.mrf.mxu0
        %v1684 = vadd.f32 0.0, %v1683
        %v1685 = vpop.f32.mrf.mxu0
        %v1686 = vpop.f32.mrf.mxu0
        %1687 = vdwg.mxu0
        %1688 = vmatprep.subr.bf16.mxu0 %v1614
        %1689 = vmatpush1.bf16.msra.mxu0 %v1613
        %1690 = vmatprep.subr.bf16.mxu0 %v1610
        %1691 = vmatpush1.bf16.msra.mxu0 %v1609
        %1692 = vmatprep.subr.bf16.mxu0 %v1606
        %1693 = vmatpush1.bf16.msra.mxu0 %v1605
        %1694 = vmatprep.subr.bf16.mxu0 %v1602
        %1695 = vmatpush1.bf16.msra.mxu0 %v1601
        %1696 = vmatprep.subr.bf16.mxu0 %v1598
        %1697 = vmatpush1.bf16.msra.mxu0 %v1597
        %1698 = vmatprep.subr.bf16.mxu0 %v1594
        %1699 = vmatpush1.bf16.msra.mxu0 %v1593
        %1700 = vmatprep.subr.bf16.mxu0 %v1590
        %1701 = vmatpush1.bf16.msra.mxu0 %v1589
        %1702 = vmatprep.subr.bf16.mxu0 %v1586
        %1703 = vmatpush1.bf16.msra.mxu0 %v1585
        %1704 = vmatprep.subr.bf16.mxu0 0
        %1705 = vmatpush2.bf16.msra.mxu0 0
        %1706 = vmatprep.subr.bf16.mxu0 0
        %1707 = vmatpush2.bf16.msra.mxu0 0
        %1708 = vmatprep.subr.bf16.mxu0 0
        %1709 = vmatpush2.bf16.msra.mxu0 0
        %1710 = vmatprep.subr.bf16.mxu0 0
        %1711 = vmatpush2.bf16.msra.mxu0 0
        %1712 = vmatprep.subr.bf16.mxu0 0
        %1713 = vmatpush2.bf16.msra.mxu0 0
        %1714 = vmatprep.subr.bf16.mxu0 0
        %1715 = vmatpush2.bf16.msra.mxu0 0
        %1716 = vmatprep.subr.bf16.mxu0 0
        %1717 = vmatpush2.bf16.msra.mxu0 0
        %1718 = vmatprep.subr.bf16.mxu0 0
        %1719 = vmatpush2.bf16.msra.mxu0 0
        %1720 = vmatprep.mubr.bf16.mxu0 0
        %1721 = vmatmul.mubr.bf16.gmra.mxu0 %v1454
        %v1722 = vpop.f32.mrf.mxu0
        %v1723 = vadd.f32 0.0, %v1722
        %v1724 = vpop.f32.mrf.mxu0
        %v1725 = vadd.f32 0.0, %v1724
        %v1726 = vpop.f32.mrf.mxu0
        %v1727 = vpop.f32.mrf.mxu0
        %1728 = vdwg.mxu0
        %v1729 = vadd.f32 %v1450, %v1682
        %v1730 = vadd.f32 %v1451, %v1684
        %v1731 = vadd.f32 %v1452, %v1723
        %v1732 = vadd.f32 %v1453, %v1725
        %v1733 = vxor.u32 %v1729, 2147483648
        %v1734 = vmul.f32 %v1733, 1.442695
        %v1735 = vpow.pop %v1734
        %v1736 = vadd.f32 %v1735, 1.0
        %v1737 = vrcp.pop %v1736
        %v1738 = vmul.f32 1.0, %v1737
        %v1739 = vxor.u32 %v1730, 2147483648
        %v1740 = vmul.f32 %v1739, 1.442695
        %v1741 = vpow.pop %v1740
        %v1742 = vadd.f32 %v1741, 1.0
        %v1743 = vrcp.pop %v1742
        %v1744 = vmul.f32 1.0, %v1743
        %v1745 = vtanh.pop %v1731
        %v1746 = vxor.u32 %v1732, 2147483648
        %v1747 = vmul.f32 %v1746, 1.442695
        %v1748 = vpow.pop %v1747
        %v1749 = vadd.f32 %v1748, 1.0
        %v1750 = vrcp.pop %v1749
        %v1751 = vmul.f32 1.0, %v1750
        %v1752 = vmul.f32 %v1744, %v1446
        %v1753 = vmul.f32 %v1738, %v1745
        %v1754 = vadd.f32 %v1752, %v1753
        %v1755 = vtanh.pop %v1754
        %v1756 = vmul.f32 %v1751, %v1755
        %1757 = vst [vmem:[#allocation3] sm:$0xff] %v1754
        %1758 = vst [vmem:[#allocation2] sm:$0xff] %v1756
        %v1759 = vpack.c.bf16 %v1756, %v1756
        %s1760 = scalar_lea.vmem %s353, 12 [#allocation7]
        %1761 = vst [vmem:[%s1760] sm:$0xf] %v1759
        %v1762 = vld [vmem:[#allocation2] sm:$0xff]
        %v1763 = vld [vmem:[#allocation3] sm:$0xff]
        %s1764 = scalar_lea.vmem %s326, 64 [#allocation6]
        %v1765 = vld [vmem:[%s1764] sm:$0xff]
        %v1766 = vld [vmem:[%s1764 + $0x8] sm:$0xff]
        %v1767 = vunpack.c.l.bf16 %v1765
        %v1768 = vunpack.c.h.bf16 %v1765
        %v1769 = vunpack.c.l.bf16 %v1766
        %v1770 = vunpack.c.h.bf16 %v1766
        %v1771 = vpack.c.bf16 %v1762, %v1762
        %v1772 = vld [vmem:[#allocation4] sm:$0xff]
        %v1773 = vld [vmem:[#allocation4 + $0x8] sm:$0xff]
        %v1774 = vld [vmem:[#allocation4 + $0x10] sm:$0xff]
        %v1775 = vld [vmem:[#allocation4 + $0x18] sm:$0xff]
        %v1776 = vld [vmem:[#allocation4 + $0x20] sm:$0xff]
        %v1777 = vld [vmem:[#allocation4 + $0x28] sm:$0xff]
        %v1778 = vld [vmem:[#allocation4 + $0x30] sm:$0xff]
        %v1779 = vld [vmem:[#allocation4 + $0x38] sm:$0xff]
        %v1780 = vld [vmem:[#allocation4 + $0x40] sm:$0xff]
        %v1781 = vld [vmem:[#allocation4 + $0x48] sm:$0xff]
        %v1782 = vld [vmem:[#allocation4 + $0x50] sm:$0xff]
        %v1783 = vld [vmem:[#allocation4 + $0x58] sm:$0xff]
        %v1784 = vld [vmem:[#allocation4 + $0x60] sm:$0xff]
        %v1785 = vld [vmem:[#allocation4 + $0x68] sm:$0xff]
        %v1786 = vld [vmem:[#allocation4 + $0x70] sm:$0xff]
        %v1787 = vld [vmem:[#allocation4 + $0x78] sm:$0xff]
        %v1788 = vld [vmem:[#allocation4 + $0x80] sm:$0xff]
        %v1789 = vld [vmem:[#allocation4 + $0x88] sm:$0xff]
        %v1790 = vld [vmem:[#allocation4 + $0x90] sm:$0xff]
        %v1791 = vld [vmem:[#allocation4 + $0x98] sm:$0xff]
        %v1792 = vld [vmem:[#allocation4 + $0xa0] sm:$0xff]
        %v1793 = vld [vmem:[#allocation4 + $0xa8] sm:$0xff]
        %v1794 = vld [vmem:[#allocation4 + $0xb0] sm:$0xff]
        %v1795 = vld [vmem:[#allocation4 + $0xb8] sm:$0xff]
        %v1796 = vld [vmem:[#allocation4 + $0xc0] sm:$0xff]
        %v1797 = vld [vmem:[#allocation4 + $0xc8] sm:$0xff]
        %v1798 = vld [vmem:[#allocation4 + $0xd0] sm:$0xff]
        %v1799 = vld [vmem:[#allocation4 + $0xd8] sm:$0xff]
        %v1800 = vld [vmem:[#allocation4 + $0xe0] sm:$0xff]
        %v1801 = vld [vmem:[#allocation4 + $0xe8] sm:$0xff]
        %v1802 = vld [vmem:[#allocation4 + $0xf0] sm:$0xff]
        %v1803 = vld [vmem:[#allocation4 + $0xf8] sm:$0xff]
        %v1836 = vunpack.c.l.b16 %v1772
        %v1837 = vunpack.c.h.b16 %v1772
        %v1838 = vunpack.c.l.b16 %v1773
        %v1839 = vunpack.c.h.b16 %v1773
        %v1840 = vunpack.c.l.b16 %v1774
        %v1841 = vunpack.c.h.b16 %v1774
        %v1842 = vunpack.c.l.b16 %v1775
        %v1843 = vunpack.c.h.b16 %v1775
        %v1844 = vunpack.c.l.b16 %v1776
        %v1845 = vunpack.c.h.b16 %v1776
        %v1846 = vunpack.c.l.b16 %v1777
        %v1847 = vunpack.c.h.b16 %v1777
        %v1848 = vunpack.c.l.b16 %v1778
        %v1849 = vunpack.c.h.b16 %v1778
        %v1850 = vunpack.c.l.b16 %v1779
        %v1851 = vunpack.c.h.b16 %v1779
        %v1852 = vunpack.c.l.b16 %v1780
        %v1853 = vunpack.c.h.b16 %v1780
        %v1854 = vunpack.c.l.b16 %v1781
        %v1855 = vunpack.c.h.b16 %v1781
        %v1856 = vunpack.c.l.b16 %v1782
        %v1857 = vunpack.c.h.b16 %v1782
        %v1858 = vunpack.c.l.b16 %v1783
        %v1859 = vunpack.c.h.b16 %v1783
        %v1860 = vunpack.c.l.b16 %v1784
        %v1861 = vunpack.c.h.b16 %v1784
        %v1862 = vunpack.c.l.b16 %v1785
        %v1863 = vunpack.c.h.b16 %v1785
        %v1864 = vunpack.c.l.b16 %v1786
        %v1865 = vunpack.c.h.b16 %v1786
        %v1866 = vunpack.c.l.b16 %v1787
        %v1867 = vunpack.c.h.b16 %v1787
        %v1868 = vunpack.c.l.b16 %v1788
        %v1869 = vunpack.c.h.b16 %v1788
        %v1870 = vunpack.c.l.b16 %v1789
        %v1871 = vunpack.c.h.b16 %v1789
        %v1872 = vunpack.c.l.b16 %v1790
        %v1873 = vunpack.c.h.b16 %v1790
        %v1874 = vunpack.c.l.b16 %v1791
        %v1875 = vunpack.c.h.b16 %v1791
        %v1876 = vunpack.c.l.b16 %v1792
        %v1877 = vunpack.c.h.b16 %v1792
        %v1878 = vunpack.c.l.b16 %v1793
        %v1879 = vunpack.c.h.b16 %v1793
        %v1880 = vunpack.c.l.b16 %v1794
        %v1881 = vunpack.c.h.b16 %v1794
        %v1882 = vunpack.c.l.b16 %v1795
        %v1883 = vunpack.c.h.b16 %v1795
        %v1884 = vunpack.c.l.b16 %v1796
        %v1885 = vunpack.c.h.b16 %v1796
        %v1886 = vunpack.c.l.b16 %v1797
        %v1887 = vunpack.c.h.b16 %v1797
        %v1888 = vunpack.c.l.b16 %v1798
        %v1889 = vunpack.c.h.b16 %v1798
        %v1890 = vunpack.c.l.b16 %v1799
        %v1891 = vunpack.c.h.b16 %v1799
        %v1892 = vunpack.c.l.b16 %v1800
        %v1893 = vunpack.c.h.b16 %v1800
        %v1894 = vunpack.c.l.b16 %v1801
        %v1895 = vunpack.c.h.b16 %v1801
        %v1896 = vunpack.c.l.b16 %v1802
        %v1897 = vunpack.c.h.b16 %v1802
        %v1898 = vunpack.c.l.b16 %v1803
        %v1899 = vunpack.c.h.b16 %v1803
        %v1900 = vpack.c.b16 %v1840, %v1836
        %v1901 = vpack.c.b16 %v1841, %v1837
        %v1902 = vpack.c.b16 %v1842, %v1838
        %v1903 = vpack.c.b16 %v1843, %v1839
        %v1904 = vpack.c.b16 %v1848, %v1844
        %v1905 = vpack.c.b16 %v1849, %v1845
        %v1906 = vpack.c.b16 %v1850, %v1846
        %v1907 = vpack.c.b16 %v1851, %v1847
        %v1908 = vpack.c.b16 %v1856, %v1852
        %v1909 = vpack.c.b16 %v1857, %v1853
        %v1910 = vpack.c.b16 %v1858, %v1854
        %v1911 = vpack.c.b16 %v1859, %v1855
        %v1912 = vpack.c.b16 %v1864, %v1860
        %v1913 = vpack.c.b16 %v1865, %v1861
        %v1914 = vpack.c.b16 %v1866, %v1862
        %v1915 = vpack.c.b16 %v1867, %v1863
        %v1916 = vpack.c.b16 %v1872, %v1868
        %v1917 = vpack.c.b16 %v1873, %v1869
        %v1918 = vpack.c.b16 %v1874, %v1870
        %v1919 = vpack.c.b16 %v1875, %v1871
        %v1920 = vpack.c.b16 %v1880, %v1876
        %v1921 = vpack.c.b16 %v1881, %v1877
        %v1922 = vpack.c.b16 %v1882, %v1878
        %v1923 = vpack.c.b16 %v1883, %v1879
        %v1924 = vpack.c.b16 %v1888, %v1884
        %v1925 = vpack.c.b16 %v1889, %v1885
        %v1926 = vpack.c.b16 %v1890, %v1886
        %v1927 = vpack.c.b16 %v1891, %v1887
        %v1928 = vpack.c.b16 %v1896, %v1892
        %v1929 = vpack.c.b16 %v1897, %v1893
        %v1930 = vpack.c.b16 %v1898, %v1894
        %v1931 = vpack.c.b16 %v1899, %v1895
        %1964 = vmatprep.subr.bf16.mxu0 %v1929
        %1965 = vmatpush1.bf16.msra.mxu0 %v1928
        %1966 = vmatprep.subr.bf16.mxu0 %v1925
        %1967 = vmatpush1.bf16.msra.mxu0 %v1924
        %1968 = vmatprep.subr.bf16.mxu0 %v1921
        %1969 = vmatpush1.bf16.msra.mxu0 %v1920
        %1970 = vmatprep.subr.bf16.mxu0 %v1917
        %1971 = vmatpush1.bf16.msra.mxu0 %v1916
        %1972 = vmatprep.subr.bf16.mxu0 %v1913
        %1973 = vmatpush1.bf16.msra.mxu0 %v1912
        %1974 = vmatprep.subr.bf16.mxu0 %v1909
        %1975 = vmatpush1.bf16.msra.mxu0 %v1908
        %1976 = vmatprep.subr.bf16.mxu0 %v1905
        %1977 = vmatpush1.bf16.msra.mxu0 %v1904
        %1978 = vmatprep.subr.bf16.mxu0 %v1901
        %1979 = vmatpush1.bf16.msra.mxu0 %v1900
        %1980 = vmatprep.subr.bf16.mxu0 0
        %1981 = vmatpush2.bf16.msra.mxu0 0
        %1982 = vmatprep.subr.bf16.mxu0 0
        %1983 = vmatpush2.bf16.msra.mxu0 0
        %1984 = vmatprep.subr.bf16.mxu0 0
        %1985 = vmatpush2.bf16.msra.mxu0 0
        %1986 = vmatprep.subr.bf16.mxu0 0
        %1987 = vmatpush2.bf16.msra.mxu0 0
        %1988 = vmatprep.subr.bf16.mxu0 0
        %1989 = vmatpush2.bf16.msra.mxu0 0
        %1990 = vmatprep.subr.bf16.mxu0 0
        %1991 = vmatpush2.bf16.msra.mxu0 0
        %1992 = vmatprep.subr.bf16.mxu0 0
        %1993 = vmatpush2.bf16.msra.mxu0 0
        %1994 = vmatprep.subr.bf16.mxu0 0
        %1995 = vmatpush2.bf16.msra.mxu0 0
        %1996 = vmatprep.mubr.bf16.mxu0 0
        %1997 = vmatmul.mubr.bf16.gmra.mxu0 %v1771
        %v1998 = vpop.f32.mrf.mxu0
        %v1999 = vadd.f32 0.0, %v1998
        %v2000 = vpop.f32.mrf.mxu0
        %v2001 = vadd.f32 0.0, %v2000
        %v2002 = vpop.f32.mrf.mxu0
        %v2003 = vpop.f32.mrf.mxu0
        %2004 = vdwg.mxu0
        %2005 = vmatprep.subr.bf16.mxu0 %v1931
        %2006 = vmatpush1.bf16.msra.mxu0 %v1930
        %2007 = vmatprep.subr.bf16.mxu0 %v1927
        %2008 = vmatpush1.bf16.msra.mxu0 %v1926
        %2009 = vmatprep.subr.bf16.mxu0 %v1923
        %2010 = vmatpush1.bf16.msra.mxu0 %v1922
        %2011 = vmatprep.subr.bf16.mxu0 %v1919
        %2012 = vmatpush1.bf16.msra.mxu0 %v1918
        %2013 = vmatprep.subr.bf16.mxu0 %v1915
        %2014 = vmatpush1.bf16.msra.mxu0 %v1914
        %2015 = vmatprep.subr.bf16.mxu0 %v1911
        %2016 = vmatpush1.bf16.msra.mxu0 %v1910
        %2017 = vmatprep.subr.bf16.mxu0 %v1907
        %2018 = vmatpush1.bf16.msra.mxu0 %v1906
        %2019 = vmatprep.subr.bf16.mxu0 %v1903
        %2020 = vmatpush1.bf16.msra.mxu0 %v1902
        %2021 = vmatprep.subr.bf16.mxu0 0
        %2022 = vmatpush2.bf16.msra.mxu0 0
        %2023 = vmatprep.subr.bf16.mxu0 0
        %2024 = vmatpush2.bf16.msra.mxu0 0
        %2025 = vmatprep.subr.bf16.mxu0 0
        %2026 = vmatpush2.bf16.msra.mxu0 0
        %2027 = vmatprep.subr.bf16.mxu0 0
        %2028 = vmatpush2.bf16.msra.mxu0 0
        %2029 = vmatprep.subr.bf16.mxu0 0
        %2030 = vmatpush2.bf16.msra.mxu0 0
        %2031 = vmatprep.subr.bf16.mxu0 0
        %2032 = vmatpush2.bf16.msra.mxu0 0
        %2033 = vmatprep.subr.bf16.mxu0 0
        %2034 = vmatpush2.bf16.msra.mxu0 0
        %2035 = vmatprep.subr.bf16.mxu0 0
        %2036 = vmatpush2.bf16.msra.mxu0 0
        %2037 = vmatprep.mubr.bf16.mxu0 0
        %2038 = vmatmul.mubr.bf16.gmra.mxu0 %v1771
        %v2039 = vpop.f32.mrf.mxu0
        %v2040 = vadd.f32 0.0, %v2039
        %v2041 = vpop.f32.mrf.mxu0
        %v2042 = vadd.f32 0.0, %v2041
        %v2043 = vpop.f32.mrf.mxu0
        %v2044 = vpop.f32.mrf.mxu0
        %2045 = vdwg.mxu0
        %v2046 = vadd.f32 %v1767, %v1999
        %v2047 = vadd.f32 %v1768, %v2001
        %v2048 = vadd.f32 %v1769, %v2040
        %v2049 = vadd.f32 %v1770, %v2042
        %v2050 = vxor.u32 %v2046, 2147483648
        %v2051 = vmul.f32 %v2050, 1.442695
        %v2052 = vpow.pop %v2051
        %v2053 = vadd.f32 %v2052, 1.0
        %v2054 = vrcp.pop %v2053
        %v2055 = vmul.f32 1.0, %v2054
        %v2056 = vxor.u32 %v2047, 2147483648
        %v2057 = vmul.f32 %v2056, 1.442695
        %v2058 = vpow.pop %v2057
        %v2059 = vadd.f32 %v2058, 1.0
        %v2060 = vrcp.pop %v2059
        %v2061 = vmul.f32 1.0, %v2060
        %v2062 = vtanh.pop %v2048
        %v2063 = vxor.u32 %v2049, 2147483648
        %v2064 = vmul.f32 %v2063, 1.442695
        %v2065 = vpow.pop %v2064
        %v2066 = vadd.f32 %v2065, 1.0
        %v2067 = vrcp.pop %v2066
        %v2068 = vmul.f32 1.0, %v2067
        %v2069 = vmul.f32 %v2061, %v1763
        %v2070 = vmul.f32 %v2055, %v2062
        %v2071 = vadd.f32 %v2069, %v2070
        %v2072 = vtanh.pop %v2071
        %v2073 = vmul.f32 %v2068, %v2072
        %2074 = vst [vmem:[#allocation3] sm:$0xff] %v2071
        %2075 = vst [vmem:[#allocation2] sm:$0xff] %v2073
        %v2076 = vpack.c.bf16 %v2073, %v2073
        %s2077 = scalar_lea.vmem %s353, 16 [#allocation7]
        %2078 = vst [vmem:[%s2077] sm:$0xf] %v2076
        %v2079 = vld [vmem:[#allocation2] sm:$0xff]
        %v2080 = vld [vmem:[#allocation3] sm:$0xff]
        %s2081 = scalar_lea.vmem %s326, 80 [#allocation6]
        %v2082 = vld [vmem:[%s2081] sm:$0xff]
        %v2083 = vld [vmem:[%s2081 + $0x8] sm:$0xff]
        %v2084 = vunpack.c.l.bf16 %v2082
        %v2085 = vunpack.c.h.bf16 %v2082
        %v2086 = vunpack.c.l.bf16 %v2083
        %v2087 = vunpack.c.h.bf16 %v2083
        %v2088 = vpack.c.bf16 %v2079, %v2079
        %v2089 = vld [vmem:[#allocation4] sm:$0xff]
        %v2090 = vld [vmem:[#allocation4 + $0x8] sm:$0xff]
        %v2091 = vld [vmem:[#allocation4 + $0x10] sm:$0xff]
        %v2092 = vld [vmem:[#allocation4 + $0x18] sm:$0xff]
        %v2093 = vld [vmem:[#allocation4 + $0x20] sm:$0xff]
        %v2094 = vld [vmem:[#allocation4 + $0x28] sm:$0xff]
        %v2095 = vld [vmem:[#allocation4 + $0x30] sm:$0xff]
        %v2096 = vld [vmem:[#allocation4 + $0x38] sm:$0xff]
        %v2097 = vld [vmem:[#allocation4 + $0x40] sm:$0xff]
        %v2098 = vld [vmem:[#allocation4 + $0x48] sm:$0xff]
        %v2099 = vld [vmem:[#allocation4 + $0x50] sm:$0xff]
        %v2100 = vld [vmem:[#allocation4 + $0x58] sm:$0xff]
        %v2101 = vld [vmem:[#allocation4 + $0x60] sm:$0xff]
        %v2102 = vld [vmem:[#allocation4 + $0x68] sm:$0xff]
        %v2103 = vld [vmem:[#allocation4 + $0x70] sm:$0xff]
        %v2104 = vld [vmem:[#allocation4 + $0x78] sm:$0xff]
        %v2105 = vld [vmem:[#allocation4 + $0x80] sm:$0xff]
        %v2106 = vld [vmem:[#allocation4 + $0x88] sm:$0xff]
        %v2107 = vld [vmem:[#allocation4 + $0x90] sm:$0xff]
        %v2108 = vld [vmem:[#allocation4 + $0x98] sm:$0xff]
        %v2109 = vld [vmem:[#allocation4 + $0xa0] sm:$0xff]
        %v2110 = vld [vmem:[#allocation4 + $0xa8] sm:$0xff]
        %v2111 = vld [vmem:[#allocation4 + $0xb0] sm:$0xff]
        %v2112 = vld [vmem:[#allocation4 + $0xb8] sm:$0xff]
        %v2113 = vld [vmem:[#allocation4 + $0xc0] sm:$0xff]
        %v2114 = vld [vmem:[#allocation4 + $0xc8] sm:$0xff]
        %v2115 = vld [vmem:[#allocation4 + $0xd0] sm:$0xff]
        %v2116 = vld [vmem:[#allocation4 + $0xd8] sm:$0xff]
        %v2117 = vld [vmem:[#allocation4 + $0xe0] sm:$0xff]
        %v2118 = vld [vmem:[#allocation4 + $0xe8] sm:$0xff]
        %v2119 = vld [vmem:[#allocation4 + $0xf0] sm:$0xff]
        %v2120 = vld [vmem:[#allocation4 + $0xf8] sm:$0xff]
        %v2153 = vunpack.c.l.b16 %v2089
        %v2154 = vunpack.c.h.b16 %v2089
        %v2155 = vunpack.c.l.b16 %v2090
        %v2156 = vunpack.c.h.b16 %v2090
        %v2157 = vunpack.c.l.b16 %v2091
        %v2158 = vunpack.c.h.b16 %v2091
        %v2159 = vunpack.c.l.b16 %v2092
        %v2160 = vunpack.c.h.b16 %v2092
        %v2161 = vunpack.c.l.b16 %v2093
        %v2162 = vunpack.c.h.b16 %v2093
        %v2163 = vunpack.c.l.b16 %v2094
        %v2164 = vunpack.c.h.b16 %v2094
        %v2165 = vunpack.c.l.b16 %v2095
        %v2166 = vunpack.c.h.b16 %v2095
        %v2167 = vunpack.c.l.b16 %v2096
        %v2168 = vunpack.c.h.b16 %v2096
        %v2169 = vunpack.c.l.b16 %v2097
        %v2170 = vunpack.c.h.b16 %v2097
        %v2171 = vunpack.c.l.b16 %v2098
        %v2172 = vunpack.c.h.b16 %v2098
        %v2173 = vunpack.c.l.b16 %v2099
        %v2174 = vunpack.c.h.b16 %v2099
        %v2175 = vunpack.c.l.b16 %v2100
        %v2176 = vunpack.c.h.b16 %v2100
        %v2177 = vunpack.c.l.b16 %v2101
        %v2178 = vunpack.c.h.b16 %v2101
        %v2179 = vunpack.c.l.b16 %v2102
        %v2180 = vunpack.c.h.b16 %v2102
        %v2181 = vunpack.c.l.b16 %v2103
        %v2182 = vunpack.c.h.b16 %v2103
        %v2183 = vunpack.c.l.b16 %v2104
        %v2184 = vunpack.c.h.b16 %v2104
        %v2185 = vunpack.c.l.b16 %v2105
        %v2186 = vunpack.c.h.b16 %v2105
        %v2187 = vunpack.c.l.b16 %v2106
        %v2188 = vunpack.c.h.b16 %v2106
        %v2189 = vunpack.c.l.b16 %v2107
        %v2190 = vunpack.c.h.b16 %v2107
        %v2191 = vunpack.c.l.b16 %v2108
        %v2192 = vunpack.c.h.b16 %v2108
        %v2193 = vunpack.c.l.b16 %v2109
        %v2194 = vunpack.c.h.b16 %v2109
        %v2195 = vunpack.c.l.b16 %v2110
        %v2196 = vunpack.c.h.b16 %v2110
        %v2197 = vunpack.c.l.b16 %v2111
        %v2198 = vunpack.c.h.b16 %v2111
        %v2199 = vunpack.c.l.b16 %v2112
        %v2200 = vunpack.c.h.b16 %v2112
        %v2201 = vunpack.c.l.b16 %v2113
        %v2202 = vunpack.c.h.b16 %v2113
        %v2203 = vunpack.c.l.b16 %v2114
        %v2204 = vunpack.c.h.b16 %v2114
        %v2205 = vunpack.c.l.b16 %v2115
        %v2206 = vunpack.c.h.b16 %v2115
        %v2207 = vunpack.c.l.b16 %v2116
        %v2208 = vunpack.c.h.b16 %v2116
        %v2209 = vunpack.c.l.b16 %v2117
        %v2210 = vunpack.c.h.b16 %v2117
        %v2211 = vunpack.c.l.b16 %v2118
        %v2212 = vunpack.c.h.b16 %v2118
        %v2213 = vunpack.c.l.b16 %v2119
        %v2214 = vunpack.c.h.b16 %v2119
        %v2215 = vunpack.c.l.b16 %v2120
        %v2216 = vunpack.c.h.b16 %v2120
        %v2217 = vpack.c.b16 %v2157, %v2153
        %v2218 = vpack.c.b16 %v2158, %v2154
        %v2219 = vpack.c.b16 %v2159, %v2155
        %v2220 = vpack.c.b16 %v2160, %v2156
        %v2221 = vpack.c.b16 %v2165, %v2161
        %v2222 = vpack.c.b16 %v2166, %v2162
        %v2223 = vpack.c.b16 %v2167, %v2163
        %v2224 = vpack.c.b16 %v2168, %v2164
        %v2225 = vpack.c.b16 %v2173, %v2169
        %v2226 = vpack.c.b16 %v2174, %v2170
        %v2227 = vpack.c.b16 %v2175, %v2171
        %v2228 = vpack.c.b16 %v2176, %v2172
        %v2229 = vpack.c.b16 %v2181, %v2177
        %v2230 = vpack.c.b16 %v2182, %v2178
        %v2231 = vpack.c.b16 %v2183, %v2179
        %v2232 = vpack.c.b16 %v2184, %v2180
        %v2233 = vpack.c.b16 %v2189, %v2185
        %v2234 = vpack.c.b16 %v2190, %v2186
        %v2235 = vpack.c.b16 %v2191, %v2187
        %v2236 = vpack.c.b16 %v2192, %v2188
        %v2237 = vpack.c.b16 %v2197, %v2193
        %v2238 = vpack.c.b16 %v2198, %v2194
        %v2239 = vpack.c.b16 %v2199, %v2195
        %v2240 = vpack.c.b16 %v2200, %v2196
        %v2241 = vpack.c.b16 %v2205, %v2201
        %v2242 = vpack.c.b16 %v2206, %v2202
        %v2243 = vpack.c.b16 %v2207, %v2203
        %v2244 = vpack.c.b16 %v2208, %v2204
        %v2245 = vpack.c.b16 %v2213, %v2209
        %v2246 = vpack.c.b16 %v2214, %v2210
        %v2247 = vpack.c.b16 %v2215, %v2211
        %v2248 = vpack.c.b16 %v2216, %v2212
        %2281 = vmatprep.subr.bf16.mxu0 %v2246
        %2282 = vmatpush1.bf16.msra.mxu0 %v2245
        %2283 = vmatprep.subr.bf16.mxu0 %v2242
        %2284 = vmatpush1.bf16.msra.mxu0 %v2241
        %2285 = vmatprep.subr.bf16.mxu0 %v2238
        %2286 = vmatpush1.bf16.msra.mxu0 %v2237
        %2287 = vmatprep.subr.bf16.mxu0 %v2234
        %2288 = vmatpush1.bf16.msra.mxu0 %v2233
        %2289 = vmatprep.subr.bf16.mxu0 %v2230
        %2290 = vmatpush1.bf16.msra.mxu0 %v2229
        %2291 = vmatprep.subr.bf16.mxu0 %v2226
        %2292 = vmatpush1.bf16.msra.mxu0 %v2225
        %2293 = vmatprep.subr.bf16.mxu0 %v2222
        %2294 = vmatpush1.bf16.msra.mxu0 %v2221
        %2295 = vmatprep.subr.bf16.mxu0 %v2218
        %2296 = vmatpush1.bf16.msra.mxu0 %v2217
        %2297 = vmatprep.subr.bf16.mxu0 0
        %2298 = vmatpush2.bf16.msra.mxu0 0
        %2299 = vmatprep.subr.bf16.mxu0 0
        %2300 = vmatpush2.bf16.msra.mxu0 0
        %2301 = vmatprep.subr.bf16.mxu0 0
        %2302 = vmatpush2.bf16.msra.mxu0 0
        %2303 = vmatprep.subr.bf16.mxu0 0
        %2304 = vmatpush2.bf16.msra.mxu0 0
        %2305 = vmatprep.subr.bf16.mxu0 0
        %2306 = vmatpush2.bf16.msra.mxu0 0
        %2307 = vmatprep.subr.bf16.mxu0 0
        %2308 = vmatpush2.bf16.msra.mxu0 0
        %2309 = vmatprep.subr.bf16.mxu0 0
        %2310 = vmatpush2.bf16.msra.mxu0 0
        %2311 = vmatprep.subr.bf16.mxu0 0
        %2312 = vmatpush2.bf16.msra.mxu0 0
        %2313 = vmatprep.mubr.bf16.mxu0 0
        %2314 = vmatmul.mubr.bf16.gmra.mxu0 %v2088
        %v2315 = vpop.f32.mrf.mxu0
        %v2316 = vadd.f32 0.0, %v2315
        %v2317 = vpop.f32.mrf.mxu0
        %v2318 = vadd.f32 0.0, %v2317
        %v2319 = vpop.f32.mrf.mxu0
        %v2320 = vpop.f32.mrf.mxu0
        %2321 = vdwg.mxu0
        %2322 = vmatprep.subr.bf16.mxu0 %v2248
        %2323 = vmatpush1.bf16.msra.mxu0 %v2247
        %2324 = vmatprep.subr.bf16.mxu0 %v2244
        %2325 = vmatpush1.bf16.msra.mxu0 %v2243
        %2326 = vmatprep.subr.bf16.mxu0 %v2240
        %2327 = vmatpush1.bf16.msra.mxu0 %v2239
        %2328 = vmatprep.subr.bf16.mxu0 %v2236
        %2329 = vmatpush1.bf16.msra.mxu0 %v2235
        %2330 = vmatprep.subr.bf16.mxu0 %v2232
        %2331 = vmatpush1.bf16.msra.mxu0 %v2231
        %2332 = vmatprep.subr.bf16.mxu0 %v2228
        %2333 = vmatpush1.bf16.msra.mxu0 %v2227
        %2334 = vmatprep.subr.bf16.mxu0 %v2224
        %2335 = vmatpush1.bf16.msra.mxu0 %v2223
        %2336 = vmatprep.subr.bf16.mxu0 %v2220
        %2337 = vmatpush1.bf16.msra.mxu0 %v2219
        %2338 = vmatprep.subr.bf16.mxu0 0
        %2339 = vmatpush2.bf16.msra.mxu0 0
        %2340 = vmatprep.subr.bf16.mxu0 0
        %2341 = vmatpush2.bf16.msra.mxu0 0
        %2342 = vmatprep.subr.bf16.mxu0 0
        %2343 = vmatpush2.bf16.msra.mxu0 0
        %2344 = vmatprep.subr.bf16.mxu0 0
        %2345 = vmatpush2.bf16.msra.mxu0 0
        %2346 = vmatprep.subr.bf16.mxu0 0
        %2347 = vmatpush2.bf16.msra.mxu0 0
        %2348 = vmatprep.subr.bf16.mxu0 0
        %2349 = vmatpush2.bf16.msra.mxu0 0
        %2350 = vmatprep.subr.bf16.mxu0 0
        %2351 = vmatpush2.bf16.msra.mxu0 0
        %2352 = vmatprep.subr.bf16.mxu0 0
        %2353 = vmatpush2.bf16.msra.mxu0 0
        %2354 = vmatprep.mubr.bf16.mxu0 0
        %2355 = vmatmul.mubr.bf16.gmra.mxu0 %v2088
        %v2356 = vpop.f32.mrf.mxu0
        %v2357 = vadd.f32 0.0, %v2356
        %v2358 = vpop.f32.mrf.mxu0
        %v2359 = vadd.f32 0.0, %v2358
        %v2360 = vpop.f32.mrf.mxu0
        %v2361 = vpop.f32.mrf.mxu0
        %2362 = vdwg.mxu0
        %v2363 = vadd.f32 %v2084, %v2316
        %v2364 = vadd.f32 %v2085, %v2318
        %v2365 = vadd.f32 %v2086, %v2357
        %v2366 = vadd.f32 %v2087, %v2359
        %v2367 = vxor.u32 %v2363, 2147483648
        %v2368 = vmul.f32 %v2367, 1.442695
        %v2369 = vpow.pop %v2368
        %v2370 = vadd.f32 %v2369, 1.0
        %v2371 = vrcp.pop %v2370
        %v2372 = vmul.f32 1.0, %v2371
        %v2373 = vxor.u32 %v2364, 2147483648
        %v2374 = vmul.f32 %v2373, 1.442695
        %v2375 = vpow.pop %v2374
        %v2376 = vadd.f32 %v2375, 1.0
        %v2377 = vrcp.pop %v2376
        %v2378 = vmul.f32 1.0, %v2377
        %v2379 = vtanh.pop %v2365
        %v2380 = vxor.u32 %v2366, 2147483648
        %v2381 = vmul.f32 %v2380, 1.442695
        %v2382 = vpow.pop %v2381
        %v2383 = vadd.f32 %v2382, 1.0
        %v2384 = vrcp.pop %v2383
        %v2385 = vmul.f32 1.0, %v2384
        %v2386 = vmul.f32 %v2378, %v2080
        %v2387 = vmul.f32 %v2372, %v2379
        %v2388 = vadd.f32 %v2386, %v2387
        %v2389 = vtanh.pop %v2388
        %v2390 = vmul.f32 %v2385, %v2389
        %2391 = vst [vmem:[#allocation3] sm:$0xff] %v2388
        %2392 = vst [vmem:[#allocation2] sm:$0xff] %v2390
        %v2393 = vpack.c.bf16 %v2390, %v2390
        %s2394 = scalar_lea.vmem %s353, 20 [#allocation7]
        %2395 = vst [vmem:[%s2394] sm:$0xf] %v2393
        %v2396 = vld [vmem:[#allocation2] sm:$0xff]
        %v2397 = vld [vmem:[#allocation3] sm:$0xff]
        %s2398 = scalar_lea.vmem %s326, 96 [#allocation6]
        %v2399 = vld [vmem:[%s2398] sm:$0xff]
        %v2400 = vld [vmem:[%s2398 + $0x8] sm:$0xff]
        %v2401 = vunpack.c.l.bf16 %v2399
        %v2402 = vunpack.c.h.bf16 %v2399
        %v2403 = vunpack.c.l.bf16 %v2400
        %v2404 = vunpack.c.h.bf16 %v2400
        %v2405 = vpack.c.bf16 %v2396, %v2396
        %v2406 = vld [vmem:[#allocation4] sm:$0xff]
        %v2407 = vld [vmem:[#allocation4 + $0x8] sm:$0xff]
        %v2408 = vld [vmem:[#allocation4 + $0x10] sm:$0xff]
        %v2409 = vld [vmem:[#allocation4 + $0x18] sm:$0xff]
        %v2410 = vld [vmem:[#allocation4 + $0x20] sm:$0xff]
        %v2411 = vld [vmem:[#allocation4 + $0x28] sm:$0xff]
        %v2412 = vld [vmem:[#allocation4 + $0x30] sm:$0xff]
        %v2413 = vld [vmem:[#allocation4 + $0x38] sm:$0xff]
        %v2414 = vld [vmem:[#allocation4 + $0x40] sm:$0xff]
        %v2415 = vld [vmem:[#allocation4 + $0x48] sm:$0xff]
        %v2416 = vld [vmem:[#allocation4 + $0x50] sm:$0xff]
        %v2417 = vld [vmem:[#allocation4 + $0x58] sm:$0xff]
        %v2418 = vld [vmem:[#allocation4 + $0x60] sm:$0xff]
        %v2419 = vld [vmem:[#allocation4 + $0x68] sm:$0xff]
        %v2420 = vld [vmem:[#allocation4 + $0x70] sm:$0xff]
        %v2421 = vld [vmem:[#allocation4 + $0x78] sm:$0xff]
        %v2422 = vld [vmem:[#allocation4 + $0x80] sm:$0xff]
        %v2423 = vld [vmem:[#allocation4 + $0x88] sm:$0xff]
        %v2424 = vld [vmem:[#allocation4 + $0x90] sm:$0xff]
        %v2425 = vld [vmem:[#allocation4 + $0x98] sm:$0xff]
        %v2426 = vld [vmem:[#allocation4 + $0xa0] sm:$0xff]
        %v2427 = vld [vmem:[#allocation4 + $0xa8] sm:$0xff]
        %v2428 = vld [vmem:[#allocation4 + $0xb0] sm:$0xff]
        %v2429 = vld [vmem:[#allocation4 + $0xb8] sm:$0xff]
        %v2430 = vld [vmem:[#allocation4 + $0xc0] sm:$0xff]
        %v2431 = vld [vmem:[#allocation4 + $0xc8] sm:$0xff]
        %v2432 = vld [vmem:[#allocation4 + $0xd0] sm:$0xff]
        %v2433 = vld [vmem:[#allocation4 + $0xd8] sm:$0xff]
        %v2434 = vld [vmem:[#allocation4 + $0xe0] sm:$0xff]
        %v2435 = vld [vmem:[#allocation4 + $0xe8] sm:$0xff]
        %v2436 = vld [vmem:[#allocation4 + $0xf0] sm:$0xff]
        %v2437 = vld [vmem:[#allocation4 + $0xf8] sm:$0xff]
        %v2470 = vunpack.c.l.b16 %v2406
        %v2471 = vunpack.c.h.b16 %v2406
        %v2472 = vunpack.c.l.b16 %v2407
        %v2473 = vunpack.c.h.b16 %v2407
        %v2474 = vunpack.c.l.b16 %v2408
        %v2475 = vunpack.c.h.b16 %v2408
        %v2476 = vunpack.c.l.b16 %v2409
        %v2477 = vunpack.c.h.b16 %v2409
        %v2478 = vunpack.c.l.b16 %v2410
        %v2479 = vunpack.c.h.b16 %v2410
        %v2480 = vunpack.c.l.b16 %v2411
        %v2481 = vunpack.c.h.b16 %v2411
        %v2482 = vunpack.c.l.b16 %v2412
        %v2483 = vunpack.c.h.b16 %v2412
        %v2484 = vunpack.c.l.b16 %v2413
        %v2485 = vunpack.c.h.b16 %v2413
        %v2486 = vunpack.c.l.b16 %v2414
        %v2487 = vunpack.c.h.b16 %v2414
        %v2488 = vunpack.c.l.b16 %v2415
        %v2489 = vunpack.c.h.b16 %v2415
        %v2490 = vunpack.c.l.b16 %v2416
        %v2491 = vunpack.c.h.b16 %v2416
        %v2492 = vunpack.c.l.b16 %v2417
        %v2493 = vunpack.c.h.b16 %v2417
        %v2494 = vunpack.c.l.b16 %v2418
        %v2495 = vunpack.c.h.b16 %v2418
        %v2496 = vunpack.c.l.b16 %v2419
        %v2497 = vunpack.c.h.b16 %v2419
        %v2498 = vunpack.c.l.b16 %v2420
        %v2499 = vunpack.c.h.b16 %v2420
        %v2500 = vunpack.c.l.b16 %v2421
        %v2501 = vunpack.c.h.b16 %v2421
        %v2502 = vunpack.c.l.b16 %v2422
        %v2503 = vunpack.c.h.b16 %v2422
        %v2504 = vunpack.c.l.b16 %v2423
        %v2505 = vunpack.c.h.b16 %v2423
        %v2506 = vunpack.c.l.b16 %v2424
        %v2507 = vunpack.c.h.b16 %v2424
        %v2508 = vunpack.c.l.b16 %v2425
        %v2509 = vunpack.c.h.b16 %v2425
        %v2510 = vunpack.c.l.b16 %v2426
        %v2511 = vunpack.c.h.b16 %v2426
        %v2512 = vunpack.c.l.b16 %v2427
        %v2513 = vunpack.c.h.b16 %v2427
        %v2514 = vunpack.c.l.b16 %v2428
        %v2515 = vunpack.c.h.b16 %v2428
        %v2516 = vunpack.c.l.b16 %v2429
        %v2517 = vunpack.c.h.b16 %v2429
        %v2518 = vunpack.c.l.b16 %v2430
        %v2519 = vunpack.c.h.b16 %v2430
        %v2520 = vunpack.c.l.b16 %v2431
        %v2521 = vunpack.c.h.b16 %v2431
        %v2522 = vunpack.c.l.b16 %v2432
        %v2523 = vunpack.c.h.b16 %v2432
        %v2524 = vunpack.c.l.b16 %v2433
        %v2525 = vunpack.c.h.b16 %v2433
        %v2526 = vunpack.c.l.b16 %v2434
        %v2527 = vunpack.c.h.b16 %v2434
        %v2528 = vunpack.c.l.b16 %v2435
        %v2529 = vunpack.c.h.b16 %v2435
        %v2530 = vunpack.c.l.b16 %v2436
        %v2531 = vunpack.c.h.b16 %v2436
        %v2532 = vunpack.c.l.b16 %v2437
        %v2533 = vunpack.c.h.b16 %v2437
        %v2534 = vpack.c.b16 %v2474, %v2470
        %v2535 = vpack.c.b16 %v2475, %v2471
        %v2536 = vpack.c.b16 %v2476, %v2472
        %v2537 = vpack.c.b16 %v2477, %v2473
        %v2538 = vpack.c.b16 %v2482, %v2478
        %v2539 = vpack.c.b16 %v2483, %v2479
        %v2540 = vpack.c.b16 %v2484, %v2480
        %v2541 = vpack.c.b16 %v2485, %v2481
        %v2542 = vpack.c.b16 %v2490, %v2486
        %v2543 = vpack.c.b16 %v2491, %v2487
        %v2544 = vpack.c.b16 %v2492, %v2488
        %v2545 = vpack.c.b16 %v2493, %v2489
        %v2546 = vpack.c.b16 %v2498, %v2494
        %v2547 = vpack.c.b16 %v2499, %v2495
        %v2548 = vpack.c.b16 %v2500, %v2496
        %v2549 = vpack.c.b16 %v2501, %v2497
        %v2550 = vpack.c.b16 %v2506, %v2502
        %v2551 = vpack.c.b16 %v2507, %v2503
        %v2552 = vpack.c.b16 %v2508, %v2504
        %v2553 = vpack.c.b16 %v2509, %v2505
        %v2554 = vpack.c.b16 %v2514, %v2510
        %v2555 = vpack.c.b16 %v2515, %v2511
        %v2556 = vpack.c.b16 %v2516, %v2512
        %v2557 = vpack.c.b16 %v2517, %v2513
        %v2558 = vpack.c.b16 %v2522, %v2518
        %v2559 = vpack.c.b16 %v2523, %v2519
        %v2560 = vpack.c.b16 %v2524, %v2520
        %v2561 = vpack.c.b16 %v2525, %v2521
        %v2562 = vpack.c.b16 %v2530, %v2526
        %v2563 = vpack.c.b16 %v2531, %v2527
        %v2564 = vpack.c.b16 %v2532, %v2528
        %v2565 = vpack.c.b16 %v2533, %v2529
        %2598 = vmatprep.subr.bf16.mxu0 %v2563
        %2599 = vmatpush1.bf16.msra.mxu0 %v2562
        %2600 = vmatprep.subr.bf16.mxu0 %v2559
        %2601 = vmatpush1.bf16.msra.mxu0 %v2558
        %2602 = vmatprep.subr.bf16.mxu0 %v2555
        %2603 = vmatpush1.bf16.msra.mxu0 %v2554
        %2604 = vmatprep.subr.bf16.mxu0 %v2551
        %2605 = vmatpush1.bf16.msra.mxu0 %v2550
        %2606 = vmatprep.subr.bf16.mxu0 %v2547
        %2607 = vmatpush1.bf16.msra.mxu0 %v2546
        %2608 = vmatprep.subr.bf16.mxu0 %v2543
        %2609 = vmatpush1.bf16.msra.mxu0 %v2542
        %2610 = vmatprep.subr.bf16.mxu0 %v2539
        %2611 = vmatpush1.bf16.msra.mxu0 %v2538
        %2612 = vmatprep.subr.bf16.mxu0 %v2535
        %2613 = vmatpush1.bf16.msra.mxu0 %v2534
        %2614 = vmatprep.subr.bf16.mxu0 0
        %2615 = vmatpush2.bf16.msra.mxu0 0
        %2616 = vmatprep.subr.bf16.mxu0 0
        %2617 = vmatpush2.bf16.msra.mxu0 0
        %2618 = vmatprep.subr.bf16.mxu0 0
        %2619 = vmatpush2.bf16.msra.mxu0 0
        %2620 = vmatprep.subr.bf16.mxu0 0
        %2621 = vmatpush2.bf16.msra.mxu0 0
        %2622 = vmatprep.subr.bf16.mxu0 0
        %2623 = vmatpush2.bf16.msra.mxu0 0
        %2624 = vmatprep.subr.bf16.mxu0 0
        %2625 = vmatpush2.bf16.msra.mxu0 0
        %2626 = vmatprep.subr.bf16.mxu0 0
        %2627 = vmatpush2.bf16.msra.mxu0 0
        %2628 = vmatprep.subr.bf16.mxu0 0
        %2629 = vmatpush2.bf16.msra.mxu0 0
        %2630 = vmatprep.mubr.bf16.mxu0 0
        %2631 = vmatmul.mubr.bf16.gmra.mxu0 %v2405
        %v2632 = vpop.f32.mrf.mxu0
        %v2633 = vadd.f32 0.0, %v2632
        %v2634 = vpop.f32.mrf.mxu0
        %v2635 = vadd.f32 0.0, %v2634
        %v2636 = vpop.f32.mrf.mxu0
        %v2637 = vpop.f32.mrf.mxu0
        %2638 = vdwg.mxu0
        %2639 = vmatprep.subr.bf16.mxu0 %v2565
        %2640 = vmatpush1.bf16.msra.mxu0 %v2564
        %2641 = vmatprep.subr.bf16.mxu0 %v2561
        %2642 = vmatpush1.bf16.msra.mxu0 %v2560
        %2643 = vmatprep.subr.bf16.mxu0 %v2557
        %2644 = vmatpush1.bf16.msra.mxu0 %v2556
        %2645 = vmatprep.subr.bf16.mxu0 %v2553
        %2646 = vmatpush1.bf16.msra.mxu0 %v2552
        %2647 = vmatprep.subr.bf16.mxu0 %v2549
        %2648 = vmatpush1.bf16.msra.mxu0 %v2548
        %2649 = vmatprep.subr.bf16.mxu0 %v2545
        %2650 = vmatpush1.bf16.msra.mxu0 %v2544
        %2651 = vmatprep.subr.bf16.mxu0 %v2541
        %2652 = vmatpush1.bf16.msra.mxu0 %v2540
        %2653 = vmatprep.subr.bf16.mxu0 %v2537
        %2654 = vmatpush1.bf16.msra.mxu0 %v2536
        %2655 = vmatprep.subr.bf16.mxu0 0
        %2656 = vmatpush2.bf16.msra.mxu0 0
        %2657 = vmatprep.subr.bf16.mxu0 0
        %2658 = vmatpush2.bf16.msra.mxu0 0
        %2659 = vmatprep.subr.bf16.mxu0 0
        %2660 = vmatpush2.bf16.msra.mxu0 0
        %2661 = vmatprep.subr.bf16.mxu0 0
        %2662 = vmatpush2.bf16.msra.mxu0 0
        %2663 = vmatprep.subr.bf16.mxu0 0
        %2664 = vmatpush2.bf16.msra.mxu0 0
        %2665 = vmatprep.subr.bf16.mxu0 0
        %2666 = vmatpush2.bf16.msra.mxu0 0
        %2667 = vmatprep.subr.bf16.mxu0 0
        %2668 = vmatpush2.bf16.msra.mxu0 0
        %2669 = vmatprep.subr.bf16.mxu0 0
        %2670 = vmatpush2.bf16.msra.mxu0 0
        %2671 = vmatprep.mubr.bf16.mxu0 0
        %2672 = vmatmul.mubr.bf16.gmra.mxu0 %v2405
        %v2673 = vpop.f32.mrf.mxu0
        %v2674 = vadd.f32 0.0, %v2673
        %v2675 = vpop.f32.mrf.mxu0
        %v2676 = vadd.f32 0.0, %v2675
        %v2677 = vpop.f32.mrf.mxu0
        %v2678 = vpop.f32.mrf.mxu0
        %2679 = vdwg.mxu0
        %v2680 = vadd.f32 %v2401, %v2633
        %v2681 = vadd.f32 %v2402, %v2635
        %v2682 = vadd.f32 %v2403, %v2674
        %v2683 = vadd.f32 %v2404, %v2676
        %v2684 = vxor.u32 %v2680, 2147483648
        %v2685 = vmul.f32 %v2684, 1.442695
        %v2686 = vpow.pop %v2685
        %v2687 = vadd.f32 %v2686, 1.0
        %v2688 = vrcp.pop %v2687
        %v2689 = vmul.f32 1.0, %v2688
        %v2690 = vxor.u32 %v2681, 2147483648
        %v2691 = vmul.f32 %v2690, 1.442695
        %v2692 = vpow.pop %v2691
        %v2693 = vadd.f32 %v2692, 1.0
        %v2694 = vrcp.pop %v2693
        %v2695 = vmul.f32 1.0, %v2694
        %v2696 = vtanh.pop %v2682
        %v2697 = vxor.u32 %v2683, 2147483648
        %v2698 = vmul.f32 %v2697, 1.442695
        %v2699 = vpow.pop %v2698
        %v2700 = vadd.f32 %v2699, 1.0
        %v2701 = vrcp.pop %v2700
        %v2702 = vmul.f32 1.0, %v2701
        %v2703 = vmul.f32 %v2695, %v2397
        %v2704 = vmul.f32 %v2689, %v2696
        %v2705 = vadd.f32 %v2703, %v2704
        %v2706 = vtanh.pop %v2705
        %v2707 = vmul.f32 %v2702, %v2706
        %2708 = vst [vmem:[#allocation3] sm:$0xff] %v2705
        %2709 = vst [vmem:[#allocation2] sm:$0xff] %v2707
        %v2710 = vpack.c.bf16 %v2707, %v2707
        %s2711 = scalar_lea.vmem %s353, 24 [#allocation7]
        %2712 = vst [vmem:[%s2711] sm:$0xf] %v2710
        %v2713 = vld [vmem:[#allocation2] sm:$0xff]
        %v2714 = vld [vmem:[#allocation3] sm:$0xff]
        %s2715 = scalar_lea.vmem %s326, 112 [#allocation6]
        %v2716 = vld [vmem:[%s2715] sm:$0xff]
        %v2717 = vld [vmem:[%s2715 + $0x8] sm:$0xff]
        %v2718 = vunpack.c.l.bf16 %v2716
        %v2719 = vunpack.c.h.bf16 %v2716
        %v2720 = vunpack.c.l.bf16 %v2717
        %v2721 = vunpack.c.h.bf16 %v2717
        %v2722 = vpack.c.bf16 %v2713, %v2713
        %v2723 = vld [vmem:[#allocation4] sm:$0xff]
        %v2724 = vld [vmem:[#allocation4 + $0x8] sm:$0xff]
        %v2725 = vld [vmem:[#allocation4 + $0x10] sm:$0xff]
        %v2726 = vld [vmem:[#allocation4 + $0x18] sm:$0xff]
        %v2727 = vld [vmem:[#allocation4 + $0x20] sm:$0xff]
        %v2728 = vld [vmem:[#allocation4 + $0x28] sm:$0xff]
        %v2729 = vld [vmem:[#allocation4 + $0x30] sm:$0xff]
        %v2730 = vld [vmem:[#allocation4 + $0x38] sm:$0xff]
        %v2731 = vld [vmem:[#allocation4 + $0x40] sm:$0xff]
        %v2732 = vld [vmem:[#allocation4 + $0x48] sm:$0xff]
        %v2733 = vld [vmem:[#allocation4 + $0x50] sm:$0xff]
        %v2734 = vld [vmem:[#allocation4 + $0x58] sm:$0xff]
        %v2735 = vld [vmem:[#allocation4 + $0x60] sm:$0xff]
        %v2736 = vld [vmem:[#allocation4 + $0x68] sm:$0xff]
        %v2737 = vld [vmem:[#allocation4 + $0x70] sm:$0xff]
        %v2738 = vld [vmem:[#allocation4 + $0x78] sm:$0xff]
        %v2739 = vld [vmem:[#allocation4 + $0x80] sm:$0xff]
        %v2740 = vld [vmem:[#allocation4 + $0x88] sm:$0xff]
        %v2741 = vld [vmem:[#allocation4 + $0x90] sm:$0xff]
        %v2742 = vld [vmem:[#allocation4 + $0x98] sm:$0xff]
        %v2743 = vld [vmem:[#allocation4 + $0xa0] sm:$0xff]
        %v2744 = vld [vmem:[#allocation4 + $0xa8] sm:$0xff]
        %v2745 = vld [vmem:[#allocation4 + $0xb0] sm:$0xff]
        %v2746 = vld [vmem:[#allocation4 + $0xb8] sm:$0xff]
        %v2747 = vld [vmem:[#allocation4 + $0xc0] sm:$0xff]
        %v2748 = vld [vmem:[#allocation4 + $0xc8] sm:$0xff]
        %v2749 = vld [vmem:[#allocation4 + $0xd0] sm:$0xff]
        %v2750 = vld [vmem:[#allocation4 + $0xd8] sm:$0xff]
        %v2751 = vld [vmem:[#allocation4 + $0xe0] sm:$0xff]
        %v2752 = vld [vmem:[#allocation4 + $0xe8] sm:$0xff]
        %v2753 = vld [vmem:[#allocation4 + $0xf0] sm:$0xff]
        %v2754 = vld [vmem:[#allocation4 + $0xf8] sm:$0xff]
        %v2787 = vunpack.c.l.b16 %v2723
        %v2788 = vunpack.c.h.b16 %v2723
        %v2789 = vunpack.c.l.b16 %v2724
        %v2790 = vunpack.c.h.b16 %v2724
        %v2791 = vunpack.c.l.b16 %v2725
        %v2792 = vunpack.c.h.b16 %v2725
        %v2793 = vunpack.c.l.b16 %v2726
        %v2794 = vunpack.c.h.b16 %v2726
        %v2795 = vunpack.c.l.b16 %v2727
        %v2796 = vunpack.c.h.b16 %v2727
        %v2797 = vunpack.c.l.b16 %v2728
        %v2798 = vunpack.c.h.b16 %v2728
        %v2799 = vunpack.c.l.b16 %v2729
        %v2800 = vunpack.c.h.b16 %v2729
        %v2801 = vunpack.c.l.b16 %v2730
        %v2802 = vunpack.c.h.b16 %v2730
        %v2803 = vunpack.c.l.b16 %v2731
        %v2804 = vunpack.c.h.b16 %v2731
        %v2805 = vunpack.c.l.b16 %v2732
        %v2806 = vunpack.c.h.b16 %v2732
        %v2807 = vunpack.c.l.b16 %v2733
        %v2808 = vunpack.c.h.b16 %v2733
        %v2809 = vunpack.c.l.b16 %v2734
        %v2810 = vunpack.c.h.b16 %v2734
        %v2811 = vunpack.c.l.b16 %v2735
        %v2812 = vunpack.c.h.b16 %v2735
        %v2813 = vunpack.c.l.b16 %v2736
        %v2814 = vunpack.c.h.b16 %v2736
        %v2815 = vunpack.c.l.b16 %v2737
        %v2816 = vunpack.c.h.b16 %v2737
        %v2817 = vunpack.c.l.b16 %v2738
        %v2818 = vunpack.c.h.b16 %v2738
        %v2819 = vunpack.c.l.b16 %v2739
        %v2820 = vunpack.c.h.b16 %v2739
        %v2821 = vunpack.c.l.b16 %v2740
        %v2822 = vunpack.c.h.b16 %v2740
        %v2823 = vunpack.c.l.b16 %v2741
        %v2824 = vunpack.c.h.b16 %v2741
        %v2825 = vunpack.c.l.b16 %v2742
        %v2826 = vunpack.c.h.b16 %v2742
        %v2827 = vunpack.c.l.b16 %v2743
        %v2828 = vunpack.c.h.b16 %v2743
        %v2829 = vunpack.c.l.b16 %v2744
        %v2830 = vunpack.c.h.b16 %v2744
        %v2831 = vunpack.c.l.b16 %v2745
        %v2832 = vunpack.c.h.b16 %v2745
        %v2833 = vunpack.c.l.b16 %v2746
        %v2834 = vunpack.c.h.b16 %v2746
        %v2835 = vunpack.c.l.b16 %v2747
        %v2836 = vunpack.c.h.b16 %v2747
        %v2837 = vunpack.c.l.b16 %v2748
        %v2838 = vunpack.c.h.b16 %v2748
        %v2839 = vunpack.c.l.b16 %v2749
        %v2840 = vunpack.c.h.b16 %v2749
        %v2841 = vunpack.c.l.b16 %v2750
        %v2842 = vunpack.c.h.b16 %v2750
        %v2843 = vunpack.c.l.b16 %v2751
        %v2844 = vunpack.c.h.b16 %v2751
        %v2845 = vunpack.c.l.b16 %v2752
        %v2846 = vunpack.c.h.b16 %v2752
        %v2847 = vunpack.c.l.b16 %v2753
        %v2848 = vunpack.c.h.b16 %v2753
        %v2849 = vunpack.c.l.b16 %v2754
        %v2850 = vunpack.c.h.b16 %v2754
        %v2851 = vpack.c.b16 %v2791, %v2787
        %v2852 = vpack.c.b16 %v2792, %v2788
        %v2853 = vpack.c.b16 %v2793, %v2789
        %v2854 = vpack.c.b16 %v2794, %v2790
        %v2855 = vpack.c.b16 %v2799, %v2795
        %v2856 = vpack.c.b16 %v2800, %v2796
        %v2857 = vpack.c.b16 %v2801, %v2797
        %v2858 = vpack.c.b16 %v2802, %v2798
        %v2859 = vpack.c.b16 %v2807, %v2803
        %v2860 = vpack.c.b16 %v2808, %v2804
        %v2861 = vpack.c.b16 %v2809, %v2805
        %v2862 = vpack.c.b16 %v2810, %v2806
        %v2863 = vpack.c.b16 %v2815, %v2811
        %v2864 = vpack.c.b16 %v2816, %v2812
        %v2865 = vpack.c.b16 %v2817, %v2813
        %v2866 = vpack.c.b16 %v2818, %v2814
        %v2867 = vpack.c.b16 %v2823, %v2819
        %v2868 = vpack.c.b16 %v2824, %v2820
        %v2869 = vpack.c.b16 %v2825, %v2821
        %v2870 = vpack.c.b16 %v2826, %v2822
        %v2871 = vpack.c.b16 %v2831, %v2827
        %v2872 = vpack.c.b16 %v2832, %v2828
        %v2873 = vpack.c.b16 %v2833, %v2829
        %v2874 = vpack.c.b16 %v2834, %v2830
        %v2875 = vpack.c.b16 %v2839, %v2835
        %v2876 = vpack.c.b16 %v2840, %v2836
        %v2877 = vpack.c.b16 %v2841, %v2837
        %v2878 = vpack.c.b16 %v2842, %v2838
        %v2879 = vpack.c.b16 %v2847, %v2843
        %v2880 = vpack.c.b16 %v2848, %v2844
        %v2881 = vpack.c.b16 %v2849, %v2845
        %v2882 = vpack.c.b16 %v2850, %v2846
        %2915 = vmatprep.subr.bf16.mxu0 %v2880
        %2916 = vmatpush1.bf16.msra.mxu0 %v2879
        %2917 = vmatprep.subr.bf16.mxu0 %v2876
        %2918 = vmatpush1.bf16.msra.mxu0 %v2875
        %2919 = vmatprep.subr.bf16.mxu0 %v2872
        %2920 = vmatpush1.bf16.msra.mxu0 %v2871
        %2921 = vmatprep.subr.bf16.mxu0 %v2868
        %2922 = vmatpush1.bf16.msra.mxu0 %v2867
        %2923 = vmatprep.subr.bf16.mxu0 %v2864
        %2924 = vmatpush1.bf16.msra.mxu0 %v2863
        %2925 = vmatprep.subr.bf16.mxu0 %v2860
        %2926 = vmatpush1.bf16.msra.mxu0 %v2859
        %2927 = vmatprep.subr.bf16.mxu0 %v2856
        %2928 = vmatpush1.bf16.msra.mxu0 %v2855
        %2929 = vmatprep.subr.bf16.mxu0 %v2852
        %2930 = vmatpush1.bf16.msra.mxu0 %v2851
        %2931 = vmatprep.subr.bf16.mxu0 0
        %2932 = vmatpush2.bf16.msra.mxu0 0
        %2933 = vmatprep.subr.bf16.mxu0 0
        %2934 = vmatpush2.bf16.msra.mxu0 0
        %2935 = vmatprep.subr.bf16.mxu0 0
        %2936 = vmatpush2.bf16.msra.mxu0 0
        %2937 = vmatprep.subr.bf16.mxu0 0
        %2938 = vmatpush2.bf16.msra.mxu0 0
        %2939 = vmatprep.subr.bf16.mxu0 0
        %2940 = vmatpush2.bf16.msra.mxu0 0
        %2941 = vmatprep.subr.bf16.mxu0 0
        %2942 = vmatpush2.bf16.msra.mxu0 0
        %2943 = vmatprep.subr.bf16.mxu0 0
        %2944 = vmatpush2.bf16.msra.mxu0 0
        %2945 = vmatprep.subr.bf16.mxu0 0
        %2946 = vmatpush2.bf16.msra.mxu0 0
        %2947 = vmatprep.mubr.bf16.mxu0 0
        %2948 = vmatmul.mubr.bf16.gmra.mxu0 %v2722
        %v2949 = vpop.f32.mrf.mxu0
        %v2950 = vadd.f32 0.0, %v2949
        %v2951 = vpop.f32.mrf.mxu0
        %v2952 = vadd.f32 0.0, %v2951
        %v2953 = vpop.f32.mrf.mxu0
        %v2954 = vpop.f32.mrf.mxu0
        %2955 = vdwg.mxu0
        %2956 = vmatprep.subr.bf16.mxu0 %v2882
        %2957 = vmatpush1.bf16.msra.mxu0 %v2881
        %2958 = vmatprep.subr.bf16.mxu0 %v2878
        %2959 = vmatpush1.bf16.msra.mxu0 %v2877
        %2960 = vmatprep.subr.bf16.mxu0 %v2874
        %2961 = vmatpush1.bf16.msra.mxu0 %v2873
        %2962 = vmatprep.subr.bf16.mxu0 %v2870
        %2963 = vmatpush1.bf16.msra.mxu0 %v2869
        %2964 = vmatprep.subr.bf16.mxu0 %v2866
        %2965 = vmatpush1.bf16.msra.mxu0 %v2865
        %2966 = vmatprep.subr.bf16.mxu0 %v2862
        %2967 = vmatpush1.bf16.msra.mxu0 %v2861
        %2968 = vmatprep.subr.bf16.mxu0 %v2858
        %2969 = vmatpush1.bf16.msra.mxu0 %v2857
        %2970 = vmatprep.subr.bf16.mxu0 %v2854
        %2971 = vmatpush1.bf16.msra.mxu0 %v2853
        %2972 = vmatprep.subr.bf16.mxu0 0
        %2973 = vmatpush2.bf16.msra.mxu0 0
        %2974 = vmatprep.subr.bf16.mxu0 0
        %2975 = vmatpush2.bf16.msra.mxu0 0
        %2976 = vmatprep.subr.bf16.mxu0 0
        %2977 = vmatpush2.bf16.msra.mxu0 0
        %2978 = vmatprep.subr.bf16.mxu0 0
        %2979 = vmatpush2.bf16.msra.mxu0 0
        %2980 = vmatprep.subr.bf16.mxu0 0
        %2981 = vmatpush2.bf16.msra.mxu0 0
        %2982 = vmatprep.subr.bf16.mxu0 0
        %2983 = vmatpush2.bf16.msra.mxu0 0
        %2984 = vmatprep.subr.bf16.mxu0 0
        %2985 = vmatpush2.bf16.msra.mxu0 0
        %2986 = vmatprep.subr.bf16.mxu0 0
        %2987 = vmatpush2.bf16.msra.mxu0 0
        %2988 = vmatprep.mubr.bf16.mxu0 0
        %2989 = vmatmul.mubr.bf16.gmra.mxu0 %v2722
        %v2990 = vpop.f32.mrf.mxu0
        %v2991 = vadd.f32 0.0, %v2990
        %v2992 = vpop.f32.mrf.mxu0
        %v2993 = vadd.f32 0.0, %v2992
        %v2994 = vpop.f32.mrf.mxu0
        %v2995 = vpop.f32.mrf.mxu0
        %2996 = vdwg.mxu0
        %v2997 = vadd.f32 %v2718, %v2950
        %v2998 = vadd.f32 %v2719, %v2952
        %v2999 = vadd.f32 %v2720, %v2991
        %v3000 = vadd.f32 %v2721, %v2993
        %v3001 = vxor.u32 %v2997, 2147483648
        %v3002 = vmul.f32 %v3001, 1.442695
        %v3003 = vpow.pop %v3002
        %v3004 = vadd.f32 %v3003, 1.0
        %v3005 = vrcp.pop %v3004
        %v3006 = vmul.f32 1.0, %v3005
        %v3007 = vxor.u32 %v2998, 2147483648
        %v3008 = vmul.f32 %v3007, 1.442695
        %v3009 = vpow.pop %v3008
        %v3010 = vadd.f32 %v3009, 1.0
        %v3011 = vrcp.pop %v3010
        %v3012 = vmul.f32 1.0, %v3011
        %v3013 = vtanh.pop %v2999
        %v3014 = vxor.u32 %v3000, 2147483648
        %v3015 = vmul.f32 %v3014, 1.442695
        %v3016 = vpow.pop %v3015
        %v3017 = vadd.f32 %v3016, 1.0
        %v3018 = vrcp.pop %v3017
        %v3019 = vmul.f32 1.0, %v3018
        %v3020 = vmul.f32 %v3012, %v2714
        %v3021 = vmul.f32 %v3006, %v3013
        %v3022 = vadd.f32 %v3020, %v3021
        %v3023 = vtanh.pop %v3022
        %v3024 = vmul.f32 %v3019, %v3023
        %3025 = vst [vmem:[#allocation3] sm:$0xff] %v3022
        %3026 = vst [vmem:[#allocation2] sm:$0xff] %v3024
        %v3027 = vpack.c.bf16 %v3024, %v3024
        %s3028 = scalar_lea.vmem %s353, 28 [#allocation7]
        %3029 = vst [vmem:[%s3028] sm:$0xf] %v3027
        %v3030 = vld [vmem:[#allocation2] sm:$0xff]
        %v3031 = vld [vmem:[#allocation3] sm:$0xff]
        %s3032 = scalar_lea.vmem %s326, 128 [#allocation6]
        %v3033 = vld [vmem:[%s3032] sm:$0xff]
        %v3034 = vld [vmem:[%s3032 + $0x8] sm:$0xff]
        %v3035 = vunpack.c.l.bf16 %v3033
        %v3036 = vunpack.c.h.bf16 %v3033
        %v3037 = vunpack.c.l.bf16 %v3034
        %v3038 = vunpack.c.h.bf16 %v3034
        %v3039 = vpack.c.bf16 %v3030, %v3030
        %v3040 = vld [vmem:[#allocation4] sm:$0xff]
        %v3041 = vld [vmem:[#allocation4 + $0x8] sm:$0xff]
        %v3042 = vld [vmem:[#allocation4 + $0x10] sm:$0xff]
        %v3043 = vld [vmem:[#allocation4 + $0x18] sm:$0xff]
        %v3044 = vld [vmem:[#allocation4 + $0x20] sm:$0xff]
        %v3045 = vld [vmem:[#allocation4 + $0x28] sm:$0xff]
        %v3046 = vld [vmem:[#allocation4 + $0x30] sm:$0xff]
        %v3047 = vld [vmem:[#allocation4 + $0x38] sm:$0xff]
        %v3048 = vld [vmem:[#allocation4 + $0x40] sm:$0xff]
        %v3049 = vld [vmem:[#allocation4 + $0x48] sm:$0xff]
        %v3050 = vld [vmem:[#allocation4 + $0x50] sm:$0xff]
        %v3051 = vld [vmem:[#allocation4 + $0x58] sm:$0xff]
        %v3052 = vld [vmem:[#allocation4 + $0x60] sm:$0xff]
        %v3053 = vld [vmem:[#allocation4 + $0x68] sm:$0xff]
        %v3054 = vld [vmem:[#allocation4 + $0x70] sm:$0xff]
        %v3055 = vld [vmem:[#allocation4 + $0x78] sm:$0xff]
        %v3056 = vld [vmem:[#allocation4 + $0x80] sm:$0xff]
        %v3057 = vld [vmem:[#allocation4 + $0x88] sm:$0xff]
        %v3058 = vld [vmem:[#allocation4 + $0x90] sm:$0xff]
        %v3059 = vld [vmem:[#allocation4 + $0x98] sm:$0xff]
        %v3060 = vld [vmem:[#allocation4 + $0xa0] sm:$0xff]
        %v3061 = vld [vmem:[#allocation4 + $0xa8] sm:$0xff]
        %v3062 = vld [vmem:[#allocation4 + $0xb0] sm:$0xff]
        %v3063 = vld [vmem:[#allocation4 + $0xb8] sm:$0xff]
        %v3064 = vld [vmem:[#allocation4 + $0xc0] sm:$0xff]
        %v3065 = vld [vmem:[#allocation4 + $0xc8] sm:$0xff]
        %v3066 = vld [vmem:[#allocation4 + $0xd0] sm:$0xff]
        %v3067 = vld [vmem:[#allocation4 + $0xd8] sm:$0xff]
        %v3068 = vld [vmem:[#allocation4 + $0xe0] sm:$0xff]
        %v3069 = vld [vmem:[#allocation4 + $0xe8] sm:$0xff]
        %v3070 = vld [vmem:[#allocation4 + $0xf0] sm:$0xff]
        %v3071 = vld [vmem:[#allocation4 + $0xf8] sm:$0xff]
        %v3104 = vunpack.c.l.b16 %v3040
        %v3105 = vunpack.c.h.b16 %v3040
        %v3106 = vunpack.c.l.b16 %v3041
        %v3107 = vunpack.c.h.b16 %v3041
        %v3108 = vunpack.c.l.b16 %v3042
        %v3109 = vunpack.c.h.b16 %v3042
        %v3110 = vunpack.c.l.b16 %v3043
        %v3111 = vunpack.c.h.b16 %v3043
        %v3112 = vunpack.c.l.b16 %v3044
        %v3113 = vunpack.c.h.b16 %v3044
        %v3114 = vunpack.c.l.b16 %v3045
        %v3115 = vunpack.c.h.b16 %v3045
        %v3116 = vunpack.c.l.b16 %v3046
        %v3117 = vunpack.c.h.b16 %v3046
        %v3118 = vunpack.c.l.b16 %v3047
        %v3119 = vunpack.c.h.b16 %v3047
        %v3120 = vunpack.c.l.b16 %v3048
        %v3121 = vunpack.c.h.b16 %v3048
        %v3122 = vunpack.c.l.b16 %v3049
        %v3123 = vunpack.c.h.b16 %v3049
        %v3124 = vunpack.c.l.b16 %v3050
        %v3125 = vunpack.c.h.b16 %v3050
        %v3126 = vunpack.c.l.b16 %v3051
        %v3127 = vunpack.c.h.b16 %v3051
        %v3128 = vunpack.c.l.b16 %v3052
        %v3129 = vunpack.c.h.b16 %v3052
        %v3130 = vunpack.c.l.b16 %v3053
        %v3131 = vunpack.c.h.b16 %v3053
        %v3132 = vunpack.c.l.b16 %v3054
        %v3133 = vunpack.c.h.b16 %v3054
        %v3134 = vunpack.c.l.b16 %v3055
        %v3135 = vunpack.c.h.b16 %v3055
        %v3136 = vunpack.c.l.b16 %v3056
        %v3137 = vunpack.c.h.b16 %v3056
        %v3138 = vunpack.c.l.b16 %v3057
        %v3139 = vunpack.c.h.b16 %v3057
        %v3140 = vunpack.c.l.b16 %v3058
        %v3141 = vunpack.c.h.b16 %v3058
        %v3142 = vunpack.c.l.b16 %v3059
        %v3143 = vunpack.c.h.b16 %v3059
        %v3144 = vunpack.c.l.b16 %v3060
        %v3145 = vunpack.c.h.b16 %v3060
        %v3146 = vunpack.c.l.b16 %v3061
        %v3147 = vunpack.c.h.b16 %v3061
        %v3148 = vunpack.c.l.b16 %v3062
        %v3149 = vunpack.c.h.b16 %v3062
        %v3150 = vunpack.c.l.b16 %v3063
        %v3151 = vunpack.c.h.b16 %v3063
        %v3152 = vunpack.c.l.b16 %v3064
        %v3153 = vunpack.c.h.b16 %v3064
        %v3154 = vunpack.c.l.b16 %v3065
        %v3155 = vunpack.c.h.b16 %v3065
        %v3156 = vunpack.c.l.b16 %v3066
        %v3157 = vunpack.c.h.b16 %v3066
        %v3158 = vunpack.c.l.b16 %v3067
        %v3159 = vunpack.c.h.b16 %v3067
        %v3160 = vunpack.c.l.b16 %v3068
        %v3161 = vunpack.c.h.b16 %v3068
        %v3162 = vunpack.c.l.b16 %v3069
        %v3163 = vunpack.c.h.b16 %v3069
        %v3164 = vunpack.c.l.b16 %v3070
        %v3165 = vunpack.c.h.b16 %v3070
        %v3166 = vunpack.c.l.b16 %v3071
        %v3167 = vunpack.c.h.b16 %v3071
        %v3168 = vpack.c.b16 %v3108, %v3104
        %v3169 = vpack.c.b16 %v3109, %v3105
        %v3170 = vpack.c.b16 %v3110, %v3106
        %v3171 = vpack.c.b16 %v3111, %v3107
        %v3172 = vpack.c.b16 %v3116, %v3112
        %v3173 = vpack.c.b16 %v3117, %v3113
        %v3174 = vpack.c.b16 %v3118, %v3114
        %v3175 = vpack.c.b16 %v3119, %v3115
        %v3176 = vpack.c.b16 %v3124, %v3120
        %v3177 = vpack.c.b16 %v3125, %v3121
        %v3178 = vpack.c.b16 %v3126, %v3122
        %v3179 = vpack.c.b16 %v3127, %v3123
        %v3180 = vpack.c.b16 %v3132, %v3128
        %v3181 = vpack.c.b16 %v3133, %v3129
        %v3182 = vpack.c.b16 %v3134, %v3130
        %v3183 = vpack.c.b16 %v3135, %v3131
        %v3184 = vpack.c.b16 %v3140, %v3136
        %v3185 = vpack.c.b16 %v3141, %v3137
        %v3186 = vpack.c.b16 %v3142, %v3138
        %v3187 = vpack.c.b16 %v3143, %v3139
        %v3188 = vpack.c.b16 %v3148, %v3144
        %v3189 = vpack.c.b16 %v3149, %v3145
        %v3190 = vpack.c.b16 %v3150, %v3146
        %v3191 = vpack.c.b16 %v3151, %v3147
        %v3192 = vpack.c.b16 %v3156, %v3152
        %v3193 = vpack.c.b16 %v3157, %v3153
        %v3194 = vpack.c.b16 %v3158, %v3154
        %v3195 = vpack.c.b16 %v3159, %v3155
        %v3196 = vpack.c.b16 %v3164, %v3160
        %v3197 = vpack.c.b16 %v3165, %v3161
        %v3198 = vpack.c.b16 %v3166, %v3162
        %v3199 = vpack.c.b16 %v3167, %v3163
        %3232 = vmatprep.subr.bf16.mxu0 %v3197
        %3233 = vmatpush1.bf16.msra.mxu0 %v3196
        %3234 = vmatprep.subr.bf16.mxu0 %v3193
        %3235 = vmatpush1.bf16.msra.mxu0 %v3192
        %3236 = vmatprep.subr.bf16.mxu0 %v3189
        %3237 = vmatpush1.bf16.msra.mxu0 %v3188
        %3238 = vmatprep.subr.bf16.mxu0 %v3185
        %3239 = vmatpush1.bf16.msra.mxu0 %v3184
        %3240 = vmatprep.subr.bf16.mxu0 %v3181
        %3241 = vmatpush1.bf16.msra.mxu0 %v3180
        %3242 = vmatprep.subr.bf16.mxu0 %v3177
        %3243 = vmatpush1.bf16.msra.mxu0 %v3176
        %3244 = vmatprep.subr.bf16.mxu0 %v3173
        %3245 = vmatpush1.bf16.msra.mxu0 %v3172
        %3246 = vmatprep.subr.bf16.mxu0 %v3169
        %3247 = vmatpush1.bf16.msra.mxu0 %v3168
        %3248 = vmatprep.subr.bf16.mxu0 0
        %3249 = vmatpush2.bf16.msra.mxu0 0
        %3250 = vmatprep.subr.bf16.mxu0 0
        %3251 = vmatpush2.bf16.msra.mxu0 0
        %3252 = vmatprep.subr.bf16.mxu0 0
        %3253 = vmatpush2.bf16.msra.mxu0 0
        %3254 = vmatprep.subr.bf16.mxu0 0
        %3255 = vmatpush2.bf16.msra.mxu0 0
        %3256 = vmatprep.subr.bf16.mxu0 0
        %3257 = vmatpush2.bf16.msra.mxu0 0
        %3258 = vmatprep.subr.bf16.mxu0 0
        %3259 = vmatpush2.bf16.msra.mxu0 0
        %3260 = vmatprep.subr.bf16.mxu0 0
        %3261 = vmatpush2.bf16.msra.mxu0 0
        %3262 = vmatprep.subr.bf16.mxu0 0
        %3263 = vmatpush2.bf16.msra.mxu0 0
        %3264 = vmatprep.mubr.bf16.mxu0 0
        %3265 = vmatmul.mubr.bf16.gmra.mxu0 %v3039
        %v3266 = vpop.f32.mrf.mxu0
        %v3267 = vadd.f32 0.0, %v3266
        %v3268 = vpop.f32.mrf.mxu0
        %v3269 = vadd.f32 0.0, %v3268
        %v3270 = vpop.f32.mrf.mxu0
        %v3271 = vpop.f32.mrf.mxu0
        %3272 = vdwg.mxu0
        %3273 = vmatprep.subr.bf16.mxu0 %v3199
        %3274 = vmatpush1.bf16.msra.mxu0 %v3198
        %3275 = vmatprep.subr.bf16.mxu0 %v3195
        %3276 = vmatpush1.bf16.msra.mxu0 %v3194
        %3277 = vmatprep.subr.bf16.mxu0 %v3191
        %3278 = vmatpush1.bf16.msra.mxu0 %v3190
        %3279 = vmatprep.subr.bf16.mxu0 %v3187
        %3280 = vmatpush1.bf16.msra.mxu0 %v3186
        %3281 = vmatprep.subr.bf16.mxu0 %v3183
        %3282 = vmatpush1.bf16.msra.mxu0 %v3182
        %3283 = vmatprep.subr.bf16.mxu0 %v3179
        %3284 = vmatpush1.bf16.msra.mxu0 %v3178
        %3285 = vmatprep.subr.bf16.mxu0 %v3175
        %3286 = vmatpush1.bf16.msra.mxu0 %v3174
        %3287 = vmatprep.subr.bf16.mxu0 %v3171
        %3288 = vmatpush1.bf16.msra.mxu0 %v3170
        %3289 = vmatprep.subr.bf16.mxu0 0
        %3290 = vmatpush2.bf16.msra.mxu0 0
        %3291 = vmatprep.subr.bf16.mxu0 0
        %3292 = vmatpush2.bf16.msra.mxu0 0
        %3293 = vmatprep.subr.bf16.mxu0 0
        %3294 = vmatpush2.bf16.msra.mxu0 0
        %3295 = vmatprep.subr.bf16.mxu0 0
        %3296 = vmatpush2.bf16.msra.mxu0 0
        %3297 = vmatprep.subr.bf16.mxu0 0
        %3298 = vmatpush2.bf16.msra.mxu0 0
        %3299 = vmatprep.subr.bf16.mxu0 0
        %3300 = vmatpush2.bf16.msra.mxu0 0
        %3301 = vmatprep.subr.bf16.mxu0 0
        %3302 = vmatpush2.bf16.msra.mxu0 0
        %3303 = vmatprep.subr.bf16.mxu0 0
        %3304 = vmatpush2.bf16.msra.mxu0 0
        %3305 = vmatprep.mubr.bf16.mxu0 0
        %3306 = vmatmul.mubr.bf16.gmra.mxu0 %v3039
        %v3307 = vpop.f32.mrf.mxu0
        %v3308 = vadd.f32 0.0, %v3307
        %v3309 = vpop.f32.mrf.mxu0
        %v3310 = vadd.f32 0.0, %v3309
        %v3311 = vpop.f32.mrf.mxu0
        %v3312 = vpop.f32.mrf.mxu0
        %3313 = vdwg.mxu0
        %v3314 = vadd.f32 %v3035, %v3267
        %v3315 = vadd.f32 %v3036, %v3269
        %v3316 = vadd.f32 %v3037, %v3308
        %v3317 = vadd.f32 %v3038, %v3310
        %v3318 = vxor.u32 %v3314, 2147483648
        %v3319 = vmul.f32 %v3318, 1.442695
        %v3320 = vpow.pop %v3319
        %v3321 = vadd.f32 %v3320, 1.0
        %v3322 = vrcp.pop %v3321
        %v3323 = vmul.f32 1.0, %v3322
        %v3324 = vxor.u32 %v3315, 2147483648
        %v3325 = vmul.f32 %v3324, 1.442695
        %v3326 = vpow.pop %v3325
        %v3327 = vadd.f32 %v3326, 1.0
        %v3328 = vrcp.pop %v3327
        %v3329 = vmul.f32 1.0, %v3328
        %v3330 = vtanh.pop %v3316
        %v3331 = vxor.u32 %v3317, 2147483648
        %v3332 = vmul.f32 %v3331, 1.442695
        %v3333 = vpow.pop %v3332
        %v3334 = vadd.f32 %v3333, 1.0
        %v3335 = vrcp.pop %v3334
        %v3336 = vmul.f32 1.0, %v3335
        %v3337 = vmul.f32 %v3329, %v3031
        %v3338 = vmul.f32 %v3323, %v3330
        %v3339 = vadd.f32 %v3337, %v3338
        %v3340 = vtanh.pop %v3339
        %v3341 = vmul.f32 %v3336, %v3340
        %3342 = vst [vmem:[#allocation3] sm:$0xff] %v3339
        %3343 = vst [vmem:[#allocation2] sm:$0xff] %v3341
        %v3344 = vpack.c.bf16 %v3341, %v3341
        %s3345 = scalar_lea.vmem %s353, 32 [#allocation7]
        %3346 = vst [vmem:[%s3345] sm:$0xf] %v3344
        %v3347 = vld [vmem:[#allocation2] sm:$0xff]
        %v3348 = vld [vmem:[#allocation3] sm:$0xff]
        %s3349 = scalar_lea.vmem %s326, 144 [#allocation6]
        %v3350 = vld [vmem:[%s3349] sm:$0xff]
        %v3351 = vld [vmem:[%s3349 + $0x8] sm:$0xff]
        %v3352 = vunpack.c.l.bf16 %v3350
        %v3353 = vunpack.c.h.bf16 %v3350
        %v3354 = vunpack.c.l.bf16 %v3351
        %v3355 = vunpack.c.h.bf16 %v3351
        %v3356 = vpack.c.bf16 %v3347, %v3347
        %v3357 = vld [vmem:[#allocation4] sm:$0xff]
        %v3358 = vld [vmem:[#allocation4 + $0x8] sm:$0xff]
        %v3359 = vld [vmem:[#allocation4 + $0x10] sm:$0xff]
        %v3360 = vld [vmem:[#allocation4 + $0x18] sm:$0xff]
        %v3361 = vld [vmem:[#allocation4 + $0x20] sm:$0xff]
        %v3362 = vld [vmem:[#allocation4 + $0x28] sm:$0xff]
        %v3363 = vld [vmem:[#allocation4 + $0x30] sm:$0xff]
        %v3364 = vld [vmem:[#allocation4 + $0x38] sm:$0xff]
        %v3365 = vld [vmem:[#allocation4 + $0x40] sm:$0xff]
        %v3366 = vld [vmem:[#allocation4 + $0x48] sm:$0xff]
        %v3367 = vld [vmem:[#allocation4 + $0x50] sm:$0xff]
        %v3368 = vld [vmem:[#allocation4 + $0x58] sm:$0xff]
        %v3369 = vld [vmem:[#allocation4 + $0x60] sm:$0xff]
        %v3370 = vld [vmem:[#allocation4 + $0x68] sm:$0xff]
        %v3371 = vld [vmem:[#allocation4 + $0x70] sm:$0xff]
        %v3372 = vld [vmem:[#allocation4 + $0x78] sm:$0xff]
        %v3373 = vld [vmem:[#allocation4 + $0x80] sm:$0xff]
        %v3374 = vld [vmem:[#allocation4 + $0x88] sm:$0xff]
        %v3375 = vld [vmem:[#allocation4 + $0x90] sm:$0xff]
        %v3376 = vld [vmem:[#allocation4 + $0x98] sm:$0xff]
        %v3377 = vld [vmem:[#allocation4 + $0xa0] sm:$0xff]
        %v3378 = vld [vmem:[#allocation4 + $0xa8] sm:$0xff]
        %v3379 = vld [vmem:[#allocation4 + $0xb0] sm:$0xff]
        %v3380 = vld [vmem:[#allocation4 + $0xb8] sm:$0xff]
        %v3381 = vld [vmem:[#allocation4 + $0xc0] sm:$0xff]
        %v3382 = vld [vmem:[#allocation4 + $0xc8] sm:$0xff]
        %v3383 = vld [vmem:[#allocation4 + $0xd0] sm:$0xff]
        %v3384 = vld [vmem:[#allocation4 + $0xd8] sm:$0xff]
        %v3385 = vld [vmem:[#allocation4 + $0xe0] sm:$0xff]
        %v3386 = vld [vmem:[#allocation4 + $0xe8] sm:$0xff]
        %v3387 = vld [vmem:[#allocation4 + $0xf0] sm:$0xff]
        %v3388 = vld [vmem:[#allocation4 + $0xf8] sm:$0xff]
        %v3421 = vunpack.c.l.b16 %v3357
        %v3422 = vunpack.c.h.b16 %v3357
        %v3423 = vunpack.c.l.b16 %v3358
        %v3424 = vunpack.c.h.b16 %v3358
        %v3425 = vunpack.c.l.b16 %v3359
        %v3426 = vunpack.c.h.b16 %v3359
        %v3427 = vunpack.c.l.b16 %v3360
        %v3428 = vunpack.c.h.b16 %v3360
        %v3429 = vunpack.c.l.b16 %v3361
        %v3430 = vunpack.c.h.b16 %v3361
        %v3431 = vunpack.c.l.b16 %v3362
        %v3432 = vunpack.c.h.b16 %v3362
        %v3433 = vunpack.c.l.b16 %v3363
        %v3434 = vunpack.c.h.b16 %v3363
        %v3435 = vunpack.c.l.b16 %v3364
        %v3436 = vunpack.c.h.b16 %v3364
        %v3437 = vunpack.c.l.b16 %v3365
        %v3438 = vunpack.c.h.b16 %v3365
        %v3439 = vunpack.c.l.b16 %v3366
        %v3440 = vunpack.c.h.b16 %v3366
        %v3441 = vunpack.c.l.b16 %v3367
        %v3442 = vunpack.c.h.b16 %v3367
        %v3443 = vunpack.c.l.b16 %v3368
        %v3444 = vunpack.c.h.b16 %v3368
        %v3445 = vunpack.c.l.b16 %v3369
        %v3446 = vunpack.c.h.b16 %v3369
        %v3447 = vunpack.c.l.b16 %v3370
        %v3448 = vunpack.c.h.b16 %v3370
        %v3449 = vunpack.c.l.b16 %v3371
        %v3450 = vunpack.c.h.b16 %v3371
        %v3451 = vunpack.c.l.b16 %v3372
        %v3452 = vunpack.c.h.b16 %v3372
        %v3453 = vunpack.c.l.b16 %v3373
        %v3454 = vunpack.c.h.b16 %v3373
        %v3455 = vunpack.c.l.b16 %v3374
        %v3456 = vunpack.c.h.b16 %v3374
        %v3457 = vunpack.c.l.b16 %v3375
        %v3458 = vunpack.c.h.b16 %v3375
        %v3459 = vunpack.c.l.b16 %v3376
        %v3460 = vunpack.c.h.b16 %v3376
        %v3461 = vunpack.c.l.b16 %v3377
        %v3462 = vunpack.c.h.b16 %v3377
        %v3463 = vunpack.c.l.b16 %v3378
        %v3464 = vunpack.c.h.b16 %v3378
        %v3465 = vunpack.c.l.b16 %v3379
        %v3466 = vunpack.c.h.b16 %v3379
        %v3467 = vunpack.c.l.b16 %v3380
        %v3468 = vunpack.c.h.b16 %v3380
        %v3469 = vunpack.c.l.b16 %v3381
        %v3470 = vunpack.c.h.b16 %v3381
        %v3471 = vunpack.c.l.b16 %v3382
        %v3472 = vunpack.c.h.b16 %v3382
        %v3473 = vunpack.c.l.b16 %v3383
        %v3474 = vunpack.c.h.b16 %v3383
        %v3475 = vunpack.c.l.b16 %v3384
        %v3476 = vunpack.c.h.b16 %v3384
        %v3477 = vunpack.c.l.b16 %v3385
        %v3478 = vunpack.c.h.b16 %v3385
        %v3479 = vunpack.c.l.b16 %v3386
        %v3480 = vunpack.c.h.b16 %v3386
        %v3481 = vunpack.c.l.b16 %v3387
        %v3482 = vunpack.c.h.b16 %v3387
        %v3483 = vunpack.c.l.b16 %v3388
        %v3484 = vunpack.c.h.b16 %v3388
        %v3485 = vpack.c.b16 %v3425, %v3421
        %v3486 = vpack.c.b16 %v3426, %v3422
        %v3487 = vpack.c.b16 %v3427, %v3423
        %v3488 = vpack.c.b16 %v3428, %v3424
        %v3489 = vpack.c.b16 %v3433, %v3429
        %v3490 = vpack.c.b16 %v3434, %v3430
        %v3491 = vpack.c.b16 %v3435, %v3431
        %v3492 = vpack.c.b16 %v3436, %v3432
        %v3493 = vpack.c.b16 %v3441, %v3437
        %v3494 = vpack.c.b16 %v3442, %v3438
        %v3495 = vpack.c.b16 %v3443, %v3439
        %v3496 = vpack.c.b16 %v3444, %v3440
        %v3497 = vpack.c.b16 %v3449, %v3445
        %v3498 = vpack.c.b16 %v3450, %v3446
        %v3499 = vpack.c.b16 %v3451, %v3447
        %v3500 = vpack.c.b16 %v3452, %v3448
        %v3501 = vpack.c.b16 %v3457, %v3453
        %v3502 = vpack.c.b16 %v3458, %v3454
        %v3503 = vpack.c.b16 %v3459, %v3455
        %v3504 = vpack.c.b16 %v3460, %v3456
        %v3505 = vpack.c.b16 %v3465, %v3461
        %v3506 = vpack.c.b16 %v3466, %v3462
        %v3507 = vpack.c.b16 %v3467, %v3463
        %v3508 = vpack.c.b16 %v3468, %v3464
        %v3509 = vpack.c.b16 %v3473, %v3469
        %v3510 = vpack.c.b16 %v3474, %v3470
        %v3511 = vpack.c.b16 %v3475, %v3471
        %v3512 = vpack.c.b16 %v3476, %v3472
        %v3513 = vpack.c.b16 %v3481, %v3477
        %v3514 = vpack.c.b16 %v3482, %v3478
        %v3515 = vpack.c.b16 %v3483, %v3479
        %v3516 = vpack.c.b16 %v3484, %v3480
        %3549 = vmatprep.subr.bf16.mxu0 %v3514
        %3550 = vmatpush1.bf16.msra.mxu0 %v3513
        %3551 = vmatprep.subr.bf16.mxu0 %v3510
        %3552 = vmatpush1.bf16.msra.mxu0 %v3509
        %3553 = vmatprep.subr.bf16.mxu0 %v3506
        %3554 = vmatpush1.bf16.msra.mxu0 %v3505
        %3555 = vmatprep.subr.bf16.mxu0 %v3502
        %3556 = vmatpush1.bf16.msra.mxu0 %v3501
        %3557 = vmatprep.subr.bf16.mxu0 %v3498
        %3558 = vmatpush1.bf16.msra.mxu0 %v3497
        %3559 = vmatprep.subr.bf16.mxu0 %v3494
        %3560 = vmatpush1.bf16.msra.mxu0 %v3493
        %3561 = vmatprep.subr.bf16.mxu0 %v3490
        %3562 = vmatpush1.bf16.msra.mxu0 %v3489
        %3563 = vmatprep.subr.bf16.mxu0 %v3486
        %3564 = vmatpush1.bf16.msra.mxu0 %v3485
        %3565 = vmatprep.subr.bf16.mxu0 0
        %3566 = vmatpush2.bf16.msra.mxu0 0
        %3567 = vmatprep.subr.bf16.mxu0 0
        %3568 = vmatpush2.bf16.msra.mxu0 0
        %3569 = vmatprep.subr.bf16.mxu0 0
        %3570 = vmatpush2.bf16.msra.mxu0 0
        %3571 = vmatprep.subr.bf16.mxu0 0
        %3572 = vmatpush2.bf16.msra.mxu0 0
        %3573 = vmatprep.subr.bf16.mxu0 0
        %3574 = vmatpush2.bf16.msra.mxu0 0
        %3575 = vmatprep.subr.bf16.mxu0 0
        %3576 = vmatpush2.bf16.msra.mxu0 0
        %3577 = vmatprep.subr.bf16.mxu0 0
        %3578 = vmatpush2.bf16.msra.mxu0 0
        %3579 = vmatprep.subr.bf16.mxu0 0
        %3580 = vmatpush2.bf16.msra.mxu0 0
        %3581 = vmatprep.mubr.bf16.mxu0 0
        %3582 = vmatmul.mubr.bf16.gmra.mxu0 %v3356
        %v3583 = vpop.f32.mrf.mxu0
        %v3584 = vadd.f32 0.0, %v3583
        %v3585 = vpop.f32.mrf.mxu0
        %v3586 = vadd.f32 0.0, %v3585
        %v3587 = vpop.f32.mrf.mxu0
        %v3588 = vpop.f32.mrf.mxu0
        %3589 = vdwg.mxu0
        %3590 = vmatprep.subr.bf16.mxu0 %v3516
        %3591 = vmatpush1.bf16.msra.mxu0 %v3515
        %3592 = vmatprep.subr.bf16.mxu0 %v3512
        %3593 = vmatpush1.bf16.msra.mxu0 %v3511
        %3594 = vmatprep.subr.bf16.mxu0 %v3508
        %3595 = vmatpush1.bf16.msra.mxu0 %v3507
        %3596 = vmatprep.subr.bf16.mxu0 %v3504
        %3597 = vmatpush1.bf16.msra.mxu0 %v3503
        %3598 = vmatprep.subr.bf16.mxu0 %v3500
        %3599 = vmatpush1.bf16.msra.mxu0 %v3499
        %3600 = vmatprep.subr.bf16.mxu0 %v3496
        %3601 = vmatpush1.bf16.msra.mxu0 %v3495
        %3602 = vmatprep.subr.bf16.mxu0 %v3492
        %3603 = vmatpush1.bf16.msra.mxu0 %v3491
        %3604 = vmatprep.subr.bf16.mxu0 %v3488
        %3605 = vmatpush1.bf16.msra.mxu0 %v3487
        %3606 = vmatprep.subr.bf16.mxu0 0
        %3607 = vmatpush2.bf16.msra.mxu0 0
        %3608 = vmatprep.subr.bf16.mxu0 0
        %3609 = vmatpush2.bf16.msra.mxu0 0
        %3610 = vmatprep.subr.bf16.mxu0 0
        %3611 = vmatpush2.bf16.msra.mxu0 0
        %3612 = vmatprep.subr.bf16.mxu0 0
        %3613 = vmatpush2.bf16.msra.mxu0 0
        %3614 = vmatprep.subr.bf16.mxu0 0
        %3615 = vmatpush2.bf16.msra.mxu0 0
        %3616 = vmatprep.subr.bf16.mxu0 0
        %3617 = vmatpush2.bf16.msra.mxu0 0
        %3618 = vmatprep.subr.bf16.mxu0 0
        %3619 = vmatpush2.bf16.msra.mxu0 0
        %3620 = vmatprep.subr.bf16.mxu0 0
        %3621 = vmatpush2.bf16.msra.mxu0 0
        %3622 = vmatprep.mubr.bf16.mxu0 0
        %3623 = vmatmul.mubr.bf16.gmra.mxu0 %v3356
        %v3624 = vpop.f32.mrf.mxu0
        %v3625 = vadd.f32 0.0, %v3624
        %v3626 = vpop.f32.mrf.mxu0
        %v3627 = vadd.f32 0.0, %v3626
        %v3628 = vpop.f32.mrf.mxu0
        %v3629 = vpop.f32.mrf.mxu0
        %3630 = vdwg.mxu0
        %v3631 = vadd.f32 %v3352, %v3584
        %v3632 = vadd.f32 %v3353, %v3586
        %v3633 = vadd.f32 %v3354, %v3625
        %v3634 = vadd.f32 %v3355, %v3627
        %v3635 = vxor.u32 %v3631, 2147483648
        %v3636 = vmul.f32 %v3635, 1.442695
        %v3637 = vpow.pop %v3636
        %v3638 = vadd.f32 %v3637, 1.0
        %v3639 = vrcp.pop %v3638
        %v3640 = vmul.f32 1.0, %v3639
        %v3641 = vxor.u32 %v3632, 2147483648
        %v3642 = vmul.f32 %v3641, 1.442695
        %v3643 = vpow.pop %v3642
        %v3644 = vadd.f32 %v3643, 1.0
        %v3645 = vrcp.pop %v3644
        %v3646 = vmul.f32 1.0, %v3645
        %v3647 = vtanh.pop %v3633
        %v3648 = vxor.u32 %v3634, 2147483648
        %v3649 = vmul.f32 %v3648, 1.442695
        %v3650 = vpow.pop %v3649
        %v3651 = vadd.f32 %v3650, 1.0
        %v3652 = vrcp.pop %v3651
        %v3653 = vmul.f32 1.0, %v3652
        %v3654 = vmul.f32 %v3646, %v3348
        %v3655 = vmul.f32 %v3640, %v3647
        %v3656 = vadd.f32 %v3654, %v3655
        %v3657 = vtanh.pop %v3656
        %v3658 = vmul.f32 %v3653, %v3657
        %3659 = vst [vmem:[#allocation3] sm:$0xff] %v3656
        %3660 = vst [vmem:[#allocation2] sm:$0xff] %v3658
        %v3661 = vpack.c.bf16 %v3658, %v3658
        %s3662 = scalar_lea.vmem %s353, 36 [#allocation7]
        %3663 = vst [vmem:[%s3662] sm:$0xf] %v3661
        %v3664 = vld [vmem:[#allocation2] sm:$0xff]
        %v3665 = vld [vmem:[#allocation3] sm:$0xff]
        %s3666 = scalar_lea.vmem %s326, 160 [#allocation6]
        %v3667 = vld [vmem:[%s3666] sm:$0xff]
        %v3668 = vld [vmem:[%s3666 + $0x8] sm:$0xff]
        %v3669 = vunpack.c.l.bf16 %v3667
        %v3670 = vunpack.c.h.bf16 %v3667
        %v3671 = vunpack.c.l.bf16 %v3668
        %v3672 = vunpack.c.h.bf16 %v3668
        %v3673 = vpack.c.bf16 %v3664, %v3664
        %v3674 = vld [vmem:[#allocation4] sm:$0xff]
        %v3675 = vld [vmem:[#allocation4 + $0x8] sm:$0xff]
        %v3676 = vld [vmem:[#allocation4 + $0x10] sm:$0xff]
        %v3677 = vld [vmem:[#allocation4 + $0x18] sm:$0xff]
        %v3678 = vld [vmem:[#allocation4 + $0x20] sm:$0xff]
        %v3679 = vld [vmem:[#allocation4 + $0x28] sm:$0xff]
        %v3680 = vld [vmem:[#allocation4 + $0x30] sm:$0xff]
        %v3681 = vld [vmem:[#allocation4 + $0x38] sm:$0xff]
        %v3682 = vld [vmem:[#allocation4 + $0x40] sm:$0xff]
        %v3683 = vld [vmem:[#allocation4 + $0x48] sm:$0xff]
        %v3684 = vld [vmem:[#allocation4 + $0x50] sm:$0xff]
        %v3685 = vld [vmem:[#allocation4 + $0x58] sm:$0xff]
        %v3686 = vld [vmem:[#allocation4 + $0x60] sm:$0xff]
        %v3687 = vld [vmem:[#allocation4 + $0x68] sm:$0xff]
        %v3688 = vld [vmem:[#allocation4 + $0x70] sm:$0xff]
        %v3689 = vld [vmem:[#allocation4 + $0x78] sm:$0xff]
        %v3690 = vld [vmem:[#allocation4 + $0x80] sm:$0xff]
        %v3691 = vld [vmem:[#allocation4 + $0x88] sm:$0xff]
        %v3692 = vld [vmem:[#allocation4 + $0x90] sm:$0xff]
        %v3693 = vld [vmem:[#allocation4 + $0x98] sm:$0xff]
        %v3694 = vld [vmem:[#allocation4 + $0xa0] sm:$0xff]
        %v3695 = vld [vmem:[#allocation4 + $0xa8] sm:$0xff]
        %v3696 = vld [vmem:[#allocation4 + $0xb0] sm:$0xff]
        %v3697 = vld [vmem:[#allocation4 + $0xb8] sm:$0xff]
        %v3698 = vld [vmem:[#allocation4 + $0xc0] sm:$0xff]
        %v3699 = vld [vmem:[#allocation4 + $0xc8] sm:$0xff]
        %v3700 = vld [vmem:[#allocation4 + $0xd0] sm:$0xff]
        %v3701 = vld [vmem:[#allocation4 + $0xd8] sm:$0xff]
        %v3702 = vld [vmem:[#allocation4 + $0xe0] sm:$0xff]
        %v3703 = vld [vmem:[#allocation4 + $0xe8] sm:$0xff]
        %v3704 = vld [vmem:[#allocation4 + $0xf0] sm:$0xff]
        %v3705 = vld [vmem:[#allocation4 + $0xf8] sm:$0xff]
        %v3738 = vunpack.c.l.b16 %v3674
        %v3739 = vunpack.c.h.b16 %v3674
        %v3740 = vunpack.c.l.b16 %v3675
        %v3741 = vunpack.c.h.b16 %v3675
        %v3742 = vunpack.c.l.b16 %v3676
        %v3743 = vunpack.c.h.b16 %v3676
        %v3744 = vunpack.c.l.b16 %v3677
        %v3745 = vunpack.c.h.b16 %v3677
        %v3746 = vunpack.c.l.b16 %v3678
        %v3747 = vunpack.c.h.b16 %v3678
        %v3748 = vunpack.c.l.b16 %v3679
        %v3749 = vunpack.c.h.b16 %v3679
        %v3750 = vunpack.c.l.b16 %v3680
        %v3751 = vunpack.c.h.b16 %v3680
        %v3752 = vunpack.c.l.b16 %v3681
        %v3753 = vunpack.c.h.b16 %v3681
        %v3754 = vunpack.c.l.b16 %v3682
        %v3755 = vunpack.c.h.b16 %v3682
        %v3756 = vunpack.c.l.b16 %v3683
        %v3757 = vunpack.c.h.b16 %v3683
        %v3758 = vunpack.c.l.b16 %v3684
        %v3759 = vunpack.c.h.b16 %v3684
        %v3760 = vunpack.c.l.b16 %v3685
        %v3761 = vunpack.c.h.b16 %v3685
        %v3762 = vunpack.c.l.b16 %v3686
        %v3763 = vunpack.c.h.b16 %v3686
        %v3764 = vunpack.c.l.b16 %v3687
        %v3765 = vunpack.c.h.b16 %v3687
        %v3766 = vunpack.c.l.b16 %v3688
        %v3767 = vunpack.c.h.b16 %v3688
        %v3768 = vunpack.c.l.b16 %v3689
        %v3769 = vunpack.c.h.b16 %v3689
        %v3770 = vunpack.c.l.b16 %v3690
        %v3771 = vunpack.c.h.b16 %v3690
        %v3772 = vunpack.c.l.b16 %v3691
        %v3773 = vunpack.c.h.b16 %v3691
        %v3774 = vunpack.c.l.b16 %v3692
        %v3775 = vunpack.c.h.b16 %v3692
        %v3776 = vunpack.c.l.b16 %v3693
        %v3777 = vunpack.c.h.b16 %v3693
        %v3778 = vunpack.c.l.b16 %v3694
        %v3779 = vunpack.c.h.b16 %v3694
        %v3780 = vunpack.c.l.b16 %v3695
        %v3781 = vunpack.c.h.b16 %v3695
        %v3782 = vunpack.c.l.b16 %v3696
        %v3783 = vunpack.c.h.b16 %v3696
        %v3784 = vunpack.c.l.b16 %v3697
        %v3785 = vunpack.c.h.b16 %v3697
        %v3786 = vunpack.c.l.b16 %v3698
        %v3787 = vunpack.c.h.b16 %v3698
        %v3788 = vunpack.c.l.b16 %v3699
        %v3789 = vunpack.c.h.b16 %v3699
        %v3790 = vunpack.c.l.b16 %v3700
        %v3791 = vunpack.c.h.b16 %v3700
        %v3792 = vunpack.c.l.b16 %v3701
        %v3793 = vunpack.c.h.b16 %v3701
        %v3794 = vunpack.c.l.b16 %v3702
        %v3795 = vunpack.c.h.b16 %v3702
        %v3796 = vunpack.c.l.b16 %v3703
        %v3797 = vunpack.c.h.b16 %v3703
        %v3798 = vunpack.c.l.b16 %v3704
        %v3799 = vunpack.c.h.b16 %v3704
        %v3800 = vunpack.c.l.b16 %v3705
        %v3801 = vunpack.c.h.b16 %v3705
        %v3802 = vpack.c.b16 %v3742, %v3738
        %v3803 = vpack.c.b16 %v3743, %v3739
        %v3804 = vpack.c.b16 %v3744, %v3740
        %v3805 = vpack.c.b16 %v3745, %v3741
        %v3806 = vpack.c.b16 %v3750, %v3746
        %v3807 = vpack.c.b16 %v3751, %v3747
        %v3808 = vpack.c.b16 %v3752, %v3748
        %v3809 = vpack.c.b16 %v3753, %v3749
        %v3810 = vpack.c.b16 %v3758, %v3754
        %v3811 = vpack.c.b16 %v3759, %v3755
        %v3812 = vpack.c.b16 %v3760, %v3756
        %v3813 = vpack.c.b16 %v3761, %v3757
        %v3814 = vpack.c.b16 %v3766, %v3762
        %v3815 = vpack.c.b16 %v3767, %v3763
        %v3816 = vpack.c.b16 %v3768, %v3764
        %v3817 = vpack.c.b16 %v3769, %v3765
        %v3818 = vpack.c.b16 %v3774, %v3770
        %v3819 = vpack.c.b16 %v3775, %v3771
        %v3820 = vpack.c.b16 %v3776, %v3772
        %v3821 = vpack.c.b16 %v3777, %v3773
        %v3822 = vpack.c.b16 %v3782, %v3778
        %v3823 = vpack.c.b16 %v3783, %v3779
        %v3824 = vpack.c.b16 %v3784, %v3780
        %v3825 = vpack.c.b16 %v3785, %v3781
        %v3826 = vpack.c.b16 %v3790, %v3786
        %v3827 = vpack.c.b16 %v3791, %v3787
        %v3828 = vpack.c.b16 %v3792, %v3788
        %v3829 = vpack.c.b16 %v3793, %v3789
        %v3830 = vpack.c.b16 %v3798, %v3794
        %v3831 = vpack.c.b16 %v3799, %v3795
        %v3832 = vpack.c.b16 %v3800, %v3796
        %v3833 = vpack.c.b16 %v3801, %v3797
        %3866 = vmatprep.subr.bf16.mxu0 %v3831
        %3867 = vmatpush1.bf16.msra.mxu0 %v3830
        %3868 = vmatprep.subr.bf16.mxu0 %v3827
        %3869 = vmatpush1.bf16.msra.mxu0 %v3826
        %3870 = vmatprep.subr.bf16.mxu0 %v3823
        %3871 = vmatpush1.bf16.msra.mxu0 %v3822
        %3872 = vmatprep.subr.bf16.mxu0 %v3819
        %3873 = vmatpush1.bf16.msra.mxu0 %v3818
        %3874 = vmatprep.subr.bf16.mxu0 %v3815
        %3875 = vmatpush1.bf16.msra.mxu0 %v3814
        %3876 = vmatprep.subr.bf16.mxu0 %v3811
        %3877 = vmatpush1.bf16.msra.mxu0 %v3810
        %3878 = vmatprep.subr.bf16.mxu0 %v3807
        %3879 = vmatpush1.bf16.msra.mxu0 %v3806
        %3880 = vmatprep.subr.bf16.mxu0 %v3803
        %3881 = vmatpush1.bf16.msra.mxu0 %v3802
        %3882 = vmatprep.subr.bf16.mxu0 0
        %3883 = vmatpush2.bf16.msra.mxu0 0
        %3884 = vmatprep.subr.bf16.mxu0 0
        %3885 = vmatpush2.bf16.msra.mxu0 0
        %3886 = vmatprep.subr.bf16.mxu0 0
        %3887 = vmatpush2.bf16.msra.mxu0 0
        %3888 = vmatprep.subr.bf16.mxu0 0
        %3889 = vmatpush2.bf16.msra.mxu0 0
        %3890 = vmatprep.subr.bf16.mxu0 0
        %3891 = vmatpush2.bf16.msra.mxu0 0
        %3892 = vmatprep.subr.bf16.mxu0 0
        %3893 = vmatpush2.bf16.msra.mxu0 0
        %3894 = vmatprep.subr.bf16.mxu0 0
        %3895 = vmatpush2.bf16.msra.mxu0 0
        %3896 = vmatprep.subr.bf16.mxu0 0
        %3897 = vmatpush2.bf16.msra.mxu0 0
        %3898 = vmatprep.mubr.bf16.mxu0 0
        %3899 = vmatmul.mubr.bf16.gmra.mxu0 %v3673
        %v3900 = vpop.f32.mrf.mxu0
        %v3901 = vadd.f32 0.0, %v3900
        %v3902 = vpop.f32.mrf.mxu0
        %v3903 = vadd.f32 0.0, %v3902
        %v3904 = vpop.f32.mrf.mxu0
        %v3905 = vpop.f32.mrf.mxu0
        %3906 = vdwg.mxu0
        %3907 = vmatprep.subr.bf16.mxu0 %v3833
        %3908 = vmatpush1.bf16.msra.mxu0 %v3832
        %3909 = vmatprep.subr.bf16.mxu0 %v3829
        %3910 = vmatpush1.bf16.msra.mxu0 %v3828
        %3911 = vmatprep.subr.bf16.mxu0 %v3825
        %3912 = vmatpush1.bf16.msra.mxu0 %v3824
        %3913 = vmatprep.subr.bf16.mxu0 %v3821
        %3914 = vmatpush1.bf16.msra.mxu0 %v3820
        %3915 = vmatprep.subr.bf16.mxu0 %v3817
        %3916 = vmatpush1.bf16.msra.mxu0 %v3816
        %3917 = vmatprep.subr.bf16.mxu0 %v3813
        %3918 = vmatpush1.bf16.msra.mxu0 %v3812
        %3919 = vmatprep.subr.bf16.mxu0 %v3809
        %3920 = vmatpush1.bf16.msra.mxu0 %v3808
        %3921 = vmatprep.subr.bf16.mxu0 %v3805
        %3922 = vmatpush1.bf16.msra.mxu0 %v3804
        %3923 = vmatprep.subr.bf16.mxu0 0
        %3924 = vmatpush2.bf16.msra.mxu0 0
        %3925 = vmatprep.subr.bf16.mxu0 0
        %3926 = vmatpush2.bf16.msra.mxu0 0
        %3927 = vmatprep.subr.bf16.mxu0 0
        %3928 = vmatpush2.bf16.msra.mxu0 0
        %3929 = vmatprep.subr.bf16.mxu0 0
        %3930 = vmatpush2.bf16.msra.mxu0 0
        %3931 = vmatprep.subr.bf16.mxu0 0
        %3932 = vmatpush2.bf16.msra.mxu0 0
        %3933 = vmatprep.subr.bf16.mxu0 0
        %3934 = vmatpush2.bf16.msra.mxu0 0
        %3935 = vmatprep.subr.bf16.mxu0 0
        %3936 = vmatpush2.bf16.msra.mxu0 0
        %3937 = vmatprep.subr.bf16.mxu0 0
        %3938 = vmatpush2.bf16.msra.mxu0 0
        %3939 = vmatprep.mubr.bf16.mxu0 0
        %3940 = vmatmul.mubr.bf16.gmra.mxu0 %v3673
        %v3941 = vpop.f32.mrf.mxu0
        %v3942 = vadd.f32 0.0, %v3941
        %v3943 = vpop.f32.mrf.mxu0
        %v3944 = vadd.f32 0.0, %v3943
        %v3945 = vpop.f32.mrf.mxu0
        %v3946 = vpop.f32.mrf.mxu0
        %3947 = vdwg.mxu0
        %v3948 = vadd.f32 %v3669, %v3901
        %v3949 = vadd.f32 %v3670, %v3903
        %v3950 = vadd.f32 %v3671, %v3942
        %v3951 = vadd.f32 %v3672, %v3944
        %v3952 = vxor.u32 %v3948, 2147483648
        %v3953 = vmul.f32 %v3952, 1.442695
        %v3954 = vpow.pop %v3953
        %v3955 = vadd.f32 %v3954, 1.0
        %v3956 = vrcp.pop %v3955
        %v3957 = vmul.f32 1.0, %v3956
        %v3958 = vxor.u32 %v3949, 2147483648
        %v3959 = vmul.f32 %v3958, 1.442695
        %v3960 = vpow.pop %v3959
        %v3961 = vadd.f32 %v3960, 1.0
        %v3962 = vrcp.pop %v3961
        %v3963 = vmul.f32 1.0, %v3962
        %v3964 = vtanh.pop %v3950
        %v3965 = vxor.u32 %v3951, 2147483648
        %v3966 = vmul.f32 %v3965, 1.442695
        %v3967 = vpow.pop %v3966
        %v3968 = vadd.f32 %v3967, 1.0
        %v3969 = vrcp.pop %v3968
        %v3970 = vmul.f32 1.0, %v3969
        %v3971 = vmul.f32 %v3963, %v3665
        %v3972 = vmul.f32 %v3957, %v3964
        %v3973 = vadd.f32 %v3971, %v3972
        %v3974 = vtanh.pop %v3973
        %v3975 = vmul.f32 %v3970, %v3974
        %3976 = vst [vmem:[#allocation3] sm:$0xff] %v3973
        %3977 = vst [vmem:[#allocation2] sm:$0xff] %v3975
        %v3978 = vpack.c.bf16 %v3975, %v3975
        %s3979 = scalar_lea.vmem %s353, 40 [#allocation7]
        %3980 = vst [vmem:[%s3979] sm:$0xf] %v3978
        %v3981 = vld [vmem:[#allocation2] sm:$0xff]
        %v3982 = vld [vmem:[#allocation3] sm:$0xff]
        %s3983 = scalar_lea.vmem %s326, 176 [#allocation6]
        %v3984 = vld [vmem:[%s3983] sm:$0xff]
        %v3985 = vld [vmem:[%s3983 + $0x8] sm:$0xff]
        %v3986 = vunpack.c.l.bf16 %v3984
        %v3987 = vunpack.c.h.bf16 %v3984
        %v3988 = vunpack.c.l.bf16 %v3985
        %v3989 = vunpack.c.h.bf16 %v3985
        %v3990 = vpack.c.bf16 %v3981, %v3981
        %v3991 = vld [vmem:[#allocation4] sm:$0xff]
        %v3992 = vld [vmem:[#allocation4 + $0x8] sm:$0xff]
        %v3993 = vld [vmem:[#allocation4 + $0x10] sm:$0xff]
        %v3994 = vld [vmem:[#allocation4 + $0x18] sm:$0xff]
        %v3995 = vld [vmem:[#allocation4 + $0x20] sm:$0xff]
        %v3996 = vld [vmem:[#allocation4 + $0x28] sm:$0xff]
        %v3997 = vld [vmem:[#allocation4 + $0x30] sm:$0xff]
        %v3998 = vld [vmem:[#allocation4 + $0x38] sm:$0xff]
        %v3999 = vld [vmem:[#allocation4 + $0x40] sm:$0xff]
        %v4000 = vld [vmem:[#allocation4 + $0x48] sm:$0xff]
        %v4001 = vld [vmem:[#allocation4 + $0x50] sm:$0xff]
        %v4002 = vld [vmem:[#allocation4 + $0x58] sm:$0xff]
        %v4003 = vld [vmem:[#allocation4 + $0x60] sm:$0xff]
        %v4004 = vld [vmem:[#allocation4 + $0x68] sm:$0xff]
        %v4005 = vld [vmem:[#allocation4 + $0x70] sm:$0xff]
        %v4006 = vld [vmem:[#allocation4 + $0x78] sm:$0xff]
        %v4007 = vld [vmem:[#allocation4 + $0x80] sm:$0xff]
        %v4008 = vld [vmem:[#allocation4 + $0x88] sm:$0xff]
        %v4009 = vld [vmem:[#allocation4 + $0x90] sm:$0xff]
        %v4010 = vld [vmem:[#allocation4 + $0x98] sm:$0xff]
        %v4011 = vld [vmem:[#allocation4 + $0xa0] sm:$0xff]
        %v4012 = vld [vmem:[#allocation4 + $0xa8] sm:$0xff]
        %v4013 = vld [vmem:[#allocation4 + $0xb0] sm:$0xff]
        %v4014 = vld [vmem:[#allocation4 + $0xb8] sm:$0xff]
        %v4015 = vld [vmem:[#allocation4 + $0xc0] sm:$0xff]
        %v4016 = vld [vmem:[#allocation4 + $0xc8] sm:$0xff]
        %v4017 = vld [vmem:[#allocation4 + $0xd0] sm:$0xff]
        %v4018 = vld [vmem:[#allocation4 + $0xd8] sm:$0xff]
        %v4019 = vld [vmem:[#allocation4 + $0xe0] sm:$0xff]
        %v4020 = vld [vmem:[#allocation4 + $0xe8] sm:$0xff]
        %v4021 = vld [vmem:[#allocation4 + $0xf0] sm:$0xff]
        %v4022 = vld [vmem:[#allocation4 + $0xf8] sm:$0xff]
        %v4055 = vunpack.c.l.b16 %v3991
        %v4056 = vunpack.c.h.b16 %v3991
        %v4057 = vunpack.c.l.b16 %v3992
        %v4058 = vunpack.c.h.b16 %v3992
        %v4059 = vunpack.c.l.b16 %v3993
        %v4060 = vunpack.c.h.b16 %v3993
        %v4061 = vunpack.c.l.b16 %v3994
        %v4062 = vunpack.c.h.b16 %v3994
        %v4063 = vunpack.c.l.b16 %v3995
        %v4064 = vunpack.c.h.b16 %v3995
        %v4065 = vunpack.c.l.b16 %v3996
        %v4066 = vunpack.c.h.b16 %v3996
        %v4067 = vunpack.c.l.b16 %v3997
        %v4068 = vunpack.c.h.b16 %v3997
        %v4069 = vunpack.c.l.b16 %v3998
        %v4070 = vunpack.c.h.b16 %v3998
        %v4071 = vunpack.c.l.b16 %v3999
        %v4072 = vunpack.c.h.b16 %v3999
        %v4073 = vunpack.c.l.b16 %v4000
        %v4074 = vunpack.c.h.b16 %v4000
        %v4075 = vunpack.c.l.b16 %v4001
        %v4076 = vunpack.c.h.b16 %v4001
        %v4077 = vunpack.c.l.b16 %v4002
        %v4078 = vunpack.c.h.b16 %v4002
        %v4079 = vunpack.c.l.b16 %v4003
        %v4080 = vunpack.c.h.b16 %v4003
        %v4081 = vunpack.c.l.b16 %v4004
        %v4082 = vunpack.c.h.b16 %v4004
        %v4083 = vunpack.c.l.b16 %v4005
        %v4084 = vunpack.c.h.b16 %v4005
        %v4085 = vunpack.c.l.b16 %v4006
        %v4086 = vunpack.c.h.b16 %v4006
        %v4087 = vunpack.c.l.b16 %v4007
        %v4088 = vunpack.c.h.b16 %v4007
        %v4089 = vunpack.c.l.b16 %v4008
        %v4090 = vunpack.c.h.b16 %v4008
        %v4091 = vunpack.c.l.b16 %v4009
        %v4092 = vunpack.c.h.b16 %v4009
        %v4093 = vunpack.c.l.b16 %v4010
        %v4094 = vunpack.c.h.b16 %v4010
        %v4095 = vunpack.c.l.b16 %v4011
        %v4096 = vunpack.c.h.b16 %v4011
        %v4097 = vunpack.c.l.b16 %v4012
        %v4098 = vunpack.c.h.b16 %v4012
        %v4099 = vunpack.c.l.b16 %v4013
        %v4100 = vunpack.c.h.b16 %v4013
        %v4101 = vunpack.c.l.b16 %v4014
        %v4102 = vunpack.c.h.b16 %v4014
        %v4103 = vunpack.c.l.b16 %v4015
        %v4104 = vunpack.c.h.b16 %v4015
        %v4105 = vunpack.c.l.b16 %v4016
        %v4106 = vunpack.c.h.b16 %v4016
        %v4107 = vunpack.c.l.b16 %v4017
        %v4108 = vunpack.c.h.b16 %v4017
        %v4109 = vunpack.c.l.b16 %v4018
        %v4110 = vunpack.c.h.b16 %v4018
        %v4111 = vunpack.c.l.b16 %v4019
        %v4112 = vunpack.c.h.b16 %v4019
        %v4113 = vunpack.c.l.b16 %v4020
        %v4114 = vunpack.c.h.b16 %v4020
        %v4115 = vunpack.c.l.b16 %v4021
        %v4116 = vunpack.c.h.b16 %v4021
        %v4117 = vunpack.c.l.b16 %v4022
        %v4118 = vunpack.c.h.b16 %v4022
        %v4119 = vpack.c.b16 %v4059, %v4055
        %v4120 = vpack.c.b16 %v4060, %v4056
        %v4121 = vpack.c.b16 %v4061, %v4057
        %v4122 = vpack.c.b16 %v4062, %v4058
        %v4123 = vpack.c.b16 %v4067, %v4063
        %v4124 = vpack.c.b16 %v4068, %v4064
        %v4125 = vpack.c.b16 %v4069, %v4065
        %v4126 = vpack.c.b16 %v4070, %v4066
        %v4127 = vpack.c.b16 %v4075, %v4071
        %v4128 = vpack.c.b16 %v4076, %v4072
        %v4129 = vpack.c.b16 %v4077, %v4073
        %v4130 = vpack.c.b16 %v4078, %v4074
        %v4131 = vpack.c.b16 %v4083, %v4079
        %v4132 = vpack.c.b16 %v4084, %v4080
        %v4133 = vpack.c.b16 %v4085, %v4081
        %v4134 = vpack.c.b16 %v4086, %v4082
        %v4135 = vpack.c.b16 %v4091, %v4087
        %v4136 = vpack.c.b16 %v4092, %v4088
        %v4137 = vpack.c.b16 %v4093, %v4089
        %v4138 = vpack.c.b16 %v4094, %v4090
        %v4139 = vpack.c.b16 %v4099, %v4095
        %v4140 = vpack.c.b16 %v4100, %v4096
        %v4141 = vpack.c.b16 %v4101, %v4097
        %v4142 = vpack.c.b16 %v4102, %v4098
        %v4143 = vpack.c.b16 %v4107, %v4103
        %v4144 = vpack.c.b16 %v4108, %v4104
        %v4145 = vpack.c.b16 %v4109, %v4105
        %v4146 = vpack.c.b16 %v4110, %v4106
        %v4147 = vpack.c.b16 %v4115, %v4111
        %v4148 = vpack.c.b16 %v4116, %v4112
        %v4149 = vpack.c.b16 %v4117, %v4113
        %v4150 = vpack.c.b16 %v4118, %v4114
        %4183 = vmatprep.subr.bf16.mxu0 %v4148
        %4184 = vmatpush1.bf16.msra.mxu0 %v4147
        %4185 = vmatprep.subr.bf16.mxu0 %v4144
        %4186 = vmatpush1.bf16.msra.mxu0 %v4143
        %4187 = vmatprep.subr.bf16.mxu0 %v4140
        %4188 = vmatpush1.bf16.msra.mxu0 %v4139
        %4189 = vmatprep.subr.bf16.mxu0 %v4136
        %4190 = vmatpush1.bf16.msra.mxu0 %v4135
        %4191 = vmatprep.subr.bf16.mxu0 %v4132
        %4192 = vmatpush1.bf16.msra.mxu0 %v4131
        %4193 = vmatprep.subr.bf16.mxu0 %v4128
        %4194 = vmatpush1.bf16.msra.mxu0 %v4127
        %4195 = vmatprep.subr.bf16.mxu0 %v4124
        %4196 = vmatpush1.bf16.msra.mxu0 %v4123
        %4197 = vmatprep.subr.bf16.mxu0 %v4120
        %4198 = vmatpush1.bf16.msra.mxu0 %v4119
        %4199 = vmatprep.subr.bf16.mxu0 0
        %4200 = vmatpush2.bf16.msra.mxu0 0
        %4201 = vmatprep.subr.bf16.mxu0 0
        %4202 = vmatpush2.bf16.msra.mxu0 0
        %4203 = vmatprep.subr.bf16.mxu0 0
        %4204 = vmatpush2.bf16.msra.mxu0 0
        %4205 = vmatprep.subr.bf16.mxu0 0
        %4206 = vmatpush2.bf16.msra.mxu0 0
        %4207 = vmatprep.subr.bf16.mxu0 0
        %4208 = vmatpush2.bf16.msra.mxu0 0
        %4209 = vmatprep.subr.bf16.mxu0 0
        %4210 = vmatpush2.bf16.msra.mxu0 0
        %4211 = vmatprep.subr.bf16.mxu0 0
        %4212 = vmatpush2.bf16.msra.mxu0 0
        %4213 = vmatprep.subr.bf16.mxu0 0
        %4214 = vmatpush2.bf16.msra.mxu0 0
        %4215 = vmatprep.mubr.bf16.mxu0 0
        %4216 = vmatmul.mubr.bf16.gmra.mxu0 %v3990
        %v4217 = vpop.f32.mrf.mxu0
        %v4218 = vadd.f32 0.0, %v4217
        %v4219 = vpop.f32.mrf.mxu0
        %v4220 = vadd.f32 0.0, %v4219
        %v4221 = vpop.f32.mrf.mxu0
        %v4222 = vpop.f32.mrf.mxu0
        %4223 = vdwg.mxu0
        %4224 = vmatprep.subr.bf16.mxu0 %v4150
        %4225 = vmatpush1.bf16.msra.mxu0 %v4149
        %4226 = vmatprep.subr.bf16.mxu0 %v4146
        %4227 = vmatpush1.bf16.msra.mxu0 %v4145
        %4228 = vmatprep.subr.bf16.mxu0 %v4142
        %4229 = vmatpush1.bf16.msra.mxu0 %v4141
        %4230 = vmatprep.subr.bf16.mxu0 %v4138
        %4231 = vmatpush1.bf16.msra.mxu0 %v4137
        %4232 = vmatprep.subr.bf16.mxu0 %v4134
        %4233 = vmatpush1.bf16.msra.mxu0 %v4133
        %4234 = vmatprep.subr.bf16.mxu0 %v4130
        %4235 = vmatpush1.bf16.msra.mxu0 %v4129
        %4236 = vmatprep.subr.bf16.mxu0 %v4126
        %4237 = vmatpush1.bf16.msra.mxu0 %v4125
        %4238 = vmatprep.subr.bf16.mxu0 %v4122
        %4239 = vmatpush1.bf16.msra.mxu0 %v4121
        %4240 = vmatprep.subr.bf16.mxu0 0
        %4241 = vmatpush2.bf16.msra.mxu0 0
        %4242 = vmatprep.subr.bf16.mxu0 0
        %4243 = vmatpush2.bf16.msra.mxu0 0
        %4244 = vmatprep.subr.bf16.mxu0 0
        %4245 = vmatpush2.bf16.msra.mxu0 0
        %4246 = vmatprep.subr.bf16.mxu0 0
        %4247 = vmatpush2.bf16.msra.mxu0 0
        %4248 = vmatprep.subr.bf16.mxu0 0
        %4249 = vmatpush2.bf16.msra.mxu0 0
        %4250 = vmatprep.subr.bf16.mxu0 0
        %4251 = vmatpush2.bf16.msra.mxu0 0
        %4252 = vmatprep.subr.bf16.mxu0 0
        %4253 = vmatpush2.bf16.msra.mxu0 0
        %4254 = vmatprep.subr.bf16.mxu0 0
        %4255 = vmatpush2.bf16.msra.mxu0 0
        %4256 = vmatprep.mubr.bf16.mxu0 0
        %4257 = vmatmul.mubr.bf16.gmra.mxu0 %v3990
        %v4258 = vpop.f32.mrf.mxu0
        %v4259 = vadd.f32 0.0, %v4258
        %v4260 = vpop.f32.mrf.mxu0
        %v4261 = vadd.f32 0.0, %v4260
        %v4262 = vpop.f32.mrf.mxu0
        %v4263 = vpop.f32.mrf.mxu0
        %4264 = vdwg.mxu0
        %v4265 = vadd.f32 %v3986, %v4218
        %v4266 = vadd.f32 %v3987, %v4220
        %v4267 = vadd.f32 %v3988, %v4259
        %v4268 = vadd.f32 %v3989, %v4261
        %v4269 = vxor.u32 %v4265, 2147483648
        %v4270 = vmul.f32 %v4269, 1.442695
        %v4271 = vpow.pop %v4270
        %v4272 = vadd.f32 %v4271, 1.0
        %v4273 = vrcp.pop %v4272
        %v4274 = vmul.f32 1.0, %v4273
        %v4275 = vxor.u32 %v4266, 2147483648
        %v4276 = vmul.f32 %v4275, 1.442695
        %v4277 = vpow.pop %v4276
        %v4278 = vadd.f32 %v4277, 1.0
        %v4279 = vrcp.pop %v4278
        %v4280 = vmul.f32 1.0, %v4279
        %v4281 = vtanh.pop %v4267
        %v4282 = vxor.u32 %v4268, 2147483648
        %v4283 = vmul.f32 %v4282, 1.442695
        %v4284 = vpow.pop %v4283
        %v4285 = vadd.f32 %v4284, 1.0
        %v4286 = vrcp.pop %v4285
        %v4287 = vmul.f32 1.0, %v4286
        %v4288 = vmul.f32 %v4280, %v3982
        %v4289 = vmul.f32 %v4274, %v4281
        %v4290 = vadd.f32 %v4288, %v4289
        %v4291 = vtanh.pop %v4290
        %v4292 = vmul.f32 %v4287, %v4291
        %4293 = vst [vmem:[#allocation3] sm:$0xff] %v4290
        %4294 = vst [vmem:[#allocation2] sm:$0xff] %v4292
        %v4295 = vpack.c.bf16 %v4292, %v4292
        %s4296 = scalar_lea.vmem %s353, 44 [#allocation7]
        %4297 = vst [vmem:[%s4296] sm:$0xf] %v4295
        %v4298 = vld [vmem:[#allocation2] sm:$0xff]
        %v4299 = vld [vmem:[#allocation3] sm:$0xff]
        %s4300 = scalar_lea.vmem %s326, 192 [#allocation6]
        %v4301 = vld [vmem:[%s4300] sm:$0xff]
        %v4302 = vld [vmem:[%s4300 + $0x8] sm:$0xff]
        %v4303 = vunpack.c.l.bf16 %v4301
        %v4304 = vunpack.c.h.bf16 %v4301
        %v4305 = vunpack.c.l.bf16 %v4302
        %v4306 = vunpack.c.h.bf16 %v4302
        %v4307 = vpack.c.bf16 %v4298, %v4298
        %v4308 = vld [vmem:[#allocation4] sm:$0xff]
        %v4309 = vld [vmem:[#allocation4 + $0x8] sm:$0xff]
        %v4310 = vld [vmem:[#allocation4 + $0x10] sm:$0xff]
        %v4311 = vld [vmem:[#allocation4 + $0x18] sm:$0xff]
        %v4312 = vld [vmem:[#allocation4 + $0x20] sm:$0xff]
        %v4313 = vld [vmem:[#allocation4 + $0x28] sm:$0xff]
        %v4314 = vld [vmem:[#allocation4 + $0x30] sm:$0xff]
        %v4315 = vld [vmem:[#allocation4 + $0x38] sm:$0xff]
        %v4316 = vld [vmem:[#allocation4 + $0x40] sm:$0xff]
        %v4317 = vld [vmem:[#allocation4 + $0x48] sm:$0xff]
        %v4318 = vld [vmem:[#allocation4 + $0x50] sm:$0xff]
        %v4319 = vld [vmem:[#allocation4 + $0x58] sm:$0xff]
        %v4320 = vld [vmem:[#allocation4 + $0x60] sm:$0xff]
        %v4321 = vld [vmem:[#allocation4 + $0x68] sm:$0xff]
        %v4322 = vld [vmem:[#allocation4 + $0x70] sm:$0xff]
        %v4323 = vld [vmem:[#allocation4 + $0x78] sm:$0xff]
        %v4324 = vld [vmem:[#allocation4 + $0x80] sm:$0xff]
        %v4325 = vld [vmem:[#allocation4 + $0x88] sm:$0xff]
        %v4326 = vld [vmem:[#allocation4 + $0x90] sm:$0xff]
        %v4327 = vld [vmem:[#allocation4 + $0x98] sm:$0xff]
        %v4328 = vld [vmem:[#allocation4 + $0xa0] sm:$0xff]
        %v4329 = vld [vmem:[#allocation4 + $0xa8] sm:$0xff]
        %v4330 = vld [vmem:[#allocation4 + $0xb0] sm:$0xff]
        %v4331 = vld [vmem:[#allocation4 + $0xb8] sm:$0xff]
        %v4332 = vld [vmem:[#allocation4 + $0xc0] sm:$0xff]
        %v4333 = vld [vmem:[#allocation4 + $0xc8] sm:$0xff]
        %v4334 = vld [vmem:[#allocation4 + $0xd0] sm:$0xff]
        %v4335 = vld [vmem:[#allocation4 + $0xd8] sm:$0xff]
        %v4336 = vld [vmem:[#allocation4 + $0xe0] sm:$0xff]
        %v4337 = vld [vmem:[#allocation4 + $0xe8] sm:$0xff]
        %v4338 = vld [vmem:[#allocation4 + $0xf0] sm:$0xff]
        %v4339 = vld [vmem:[#allocation4 + $0xf8] sm:$0xff]
        %v4372 = vunpack.c.l.b16 %v4308
        %v4373 = vunpack.c.h.b16 %v4308
        %v4374 = vunpack.c.l.b16 %v4309
        %v4375 = vunpack.c.h.b16 %v4309
        %v4376 = vunpack.c.l.b16 %v4310
        %v4377 = vunpack.c.h.b16 %v4310
        %v4378 = vunpack.c.l.b16 %v4311
        %v4379 = vunpack.c.h.b16 %v4311
        %v4380 = vunpack.c.l.b16 %v4312
        %v4381 = vunpack.c.h.b16 %v4312
        %v4382 = vunpack.c.l.b16 %v4313
        %v4383 = vunpack.c.h.b16 %v4313
        %v4384 = vunpack.c.l.b16 %v4314
        %v4385 = vunpack.c.h.b16 %v4314
        %v4386 = vunpack.c.l.b16 %v4315
        %v4387 = vunpack.c.h.b16 %v4315
        %v4388 = vunpack.c.l.b16 %v4316
        %v4389 = vunpack.c.h.b16 %v4316
        %v4390 = vunpack.c.l.b16 %v4317
        %v4391 = vunpack.c.h.b16 %v4317
        %v4392 = vunpack.c.l.b16 %v4318
        %v4393 = vunpack.c.h.b16 %v4318
        %v4394 = vunpack.c.l.b16 %v4319
        %v4395 = vunpack.c.h.b16 %v4319
        %v4396 = vunpack.c.l.b16 %v4320
        %v4397 = vunpack.c.h.b16 %v4320
        %v4398 = vunpack.c.l.b16 %v4321
        %v4399 = vunpack.c.h.b16 %v4321
        %v4400 = vunpack.c.l.b16 %v4322
        %v4401 = vunpack.c.h.b16 %v4322
        %v4402 = vunpack.c.l.b16 %v4323
        %v4403 = vunpack.c.h.b16 %v4323
        %v4404 = vunpack.c.l.b16 %v4324
        %v4405 = vunpack.c.h.b16 %v4324
        %v4406 = vunpack.c.l.b16 %v4325
        %v4407 = vunpack.c.h.b16 %v4325
        %v4408 = vunpack.c.l.b16 %v4326
        %v4409 = vunpack.c.h.b16 %v4326
        %v4410 = vunpack.c.l.b16 %v4327
        %v4411 = vunpack.c.h.b16 %v4327
        %v4412 = vunpack.c.l.b16 %v4328
        %v4413 = vunpack.c.h.b16 %v4328
        %v4414 = vunpack.c.l.b16 %v4329
        %v4415 = vunpack.c.h.b16 %v4329
        %v4416 = vunpack.c.l.b16 %v4330
        %v4417 = vunpack.c.h.b16 %v4330
        %v4418 = vunpack.c.l.b16 %v4331
        %v4419 = vunpack.c.h.b16 %v4331
        %v4420 = vunpack.c.l.b16 %v4332
        %v4421 = vunpack.c.h.b16 %v4332
        %v4422 = vunpack.c.l.b16 %v4333
        %v4423 = vunpack.c.h.b16 %v4333
        %v4424 = vunpack.c.l.b16 %v4334
        %v4425 = vunpack.c.h.b16 %v4334
        %v4426 = vunpack.c.l.b16 %v4335
        %v4427 = vunpack.c.h.b16 %v4335
        %v4428 = vunpack.c.l.b16 %v4336
        %v4429 = vunpack.c.h.b16 %v4336
        %v4430 = vunpack.c.l.b16 %v4337
        %v4431 = vunpack.c.h.b16 %v4337
        %v4432 = vunpack.c.l.b16 %v4338
        %v4433 = vunpack.c.h.b16 %v4338
        %v4434 = vunpack.c.l.b16 %v4339
        %v4435 = vunpack.c.h.b16 %v4339
        %v4436 = vpack.c.b16 %v4376, %v4372
        %v4437 = vpack.c.b16 %v4377, %v4373
        %v4438 = vpack.c.b16 %v4378, %v4374
        %v4439 = vpack.c.b16 %v4379, %v4375
        %v4440 = vpack.c.b16 %v4384, %v4380
        %v4441 = vpack.c.b16 %v4385, %v4381
        %v4442 = vpack.c.b16 %v4386, %v4382
        %v4443 = vpack.c.b16 %v4387, %v4383
        %v4444 = vpack.c.b16 %v4392, %v4388
        %v4445 = vpack.c.b16 %v4393, %v4389
        %v4446 = vpack.c.b16 %v4394, %v4390
        %v4447 = vpack.c.b16 %v4395, %v4391
        %v4448 = vpack.c.b16 %v4400, %v4396
        %v4449 = vpack.c.b16 %v4401, %v4397
        %v4450 = vpack.c.b16 %v4402, %v4398
        %v4451 = vpack.c.b16 %v4403, %v4399
        %v4452 = vpack.c.b16 %v4408, %v4404
        %v4453 = vpack.c.b16 %v4409, %v4405
        %v4454 = vpack.c.b16 %v4410, %v4406
        %v4455 = vpack.c.b16 %v4411, %v4407
        %v4456 = vpack.c.b16 %v4416, %v4412
        %v4457 = vpack.c.b16 %v4417, %v4413
        %v4458 = vpack.c.b16 %v4418, %v4414
        %v4459 = vpack.c.b16 %v4419, %v4415
        %v4460 = vpack.c.b16 %v4424, %v4420
        %v4461 = vpack.c.b16 %v4425, %v4421
        %v4462 = vpack.c.b16 %v4426, %v4422
        %v4463 = vpack.c.b16 %v4427, %v4423
        %v4464 = vpack.c.b16 %v4432, %v4428
        %v4465 = vpack.c.b16 %v4433, %v4429
        %v4466 = vpack.c.b16 %v4434, %v4430
        %v4467 = vpack.c.b16 %v4435, %v4431
        %4500 = vmatprep.subr.bf16.mxu0 %v4465
        %4501 = vmatpush1.bf16.msra.mxu0 %v4464
        %4502 = vmatprep.subr.bf16.mxu0 %v4461
        %4503 = vmatpush1.bf16.msra.mxu0 %v4460
        %4504 = vmatprep.subr.bf16.mxu0 %v4457
        %4505 = vmatpush1.bf16.msra.mxu0 %v4456
        %4506 = vmatprep.subr.bf16.mxu0 %v4453
        %4507 = vmatpush1.bf16.msra.mxu0 %v4452
        %4508 = vmatprep.subr.bf16.mxu0 %v4449
        %4509 = vmatpush1.bf16.msra.mxu0 %v4448
        %4510 = vmatprep.subr.bf16.mxu0 %v4445
        %4511 = vmatpush1.bf16.msra.mxu0 %v4444
        %4512 = vmatprep.subr.bf16.mxu0 %v4441
        %4513 = vmatpush1.bf16.msra.mxu0 %v4440
        %4514 = vmatprep.subr.bf16.mxu0 %v4437
        %4515 = vmatpush1.bf16.msra.mxu0 %v4436
        %4516 = vmatprep.subr.bf16.mxu0 0
        %4517 = vmatpush2.bf16.msra.mxu0 0
        %4518 = vmatprep.subr.bf16.mxu0 0
        %4519 = vmatpush2.bf16.msra.mxu0 0
        %4520 = vmatprep.subr.bf16.mxu0 0
        %4521 = vmatpush2.bf16.msra.mxu0 0
        %4522 = vmatprep.subr.bf16.mxu0 0
        %4523 = vmatpush2.bf16.msra.mxu0 0
        %4524 = vmatprep.subr.bf16.mxu0 0
        %4525 = vmatpush2.bf16.msra.mxu0 0
        %4526 = vmatprep.subr.bf16.mxu0 0
        %4527 = vmatpush2.bf16.msra.mxu0 0
        %4528 = vmatprep.subr.bf16.mxu0 0
        %4529 = vmatpush2.bf16.msra.mxu0 0
        %4530 = vmatprep.subr.bf16.mxu0 0
        %4531 = vmatpush2.bf16.msra.mxu0 0
        %4532 = vmatprep.mubr.bf16.mxu0 0
        %4533 = vmatmul.mubr.bf16.gmra.mxu0 %v4307
        %v4534 = vpop.f32.mrf.mxu0
        %v4535 = vadd.f32 0.0, %v4534
        %v4536 = vpop.f32.mrf.mxu0
        %v4537 = vadd.f32 0.0, %v4536
        %v4538 = vpop.f32.mrf.mxu0
        %v4539 = vpop.f32.mrf.mxu0
        %4540 = vdwg.mxu0
        %4541 = vmatprep.subr.bf16.mxu0 %v4467
        %4542 = vmatpush1.bf16.msra.mxu0 %v4466
        %4543 = vmatprep.subr.bf16.mxu0 %v4463
        %4544 = vmatpush1.bf16.msra.mxu0 %v4462
        %4545 = vmatprep.subr.bf16.mxu0 %v4459
        %4546 = vmatpush1.bf16.msra.mxu0 %v4458
        %4547 = vmatprep.subr.bf16.mxu0 %v4455
        %4548 = vmatpush1.bf16.msra.mxu0 %v4454
        %4549 = vmatprep.subr.bf16.mxu0 %v4451
        %4550 = vmatpush1.bf16.msra.mxu0 %v4450
        %4551 = vmatprep.subr.bf16.mxu0 %v4447
        %4552 = vmatpush1.bf16.msra.mxu0 %v4446
        %4553 = vmatprep.subr.bf16.mxu0 %v4443
        %4554 = vmatpush1.bf16.msra.mxu0 %v4442
        %4555 = vmatprep.subr.bf16.mxu0 %v4439
        %4556 = vmatpush1.bf16.msra.mxu0 %v4438
        %4557 = vmatprep.subr.bf16.mxu0 0
        %4558 = vmatpush2.bf16.msra.mxu0 0
        %4559 = vmatprep.subr.bf16.mxu0 0
        %4560 = vmatpush2.bf16.msra.mxu0 0
        %4561 = vmatprep.subr.bf16.mxu0 0
        %4562 = vmatpush2.bf16.msra.mxu0 0
        %4563 = vmatprep.subr.bf16.mxu0 0
        %4564 = vmatpush2.bf16.msra.mxu0 0
        %4565 = vmatprep.subr.bf16.mxu0 0
        %4566 = vmatpush2.bf16.msra.mxu0 0
        %4567 = vmatprep.subr.bf16.mxu0 0
        %4568 = vmatpush2.bf16.msra.mxu0 0
        %4569 = vmatprep.subr.bf16.mxu0 0
        %4570 = vmatpush2.bf16.msra.mxu0 0
        %4571 = vmatprep.subr.bf16.mxu0 0
        %4572 = vmatpush2.bf16.msra.mxu0 0
        %4573 = vmatprep.mubr.bf16.mxu0 0
        %4574 = vmatmul.mubr.bf16.gmra.mxu0 %v4307
        %v4575 = vpop.f32.mrf.mxu0
        %v4576 = vadd.f32 0.0, %v4575
        %v4577 = vpop.f32.mrf.mxu0
        %v4578 = vadd.f32 0.0, %v4577
        %v4579 = vpop.f32.mrf.mxu0
        %v4580 = vpop.f32.mrf.mxu0
        %4581 = vdwg.mxu0
        %v4582 = vadd.f32 %v4303, %v4535
        %v4583 = vadd.f32 %v4304, %v4537
        %v4584 = vadd.f32 %v4305, %v4576
        %v4585 = vadd.f32 %v4306, %v4578
        %v4586 = vxor.u32 %v4582, 2147483648
        %v4587 = vmul.f32 %v4586, 1.442695
        %v4588 = vpow.pop %v4587
        %v4589 = vadd.f32 %v4588, 1.0
        %v4590 = vrcp.pop %v4589
        %v4591 = vmul.f32 1.0, %v4590
        %v4592 = vxor.u32 %v4583, 2147483648
        %v4593 = vmul.f32 %v4592, 1.442695
        %v4594 = vpow.pop %v4593
        %v4595 = vadd.f32 %v4594, 1.0
        %v4596 = vrcp.pop %v4595
        %v4597 = vmul.f32 1.0, %v4596
        %v4598 = vtanh.pop %v4584
        %v4599 = vxor.u32 %v4585, 2147483648
        %v4600 = vmul.f32 %v4599, 1.442695
        %v4601 = vpow.pop %v4600
        %v4602 = vadd.f32 %v4601, 1.0
        %v4603 = vrcp.pop %v4602
        %v4604 = vmul.f32 1.0, %v4603
        %v4605 = vmul.f32 %v4597, %v4299
        %v4606 = vmul.f32 %v4591, %v4598
        %v4607 = vadd.f32 %v4605, %v4606
        %v4608 = vtanh.pop %v4607
        %v4609 = vmul.f32 %v4604, %v4608
        %4610 = vst [vmem:[#allocation3] sm:$0xff] %v4607
        %4611 = vst [vmem:[#allocation2] sm:$0xff] %v4609
        %v4612 = vpack.c.bf16 %v4609, %v4609
        %s4613 = scalar_lea.vmem %s353, 48 [#allocation7]
        %4614 = vst [vmem:[%s4613] sm:$0xf] %v4612
        %v4615 = vld [vmem:[#allocation2] sm:$0xff]
        %v4616 = vld [vmem:[#allocation3] sm:$0xff]
        %s4617 = scalar_lea.vmem %s326, 208 [#allocation6]
        %v4618 = vld [vmem:[%s4617] sm:$0xff]
        %v4619 = vld [vmem:[%s4617 + $0x8] sm:$0xff]
        %v4620 = vunpack.c.l.bf16 %v4618
        %v4621 = vunpack.c.h.bf16 %v4618
        %v4622 = vunpack.c.l.bf16 %v4619
        %v4623 = vunpack.c.h.bf16 %v4619
        %v4624 = vpack.c.bf16 %v4615, %v4615
        %v4625 = vld [vmem:[#allocation4] sm:$0xff]
        %v4626 = vld [vmem:[#allocation4 + $0x8] sm:$0xff]
        %v4627 = vld [vmem:[#allocation4 + $0x10] sm:$0xff]
        %v4628 = vld [vmem:[#allocation4 + $0x18] sm:$0xff]
        %v4629 = vld [vmem:[#allocation4 + $0x20] sm:$0xff]
        %v4630 = vld [vmem:[#allocation4 + $0x28] sm:$0xff]
        %v4631 = vld [vmem:[#allocation4 + $0x30] sm:$0xff]
        %v4632 = vld [vmem:[#allocation4 + $0x38] sm:$0xff]
        %v4633 = vld [vmem:[#allocation4 + $0x40] sm:$0xff]
        %v4634 = vld [vmem:[#allocation4 + $0x48] sm:$0xff]
        %v4635 = vld [vmem:[#allocation4 + $0x50] sm:$0xff]
        %v4636 = vld [vmem:[#allocation4 + $0x58] sm:$0xff]
        %v4637 = vld [vmem:[#allocation4 + $0x60] sm:$0xff]
        %v4638 = vld [vmem:[#allocation4 + $0x68] sm:$0xff]
        %v4639 = vld [vmem:[#allocation4 + $0x70] sm:$0xff]
        %v4640 = vld [vmem:[#allocation4 + $0x78] sm:$0xff]
        %v4641 = vld [vmem:[#allocation4 + $0x80] sm:$0xff]
        %v4642 = vld [vmem:[#allocation4 + $0x88] sm:$0xff]
        %v4643 = vld [vmem:[#allocation4 + $0x90] sm:$0xff]
        %v4644 = vld [vmem:[#allocation4 + $0x98] sm:$0xff]
        %v4645 = vld [vmem:[#allocation4 + $0xa0] sm:$0xff]
        %v4646 = vld [vmem:[#allocation4 + $0xa8] sm:$0xff]
        %v4647 = vld [vmem:[#allocation4 + $0xb0] sm:$0xff]
        %v4648 = vld [vmem:[#allocation4 + $0xb8] sm:$0xff]
        %v4649 = vld [vmem:[#allocation4 + $0xc0] sm:$0xff]
        %v4650 = vld [vmem:[#allocation4 + $0xc8] sm:$0xff]
        %v4651 = vld [vmem:[#allocation4 + $0xd0] sm:$0xff]
        %v4652 = vld [vmem:[#allocation4 + $0xd8] sm:$0xff]
        %v4653 = vld [vmem:[#allocation4 + $0xe0] sm:$0xff]
        %v4654 = vld [vmem:[#allocation4 + $0xe8] sm:$0xff]
        %v4655 = vld [vmem:[#allocation4 + $0xf0] sm:$0xff]
        %v4656 = vld [vmem:[#allocation4 + $0xf8] sm:$0xff]
        %v4689 = vunpack.c.l.b16 %v4625
        %v4690 = vunpack.c.h.b16 %v4625
        %v4691 = vunpack.c.l.b16 %v4626
        %v4692 = vunpack.c.h.b16 %v4626
        %v4693 = vunpack.c.l.b16 %v4627
        %v4694 = vunpack.c.h.b16 %v4627
        %v4695 = vunpack.c.l.b16 %v4628
        %v4696 = vunpack.c.h.b16 %v4628
        %v4697 = vunpack.c.l.b16 %v4629
        %v4698 = vunpack.c.h.b16 %v4629
        %v4699 = vunpack.c.l.b16 %v4630
        %v4700 = vunpack.c.h.b16 %v4630
        %v4701 = vunpack.c.l.b16 %v4631
        %v4702 = vunpack.c.h.b16 %v4631
        %v4703 = vunpack.c.l.b16 %v4632
        %v4704 = vunpack.c.h.b16 %v4632
        %v4705 = vunpack.c.l.b16 %v4633
        %v4706 = vunpack.c.h.b16 %v4633
        %v4707 = vunpack.c.l.b16 %v4634
        %v4708 = vunpack.c.h.b16 %v4634
        %v4709 = vunpack.c.l.b16 %v4635
        %v4710 = vunpack.c.h.b16 %v4635
        %v4711 = vunpack.c.l.b16 %v4636
        %v4712 = vunpack.c.h.b16 %v4636
        %v4713 = vunpack.c.l.b16 %v4637
        %v4714 = vunpack.c.h.b16 %v4637
        %v4715 = vunpack.c.l.b16 %v4638
        %v4716 = vunpack.c.h.b16 %v4638
        %v4717 = vunpack.c.l.b16 %v4639
        %v4718 = vunpack.c.h.b16 %v4639
        %v4719 = vunpack.c.l.b16 %v4640
        %v4720 = vunpack.c.h.b16 %v4640
        %v4721 = vunpack.c.l.b16 %v4641
        %v4722 = vunpack.c.h.b16 %v4641
        %v4723 = vunpack.c.l.b16 %v4642
        %v4724 = vunpack.c.h.b16 %v4642
        %v4725 = vunpack.c.l.b16 %v4643
        %v4726 = vunpack.c.h.b16 %v4643
        %v4727 = vunpack.c.l.b16 %v4644
        %v4728 = vunpack.c.h.b16 %v4644
        %v4729 = vunpack.c.l.b16 %v4645
        %v4730 = vunpack.c.h.b16 %v4645
        %v4731 = vunpack.c.l.b16 %v4646
        %v4732 = vunpack.c.h.b16 %v4646
        %v4733 = vunpack.c.l.b16 %v4647
        %v4734 = vunpack.c.h.b16 %v4647
        %v4735 = vunpack.c.l.b16 %v4648
        %v4736 = vunpack.c.h.b16 %v4648
        %v4737 = vunpack.c.l.b16 %v4649
        %v4738 = vunpack.c.h.b16 %v4649
        %v4739 = vunpack.c.l.b16 %v4650
        %v4740 = vunpack.c.h.b16 %v4650
        %v4741 = vunpack.c.l.b16 %v4651
        %v4742 = vunpack.c.h.b16 %v4651
        %v4743 = vunpack.c.l.b16 %v4652
        %v4744 = vunpack.c.h.b16 %v4652
        %v4745 = vunpack.c.l.b16 %v4653
        %v4746 = vunpack.c.h.b16 %v4653
        %v4747 = vunpack.c.l.b16 %v4654
        %v4748 = vunpack.c.h.b16 %v4654
        %v4749 = vunpack.c.l.b16 %v4655
        %v4750 = vunpack.c.h.b16 %v4655
        %v4751 = vunpack.c.l.b16 %v4656
        %v4752 = vunpack.c.h.b16 %v4656
        %v4753 = vpack.c.b16 %v4693, %v4689
        %v4754 = vpack.c.b16 %v4694, %v4690
        %v4755 = vpack.c.b16 %v4695, %v4691
        %v4756 = vpack.c.b16 %v4696, %v4692
        %v4757 = vpack.c.b16 %v4701, %v4697
        %v4758 = vpack.c.b16 %v4702, %v4698
        %v4759 = vpack.c.b16 %v4703, %v4699
        %v4760 = vpack.c.b16 %v4704, %v4700
        %v4761 = vpack.c.b16 %v4709, %v4705
        %v4762 = vpack.c.b16 %v4710, %v4706
        %v4763 = vpack.c.b16 %v4711, %v4707
        %v4764 = vpack.c.b16 %v4712, %v4708
        %v4765 = vpack.c.b16 %v4717, %v4713
        %v4766 = vpack.c.b16 %v4718, %v4714
        %v4767 = vpack.c.b16 %v4719, %v4715
        %v4768 = vpack.c.b16 %v4720, %v4716
        %v4769 = vpack.c.b16 %v4725, %v4721
        %v4770 = vpack.c.b16 %v4726, %v4722
        %v4771 = vpack.c.b16 %v4727, %v4723
        %v4772 = vpack.c.b16 %v4728, %v4724
        %v4773 = vpack.c.b16 %v4733, %v4729
        %v4774 = vpack.c.b16 %v4734, %v4730
        %v4775 = vpack.c.b16 %v4735, %v4731
        %v4776 = vpack.c.b16 %v4736, %v4732
        %v4777 = vpack.c.b16 %v4741, %v4737
        %v4778 = vpack.c.b16 %v4742, %v4738
        %v4779 = vpack.c.b16 %v4743, %v4739
        %v4780 = vpack.c.b16 %v4744, %v4740
        %v4781 = vpack.c.b16 %v4749, %v4745
        %v4782 = vpack.c.b16 %v4750, %v4746
        %v4783 = vpack.c.b16 %v4751, %v4747
        %v4784 = vpack.c.b16 %v4752, %v4748
        %4817 = vmatprep.subr.bf16.mxu0 %v4782
        %4818 = vmatpush1.bf16.msra.mxu0 %v4781
        %4819 = vmatprep.subr.bf16.mxu0 %v4778
        %4820 = vmatpush1.bf16.msra.mxu0 %v4777
        %4821 = vmatprep.subr.bf16.mxu0 %v4774
        %4822 = vmatpush1.bf16.msra.mxu0 %v4773
        %4823 = vmatprep.subr.bf16.mxu0 %v4770
        %4824 = vmatpush1.bf16.msra.mxu0 %v4769
        %4825 = vmatprep.subr.bf16.mxu0 %v4766
        %4826 = vmatpush1.bf16.msra.mxu0 %v4765
        %4827 = vmatprep.subr.bf16.mxu0 %v4762
        %4828 = vmatpush1.bf16.msra.mxu0 %v4761
        %4829 = vmatprep.subr.bf16.mxu0 %v4758
        %4830 = vmatpush1.bf16.msra.mxu0 %v4757
        %4831 = vmatprep.subr.bf16.mxu0 %v4754
        %4832 = vmatpush1.bf16.msra.mxu0 %v4753
        %4833 = vmatprep.subr.bf16.mxu0 0
        %4834 = vmatpush2.bf16.msra.mxu0 0
        %4835 = vmatprep.subr.bf16.mxu0 0
        %4836 = vmatpush2.bf16.msra.mxu0 0
        %4837 = vmatprep.subr.bf16.mxu0 0
        %4838 = vmatpush2.bf16.msra.mxu0 0
        %4839 = vmatprep.subr.bf16.mxu0 0
        %4840 = vmatpush2.bf16.msra.mxu0 0
        %4841 = vmatprep.subr.bf16.mxu0 0
        %4842 = vmatpush2.bf16.msra.mxu0 0
        %4843 = vmatprep.subr.bf16.mxu0 0
        %4844 = vmatpush2.bf16.msra.mxu0 0
        %4845 = vmatprep.subr.bf16.mxu0 0
        %4846 = vmatpush2.bf16.msra.mxu0 0
        %4847 = vmatprep.subr.bf16.mxu0 0
        %4848 = vmatpush2.bf16.msra.mxu0 0
        %4849 = vmatprep.mubr.bf16.mxu0 0
        %4850 = vmatmul.mubr.bf16.gmra.mxu0 %v4624
        %v4851 = vpop.f32.mrf.mxu0
        %v4852 = vadd.f32 0.0, %v4851
        %v4853 = vpop.f32.mrf.mxu0
        %v4854 = vadd.f32 0.0, %v4853
        %v4855 = vpop.f32.mrf.mxu0
        %v4856 = vpop.f32.mrf.mxu0
        %4857 = vdwg.mxu0
        %4858 = vmatprep.subr.bf16.mxu0 %v4784
        %4859 = vmatpush1.bf16.msra.mxu0 %v4783
        %4860 = vmatprep.subr.bf16.mxu0 %v4780
        %4861 = vmatpush1.bf16.msra.mxu0 %v4779
        %4862 = vmatprep.subr.bf16.mxu0 %v4776
        %4863 = vmatpush1.bf16.msra.mxu0 %v4775
        %4864 = vmatprep.subr.bf16.mxu0 %v4772
        %4865 = vmatpush1.bf16.msra.mxu0 %v4771
        %4866 = vmatprep.subr.bf16.mxu0 %v4768
        %4867 = vmatpush1.bf16.msra.mxu0 %v4767
        %4868 = vmatprep.subr.bf16.mxu0 %v4764
        %4869 = vmatpush1.bf16.msra.mxu0 %v4763
        %4870 = vmatprep.subr.bf16.mxu0 %v4760
        %4871 = vmatpush1.bf16.msra.mxu0 %v4759
        %4872 = vmatprep.subr.bf16.mxu0 %v4756
        %4873 = vmatpush1.bf16.msra.mxu0 %v4755
        %4874 = vmatprep.subr.bf16.mxu0 0
        %4875 = vmatpush2.bf16.msra.mxu0 0
        %4876 = vmatprep.subr.bf16.mxu0 0
        %4877 = vmatpush2.bf16.msra.mxu0 0
        %4878 = vmatprep.subr.bf16.mxu0 0
        %4879 = vmatpush2.bf16.msra.mxu0 0
        %4880 = vmatprep.subr.bf16.mxu0 0
        %4881 = vmatpush2.bf16.msra.mxu0 0
        %4882 = vmatprep.subr.bf16.mxu0 0
        %4883 = vmatpush2.bf16.msra.mxu0 0
        %4884 = vmatprep.subr.bf16.mxu0 0
        %4885 = vmatpush2.bf16.msra.mxu0 0
        %4886 = vmatprep.subr.bf16.mxu0 0
        %4887 = vmatpush2.bf16.msra.mxu0 0
        %4888 = vmatprep.subr.bf16.mxu0 0
        %4889 = vmatpush2.bf16.msra.mxu0 0
        %4890 = vmatprep.mubr.bf16.mxu0 0
        %4891 = vmatmul.mubr.bf16.gmra.mxu0 %v4624
        %v4892 = vpop.f32.mrf.mxu0
        %v4893 = vadd.f32 0.0, %v4892
        %v4894 = vpop.f32.mrf.mxu0
        %v4895 = vadd.f32 0.0, %v4894
        %v4896 = vpop.f32.mrf.mxu0
        %v4897 = vpop.f32.mrf.mxu0
        %4898 = vdwg.mxu0
        %v4899 = vadd.f32 %v4620, %v4852
        %v4900 = vadd.f32 %v4621, %v4854
        %v4901 = vadd.f32 %v4622, %v4893
        %v4902 = vadd.f32 %v4623, %v4895
        %v4903 = vxor.u32 %v4899, 2147483648
        %v4904 = vmul.f32 %v4903, 1.442695
        %v4905 = vpow.pop %v4904
        %v4906 = vadd.f32 %v4905, 1.0
        %v4907 = vrcp.pop %v4906
        %v4908 = vmul.f32 1.0, %v4907
        %v4909 = vxor.u32 %v4900, 2147483648
        %v4910 = vmul.f32 %v4909, 1.442695
        %v4911 = vpow.pop %v4910
        %v4912 = vadd.f32 %v4911, 1.0
        %v4913 = vrcp.pop %v4912
        %v4914 = vmul.f32 1.0, %v4913
        %v4915 = vtanh.pop %v4901
        %v4916 = vxor.u32 %v4902, 2147483648
        %v4917 = vmul.f32 %v4916, 1.442695
        %v4918 = vpow.pop %v4917
        %v4919 = vadd.f32 %v4918, 1.0
        %v4920 = vrcp.pop %v4919
        %v4921 = vmul.f32 1.0, %v4920
        %v4922 = vmul.f32 %v4914, %v4616
        %v4923 = vmul.f32 %v4908, %v4915
        %v4924 = vadd.f32 %v4922, %v4923
        %v4925 = vtanh.pop %v4924
        %v4926 = vmul.f32 %v4921, %v4925
        %4927 = vst [vmem:[#allocation3] sm:$0xff] %v4924
        %4928 = vst [vmem:[#allocation2] sm:$0xff] %v4926
        %v4929 = vpack.c.bf16 %v4926, %v4926
        %s4930 = scalar_lea.vmem %s353, 52 [#allocation7]
        %4931 = vst [vmem:[%s4930] sm:$0xf] %v4929
        %v4932 = vld [vmem:[#allocation2] sm:$0xff]
        %v4933 = vld [vmem:[#allocation3] sm:$0xff]
        %s4934 = scalar_lea.vmem %s326, 224 [#allocation6]
        %v4935 = vld [vmem:[%s4934] sm:$0xff]
        %v4936 = vld [vmem:[%s4934 + $0x8] sm:$0xff]
        %v4937 = vunpack.c.l.bf16 %v4935
        %v4938 = vunpack.c.h.bf16 %v4935
        %v4939 = vunpack.c.l.bf16 %v4936
        %v4940 = vunpack.c.h.bf16 %v4936
        %v4941 = vpack.c.bf16 %v4932, %v4932
        %v4942 = vld [vmem:[#allocation4] sm:$0xff]
        %v4943 = vld [vmem:[#allocation4 + $0x8] sm:$0xff]
        %v4944 = vld [vmem:[#allocation4 + $0x10] sm:$0xff]
        %v4945 = vld [vmem:[#allocation4 + $0x18] sm:$0xff]
        %v4946 = vld [vmem:[#allocation4 + $0x20] sm:$0xff]
        %v4947 = vld [vmem:[#allocation4 + $0x28] sm:$0xff]
        %v4948 = vld [vmem:[#allocation4 + $0x30] sm:$0xff]
        %v4949 = vld [vmem:[#allocation4 + $0x38] sm:$0xff]
        %v4950 = vld [vmem:[#allocation4 + $0x40] sm:$0xff]
        %v4951 = vld [vmem:[#allocation4 + $0x48] sm:$0xff]
        %v4952 = vld [vmem:[#allocation4 + $0x50] sm:$0xff]
        %v4953 = vld [vmem:[#allocation4 + $0x58] sm:$0xff]
        %v4954 = vld [vmem:[#allocation4 + $0x60] sm:$0xff]
        %v4955 = vld [vmem:[#allocation4 + $0x68] sm:$0xff]
        %v4956 = vld [vmem:[#allocation4 + $0x70] sm:$0xff]
        %v4957 = vld [vmem:[#allocation4 + $0x78] sm:$0xff]
        %v4958 = vld [vmem:[#allocation4 + $0x80] sm:$0xff]
        %v4959 = vld [vmem:[#allocation4 + $0x88] sm:$0xff]
        %v4960 = vld [vmem:[#allocation4 + $0x90] sm:$0xff]
        %v4961 = vld [vmem:[#allocation4 + $0x98] sm:$0xff]
        %v4962 = vld [vmem:[#allocation4 + $0xa0] sm:$0xff]
        %v4963 = vld [vmem:[#allocation4 + $0xa8] sm:$0xff]
        %v4964 = vld [vmem:[#allocation4 + $0xb0] sm:$0xff]
        %v4965 = vld [vmem:[#allocation4 + $0xb8] sm:$0xff]
        %v4966 = vld [vmem:[#allocation4 + $0xc0] sm:$0xff]
        %v4967 = vld [vmem:[#allocation4 + $0xc8] sm:$0xff]
        %v4968 = vld [vmem:[#allocation4 + $0xd0] sm:$0xff]
        %v4969 = vld [vmem:[#allocation4 + $0xd8] sm:$0xff]
        %v4970 = vld [vmem:[#allocation4 + $0xe0] sm:$0xff]
        %v4971 = vld [vmem:[#allocation4 + $0xe8] sm:$0xff]
        %v4972 = vld [vmem:[#allocation4 + $0xf0] sm:$0xff]
        %v4973 = vld [vmem:[#allocation4 + $0xf8] sm:$0xff]
        %v5006 = vunpack.c.l.b16 %v4942
        %v5007 = vunpack.c.h.b16 %v4942
        %v5008 = vunpack.c.l.b16 %v4943
        %v5009 = vunpack.c.h.b16 %v4943
        %v5010 = vunpack.c.l.b16 %v4944
        %v5011 = vunpack.c.h.b16 %v4944
        %v5012 = vunpack.c.l.b16 %v4945
        %v5013 = vunpack.c.h.b16 %v4945
        %v5014 = vunpack.c.l.b16 %v4946
        %v5015 = vunpack.c.h.b16 %v4946
        %v5016 = vunpack.c.l.b16 %v4947
        %v5017 = vunpack.c.h.b16 %v4947
        %v5018 = vunpack.c.l.b16 %v4948
        %v5019 = vunpack.c.h.b16 %v4948
        %v5020 = vunpack.c.l.b16 %v4949
        %v5021 = vunpack.c.h.b16 %v4949
        %v5022 = vunpack.c.l.b16 %v4950
        %v5023 = vunpack.c.h.b16 %v4950
        %v5024 = vunpack.c.l.b16 %v4951
        %v5025 = vunpack.c.h.b16 %v4951
        %v5026 = vunpack.c.l.b16 %v4952
        %v5027 = vunpack.c.h.b16 %v4952
        %v5028 = vunpack.c.l.b16 %v4953
        %v5029 = vunpack.c.h.b16 %v4953
        %v5030 = vunpack.c.l.b16 %v4954
        %v5031 = vunpack.c.h.b16 %v4954
        %v5032 = vunpack.c.l.b16 %v4955
        %v5033 = vunpack.c.h.b16 %v4955
        %v5034 = vunpack.c.l.b16 %v4956
        %v5035 = vunpack.c.h.b16 %v4956
        %v5036 = vunpack.c.l.b16 %v4957
        %v5037 = vunpack.c.h.b16 %v4957
        %v5038 = vunpack.c.l.b16 %v4958
        %v5039 = vunpack.c.h.b16 %v4958
        %v5040 = vunpack.c.l.b16 %v4959
        %v5041 = vunpack.c.h.b16 %v4959
        %v5042 = vunpack.c.l.b16 %v4960
        %v5043 = vunpack.c.h.b16 %v4960
        %v5044 = vunpack.c.l.b16 %v4961
        %v5045 = vunpack.c.h.b16 %v4961
        %v5046 = vunpack.c.l.b16 %v4962
        %v5047 = vunpack.c.h.b16 %v4962
        %v5048 = vunpack.c.l.b16 %v4963
        %v5049 = vunpack.c.h.b16 %v4963
        %v5050 = vunpack.c.l.b16 %v4964
        %v5051 = vunpack.c.h.b16 %v4964
        %v5052 = vunpack.c.l.b16 %v4965
        %v5053 = vunpack.c.h.b16 %v4965
        %v5054 = vunpack.c.l.b16 %v4966
        %v5055 = vunpack.c.h.b16 %v4966
        %v5056 = vunpack.c.l.b16 %v4967
        %v5057 = vunpack.c.h.b16 %v4967
        %v5058 = vunpack.c.l.b16 %v4968
        %v5059 = vunpack.c.h.b16 %v4968
        %v5060 = vunpack.c.l.b16 %v4969
        %v5061 = vunpack.c.h.b16 %v4969
        %v5062 = vunpack.c.l.b16 %v4970
        %v5063 = vunpack.c.h.b16 %v4970
        %v5064 = vunpack.c.l.b16 %v4971
        %v5065 = vunpack.c.h.b16 %v4971
        %v5066 = vunpack.c.l.b16 %v4972
        %v5067 = vunpack.c.h.b16 %v4972
        %v5068 = vunpack.c.l.b16 %v4973
        %v5069 = vunpack.c.h.b16 %v4973
        %v5070 = vpack.c.b16 %v5010, %v5006
        %v5071 = vpack.c.b16 %v5011, %v5007
        %v5072 = vpack.c.b16 %v5012, %v5008
        %v5073 = vpack.c.b16 %v5013, %v5009
        %v5074 = vpack.c.b16 %v5018, %v5014
        %v5075 = vpack.c.b16 %v5019, %v5015
        %v5076 = vpack.c.b16 %v5020, %v5016
        %v5077 = vpack.c.b16 %v5021, %v5017
        %v5078 = vpack.c.b16 %v5026, %v5022
        %v5079 = vpack.c.b16 %v5027, %v5023
        %v5080 = vpack.c.b16 %v5028, %v5024
        %v5081 = vpack.c.b16 %v5029, %v5025
        %v5082 = vpack.c.b16 %v5034, %v5030
        %v5083 = vpack.c.b16 %v5035, %v5031
        %v5084 = vpack.c.b16 %v5036, %v5032
        %v5085 = vpack.c.b16 %v5037, %v5033
        %v5086 = vpack.c.b16 %v5042, %v5038
        %v5087 = vpack.c.b16 %v5043, %v5039
        %v5088 = vpack.c.b16 %v5044, %v5040
        %v5089 = vpack.c.b16 %v5045, %v5041
        %v5090 = vpack.c.b16 %v5050, %v5046
        %v5091 = vpack.c.b16 %v5051, %v5047
        %v5092 = vpack.c.b16 %v5052, %v5048
        %v5093 = vpack.c.b16 %v5053, %v5049
        %v5094 = vpack.c.b16 %v5058, %v5054
        %v5095 = vpack.c.b16 %v5059, %v5055
        %v5096 = vpack.c.b16 %v5060, %v5056
        %v5097 = vpack.c.b16 %v5061, %v5057
        %v5098 = vpack.c.b16 %v5066, %v5062
        %v5099 = vpack.c.b16 %v5067, %v5063
        %v5100 = vpack.c.b16 %v5068, %v5064
        %v5101 = vpack.c.b16 %v5069, %v5065
        %5134 = vmatprep.subr.bf16.mxu0 %v5099
        %5135 = vmatpush1.bf16.msra.mxu0 %v5098
        %5136 = vmatprep.subr.bf16.mxu0 %v5095
        %5137 = vmatpush1.bf16.msra.mxu0 %v5094
        %5138 = vmatprep.subr.bf16.mxu0 %v5091
        %5139 = vmatpush1.bf16.msra.mxu0 %v5090
        %5140 = vmatprep.subr.bf16.mxu0 %v5087
        %5141 = vmatpush1.bf16.msra.mxu0 %v5086
        %5142 = vmatprep.subr.bf16.mxu0 %v5083
        %5143 = vmatpush1.bf16.msra.mxu0 %v5082
        %5144 = vmatprep.subr.bf16.mxu0 %v5079
        %5145 = vmatpush1.bf16.msra.mxu0 %v5078
        %5146 = vmatprep.subr.bf16.mxu0 %v5075
        %5147 = vmatpush1.bf16.msra.mxu0 %v5074
        %5148 = vmatprep.subr.bf16.mxu0 %v5071
        %5149 = vmatpush1.bf16.msra.mxu0 %v5070
        %5150 = vmatprep.subr.bf16.mxu0 0
        %5151 = vmatpush2.bf16.msra.mxu0 0
        %5152 = vmatprep.subr.bf16.mxu0 0
        %5153 = vmatpush2.bf16.msra.mxu0 0
        %5154 = vmatprep.subr.bf16.mxu0 0
        %5155 = vmatpush2.bf16.msra.mxu0 0
        %5156 = vmatprep.subr.bf16.mxu0 0
        %5157 = vmatpush2.bf16.msra.mxu0 0
        %5158 = vmatprep.subr.bf16.mxu0 0
        %5159 = vmatpush2.bf16.msra.mxu0 0
        %5160 = vmatprep.subr.bf16.mxu0 0
        %5161 = vmatpush2.bf16.msra.mxu0 0
        %5162 = vmatprep.subr.bf16.mxu0 0
        %5163 = vmatpush2.bf16.msra.mxu0 0
        %5164 = vmatprep.subr.bf16.mxu0 0
        %5165 = vmatpush2.bf16.msra.mxu0 0
        %5166 = vmatprep.mubr.bf16.mxu0 0
        %5167 = vmatmul.mubr.bf16.gmra.mxu0 %v4941
        %v5168 = vpop.f32.mrf.mxu0
        %v5169 = vadd.f32 0.0, %v5168
        %v5170 = vpop.f32.mrf.mxu0
        %v5171 = vadd.f32 0.0, %v5170
        %v5172 = vpop.f32.mrf.mxu0
        %v5173 = vpop.f32.mrf.mxu0
        %5174 = vdwg.mxu0
        %5175 = vmatprep.subr.bf16.mxu0 %v5101
        %5176 = vmatpush1.bf16.msra.mxu0 %v5100
        %5177 = vmatprep.subr.bf16.mxu0 %v5097
        %5178 = vmatpush1.bf16.msra.mxu0 %v5096
        %5179 = vmatprep.subr.bf16.mxu0 %v5093
        %5180 = vmatpush1.bf16.msra.mxu0 %v5092
        %5181 = vmatprep.subr.bf16.mxu0 %v5089
        %5182 = vmatpush1.bf16.msra.mxu0 %v5088
        %5183 = vmatprep.subr.bf16.mxu0 %v5085
        %5184 = vmatpush1.bf16.msra.mxu0 %v5084
        %5185 = vmatprep.subr.bf16.mxu0 %v5081
        %5186 = vmatpush1.bf16.msra.mxu0 %v5080
        %5187 = vmatprep.subr.bf16.mxu0 %v5077
        %5188 = vmatpush1.bf16.msra.mxu0 %v5076
        %5189 = vmatprep.subr.bf16.mxu0 %v5073
        %5190 = vmatpush1.bf16.msra.mxu0 %v5072
        %5191 = vmatprep.subr.bf16.mxu0 0
        %5192 = vmatpush2.bf16.msra.mxu0 0
        %5193 = vmatprep.subr.bf16.mxu0 0
        %5194 = vmatpush2.bf16.msra.mxu0 0
        %5195 = vmatprep.subr.bf16.mxu0 0
        %5196 = vmatpush2.bf16.msra.mxu0 0
        %5197 = vmatprep.subr.bf16.mxu0 0
        %5198 = vmatpush2.bf16.msra.mxu0 0
        %5199 = vmatprep.subr.bf16.mxu0 0
        %5200 = vmatpush2.bf16.msra.mxu0 0
        %5201 = vmatprep.subr.bf16.mxu0 0
        %5202 = vmatpush2.bf16.msra.mxu0 0
        %5203 = vmatprep.subr.bf16.mxu0 0
        %5204 = vmatpush2.bf16.msra.mxu0 0
        %5205 = vmatprep.subr.bf16.mxu0 0
        %5206 = vmatpush2.bf16.msra.mxu0 0
        %5207 = vmatprep.mubr.bf16.mxu0 0
        %5208 = vmatmul.mubr.bf16.gmra.mxu0 %v4941
        %v5209 = vpop.f32.mrf.mxu0
        %v5210 = vadd.f32 0.0, %v5209
        %v5211 = vpop.f32.mrf.mxu0
        %v5212 = vadd.f32 0.0, %v5211
        %v5213 = vpop.f32.mrf.mxu0
        %v5214 = vpop.f32.mrf.mxu0
        %5215 = vdwg.mxu0
        %v5216 = vadd.f32 %v4937, %v5169
        %v5217 = vadd.f32 %v4938, %v5171
        %v5218 = vadd.f32 %v4939, %v5210
        %v5219 = vadd.f32 %v4940, %v5212
        %v5220 = vxor.u32 %v5216, 2147483648
        %v5221 = vmul.f32 %v5220, 1.442695
        %v5222 = vpow.pop %v5221
        %v5223 = vadd.f32 %v5222, 1.0
        %v5224 = vrcp.pop %v5223
        %v5225 = vmul.f32 1.0, %v5224
        %v5226 = vxor.u32 %v5217, 2147483648
        %v5227 = vmul.f32 %v5226, 1.442695
        %v5228 = vpow.pop %v5227
        %v5229 = vadd.f32 %v5228, 1.0
        %v5230 = vrcp.pop %v5229
        %v5231 = vmul.f32 1.0, %v5230
        %v5232 = vtanh.pop %v5218
        %v5233 = vxor.u32 %v5219, 2147483648
        %v5234 = vmul.f32 %v5233, 1.442695
        %v5235 = vpow.pop %v5234
        %v5236 = vadd.f32 %v5235, 1.0
        %v5237 = vrcp.pop %v5236
        %v5238 = vmul.f32 1.0, %v5237
        %v5239 = vmul.f32 %v5231, %v4933
        %v5240 = vmul.f32 %v5225, %v5232
        %v5241 = vadd.f32 %v5239, %v5240
        %v5242 = vtanh.pop %v5241
        %v5243 = vmul.f32 %v5238, %v5242
        %5244 = vst [vmem:[#allocation3] sm:$0xff] %v5241
        %5245 = vst [vmem:[#allocation2] sm:$0xff] %v5243
        %v5246 = vpack.c.bf16 %v5243, %v5243
        %s5247 = scalar_lea.vmem %s353, 56 [#allocation7]
        %5248 = vst [vmem:[%s5247] sm:$0xf] %v5246
        %v5249 = vld [vmem:[#allocation2] sm:$0xff]
        %v5250 = vld [vmem:[#allocation3] sm:$0xff]
        %s5251 = scalar_lea.vmem %s326, 240 [#allocation6]
        %v5252 = vld [vmem:[%s5251] sm:$0xff]
        %v5253 = vld [vmem:[%s5251 + $0x8] sm:$0xff]
        %v5254 = vunpack.c.l.bf16 %v5252
        %v5255 = vunpack.c.h.bf16 %v5252
        %v5256 = vunpack.c.l.bf16 %v5253
        %v5257 = vunpack.c.h.bf16 %v5253
        %v5258 = vpack.c.bf16 %v5249, %v5249
        %v5259 = vld [vmem:[#allocation4] sm:$0xff]
        %v5260 = vld [vmem:[#allocation4 + $0x8] sm:$0xff]
        %v5261 = vld [vmem:[#allocation4 + $0x10] sm:$0xff]
        %v5262 = vld [vmem:[#allocation4 + $0x18] sm:$0xff]
        %v5263 = vld [vmem:[#allocation4 + $0x20] sm:$0xff]
        %v5264 = vld [vmem:[#allocation4 + $0x28] sm:$0xff]
        %v5265 = vld [vmem:[#allocation4 + $0x30] sm:$0xff]
        %v5266 = vld [vmem:[#allocation4 + $0x38] sm:$0xff]
        %v5267 = vld [vmem:[#allocation4 + $0x40] sm:$0xff]
        %v5268 = vld [vmem:[#allocation4 + $0x48] sm:$0xff]
        %v5269 = vld [vmem:[#allocation4 + $0x50] sm:$0xff]
        %v5270 = vld [vmem:[#allocation4 + $0x58] sm:$0xff]
        %v5271 = vld [vmem:[#allocation4 + $0x60] sm:$0xff]
        %v5272 = vld [vmem:[#allocation4 + $0x68] sm:$0xff]
        %v5273 = vld [vmem:[#allocation4 + $0x70] sm:$0xff]
        %v5274 = vld [vmem:[#allocation4 + $0x78] sm:$0xff]
        %v5275 = vld [vmem:[#allocation4 + $0x80] sm:$0xff]
        %v5276 = vld [vmem:[#allocation4 + $0x88] sm:$0xff]
        %v5277 = vld [vmem:[#allocation4 + $0x90] sm:$0xff]
        %v5278 = vld [vmem:[#allocation4 + $0x98] sm:$0xff]
        %v5279 = vld [vmem:[#allocation4 + $0xa0] sm:$0xff]
        %v5280 = vld [vmem:[#allocation4 + $0xa8] sm:$0xff]
        %v5281 = vld [vmem:[#allocation4 + $0xb0] sm:$0xff]
        %v5282 = vld [vmem:[#allocation4 + $0xb8] sm:$0xff]
        %v5283 = vld [vmem:[#allocation4 + $0xc0] sm:$0xff]
        %v5284 = vld [vmem:[#allocation4 + $0xc8] sm:$0xff]
        %v5285 = vld [vmem:[#allocation4 + $0xd0] sm:$0xff]
        %v5286 = vld [vmem:[#allocation4 + $0xd8] sm:$0xff]
        %v5287 = vld [vmem:[#allocation4 + $0xe0] sm:$0xff]
        %v5288 = vld [vmem:[#allocation4 + $0xe8] sm:$0xff]
        %v5289 = vld [vmem:[#allocation4 + $0xf0] sm:$0xff]
        %v5290 = vld [vmem:[#allocation4 + $0xf8] sm:$0xff]
        %v5323 = vunpack.c.l.b16 %v5259
        %v5324 = vunpack.c.h.b16 %v5259
        %v5325 = vunpack.c.l.b16 %v5260
        %v5326 = vunpack.c.h.b16 %v5260
        %v5327 = vunpack.c.l.b16 %v5261
        %v5328 = vunpack.c.h.b16 %v5261
        %v5329 = vunpack.c.l.b16 %v5262
        %v5330 = vunpack.c.h.b16 %v5262
        %v5331 = vunpack.c.l.b16 %v5263
        %v5332 = vunpack.c.h.b16 %v5263
        %v5333 = vunpack.c.l.b16 %v5264
        %v5334 = vunpack.c.h.b16 %v5264
        %v5335 = vunpack.c.l.b16 %v5265
        %v5336 = vunpack.c.h.b16 %v5265
        %v5337 = vunpack.c.l.b16 %v5266
        %v5338 = vunpack.c.h.b16 %v5266
        %v5339 = vunpack.c.l.b16 %v5267
        %v5340 = vunpack.c.h.b16 %v5267
        %v5341 = vunpack.c.l.b16 %v5268
        %v5342 = vunpack.c.h.b16 %v5268
        %v5343 = vunpack.c.l.b16 %v5269
        %v5344 = vunpack.c.h.b16 %v5269
        %v5345 = vunpack.c.l.b16 %v5270
        %v5346 = vunpack.c.h.b16 %v5270
        %v5347 = vunpack.c.l.b16 %v5271
        %v5348 = vunpack.c.h.b16 %v5271
        %v5349 = vunpack.c.l.b16 %v5272
        %v5350 = vunpack.c.h.b16 %v5272
        %v5351 = vunpack.c.l.b16 %v5273
        %v5352 = vunpack.c.h.b16 %v5273
        %v5353 = vunpack.c.l.b16 %v5274
        %v5354 = vunpack.c.h.b16 %v5274
        %v5355 = vunpack.c.l.b16 %v5275
        %v5356 = vunpack.c.h.b16 %v5275
        %v5357 = vunpack.c.l.b16 %v5276
        %v5358 = vunpack.c.h.b16 %v5276
        %v5359 = vunpack.c.l.b16 %v5277
        %v5360 = vunpack.c.h.b16 %v5277
        %v5361 = vunpack.c.l.b16 %v5278
        %v5362 = vunpack.c.h.b16 %v5278
        %v5363 = vunpack.c.l.b16 %v5279
        %v5364 = vunpack.c.h.b16 %v5279
        %v5365 = vunpack.c.l.b16 %v5280
        %v5366 = vunpack.c.h.b16 %v5280
        %v5367 = vunpack.c.l.b16 %v5281
        %v5368 = vunpack.c.h.b16 %v5281
        %v5369 = vunpack.c.l.b16 %v5282
        %v5370 = vunpack.c.h.b16 %v5282
        %v5371 = vunpack.c.l.b16 %v5283
        %v5372 = vunpack.c.h.b16 %v5283
        %v5373 = vunpack.c.l.b16 %v5284
        %v5374 = vunpack.c.h.b16 %v5284
        %v5375 = vunpack.c.l.b16 %v5285
        %v5376 = vunpack.c.h.b16 %v5285
        %v5377 = vunpack.c.l.b16 %v5286
        %v5378 = vunpack.c.h.b16 %v5286
        %v5379 = vunpack.c.l.b16 %v5287
        %v5380 = vunpack.c.h.b16 %v5287
        %v5381 = vunpack.c.l.b16 %v5288
        %v5382 = vunpack.c.h.b16 %v5288
        %v5383 = vunpack.c.l.b16 %v5289
        %v5384 = vunpack.c.h.b16 %v5289
        %v5385 = vunpack.c.l.b16 %v5290
        %v5386 = vunpack.c.h.b16 %v5290
        %v5387 = vpack.c.b16 %v5327, %v5323
        %v5388 = vpack.c.b16 %v5328, %v5324
        %v5389 = vpack.c.b16 %v5329, %v5325
        %v5390 = vpack.c.b16 %v5330, %v5326
        %v5391 = vpack.c.b16 %v5335, %v5331
        %v5392 = vpack.c.b16 %v5336, %v5332
        %v5393 = vpack.c.b16 %v5337, %v5333
        %v5394 = vpack.c.b16 %v5338, %v5334
        %v5395 = vpack.c.b16 %v5343, %v5339
        %v5396 = vpack.c.b16 %v5344, %v5340
        %v5397 = vpack.c.b16 %v5345, %v5341
        %v5398 = vpack.c.b16 %v5346, %v5342
        %v5399 = vpack.c.b16 %v5351, %v5347
        %v5400 = vpack.c.b16 %v5352, %v5348
        %v5401 = vpack.c.b16 %v5353, %v5349
        %v5402 = vpack.c.b16 %v5354, %v5350
        %v5403 = vpack.c.b16 %v5359, %v5355
        %v5404 = vpack.c.b16 %v5360, %v5356
        %v5405 = vpack.c.b16 %v5361, %v5357
        %v5406 = vpack.c.b16 %v5362, %v5358
        %v5407 = vpack.c.b16 %v5367, %v5363
        %v5408 = vpack.c.b16 %v5368, %v5364
        %v5409 = vpack.c.b16 %v5369, %v5365
        %v5410 = vpack.c.b16 %v5370, %v5366
        %v5411 = vpack.c.b16 %v5375, %v5371
        %v5412 = vpack.c.b16 %v5376, %v5372
        %v5413 = vpack.c.b16 %v5377, %v5373
        %v5414 = vpack.c.b16 %v5378, %v5374
        %v5415 = vpack.c.b16 %v5383, %v5379
        %v5416 = vpack.c.b16 %v5384, %v5380
        %v5417 = vpack.c.b16 %v5385, %v5381
        %v5418 = vpack.c.b16 %v5386, %v5382
        %5451 = vmatprep.subr.bf16.mxu0 %v5416
        %5452 = vmatpush1.bf16.msra.mxu0 %v5415
        %5453 = vmatprep.subr.bf16.mxu0 %v5412
        %5454 = vmatpush1.bf16.msra.mxu0 %v5411
        %5455 = vmatprep.subr.bf16.mxu0 %v5408
        %5456 = vmatpush1.bf16.msra.mxu0 %v5407
        %5457 = vmatprep.subr.bf16.mxu0 %v5404
        %5458 = vmatpush1.bf16.msra.mxu0 %v5403
        %5459 = vmatprep.subr.bf16.mxu0 %v5400
        %5460 = vmatpush1.bf16.msra.mxu0 %v5399
        %5461 = vmatprep.subr.bf16.mxu0 %v5396
        %5462 = vmatpush1.bf16.msra.mxu0 %v5395
        %5463 = vmatprep.subr.bf16.mxu0 %v5392
        %5464 = vmatpush1.bf16.msra.mxu0 %v5391
        %5465 = vmatprep.subr.bf16.mxu0 %v5388
        %5466 = vmatpush1.bf16.msra.mxu0 %v5387
        %5467 = vmatprep.subr.bf16.mxu0 0
        %5468 = vmatpush2.bf16.msra.mxu0 0
        %5469 = vmatprep.subr.bf16.mxu0 0
        %5470 = vmatpush2.bf16.msra.mxu0 0
        %5471 = vmatprep.subr.bf16.mxu0 0
        %5472 = vmatpush2.bf16.msra.mxu0 0
        %5473 = vmatprep.subr.bf16.mxu0 0
        %5474 = vmatpush2.bf16.msra.mxu0 0
        %5475 = vmatprep.subr.bf16.mxu0 0
        %5476 = vmatpush2.bf16.msra.mxu0 0
        %5477 = vmatprep.subr.bf16.mxu0 0
        %5478 = vmatpush2.bf16.msra.mxu0 0
        %5479 = vmatprep.subr.bf16.mxu0 0
        %5480 = vmatpush2.bf16.msra.mxu0 0
        %5481 = vmatprep.subr.bf16.mxu0 0
        %5482 = vmatpush2.bf16.msra.mxu0 0
        %5483 = vmatprep.mubr.bf16.mxu0 0
        %5484 = vmatmul.mubr.bf16.gmra.mxu0 %v5258
        %v5485 = vpop.f32.mrf.mxu0
        %v5486 = vadd.f32 0.0, %v5485
        %v5487 = vpop.f32.mrf.mxu0
        %v5488 = vadd.f32 0.0, %v5487
        %v5489 = vpop.f32.mrf.mxu0
        %v5490 = vpop.f32.mrf.mxu0
        %5491 = vdwg.mxu0
        %5492 = vmatprep.subr.bf16.mxu0 %v5418
        %5493 = vmatpush1.bf16.msra.mxu0 %v5417
        %5494 = vmatprep.subr.bf16.mxu0 %v5414
        %5495 = vmatpush1.bf16.msra.mxu0 %v5413
        %5496 = vmatprep.subr.bf16.mxu0 %v5410
        %5497 = vmatpush1.bf16.msra.mxu0 %v5409
        %5498 = vmatprep.subr.bf16.mxu0 %v5406
        %5499 = vmatpush1.bf16.msra.mxu0 %v5405
        %5500 = vmatprep.subr.bf16.mxu0 %v5402
        %5501 = vmatpush1.bf16.msra.mxu0 %v5401
        %5502 = vmatprep.subr.bf16.mxu0 %v5398
        %5503 = vmatpush1.bf16.msra.mxu0 %v5397
        %5504 = vmatprep.subr.bf16.mxu0 %v5394
        %5505 = vmatpush1.bf16.msra.mxu0 %v5393
        %5506 = vmatprep.subr.bf16.mxu0 %v5390
        %5507 = vmatpush1.bf16.msra.mxu0 %v5389
        %5508 = vmatprep.subr.bf16.mxu0 0
        %5509 = vmatpush2.bf16.msra.mxu0 0
        %5510 = vmatprep.subr.bf16.mxu0 0
        %5511 = vmatpush2.bf16.msra.mxu0 0
        %5512 = vmatprep.subr.bf16.mxu0 0
        %5513 = vmatpush2.bf16.msra.mxu0 0
        %5514 = vmatprep.subr.bf16.mxu0 0
        %5515 = vmatpush2.bf16.msra.mxu0 0
        %5516 = vmatprep.subr.bf16.mxu0 0
        %5517 = vmatpush2.bf16.msra.mxu0 0
        %5518 = vmatprep.subr.bf16.mxu0 0
        %5519 = vmatpush2.bf16.msra.mxu0 0
        %5520 = vmatprep.subr.bf16.mxu0 0
        %5521 = vmatpush2.bf16.msra.mxu0 0
        %5522 = vmatprep.subr.bf16.mxu0 0
        %5523 = vmatpush2.bf16.msra.mxu0 0
        %5524 = vmatprep.mubr.bf16.mxu0 0
        %5525 = vmatmul.mubr.bf16.gmra.mxu0 %v5258
        %v5526 = vpop.f32.mrf.mxu0
        %v5527 = vadd.f32 0.0, %v5526
        %v5528 = vpop.f32.mrf.mxu0
        %v5529 = vadd.f32 0.0, %v5528
        %v5530 = vpop.f32.mrf.mxu0
        %v5531 = vpop.f32.mrf.mxu0
        %5532 = vdwg.mxu0
        %v5533 = vadd.f32 %v5254, %v5486
        %v5534 = vadd.f32 %v5255, %v5488
        %v5535 = vadd.f32 %v5256, %v5527
        %v5536 = vadd.f32 %v5257, %v5529
        %v5537 = vxor.u32 %v5533, 2147483648
        %v5538 = vmul.f32 %v5537, 1.442695
        %v5539 = vpow.pop %v5538
        %v5540 = vadd.f32 %v5539, 1.0
        %v5541 = vrcp.pop %v5540
        %v5542 = vmul.f32 1.0, %v5541
        %v5543 = vxor.u32 %v5534, 2147483648
        %v5544 = vmul.f32 %v5543, 1.442695
        %v5545 = vpow.pop %v5544
        %v5546 = vadd.f32 %v5545, 1.0
        %v5547 = vrcp.pop %v5546
        %v5548 = vmul.f32 1.0, %v5547
        %v5549 = vtanh.pop %v5535
        %v5550 = vxor.u32 %v5536, 2147483648
        %v5551 = vmul.f32 %v5550, 1.442695
        %v5552 = vpow.pop %v5551
        %v5553 = vadd.f32 %v5552, 1.0
        %v5554 = vrcp.pop %v5553
        %v5555 = vmul.f32 1.0, %v5554
        %v5556 = vmul.f32 %v5548, %v5250
        %v5557 = vmul.f32 %v5542, %v5549
        %v5558 = vadd.f32 %v5556, %v5557
        %v5559 = vtanh.pop %v5558
        %v5560 = vmul.f32 %v5555, %v5559
        %5561 = vst [vmem:[#allocation3] sm:$0xff] %v5558
        %5562 = vst [vmem:[#allocation2] sm:$0xff] %v5560
        %v5563 = vpack.c.bf16 %v5560, %v5560
        %s5564 = scalar_lea.vmem %s353, 60 [#allocation7]
        %5565 = vst [vmem:[%s5564] sm:$0xf] %v5563
        // Predicated region
        $region94: #{rnn_model_forward.4} parent=50 // pred_check
          %p5566 = pneg %p379
        $region95: #{rnn_model_forward.4} parent=50 // pred_check_branch
          %5568 = sbr.rel (%p5566) target = $region97
        $region96: #{rnn_model_forward.4} parent=50 // pred_region
          %v5569 = vld [vmem:[#allocation2] sm:$0xff]
          %5570 = vst [vmem:[%s360] sm:$0xff] %v5569
          %v5571 = vld [vmem:[#allocation3] sm:$0xff]
          %5572 = vst [vmem:[%s367] sm:$0xff] %v5571
        $region97: #{rnn_model_forward.4} parent=50 // pred_fallthru
          _
        %s5573 = sand.u32 %s126, 1
        %s5574 = sand.u32 %s126, 1
        %s5575 = smul.addr %s5574, 64
        %s5576 = scalar_lea.vmem [#allocation7], %s5575
        %s5577 = sand.u32 %s152, 1
        %s5578 = scalar_lea.sflag [#allocation9], %s5577
        %s5579 = sand.u32 %s152, 1
        %s5580 = smul.addr %s5579, 8
        %s5581 = scalar_lea.vmem [#allocation8], %s5580
        %s5582 = sand.u32 %s178, 1
        %s5583 = scalar_lea.sflag [#allocation11], %s5582
        %s5584 = sand.u32 %s178, 1
        %s5585 = smul.addr %s5584, 8
        %s5586 = scalar_lea.vmem [#allocation10], %s5585
        // Predicated region
        $region98: #{rnn_model_forward.4} parent=50 // pred_check
          %p5587 = pneg %p136
        $region99: #{rnn_model_forward.4} parent=50 // pred_check_branch
          %5589 = sbr.rel (%p5587) target = $region101
        $region100: #{rnn_model_forward.4} parent=50 // pred_region
          %s5590 = smul.u32 16, %s29
          %s5591 = smul.addr %s5590, 2
          %s5592 = sadd.s32 %s28, %s5591
          %s5593 = smul.addr %s5592, 4
          %s5594 = scalar_lea.vmem %s4, %s5593
          // Predicated region
          $region102: #{rnn_model_forward.4} parent=100 // pred_check
            _
          $region103: #{rnn_model_forward.4} parent=100 // pred_check_branch
            %5596 = sbr.rel (0) target = $region105
          $region104: #{rnn_model_forward.4} parent=100 // pred_region
            // Predicated region
            $region106: #{rnn_model_forward.4} parent=104 // pred_check
              _
            $region107: #{rnn_model_forward.4} parent=104 // pred_check_branch
              %5598 = sbr.rel target = $region109
            $region108: #{rnn_model_forward.4} parent=104 // pred_region
              // Predicated region
              $region121: #{rnn_model_forward.4} parent=108 // pred_check
                _
              $region122: #{rnn_model_forward.4} parent=108 // pred_check_branch
                %5644 = sbr.rel (0) target = $region124
              $region123: #{rnn_model_forward.4} parent=108 // pred_region
                loop: start=0, step=1, limit=1
                $region125: #{rnn_model_forward.4} parent=123 // loop_pre_header
                  _
                $region126: #{rnn_model_forward.4} parent=123 // loop_header
                  %s5646 = sphi 0, %s5650
                  %p5647 = scmp.ge.s32.totalorder %s5646, 1
                  %s5651 = sphi %s5576, %s5576
                  %s5652 = sphi %s5594, %s5594
                $region127: #{rnn_model_forward.4} parent=123 // loop_header_branch
                  %5649 = sbr.rel (%p5647) target = $region131
                $region128: #{rnn_model_forward.4} parent=123 // loop_body
                  _
                $region129: #{rnn_model_forward.4} parent=123 // loop_footer
                  %s5650 = sadd.s32 1, %s5646
                $region130: #{rnn_model_forward.4} parent=123 // loop_footer_branch
                  %5645 = sbr.rel target = $region126
                $region131: #{rnn_model_forward.4} parent=123 // loop_exit
                  _
                %s5654 = ssub.s32 16, 1
                loop: start=0, step=1, limit=1
                $region132: #{rnn_model_forward.4} parent=123 // loop_pre_header
                  _
                $region133: #{rnn_model_forward.4} parent=123 // loop_header
                  %s5656 = sphi 0, %s5660
                  %p5657 = scmp.ge.s32.totalorder %s5656, 1
                  %s5661 = sphi %s5576, %s5576
                  %s5662 = sphi %s5594, %s5594
                $region134: #{rnn_model_forward.4} parent=123 // loop_header_branch
                  %5659 = sbr.rel (%p5657) target = $region138
                $region135: #{rnn_model_forward.4} parent=123 // loop_body
                  %v5663 = vld [vmem:[%s5661] sm:%s5654]
                  %5664 = vst [vmem:[%s5662] sm:%s5654] %v5663
                  %v5665 = vld [vmem:[%s5661 + $0x4] sm:%s5654]
                  %5666 = vst [vmem:[%s5662 + $0x8] sm:%s5654] %v5665
                  %v5667 = vld [vmem:[%s5661 + $0x8] sm:%s5654]
                  %5668 = vst [vmem:[%s5662 + $0x10] sm:%s5654] %v5667
                  %v5669 = vld [vmem:[%s5661 + $0xc] sm:%s5654]
                  %5670 = vst [vmem:[%s5662 + $0x18] sm:%s5654] %v5669
                  %v5671 = vld [vmem:[%s5661 + $0x10] sm:%s5654]
                  %5672 = vst [vmem:[%s5662 + $0x20] sm:%s5654] %v5671
                  %v5673 = vld [vmem:[%s5661 + $0x14] sm:%s5654]
                  %5674 = vst [vmem:[%s5662 + $0x28] sm:%s5654] %v5673
                  %v5675 = vld [vmem:[%s5661 + $0x18] sm:%s5654]
                  %5676 = vst [vmem:[%s5662 + $0x30] sm:%s5654] %v5675
                  %v5677 = vld [vmem:[%s5661 + $0x1c] sm:%s5654]
                  %5678 = vst [vmem:[%s5662 + $0x38] sm:%s5654] %v5677
                  %v5679 = vld [vmem:[%s5661 + $0x20] sm:%s5654]
                  %5680 = vst [vmem:[%s5662 + $0x40] sm:%s5654] %v5679
                  %v5681 = vld [vmem:[%s5661 + $0x24] sm:%s5654]
                  %5682 = vst [vmem:[%s5662 + $0x48] sm:%s5654] %v5681
                  %v5683 = vld [vmem:[%s5661 + $0x28] sm:%s5654]
                  %5684 = vst [vmem:[%s5662 + $0x50] sm:%s5654] %v5683
                  %v5685 = vld [vmem:[%s5661 + $0x2c] sm:%s5654]
                  %5686 = vst [vmem:[%s5662 + $0x58] sm:%s5654] %v5685
                  %v5687 = vld [vmem:[%s5661 + $0x30] sm:%s5654]
                  %5688 = vst [vmem:[%s5662 + $0x60] sm:%s5654] %v5687
                  %v5689 = vld [vmem:[%s5661 + $0x34] sm:%s5654]
                  %5690 = vst [vmem:[%s5662 + $0x68] sm:%s5654] %v5689
                  %v5691 = vld [vmem:[%s5661 + $0x38] sm:%s5654]
                  %5692 = vst [vmem:[%s5662 + $0x70] sm:%s5654] %v5691
                  %v5693 = vld [vmem:[%s5661 + $0x3c] sm:%s5654]
                  %5694 = vst [vmem:[%s5662 + $0x78] sm:%s5654] %v5693
                $region136: #{rnn_model_forward.4} parent=123 // loop_footer
                  %s5660 = sadd.s32 1, %s5656
                $region137: #{rnn_model_forward.4} parent=123 // loop_footer_branch
                  %5655 = sbr.rel target = $region133
                $region138: #{rnn_model_forward.4} parent=123 // loop_exit
                  _
              $region124: #{rnn_model_forward.4} parent=108 // pred_fallthru
                _
            $region109: #{rnn_model_forward.4} parent=104 // pred_fallthru
              _
            // Predicated region
            $region110: #{rnn_model_forward.4} parent=104 // pred_check
              _
            $region111: #{rnn_model_forward.4} parent=104 // pred_check_branch
              %5600 = sbr.rel (0) target = $region113
            $region112: #{rnn_model_forward.4} parent=104 // pred_region
              %s5602 = ssub.s32 16, 1
              loop: start=0, step=1, limit=1
              $region114: #{rnn_model_forward.4} parent=112 // loop_pre_header
                _
              $region115: #{rnn_model_forward.4} parent=112 // loop_header
                %s5604 = sphi 0, %s5608
                %p5605 = scmp.ge.s32.totalorder %s5604, 1
                %s5609 = sphi %s5576, %s5576
                %s5610 = sphi %s5594, %s5594
              $region116: #{rnn_model_forward.4} parent=112 // loop_header_branch
                %5607 = sbr.rel (%p5605) target = $region120
              $region117: #{rnn_model_forward.4} parent=112 // loop_body
                %v5611 = vld [vmem:[%s5609] sm:%s5602]
                %5612 = vst [vmem:[%s5610] sm:%s5602] %v5611
                %v5613 = vld [vmem:[%s5609 + $0x4] sm:%s5602]
                %5614 = vst [vmem:[%s5610 + $0x8] sm:%s5602] %v5613
                %v5615 = vld [vmem:[%s5609 + $0x8] sm:%s5602]
                %5616 = vst [vmem:[%s5610 + $0x10] sm:%s5602] %v5615
                %v5617 = vld [vmem:[%s5609 + $0xc] sm:%s5602]
                %5618 = vst [vmem:[%s5610 + $0x18] sm:%s5602] %v5617
                %v5619 = vld [vmem:[%s5609 + $0x10] sm:%s5602]
                %5620 = vst [vmem:[%s5610 + $0x20] sm:%s5602] %v5619
                %v5621 = vld [vmem:[%s5609 + $0x14] sm:%s5602]
                %5622 = vst [vmem:[%s5610 + $0x28] sm:%s5602] %v5621
                %v5623 = vld [vmem:[%s5609 + $0x18] sm:%s5602]
                %5624 = vst [vmem:[%s5610 + $0x30] sm:%s5602] %v5623
                %v5625 = vld [vmem:[%s5609 + $0x1c] sm:%s5602]
                %5626 = vst [vmem:[%s5610 + $0x38] sm:%s5602] %v5625
                %v5627 = vld [vmem:[%s5609 + $0x20] sm:%s5602]
                %5628 = vst [vmem:[%s5610 + $0x40] sm:%s5602] %v5627
                %v5629 = vld [vmem:[%s5609 + $0x24] sm:%s5602]
                %5630 = vst [vmem:[%s5610 + $0x48] sm:%s5602] %v5629
                %v5631 = vld [vmem:[%s5609 + $0x28] sm:%s5602]
                %5632 = vst [vmem:[%s5610 + $0x50] sm:%s5602] %v5631
                %v5633 = vld [vmem:[%s5609 + $0x2c] sm:%s5602]
                %5634 = vst [vmem:[%s5610 + $0x58] sm:%s5602] %v5633
                %v5635 = vld [vmem:[%s5609 + $0x30] sm:%s5602]
                %5636 = vst [vmem:[%s5610 + $0x60] sm:%s5602] %v5635
                %v5637 = vld [vmem:[%s5609 + $0x34] sm:%s5602]
                %5638 = vst [vmem:[%s5610 + $0x68] sm:%s5602] %v5637
                %v5639 = vld [vmem:[%s5609 + $0x38] sm:%s5602]
                %5640 = vst [vmem:[%s5610 + $0x70] sm:%s5602] %v5639
                %v5641 = vld [vmem:[%s5609 + $0x3c] sm:%s5602]
                %5642 = vst [vmem:[%s5610 + $0x78] sm:%s5602] %v5641
              $region118: #{rnn_model_forward.4} parent=112 // loop_footer
                %s5608 = sadd.s32 1, %s5604
              $region119: #{rnn_model_forward.4} parent=112 // loop_footer_branch
                %5603 = sbr.rel target = $region115
              $region120: #{rnn_model_forward.4} parent=112 // loop_exit
                _
            $region113: #{rnn_model_forward.4} parent=104 // pred_fallthru
              _
          $region105: #{rnn_model_forward.4} parent=100 // pred_fallthru
            _
          %5695 = vnop
        $region101: #{rnn_model_forward.4} parent=50 // pred_fallthru
          _
        // Predicated region
        $region139: #{rnn_model_forward.4} parent=50 // pred_check
          %p5696 = pneg %p162
        $region140: #{rnn_model_forward.4} parent=50 // pred_check_branch
          %5698 = sbr.rel (%p5696) target = $region142
        $region141: #{rnn_model_forward.4} parent=50 // pred_region
          %s5700 = ssub.s32 128, 128
          %5701 = vsyncadd %s5578, %s5700
          %s5702 = smul.addr %s28, 128
          %s5703 = scalar_lea.hbm %s5, %s5702
          %s5705 = sshll.u32 %s5581, 4
          %s5706 = int_to_ptr.vmem [resolvable:$true] %s5705
          %5708 = dma.vmem_to_hbm [thread:$0]  %s5706, 128, %s5703, %s5578
        $region142: #{rnn_model_forward.4} parent=50 // pred_fallthru
          _
        // Predicated region
        $region143: #{rnn_model_forward.4} parent=50 // pred_check
          %p5709 = pneg %p188
        $region144: #{rnn_model_forward.4} parent=50 // pred_check_branch
          %5711 = sbr.rel (%p5709) target = $region146
        $region145: #{rnn_model_forward.4} parent=50 // pred_region
          %s5713 = ssub.s32 128, 128
          %5714 = vsyncadd %s5583, %s5713
          %s5715 = smul.addr %s28, 128
          %s5716 = scalar_lea.hbm %s6, %s5715
          %s5718 = sshll.u32 %s5586, 4
          %s5719 = int_to_ptr.vmem [resolvable:$true] %s5718
          %5721 = dma.vmem_to_hbm [thread:$0]  %s5719, 128, %s5716, %s5583
        $region146: #{rnn_model_forward.4} parent=50 // pred_fallthru
          _
      $region51: #{rnn_model_forward.4} parent=5 // pred_fallthru
        _
      %p5722 = scmp.le.s32.totalorder 2, %s19
      // Predicated region
      $region147: #{rnn_model_forward.4} parent=5 // pred_check
        %p5723 = pneg %p5722
      $region148: #{rnn_model_forward.4} parent=5 // pred_check_branch
        %5725 = sbr.rel (%p5723) target = $region150
      $region149: #{rnn_model_forward.4} parent=5 // pred_region
        %s5726 = ssub.s32 %s19, 2
        // Predicated region
        $region151: #{rnn_model_forward.4} parent=149 // pred_check
          %p5727 = pneg %p142
        $region152: #{rnn_model_forward.4} parent=149 // pred_check_branch
          %5729 = sbr.rel (%p5727) target = $region154
        $region153: #{rnn_model_forward.4} parent=149 // pred_region
          %s5730 = sand.u32 %s127, 1
          %s5731 = sand.u32 %s127, 1
          %s5732 = smul.addr %s5731, 64
          %s5733 = scalar_lea.vmem [#allocation7], %s5732
        $region154: #{rnn_model_forward.4} parent=149 // pred_fallthru
          _
        // Predicated region
        $region155: #{rnn_model_forward.4} parent=149 // pred_check
          %p5734 = pneg %p168
        $region156: #{rnn_model_forward.4} parent=149 // pred_check_branch
          %5736 = sbr.rel (%p5734) target = $region158
        $region157: #{rnn_model_forward.4} parent=149 // pred_region
          %s5737 = sand.u32 %s153, 1
          %s5738 = scalar_lea.sflag [#allocation9], %s5737
          %s5739 = sand.u32 %s153, 1
          %s5740 = smul.addr %s5739, 8
          %s5741 = scalar_lea.vmem [#allocation8], %s5740
          %5742 = dma.done %s5738, 128
        $region158: #{rnn_model_forward.4} parent=149 // pred_fallthru
          _
        // Predicated region
        $region159: #{rnn_model_forward.4} parent=149 // pred_check
          %p5743 = pneg %p194
        $region160: #{rnn_model_forward.4} parent=149 // pred_check_branch
          %5745 = sbr.rel (%p5743) target = $region162
        $region161: #{rnn_model_forward.4} parent=149 // pred_region
          %s5746 = sand.u32 %s179, 1
          %s5747 = scalar_lea.sflag [#allocation11], %s5746
          %s5748 = sand.u32 %s179, 1
          %s5749 = smul.addr %s5748, 8
          %s5750 = scalar_lea.vmem [#allocation10], %s5749
          %5751 = dma.done %s5747, 128
        $region162: #{rnn_model_forward.4} parent=149 // pred_fallthru
          _
      $region150: #{rnn_model_forward.4} parent=5 // pred_fallthru
        _
    $region6: #{rnn_model_forward.4} parent=1 // loop_footer
      %s23 = sadd.s32 1, %s19
    $region7: #{rnn_model_forward.4} parent=1 // loop_footer_branch
      %18 = sbr.rel target = $region3
    $region8: #{rnn_model_forward.4} parent=1 // loop_exit
      _
    %5752 = vsyncpa [#allocation9], 1
    %s5753 = scalar_lea.sflag [#allocation9], 1
    %5754 = vsyncpa %s5753, 1
    %5755 = vsyncpa [#allocation11], 1
    %s5756 = scalar_lea.sflag [#allocation11], 1
    %5757 = vsyncpa %s5756, 1
  %5758 = vsyncmov [#allocation5]
  %s5759 = vpop.sfrf %5758
  %p5760 = scmp.eq.s32.totalorder %s5759, 0
  %p5761 = pneg %p5760
  %5763 = shalt.err (%p5761)

</llo_original>
